<compile_context>
chip_gen: v7x
topology: tpu7x:2x2x1
jax: 0.10.0
libtpu: 0.0.40
codegen_flags: <defaults>
</compile_context>

<pallas_src>
import jax
import jax.numpy as jnp
from jax.experimental import pallas as pl
from jax.experimental.pallas import tpu as pltpu

# ------------------------------- static shapes --------------------------------
CH_PAD = 128                      # padded channel / FC lane width
IC1_PAD = 8                       # conv1 input channels padded 3 -> 8
IMG_H = IMG_W = 32                # required by the 64*5*5 flatten
KK = 5                            # conv kernel size

C1_OH = IMG_H - KK + 1            # 28
C1_OW = IMG_W - KK + 1            # 28
C1_PH = C1_OH // 2                # 14 pooled rows
C1_PW = C1_OW // 2                # 14 pooled cols
PATCH_K = 256                     # 25 taps * 8 ch = 200, zero padded to 256

STRIP_POOL_ROWS = 2                          # pool rows per conv1 strip
STRIP_ROWS = 2 * STRIP_POOL_ROWS * C1_OW     # 112 patch rows per strip
N_STRIPS = C1_PH // STRIP_POOL_ROWS          # 7 compute strips (+1 zero-tail strip)

V1_W = 16                                    # virtual row width of conv1 output
XS_ROWS = C1_PH * V1_W                       # 224 real conv1-output rows
C1_OUT_ROWS = (N_STRIPS + 1) * STRIP_POOL_ROWS * V1_W   # 256 (rows >= 224 are zero)

C2_OH = C1_PH - KK + 1            # 10
C2_OW = C1_PW - KK + 1            # 10
C2_PH = C2_OH // 2                # 5
C2_PW = C2_OW // 2                # 5
NVIRT2 = C2_OH * V1_W             # 160 virtual conv2 output rows
N_TAP_PAIRS = (KK * KK + 1) // 2  # 13 (26th tap is a zero pad)

C2_OUT_ROWS = 32                  # 25 pooled rows + 7 explicit zero rows
FC_K = C2_OUT_ROWS * CH_PAD       # 4096

# static invariants (see review correctness notes) -----------------------------
assert 2 * (C1_PW - 1) + 1 < C1_OW                     # conv1 pool never reads ow >= OW
assert 2 * (C2_PW - 1) + 1 < C2_OW                     # conv2 pool never reads garbage cols
assert (KK - 1) * V1_W + NVIRT2 <= XS_ROWS             # conv2 tap slices fit in xs scratch
assert (KK - 1) + XS_ROWS <= C1_OUT_ROWS               # j-shift slab reads stay in bounds
assert (2 * STRIP_POOL_ROWS - 1) * C1_OW + 1 + 2 * (C1_PW - 1) < STRIP_ROWS
assert STRIP_ROWS % 16 == 0 and C1_PH % STRIP_POOL_ROWS == 0


def _round_up(x, m):
    return (x + m - 1) // m * m


# ------------------ conv1: patch-matmul + bias + relu + pool -------------------
def _conv1_kernel(p_ref, w_ref, b_ref, o_ref, acc_ref):
    # p_ref  : (NB, 112, 256) bf16 conv1 patches for this strip (row = oh*28+ow)
    # w_ref  : (256, 128)     bf16 (resident)
    # b_ref  : (1, 128)       f32
    # o_ref  : (NB, 32, 128)  bf16 output block for this strip (2 pool rows, width 16)
    # acc_ref: (112, 128)     f32 per-strip accumulator (for strided pool reads)
    s = pl.program_id(1)
    nb = p_ref.shape[0]

    @pl.when(s == N_STRIPS)       # last strip holds the zero tail rows read by conv2
    def _():
        o_ref[...] = jnp.zeros_like(o_ref)

    @pl.when(s < N_STRIPS)
    def _():
        zero_cols = jnp.zeros((V1_W - C1_PW, CH_PAD), jnp.float32)
        for n in range(nb):
            # one K=256 MXU matmul per strip (was 25 K=8 matmuls)
            acc_ref[...] = jnp.maximum(
                jnp.dot(p_ref[n], w_ref[...], preferred_element_type=jnp.float32)
                + b_ref[...], 0.0)
            pieces = []
            for pr in range(STRIP_POOL_ROWS):
                r0 = (2 * pr) * C1_OW
                r1 = r0 + C1_OW
                p00 = acc_ref[pl.ds(r0, C1_PW, stride=2), :]
                p01 = acc_ref[pl.ds(r0 + 1, C1_PW, stride=2), :]
                p10 = acc_ref[pl.ds(r1, C1_PW, stride=2), :]
                p11 = acc_ref[pl.ds(r1 + 1, C1_PW, stride=2), :]
                pieces.append(jnp.maximum(jnp.maximum(p00, p01),
                                          jnp.maximum(p10, p11)))
                pieces.append(zero_cols)          # zero columns w = 14, 15
            # one dense, sublane-aligned 32-row store per image per strip
            o_ref[n] = jnp.concatenate(pieces, axis=0).astype(jnp.bfloat16)


def conv1_pool(patches, w, b, *, nb):
    bc = patches.shape[0]
    return pl.pallas_call(
        _conv1_kernel,
        grid=(bc // nb, N_STRIPS + 1),
        in_specs=[
            pl.BlockSpec((nb, STRIP_ROWS, PATCH_K),
                         lambda n, s: (n, jnp.minimum(s, N_STRIPS - 1), 0)),
            pl.BlockSpec((PATCH_K, CH_PAD), lambda n, s: (0, 0)),
            pl.BlockSpec((1, CH_PAD), lambda n, s: (0, 0)),
        ],
        out_specs=pl.BlockSpec((nb, STRIP_POOL_ROWS * V1_W, CH_PAD),
                               lambda n, s: (n, s, 0)),
        out_shape=jax.ShapeDtypeStruct((bc, C1_OUT_ROWS, CH_PAD), jnp.bfloat16),
        scratch_shapes=[pltpu.VMEM((STRIP_ROWS, CH_PAD), jnp.float32)],
        compiler_params=pltpu.CompilerParams(
            dimension_semantics=("parallel", "parallel")),
    )(patches, w, b)


# ------------- conv2: tap-pair (K=256) matmuls + bias + relu + pool ------------
def _conv2_kernel(x_ref, w_ref, b_ref, o_ref, xs_ref, acc_ref):
    # x_ref  : (NB, 256, 128) bf16 conv1 pooled output (virtual width 16, zero tail)
    # w_ref  : (13, 256, 128) bf16 tap-pair weights (resident)
    # b_ref  : (1, 128)       f32
    # o_ref  : (NB, 32, 128)  bf16 (25 pooled rows + 7 zero rows)
    # xs_ref : (5, 224, 128)  bf16 j-shifted slabs -> all tap slices sublane-aligned
    # acc_ref: (160, 128)     f32
    nb = x_ref.shape[0]
    zero_rows = jnp.zeros((C2_OUT_ROWS - C2_PH * C2_PW, CH_PAD), jnp.float32)
    for n in range(nb):
        # hoist the 5 j-shifts: one sublane rotate per j instead of per tap
        for j in range(KK):
            xs_ref[j] = x_ref[n, pl.ds(j, XS_ROWS), :]
        acc = jnp.zeros((NVIRT2, CH_PAD), jnp.float32)
        for k in range(N_TAP_PAIRS):
            t0 = 2 * k
            t1 = min(2 * k + 1, KK * KK - 1)   # pair 12's 2nd tap is a zero pad;
            i0, j0 = divmod(t0, KK)            # reuse tap 24's slice (weight is 0)
            i1, j1 = divmod(t1, KK)
            xp = jnp.concatenate(
                [xs_ref[j0, pl.ds(i0 * V1_W, NVIRT2), :],
                 xs_ref[j1, pl.ds(i1 * V1_W, NVIRT2), :]], axis=-1)  # (160, 256)
            acc = acc + jnp.dot(xp, w_ref[k], preferred_element_type=jnp.float32)
        acc_ref[...] = jnp.maximum(acc + b_ref[...], 0.0)
        pieces = []
        for ph in range(C2_PH):
            r0 = (2 * ph) * V1_W
            r1 = r0 + V1_W
            p00 = acc_ref[pl.ds(r0, C2_PW, stride=2), :]
            p01 = acc_ref[pl.ds(r0 + 1, C2_PW, stride=2), :]
            p10 = acc_ref[pl.ds(r1, C2_PW, stride=2), :]
            p11 = acc_ref[pl.ds(r1 + 1, C2_PW, stride=2), :]
            pieces.append(jnp.maximum(jnp.maximum(p00, p01),
                                      jnp.maximum(p10, p11)))
        pieces.append(zero_rows)
        # one dense 32-row store per image
        o_ref[n] = jnp.concatenate(pieces, axis=0).astype(jnp.bfloat16)


def conv2_pool(x, w_pairs, b, *, nb):
    bc = x.shape[0]
    return pl.pallas_call(
        _conv2_kernel,
        grid=(bc // nb,),
        in_specs=[
            pl.BlockSpec((nb, C1_OUT_ROWS, CH_PAD), lambda n: (n, 0, 0)),
            pl.BlockSpec((N_TAP_PAIRS, 2 * CH_PAD, CH_PAD), lambda n: (0, 0, 0)),
            pl.BlockSpec((1, CH_PAD), lambda n: (0, 0)),
        ],
        out_specs=pl.BlockSpec((nb, C2_OUT_ROWS, CH_PAD), lambda n: (n, 0, 0)),
        out_shape=jax.ShapeDtypeStruct((bc, C2_OUT_ROWS, CH_PAD), jnp.bfloat16),
        scratch_shapes=[pltpu.VMEM((KK, XS_ROWS, CH_PAD), jnp.bfloat16),
                        pltpu.VMEM((NVIRT2, CH_PAD), jnp.float32)],
        compiler_params=pltpu.CompilerParams(dimension_semantics=("parallel",)),
    )(x, w_pairs, b)


# --------------------------- fused fc1/fc2/fc3 head ----------------------------
def _fc3_kernel(x_ref, w1_ref, b1_ref, w2_ref, b2_ref, w3_ref, b3_ref, o_ref):
    h = jnp.dot(x_ref[...], w1_ref[...], preferred_element_type=jnp.float32)
    h = jnp.maximum(h + b1_ref[...], 0.0)
    h = jnp.dot(h.astype(jnp.bfloat16), w2_ref[...],
                preferred_element_type=jnp.float32)
    h = jnp.maximum(h + b2_ref[...], 0.0)
    h = jnp.dot(h.astype(jnp.bfloat16), w3_ref[...],
                preferred_element_type=jnp.float32)
    o_ref[...] = (h + b3_ref[...]).astype(o_ref.dtype)


def fc_head(x, w1, b1, w2, b2, w3, b3):
    bp, k1 = x.shape
    n1, n2, n3 = w1.shape[1], w2.shape[1], w3.shape[1]
    bm = min(128, bp)
    return pl.pallas_call(
        _fc3_kernel,
        grid=(bp // bm,),
        in_specs=[
            pl.BlockSpec((bm, k1), lambda i: (i, 0)),
            pl.BlockSpec((k1, n1), lambda i: (0, 0)),
            pl.BlockSpec((1, n1), lambda i: (0, 0)),
            pl.BlockSpec((n1, n2), lambda i: (0, 0)),
            pl.BlockSpec((1, n2), lambda i: (0, 0)),
            pl.BlockSpec((n2, n3), lambda i: (0, 0)),
            pl.BlockSpec((1, n3), lambda i: (0, 0)),
        ],
        out_specs=pl.BlockSpec((bm, n3), lambda i: (i, 0)),
        out_shape=jax.ShapeDtypeStruct((bp, n3), jnp.float32),
        compiler_params=pltpu.CompilerParams(dimension_semantics=("parallel",)),
    )(x, w1, b1, w2, b2, w3, b3)


# --------------------------------- parameters ----------------------------------
def init_params(key):
    ks = jax.random.split(key, 5)

    def u(k, shape, fan_in):
        bound = 1.0 / jnp.sqrt(fan_in)
        return jax.random.uniform(k, shape, jnp.float32, -bound, bound)

    return {
        "conv1_w": u(ks[0], (32, 3, 5, 5), 3 * 5 * 5),
        "conv1_b": jnp.zeros((32,), jnp.float32),
        "conv2_w": u(ks[1], (64, 32, 5, 5), 32 * 5 * 5),
        "conv2_b": jnp.zeros((64,), jnp.float32),
        "fc1_w": u(ks[2], (120, 64 * 5 * 5), 64 * 5 * 5),   # torch Linear: (out, in)
        "fc1_b": jnp.zeros((120,), jnp.float32),
        "fc2_w": u(ks[3], (84, 120), 120),
        "fc2_b": jnp.zeros((84,), jnp.float32),
        "fc3_w": u(ks[4], (10, 84), 84),
        "fc3_b": jnp.zeros((10,), jnp.float32),
    }


def prepare_params(p):
    bf = jnp.bfloat16
    # conv1: (OC,IC,5,5) -> (256,128); row order = (i*5+j)*8 + c (matches patches)
    w1 = jnp.transpose(p["conv1_w"], (2, 3, 1, 0))                      # (5,5,3,32)
    w1 = jnp.pad(w1, ((0, 0), (0, 0), (0, IC1_PAD - 3), (0, CH_PAD - 32)))
    w1 = w1.reshape(KK * KK * IC1_PAD, CH_PAD)
    w1 = jnp.pad(w1, ((0, PATCH_K - KK * KK * IC1_PAD), (0, 0)))        # (256,128)
    b1 = jnp.pad(p["conv1_b"], (0, CH_PAD - 32)).reshape(1, CH_PAD)

    # conv2: per-tap (128,128) matrices fused into 13 tap-pairs of K=256
    w2 = jnp.transpose(p["conv2_w"], (2, 3, 1, 0))                      # (5,5,32,64)
    w2 = jnp.pad(w2, ((0, 0), (0, 0), (0, CH_PAD - 32), (0, CH_PAD - 64)))
    w2 = w2.reshape(KK * KK, CH_PAD, CH_PAD)                            # (25,128,128)
    w2 = jnp.concatenate([w2, jnp.zeros((1, CH_PAD, CH_PAD), w2.dtype)], axis=0)
    w2 = w2.reshape(N_TAP_PAIRS, 2 * CH_PAD, CH_PAD)                    # (13,256,128)
    b2 = jnp.pad(p["conv2_b"], (0, CH_PAD - 64)).reshape(1, CH_PAD)

    # fc1: fold PyTorch's NCHW view(-1,1600) permutation + channel/row padding
    # into the weight rows: kernel FC input index = s*128 + c  (s = ph*5+pw)
    f1 = p["fc1_w"].reshape(120, 64, KK * KK)           # (out, c, s)
    f1 = jnp.transpose(f1, (2, 1, 0))                   # (s, c, out)
    f1 = jnp.pad(f1, ((0, C2_OUT_ROWS - KK * KK), (0, CH_PAD - 64), (0, 128 - 120)))
    f1 = f1.reshape(FC_K, 128)
    f1_b = jnp.pad(p["fc1_b"], (0, 128 - 120)).reshape(1, 128)
    f2 = jnp.pad(p["fc2_w"].T, ((0, 128 - 120), (0, 128 - 84)))
    f2_b = jnp.pad(p["fc2_b"], (0, 128 - 84)).reshape(1, 128)
    f3 = jnp.pad(p["fc3_w"].T, ((0, 128 - 84), (0, 128 - 10)))
    f3_b = jnp.pad(p["fc3_b"], (0, 128 - 10)).reshape(1, 128)

    return {
        "c1_w": w1.astype(bf), "c1_b": b1.astype(jnp.float32),
        "c2_w": w2.astype(bf), "c2_b": b2.astype(jnp.float32),
        "f1_w": f1.astype(bf), "f1_b": f1_b.astype(jnp.float32),
        "f2_w": f2.astype(bf), "f2_b": f2_b.astype(jnp.float32),
        "f3_w": f3.astype(bf), "f3_b": f3_b.astype(jnp.float32),
    }


# ----------------------------------- forward -----------------------------------
def net_forward(prep, x_nchw):
    b = x_nchw.shape[0]
    assert x_nchw.shape[1:] == (3, IMG_H, IMG_W), "64*5*5 flatten requires 3x32x32"
    nb = min(8, max(1, b // 2))           # keep >= 2 batch grid steps for v7x
    bc = _round_up(b, nb)

    # NCHW -> NHWC, pad channels 3->8 and batch -> multiple of nb, cast bf16 once
    x = jnp.transpose(x_nchw, (0, 2, 3, 1))
    x = jnp.pad(x, ((0, bc - b), (0, 0), (0, 0), (0, IC1_PAD - 3))).astype(jnp.bfloat16)

    # conv1 patches built in the wrapper (IC=3 is too lane-sparse for efficient
    # in-kernel lane concatenation); lane order = (i*5+j)*8 + c, padded to 256
    patches = jnp.concatenate(
        [x[:, i:i + C1_OH, j:j + C1_OW, :] for i in range(KK) for j in range(KK)],
        axis=-1)
    patches = jnp.pad(patches, ((0, 0), (0, 0), (0, 0),
                                (0, PATCH_K - KK * KK * IC1_PAD)))
    patches = patches.reshape(bc, C1_OH * C1_OW, PATCH_K)

    h1 = conv1_pool(patches, prep["c1_w"], prep["c1_b"], nb=nb)   # (bc,256,128) bf16
    h2 = conv2_pool(h1, prep["c2_w"], prep["c2_b"], nb=nb)        # (bc,32,128)  bf16

    xf = h2.reshape(bc, FC_K)
    bp = _round_up(bc, 8)
    bm = min(128, bp)
    bp = _round_up(bp, bm)
    if bp != bc:
        xf = jnp.pad(xf, ((0, bp - bc), (0, 0)))
    out = fc_head(xf, prep["f1_w"], prep["f1_b"], prep["f2_w"], prep["f2_b"],
                  prep["f3_w"], prep["f3_b"])                     # (bp, 128) f32
    return out[:b, :10]


if __name__ == "__main__":
    key = jax.random.PRNGKey(0)
    k_params, k_x = jax.random.split(key)
    params = init_params(k_params)
    prep = prepare_params(params)

    # Spatial size must be 32x32 so the 64*5*5 flatten matches the module.
    x = jax.random.normal(k_x, (2, 3, 32, 32), jnp.float32)

    fwd = jax.jit(net_forward)
    out = jax.block_until_ready(fwd(prep, x))
    assert out.shape == (2, 10) and out.dtype == jnp.float32
    assert bool(jnp.all(jnp.isfinite(out)))
    print("KERNEL_OK")
</pallas_src>

<mosaic_0001>
module attributes {stable_mosaic.version = 11 : i64} {
  func.func @_conv1_kernel(%arg0: i32, %arg1: i32, %arg2: memref<1x112x256xbf16, #tpu.memory_space<vmem>>, %arg3: memref<256x128xbf16, #tpu.memory_space<vmem>>, %arg4: memref<1x128xf32, #tpu.memory_space<vmem>>, %arg5: memref<1x32x128xbf16, #tpu.memory_space<vmem>>, %arg6: memref<112x128xf32, #tpu.memory_space<vmem>>) attributes {dimension_semantics = [#tpu.dimension_semantics<parallel>, #tpu.dimension_semantics<parallel>], iteration_bounds = array<i64: 2, 8>, scalar_prefetch = 0 : i64, scratch_operands = 1 : i64, tpu.core_type = #tpu.core_type<tc>, window_params = [{transform_indices = @transform_0, window_bounds = array<i64: 1, 112, 256>}, {pipeline_mode = #tpu.pipeline_mode<synchronous>, transform_indices = @transform_1, window_bounds = array<i64: 256, 128>}, {pipeline_mode = #tpu.pipeline_mode<synchronous>, transform_indices = @transform_2, window_bounds = array<i64: 1, 128>}, {transform_indices = @transform_3, window_bounds = array<i64: 1, 32, 128>}]} {
    %c7_i32 = arith.constant 7 : i32
    %0 = arith.cmpi eq, %arg1, %c7_i32 : i32
    %1 = arith.extui %0 : i1 to i32
    %c0_i32 = arith.constant 0 : i32
    %2 = arith.cmpi ne, %1, %c0_i32 : i32
    scf.if %2 {
      %cst = arith.constant 0.000000e+00 : bf16
      %6 = vector.broadcast %cst : bf16 to vector<1x32x128xbf16>
      %c0 = arith.constant 0 : index
      %c0_2 = arith.constant 0 : index
      %c0_3 = arith.constant 0 : index
      %7 = vector.load %arg5[%c0, %c0_2, %c0_3] : memref<1x32x128xbf16, #tpu.memory_space<vmem>>, vector<1x32x128xbf16>
      tpu.vector_store %arg5[%c0, %c0_2, %c0_3], %6 {strides = array<i32>} : memref<1x32x128xbf16, #tpu.memory_space<vmem>>, vector<1x32x128xbf16>,
    } else {
    }
    %c7_i32_0 = arith.constant 7 : i32
    %3 = arith.cmpi slt, %arg1, %c7_i32_0 : i32
    %4 = arith.extui %3 : i1 to i32
    %c0_i32_1 = arith.constant 0 : i32
    %5 = arith.cmpi ne, %4, %c0_i32_1 : i32
    scf.if %5 {
      %cst = arith.constant 0.000000e+00 : f32
      %6 = vector.broadcast %cst : f32 to vector<2x128xf32>
      %c0 = arith.constant 0 : index
      %c0_2 = arith.constant 0 : index
      %c0_3 = arith.constant 0 : index
      %7 = vector.load %arg2[%c0, %c0_2, %c0_3] : memref<1x112x256xbf16, #tpu.memory_space<vmem>>, vector<1x112x256xbf16>
      %8 = vector.shape_cast %7 : vector<1x112x256xbf16> to vector<112x256xbf16>
      %c0_4 = arith.constant 0 : index
      %c0_5 = arith.constant 0 : index
      %9 = vector.load %arg3[%c0_4, %c0_5] : memref<256x128xbf16, #tpu.memory_space<vmem>>, vector<256x128xbf16>
      %cst_6 = arith.constant dense<0.000000e+00> : vector<112x128xf32>
      %10 = tpu.matmul %8, %9, %cst_6 {dimension_numbers = #tpu.dot_dimension_numbers<[1], [0], [0], [1], [0, 0, 1, 1], [], []>} : vector<112x256xbf16>, vector<256x128xbf16>, vector<112x128xf32> -> vector<112x128xf32>
      %c0_7 = arith.constant 0 : index
      %c0_8 = arith.constant 0 : index
      %11 = vector.load %arg4[%c0_7, %c0_8] : memref<1x128xf32, #tpu.memory_space<vmem>>, vector<1x128xf32>
      %12 = vector.broadcast %11 : vector<1x128xf32> to vector<112x128xf32>
      %13 = arith.addf %10, %12 : vector<112x128xf32>
      %cst_9 = arith.constant 0.000000e+00 : f32
      %14 = vector.broadcast %cst_9 : f32 to vector<112x128xf32>
      %15 = arith.maximumf %13, %14 : vector<112x128xf32>
      %c0_10 = arith.constant 0 : index
      %c0_11 = arith.constant 0 : index
      %16 = vector.load %arg6[%c0_10, %c0_11] : memref<112x128xf32, #tpu.memory_space<vmem>>, vector<112x128xf32>
      tpu.vector_store %arg6[%c0_10, %c0_11], %15 {strides = array<i32>} : memref<112x128xf32, #tpu.memory_space<vmem>>, vector<112x128xf32>,
      %c0_12 = arith.constant 0 : index
      %c0_13 = arith.constant 0 : index
      %17 = tpu.strided_load %arg6[%c0_12, %c0_13] {strides = array<i32: 2, 1>} : memref<112x128xf32, #tpu.memory_space<vmem>>, vector<14x128xf32>
      %c1 = arith.constant 1 : index
      %c0_14 = arith.constant 0 : index
      %18 = tpu.strided_load %arg6[%c1, %c0_14] {strides = array<i32: 2, 1>} : memref<112x128xf32, #tpu.memory_space<vmem>>, vector<14x128xf32>
      %c28 = arith.constant 28 : index
      %c0_15 = arith.constant 0 : index
      %19 = tpu.strided_load %arg6[%c28, %c0_15] {strides = array<i32: 2, 1>} : memref<112x128xf32, #tpu.memory_space<vmem>>, vector<14x128xf32>
      %c29 = arith.constant 29 : index
      %c0_16 = arith.constant 0 : index
      %20 = tpu.strided_load %arg6[%c29, %c0_16] {strides = array<i32: 2, 1>} : memref<112x128xf32, #tpu.memory_space<vmem>>, vector<14x128xf32>
      %21 = arith.maximumf %17, %18 : vector<14x128xf32>
      %22 = arith.maximumf %19, %20 : vector<14x128xf32>
      %23 = arith.maximumf %21, %22 : vector<14x128xf32>
      %c56 = arith.constant 56 : index
      %c0_17 = arith.constant 0 : index
      %24 = tpu.strided_load %arg6[%c56, %c0_17] {strides = array<i32: 2, 1>} : memref<112x128xf32, #tpu.memory_space<vmem>>, vector<14x128xf32>
      %c57 = arith.constant 57 : index
      %c0_18 = arith.constant 0 : index
      %25 = tpu.strided_load %arg6[%c57, %c0_18] {strides = array<i32: 2, 1>} : memref<112x128xf32, #tpu.memory_space<vmem>>, vector<14x128xf32>
      %c84 = arith.constant 84 : index
      %c0_19 = arith.constant 0 : index
      %26 = tpu.strided_load %arg6[%c84, %c0_19] {strides = array<i32: 2, 1>} : memref<112x128xf32, #tpu.memory_space<vmem>>, vector<14x128xf32>
      %c85 = arith.constant 85 : index
      %c0_20 = arith.constant 0 : index
      %27 = tpu.strided_load %arg6[%c85, %c0_20] {strides = array<i32: 2, 1>} : memref<112x128xf32, #tpu.memory_space<vmem>>, vector<14x128xf32>
      %28 = arith.maximumf %24, %25 : vector<14x128xf32>
      %29 = arith.maximumf %26, %27 : vector<14x128xf32>
      %30 = arith.maximumf %28, %29 : vector<14x128xf32>
      %31 = tpu.concatenate %23, %6, %30, %6 in 0 : vector<14x128xf32>, vector<2x128xf32>, vector<14x128xf32>, vector<2x128xf32> -> vector<32x128xf32>
      %32 = arith.truncf %31 : vector<32x128xf32> to vector<32x128xbf16>
      %c0_21 = arith.constant 0 : index
      %c0_22 = arith.constant 0 : index
      %c0_23 = arith.constant 0 : index
      %33 = vector.load %arg5[%c0_21, %c0_22, %c0_23] : memref<1x32x128xbf16, #tpu.memory_space<vmem>>, vector<1x32x128xbf16>
      %34 = vector.shape_cast %33 : vector<1x32x128xbf16> to vector<32x128xbf16>
      %35 = vector.shape_cast %32 : vector<32x128xbf16> to vector<1x32x128xbf16>
      tpu.vector_store %arg5[%c0_21, %c0_22, %c0_23], %35 {strides = array<i32>} : memref<1x32x128xbf16, #tpu.memory_space<vmem>>, vector<1x32x128xbf16>,
    } else {
    }
    return
  }
  func.func @transform_0(%arg0: i32, %arg1: i32) -> (i32, i32, i32) {
    %c6_i32 = arith.constant 6 : i32
    %0 = arith.minsi %arg1, %c6_i32 : i32
    %c0_i32 = arith.constant 0 : i32
    %c0_i32_0 = arith.constant 0 : i32
    return %arg0, %0, %c0_i32 : i32, i32, i32
  }
  func.func @transform_1(%arg0: i32, %arg1: i32) -> (i32, i32) {
    %c0_i32 = arith.constant 0 : i32
    %c0_i32_0 = arith.constant 0 : i32
    %c0_i32_1 = arith.constant 0 : i32
    return %c0_i32, %c0_i32_0 : i32, i32
  }
  func.func @transform_2(%arg0: i32, %arg1: i32) -> (i32, i32) {
    %c0_i32 = arith.constant 0 : i32
    %c0_i32_0 = arith.constant 0 : i32
    %c0_i32_1 = arith.constant 0 : i32
    return %c0_i32, %c0_i32_0 : i32, i32
  }
  func.func @transform_3(%arg0: i32, %arg1: i32) -> (i32, i32, i32) {
    %c0_i32 = arith.constant 0 : i32
    %c0_i32_0 = arith.constant 0 : i32
    return %arg0, %arg1, %c0_i32 : i32, i32, i32
  }
}

module attributes {stable_mosaic.version = 11 : i64} {
  func.func @_conv2_kernel(%arg0: i32, %arg1: memref<1x256x128xbf16, #tpu.memory_space<vmem>>, %arg2: memref<13x256x128xbf16, #tpu.memory_space<vmem>>, %arg3: memref<1x128xf32, #tpu.memory_space<vmem>>, %arg4: memref<1x32x128xbf16, #tpu.memory_space<vmem>>, %arg5: memref<5x224x128xbf16, #tpu.memory_space<vmem>>, %arg6: memref<160x128xf32, #tpu.memory_space<vmem>>) attributes {dimension_semantics = [#tpu.dimension_semantics<parallel>], iteration_bounds = array<i64: 2>, scalar_prefetch = 0 : i64, scratch_operands = 2 : i64, tpu.core_type = #tpu.core_type<tc>, window_params = [{transform_indices = @transform_0, window_bounds = array<i64: 1, 256, 128>}, {pipeline_mode = #tpu.pipeline_mode<synchronous>, transform_indices = @transform_1, window_bounds = array<i64: 13, 256, 128>}, {pipeline_mode = #tpu.pipeline_mode<synchronous>, transform_indices = @transform_2, window_bounds = array<i64: 1, 128>}, {transform_indices = @transform_3, window_bounds = array<i64: 1, 32, 128>}]} {
    %cst = arith.constant 0.000000e+00 : f32
    %0 = vector.broadcast %cst : f32 to vector<7x128xf32>
    %c0 = arith.constant 0 : index
    %c0_0 = arith.constant 0 : index
    %c0_1 = arith.constant 0 : index
    %1 = vector.load %arg1[%c0, %c0_0, %c0_1] : memref<1x256x128xbf16, #tpu.memory_space<vmem>>, vector<1x224x128xbf16>
    %2 = vector.shape_cast %1 : vector<1x224x128xbf16> to vector<224x128xbf16>
    %c0_2 = arith.constant 0 : index
    %c0_3 = arith.constant 0 : index
    %c0_4 = arith.constant 0 : index
    %3 = vector.load %arg5[%c0_2, %c0_3, %c0_4] : memref<5x224x128xbf16, #tpu.memory_space<vmem>>, vector<1x224x128xbf16>
    %4 = vector.shape_cast %3 : vector<1x224x128xbf16> to vector<224x128xbf16>
    %5 = vector.shape_cast %2 : vector<224x128xbf16> to vector<1x224x128xbf16>
    tpu.vector_store %arg5[%c0_2, %c0_3, %c0_4], %5 {strides = array<i32>} : memref<5x224x128xbf16, #tpu.memory_space<vmem>>, vector<1x224x128xbf16>,
    %c0_5 = arith.constant 0 : index
    %c1 = arith.constant 1 : index
    %c0_6 = arith.constant 0 : index
    %6 = vector.load %arg1[%c0_5, %c1, %c0_6] : memref<1x256x128xbf16, #tpu.memory_space<vmem>>, vector<1x224x128xbf16>
    %7 = vector.shape_cast %6 : vector<1x224x128xbf16> to vector<224x128xbf16>
    %c1_7 = arith.constant 1 : index
    %c0_8 = arith.constant 0 : index
    %c0_9 = arith.constant 0 : index
    %8 = vector.load %arg5[%c1_7, %c0_8, %c0_9] : memref<5x224x128xbf16, #tpu.memory_space<vmem>>, vector<1x224x128xbf16>
    %9 = vector.shape_cast %8 : vector<1x224x128xbf16> to vector<224x128xbf16>
    %10 = vector.shape_cast %7 : vector<224x128xbf16> to vector<1x224x128xbf16>
    tpu.vector_store %arg5[%c1_7, %c0_8, %c0_9], %10 {strides = array<i32>} : memref<5x224x128xbf16, #tpu.memory_space<vmem>>, vector<1x224x128xbf16>,
    %c0_10 = arith.constant 0 : index
    %c2 = arith.constant 2 : index
    %c0_11 = arith.constant 0 : index
    %11 = vector.load %arg1[%c0_10, %c2, %c0_11] : memref<1x256x128xbf16, #tpu.memory_space<vmem>>, vector<1x224x128xbf16>
    %12 = vector.shape_cast %11 : vector<1x224x128xbf16> to vector<224x128xbf16>
    %c2_12 = arith.constant 2 : index
    %c0_13 = arith.constant 0 : index
    %c0_14 = arith.constant 0 : index
    %13 = vector.load %arg5[%c2_12, %c0_13, %c0_14] : memref<5x224x128xbf16, #tpu.memory_space<vmem>>, vector<1x224x128xbf16>
    %14 = vector.shape_cast %13 : vector<1x224x128xbf16> to vector<224x128xbf16>
    %15 = vector.shape_cast %12 : vector<224x128xbf16> to vector<1x224x128xbf16>
    tpu.vector_store %arg5[%c2_12, %c0_13, %c0_14], %15 {strides = array<i32>} : memref<5x224x128xbf16, #tpu.memory_space<vmem>>, vector<1x224x128xbf16>,
    %c0_15 = arith.constant 0 : index
    %c3 = arith.constant 3 : index
    %c0_16 = arith.constant 0 : index
    %16 = vector.load %arg1[%c0_15, %c3, %c0_16] : memref<1x256x128xbf16, #tpu.memory_space<vmem>>, vector<1x224x128xbf16>
    %17 = vector.shape_cast %16 : vector<1x224x128xbf16> to vector<224x128xbf16>
    %c3_17 = arith.constant 3 : index
    %c0_18 = arith.constant 0 : index
    %c0_19 = arith.constant 0 : index
    %18 = vector.load %arg5[%c3_17, %c0_18, %c0_19] : memref<5x224x128xbf16, #tpu.memory_space<vmem>>, vector<1x224x128xbf16>
    %19 = vector.shape_cast %18 : vector<1x224x128xbf16> to vector<224x128xbf16>
    %20 = vector.shape_cast %17 : vector<224x128xbf16> to vector<1x224x128xbf16>
    tpu.vector_store %arg5[%c3_17, %c0_18, %c0_19], %20 {strides = array<i32>} : memref<5x224x128xbf16, #tpu.memory_space<vmem>>, vector<1x224x128xbf16>,
    %c0_20 = arith.constant 0 : index
    %c4 = arith.constant 4 : index
    %c0_21 = arith.constant 0 : index
    %21 = vector.load %arg1[%c0_20, %c4, %c0_21] : memref<1x256x128xbf16, #tpu.memory_space<vmem>>, vector<1x224x128xbf16>
    %22 = vector.shape_cast %21 : vector<1x224x128xbf16> to vector<224x128xbf16>
    %c4_22 = arith.constant 4 : index
    %c0_23 = arith.constant 0 : index
    %c0_24 = arith.constant 0 : index
    %23 = vector.load %arg5[%c4_22, %c0_23, %c0_24] : memref<5x224x128xbf16, #tpu.memory_space<vmem>>, vector<1x224x128xbf16>
    %24 = vector.shape_cast %23 : vector<1x224x128xbf16> to vector<224x128xbf16>
    %25 = vector.shape_cast %22 : vector<224x128xbf16> to vector<1x224x128xbf16>
    tpu.vector_store %arg5[%c4_22, %c0_23, %c0_24], %25 {strides = array<i32>} : memref<5x224x128xbf16, #tpu.memory_space<vmem>>, vector<1x224x128xbf16>,
    %cst_25 = arith.constant 0.000000e+00 : f32
    %26 = vector.broadcast %cst_25 : f32 to vector<160x128xf32>
    %c0_26 = arith.constant 0 : index
    %c0_27 = arith.constant 0 : index
    %c0_28 = arith.constant 0 : index
    %27 = vector.load %arg5[%c0_26, %c0_27, %c0_28] : memref<5x224x128xbf16, #tpu.memory_space<vmem>>, vector<1x160x128xbf16>
    %28 = vector.shape_cast %27 : vector<1x160x128xbf16> to vector<160x128xbf16>
    %c1_29 = arith.constant 1 : index
    %c0_30 = arith.constant 0 : index
    %c0_31 = arith.constant 0 : index
    %29 = vector.load %arg5[%c1_29, %c0_30, %c0_31] : memref<5x224x128xbf16, #tpu.memory_space<vmem>>, vector<1x160x128xbf16>
    %30 = vector.shape_cast %29 : vector<1x160x128xbf16> to vector<160x128xbf16>
    %31 = tpu.concatenate %28, %30 in 1 : vector<160x128xbf16>, vector<160x128xbf16> -> vector<160x256xbf16>
    %c0_32 = arith.constant 0 : index
    %c0_33 = arith.constant 0 : index
    %c0_34 = arith.constant 0 : index
    %32 = vector.load %arg2[%c0_32, %c0_33, %c0_34] : memref<13x256x128xbf16, #tpu.memory_space<vmem>>, vector<1x256x128xbf16>
    %33 = vector.shape_cast %32 : vector<1x256x128xbf16> to vector<256x128xbf16>
    %cst_35 = arith.constant dense<0.000000e+00> : vector<160x128xf32>
    %34 = tpu.matmul %31, %33, %cst_35 {dimension_numbers = #tpu.dot_dimension_numbers<[1], [0], [0], [1], [0, 0, 1, 1], [], []>} : vector<160x256xbf16>, vector<256x128xbf16>, vector<160x128xf32> -> vector<160x128xf32>
    %35 = arith.addf %26, %34 : vector<160x128xf32>
    %c2_36 = arith.constant 2 : index
    %c0_37 = arith.constant 0 : index
    %c0_38 = arith.constant 0 : index
    %36 = vector.load %arg5[%c2_36, %c0_37, %c0_38] : memref<5x224x128xbf16, #tpu.memory_space<vmem>>, vector<1x160x128xbf16>
    %37 = vector.shape_cast %36 : vector<1x160x128xbf16> to vector<160x128xbf16>
    %c3_39 = arith.constant 3 : index
    %c0_40 = arith.constant 0 : index
    %c0_41 = arith.constant 0 : index
    %38 = vector.load %arg5[%c3_39, %c0_40, %c0_41] : memref<5x224x128xbf16, #tpu.memory_space<vmem>>, vector<1x160x128xbf16>
    %39 = vector.shape_cast %38 : vector<1x160x128xbf16> to vector<160x128xbf16>
    %40 = tpu.concatenate %37, %39 in 1 : vector<160x128xbf16>, vector<160x128xbf16> -> vector<160x256xbf16>
    %c1_42 = arith.constant 1 : index
    %c0_43 = arith.constant 0 : index
    %c0_44 = arith.constant 0 : index
    %41 = vector.load %arg2[%c1_42, %c0_43, %c0_44] : memref<13x256x128xbf16, #tpu.memory_space<vmem>>, vector<1x256x128xbf16>
    %42 = vector.shape_cast %41 : vector<1x256x128xbf16> to vector<256x128xbf16>
    %cst_45 = arith.constant dense<0.000000e+00> : vector<160x128xf32>
    %43 = tpu.matmul %40, %42, %cst_45 {dimension_numbers = #tpu.dot_dimension_numbers<[1], [0], [0], [1], [0, 0, 1, 1], [], []>} : vector<160x256xbf16>, vector<256x128xbf16>, vector<160x128xf32> -> vector<160x128xf32>
    %44 = arith.addf %35, %43 : vector<160x128xf32>
    %c4_46 = arith.constant 4 : index
    %c0_47 = arith.constant 0 : index
    %c0_48 = arith.constant 0 : index
    %45 = vector.load %arg5[%c4_46, %c0_47, %c0_48] : memref<5x224x128xbf16, #tpu.memory_space<vmem>>, vector<1x160x128xbf16>
    %46 = vector.shape_cast %45 : vector<1x160x128xbf16> to vector<160x128xbf16>
    %c0_49 = arith.constant 0 : index
    %c16 = arith.constant 16 : index
    %c0_50 = arith.constant 0 : index
    %47 = vector.load %arg5[%c0_49, %c16, %c0_50] : memref<5x224x128xbf16, #tpu.memory_space<vmem>>, vector<1x160x128xbf16>
    %48 = vector.shape_cast %47 : vector<1x160x128xbf16> to vector<160x128xbf16>
    %49 = tpu.concatenate %46, %48 in 1 : vector<160x128xbf16>, vector<160x128xbf16> -> vector<160x256xbf16>
    %c2_51 = arith.constant 2 : index
    %c0_52 = arith.constant 0 : index
    %c0_53 = arith.constant 0 : index
    %50 = vector.load %arg2[%c2_51, %c0_52, %c0_53] : memref<13x256x128xbf16, #tpu.memory_space<vmem>>, vector<1x256x128xbf16>
    %51 = vector.shape_cast %50 : vector<1x256x128xbf16> to vector<256x128xbf16>
    %cst_54 = arith.constant dense<0.000000e+00> : vector<160x128xf32>
    %52 = tpu.matmul %49, %51, %cst_54 {dimension_numbers = #tpu.dot_dimension_numbers<[1], [0], [0], [1], [0, 0, 1, 1], [], []>} : vector<160x256xbf16>, vector<256x128xbf16>, vector<160x128xf32> -> vector<160x128xf32>
    %53 = arith.addf %44, %52 : vector<160x128xf32>
    %c1_55 = arith.constant 1 : index
    %c16_56 = arith.constant 16 : index
    %c0_57 = arith.constant 0 : index
    %54 = vector.load %arg5[%c1_55, %c16_56, %c0_57] : memref<5x224x128xbf16, #tpu.memory_space<vmem>>, vector<1x160x128xbf16>
    %55 = vector.shape_cast %54 : vector<1x160x128xbf16> to vector<160x128xbf16>
    %c2_58 = arith.constant 2 : index
    %c16_59 = arith.constant 16 : index
    %c0_60 = arith.constant 0 : index
    %56 = vector.load %arg5[%c2_58, %c16_59, %c0_60] : memref<5x224x128xbf16, #tpu.memory_space<vmem>>, vector<1x160x128xbf16>
    %57 = vector.shape_cast %56 : vector<1x160x128xbf16> to vector<160x128xbf16>
    %58 = tpu.concatenate %55, %57 in 1 : vector<160x128xbf16>, vector<160x128xbf16> -> vector<160x256xbf16>
    %c3_61 = arith.constant 3 : index
    %c0_62 = arith.constant 0 : index
    %c0_63 = arith.constant 0 : index
    %59 = vector.load %arg2[%c3_61, %c0_62, %c0_63] : memref<13x256x128xbf16, #tpu.memory_space<vmem>>, vector<1x256x128xbf16>
    %60 = vector.shape_cast %59 : vector<1x256x128xbf16> to vector<256x128xbf16>
    %cst_64 = arith.constant dense<0.000000e+00> : vector<160x128xf32>
    %61 = tpu.matmul %58, %60, %cst_64 {dimension_numbers = #tpu.dot_dimension_numbers<[1], [0], [0], [1], [0, 0, 1, 1], [], []>} : vector<160x256xbf16>, vector<256x128xbf16>, vector<160x128xf32> -> vector<160x128xf32>
    %62 = arith.addf %53, %61 : vector<160x128xf32>
    %c3_65 = arith.constant 3 : index
    %c16_66 = arith.constant 16 : index
    %c0_67 = arith.constant 0 : index
    %63 = vector.load %arg5[%c3_65, %c16_66, %c0_67] : memref<5x224x128xbf16, #tpu.memory_space<vmem>>, vector<1x160x128xbf16>
    %64 = vector.shape_cast %63 : vector<1x160x128xbf16> to vector<160x128xbf16>
    %c4_68 = arith.constant 4 : index
    %c16_69 = arith.constant 16 : index
    %c0_70 = arith.constant 0 : index
    %65 = vector.load %arg5[%c4_68, %c16_69, %c0_70] : memref<5x224x128xbf16, #tpu.memory_space<vmem>>, vector<1x160x128xbf16>
    %66 = vector.shape_cast %65 : vector<1x160x128xbf16> to vector<160x128xbf16>
    %67 = tpu.concatenate %64, %66 in 1 : vector<160x128xbf16>, vector<160x128xbf16> -> vector<160x256xbf16>
    %c4_71 = arith.constant 4 : index
    %c0_72 = arith.constant 0 : index
    %c0_73 = arith.constant 0 : index
    %68 = vector.load %arg2[%c4_71, %c0_72, %c0_73] : memref<13x256x128xbf16, #tpu.memory_space<vmem>>, vector<1x256x128xbf16>
    %69 = vector.shape_cast %68 : vector<1x256x128xbf16> to vector<256x128xbf16>
    %cst_74 = arith.constant dense<0.000000e+00> : vector<160x128xf32>
    %70 = tpu.matmul %67, %69, %cst_74 {dimension_numbers = #tpu.dot_dimension_numbers<[1], [0], [0], [1], [0, 0, 1, 1], [], []>} : vector<160x256xbf16>, vector<256x128xbf16>, vector<160x128xf32> -> vector<160x128xf32>
    %71 = arith.addf %62, %70 : vector<160x128xf32>
    %c0_75 = arith.constant 0 : index
    %c32 = arith.constant 32 : index
    %c0_76 = arith.constant 0 : index
    %72 = vector.load %arg5[%c0_75, %c32, %c0_76] : memref<5x224x128xbf16, #tpu.memory_space<vmem>>, vector<1x160x128xbf16>
    %73 = vector.shape_cast %72 : vector<1x160x128xbf16> to vector<160x128xbf16>
    %c1_77 = arith.constant 1 : index
    %c32_78 = arith.constant 32 : index
    %c0_79 = arith.constant 0 : index
    %74 = vector.load %arg5[%c1_77, %c32_78, %c0_79] : memref<5x224x128xbf16, #tpu.memory_space<vmem>>, vector<1x160x128xbf16>
    %75 = vector.shape_cast %74 : vector<1x160x128xbf16> to vector<160x128xbf16>
    %76 = tpu.concatenate %73, %75 in 1 : vector<160x128xbf16>, vector<160x128xbf16> -> vector<160x256xbf16>
    %c5 = arith.constant 5 : index
    %c0_80 = arith.constant 0 : index
    %c0_81 = arith.constant 0 : index
    %77 = vector.load %arg2[%c5, %c0_80, %c0_81] : memref<13x256x128xbf16, #tpu.memory_space<vmem>>, vector<1x256x128xbf16>
    %78 = vector.shape_cast %77 : vector<1x256x128xbf16> to vector<256x128xbf16>
    %cst_82 = arith.constant dense<0.000000e+00> : vector<160x128xf32>
    %79 = tpu.matmul %76, %78, %cst_82 {dimension_numbers = #tpu.dot_dimension_numbers<[1], [0], [0], [1], [0, 0, 1, 1], [], []>} : vector<160x256xbf16>, vector<256x128xbf16>, vector<160x128xf32> -> vector<160x128xf32>
    %80 = arith.addf %71, %79 : vector<160x128xf32>
    %c2_83 = arith.constant 2 : index
    %c32_84 = arith.constant 32 : index
    %c0_85 = arith.constant 0 : index
    %81 = vector.load %arg5[%c2_83, %c32_84, %c0_85] : memref<5x224x128xbf16, #tpu.memory_space<vmem>>, vector<1x160x128xbf16>
    %82 = vector.shape_cast %81 : vector<1x160x128xbf16> to vector<160x128xbf16>
    %c3_86 = arith.constant 3 : index
    %c32_87 = arith.constant 32 : index
    %c0_88 = arith.constant 0 : index
    %83 = vector.load %arg5[%c3_86, %c32_87, %c0_88] : memref<5x224x128xbf16, #tpu.memory_space<vmem>>, vector<1x160x128xbf16>
    %84 = vector.shape_cast %83 : vector<1x160x128xbf16> to vector<160x128xbf16>
    %85 = tpu.concatenate %82, %84 in 1 : vector<160x128xbf16>, vector<160x128xbf16> -> vector<160x256xbf16>
    %c6 = arith.constant 6 : index
    %c0_89 = arith.constant 0 : index
    %c0_90 = arith.constant 0 : index
    %86 = vector.load %arg2[%c6, %c0_89, %c0_90] : memref<13x256x128xbf16, #tpu.memory_space<vmem>>, vector<1x256x128xbf16>
    %87 = vector.shape_cast %86 : vector<1x256x128xbf16> to vector<256x128xbf16>
    %cst_91 = arith.constant dense<0.000000e+00> : vector<160x128xf32>
    %88 = tpu.matmul %85, %87, %cst_91 {dimension_numbers = #tpu.dot_dimension_numbers<[1], [0], [0], [1], [0, 0, 1, 1], [], []>} : vector<160x256xbf16>, vector<256x128xbf16>, vector<160x128xf32> -> vector<160x128xf32>
    %89 = arith.addf %80, %88 : vector<160x128xf32>
    %c4_92 = arith.constant 4 : index
    %c32_93 = arith.constant 32 : index
    %c0_94 = arith.constant 0 : index
    %90 = vector.load %arg5[%c4_92, %c32_93, %c0_94] : memref<5x224x128xbf16, #tpu.memory_space<vmem>>, vector<1x160x128xbf16>
    %91 = vector.shape_cast %90 : vector<1x160x128xbf16> to vector<160x128xbf16>
    %c0_95 = arith.constant 0 : index
    %c48 = arith.constant 48 : index
    %c0_96 = arith.constant 0 : index
    %92 = vector.load %arg5[%c0_95, %c48, %c0_96] : memref<5x224x128xbf16, #tpu.memory_space<vmem>>, vector<1x160x128xbf16>
    %93 = vector.shape_cast %92 : vector<1x160x128xbf16> to vector<160x128xbf16>
    %94 = tpu.concatenate %91, %93 in 1 : vector<160x128xbf16>, vector<160x128xbf16> -> vector<160x256xbf16>
    %c7 = arith.constant 7 : index
    %c0_97 = arith.constant 0 : index
    %c0_98 = arith.constant 0 : index
    %95 = vector.load %arg2[%c7, %c0_97, %c0_98] : memref<13x256x128xbf16, #tpu.memory_space<vmem>>, vector<1x256x128xbf16>
    %96 = vector.shape_cast %95 : vector<1x256x128xbf16> to vector<256x128xbf16>
    %cst_99 = arith.constant dense<0.000000e+00> : vector<160x128xf32>
    %97 = tpu.matmul %94, %96, %cst_99 {dimension_numbers = #tpu.dot_dimension_numbers<[1], [0], [0], [1], [0, 0, 1, 1], [], []>} : vector<160x256xbf16>, vector<256x128xbf16>, vector<160x128xf32> -> vector<160x128xf32>
    %98 = arith.addf %89, %97 : vector<160x128xf32>
    %c1_100 = arith.constant 1 : index
    %c48_101 = arith.constant 48 : index
    %c0_102 = arith.constant 0 : index
    %99 = vector.load %arg5[%c1_100, %c48_101, %c0_102] : memref<5x224x128xbf16, #tpu.memory_space<vmem>>, vector<1x160x128xbf16>
    %100 = vector.shape_cast %99 : vector<1x160x128xbf16> to vector<160x128xbf16>
    %c2_103 = arith.constant 2 : index
    %c48_104 = arith.constant 48 : index
    %c0_105 = arith.constant 0 : index
    %101 = vector.load %arg5[%c2_103, %c48_104, %c0_105] : memref<5x224x128xbf16, #tpu.memory_space<vmem>>, vector<1x160x128xbf16>
    %102 = vector.shape_cast %101 : vector<1x160x128xbf16> to vector<160x128xbf16>
    %103 = tpu.concatenate %100, %102 in 1 : vector<160x128xbf16>, vector<160x128xbf16> -> vector<160x256xbf16>
    %c8 = arith.constant 8 : index
    %c0_106 = arith.constant 0 : index
    %c0_107 = arith.constant 0 : index
    %104 = vector.load %arg2[%c8, %c0_106, %c0_107] : memref<13x256x128xbf16, #tpu.memory_space<vmem>>, vector<1x256x128xbf16>
    %105 = vector.shape_cast %104 : vector<1x256x128xbf16> to vector<256x128xbf16>
    %cst_108 = arith.constant dense<0.000000e+00> : vector<160x128xf32>
    %106 = tpu.matmul %103, %105, %cst_108 {dimension_numbers = #tpu.dot_dimension_numbers<[1], [0], [0], [1], [0, 0, 1, 1], [], []>} : vector<160x256xbf16>, vector<256x128xbf16>, vector<160x128xf32> -> vector<160x128xf32>
    %107 = arith.addf %98, %106 : vector<160x128xf32>
    %c3_109 = arith.constant 3 : index
    %c48_110 = arith.constant 48 : index
    %c0_111 = arith.constant 0 : index
    %108 = vector.load %arg5[%c3_109, %c48_110, %c0_111] : memref<5x224x128xbf16, #tpu.memory_space<vmem>>, vector<1x160x128xbf16>
    %109 = vector.shape_cast %108 : vector<1x160x128xbf16> to vector<160x128xbf16>
    %c4_112 = arith.constant 4 : index
    %c48_113 = arith.constant 48 : index
    %c0_114 = arith.constant 0 : index
    %110 = vector.load %arg5[%c4_112, %c48_113, %c0_114] : memref<5x224x128xbf16, #tpu.memory_space<vmem>>, vector<1x160x128xbf16>
    %111 = vector.shape_cast %110 : vector<1x160x128xbf16> to vector<160x128xbf16>
    %112 = tpu.concatenate %109, %111 in 1 : vector<160x128xbf16>, vector<160x128xbf16> -> vector<160x256xbf16>
    %c9 = arith.constant 9 : index
    %c0_115 = arith.constant 0 : index
    %c0_116 = arith.constant 0 : index
    %113 = vector.load %arg2[%c9, %c0_115, %c0_116] : memref<13x256x128xbf16, #tpu.memory_space<vmem>>, vector<1x256x128xbf16>
    %114 = vector.shape_cast %113 : vector<1x256x128xbf16> to vector<256x128xbf16>
    %cst_117 = arith.constant dense<0.000000e+00> : vector<160x128xf32>
    %115 = tpu.matmul %112, %114, %cst_117 {dimension_numbers = #tpu.dot_dimension_numbers<[1], [0], [0], [1], [0, 0, 1, 1], [], []>} : vector<160x256xbf16>, vector<256x128xbf16>, vector<160x128xf32> -> vector<160x128xf32>
    %116 = arith.addf %107, %115 : vector<160x128xf32>
    %c0_118 = arith.constant 0 : index
    %c64 = arith.constant 64 : index
    %c0_119 = arith.constant 0 : index
    %117 = vector.load %arg5[%c0_118, %c64, %c0_119] : memref<5x224x128xbf16, #tpu.memory_space<vmem>>, vector<1x160x128xbf16>
    %118 = vector.shape_cast %117 : vector<1x160x128xbf16> to vector<160x128xbf16>
    %c1_120 = arith.constant 1 : index
    %c64_121 = arith.constant 64 : index
    %c0_122 = arith.constant 0 : index
    %119 = vector.load %arg5[%c1_120, %c64_121, %c0_122] : memref<5x224x128xbf16, #tpu.memory_space<vmem>>, vector<1x160x128xbf16>
    %120 = vector.shape_cast %119 : vector<1x160x128xbf16> to vector<160x128xbf16>
    %121 = tpu.concatenate %118, %120 in 1 : vector<160x128xbf16>, vector<160x128xbf16> -> vector<160x256xbf16>
    %c10 = arith.constant 10 : index
    %c0_123 = arith.constant 0 : index
    %c0_124 = arith.constant 0 : index
    %122 = vector.load %arg2[%c10, %c0_123, %c0_124] : memref<13x256x128xbf16, #tpu.memory_space<vmem>>, vector<1x256x128xbf16>
    %123 = vector.shape_cast %122 : vector<1x256x128xbf16> to vector<256x128xbf16>
    %cst_125 = arith.constant dense<0.000000e+00> : vector<160x128xf32>
    %124 = tpu.matmul %121, %123, %cst_125 {dimension_numbers = #tpu.dot_dimension_numbers<[1], [0], [0], [1], [0, 0, 1, 1], [], []>} : vector<160x256xbf16>, vector<256x128xbf16>, vector<160x128xf32> -> vector<160x128xf32>
    %125 = arith.addf %116, %124 : vector<160x128xf32>
    %c2_126 = arith.constant 2 : index
    %c64_127 = arith.constant 64 : index
    %c0_128 = arith.constant 0 : index
    %126 = vector.load %arg5[%c2_126, %c64_127, %c0_128] : memref<5x224x128xbf16, #tpu.memory_space<vmem>>, vector<1x160x128xbf16>
    %127 = vector.shape_cast %126 : vector<1x160x128xbf16> to vector<160x128xbf16>
    %c3_129 = arith.constant 3 : index
    %c64_130 = arith.constant 64 : index
    %c0_131 = arith.constant 0 : index
    %128 = vector.load %arg5[%c3_129, %c64_130, %c0_131] : memref<5x224x128xbf16, #tpu.memory_space<vmem>>, vector<1x160x128xbf16>
    %129 = vector.shape_cast %128 : vector<1x160x128xbf16> to vector<160x128xbf16>
    %130 = tpu.concatenate %127, %129 in 1 : vector<160x128xbf16>, vector<160x128xbf16> -> vector<160x256xbf16>
    %c11 = arith.constant 11 : index
    %c0_132 = arith.constant 0 : index
    %c0_133 = arith.constant 0 : index
    %131 = vector.load %arg2[%c11, %c0_132, %c0_133] : memref<13x256x128xbf16, #tpu.memory_space<vmem>>, vector<1x256x128xbf16>
    %132 = vector.shape_cast %131 : vector<1x256x128xbf16> to vector<256x128xbf16>
    %cst_134 = arith.constant dense<0.000000e+00> : vector<160x128xf32>
    %133 = tpu.matmul %130, %132, %cst_134 {dimension_numbers = #tpu.dot_dimension_numbers<[1], [0], [0], [1], [0, 0, 1, 1], [], []>} : vector<160x256xbf16>, vector<256x128xbf16>, vector<160x128xf32> -> vector<160x128xf32>
    %134 = arith.addf %125, %133 : vector<160x128xf32>
    %c4_135 = arith.constant 4 : index
    %c64_136 = arith.constant 64 : index
    %c0_137 = arith.constant 0 : index
    %135 = vector.load %arg5[%c4_135, %c64_136, %c0_137] : memref<5x224x128xbf16, #tpu.memory_space<vmem>>, vector<1x160x128xbf16>
    %136 = vector.shape_cast %135 : vector<1x160x128xbf16> to vector<160x128xbf16>
    %c4_138 = arith.constant 4 : index
    %c64_139 = arith.constant 64 : index
    %c0_140 = arith.constant 0 : index
    %137 = vector.load %arg5[%c4_138, %c64_139, %c0_140] : memref<5x224x128xbf16, #tpu.memory_space<vmem>>, vector<1x160x128xbf16>
    %138 = vector.shape_cast %137 : vector<1x160x128xbf16> to vector<160x128xbf16>
    %139 = tpu.concatenate %136, %138 in 1 : vector<160x128xbf16>, vector<160x128xbf16> -> vector<160x256xbf16>
    %c12 = arith.constant 12 : index
    %c0_141 = arith.constant 0 : index
    %c0_142 = arith.constant 0 : index
    %140 = vector.load %arg2[%c12, %c0_141, %c0_142] : memref<13x256x128xbf16, #tpu.memory_space<vmem>>, vector<1x256x128xbf16>
    %141 = vector.shape_cast %140 : vector<1x256x128xbf16> to vector<256x128xbf16>
    %cst_143 = arith.constant dense<0.000000e+00> : vector<160x128xf32>
    %142 = tpu.matmul %139, %141, %cst_143 {dimension_numbers = #tpu.dot_dimension_numbers<[1], [0], [0], [1], [0, 0, 1, 1], [], []>} : vector<160x256xbf16>, vector<256x128xbf16>, vector<160x128xf32> -> vector<160x128xf32>
    %143 = arith.addf %134, %142 : vector<160x128xf32>
    %c0_144 = arith.constant 0 : index
    %c0_145 = arith.constant 0 : index
    %144 = vector.load %arg3[%c0_144, %c0_145] : memref<1x128xf32, #tpu.memory_space<vmem>>, vector<1x128xf32>
    %145 = vector.broadcast %144 : vector<1x128xf32> to vector<160x128xf32>
    %146 = arith.addf %143, %145 : vector<160x128xf32>
    %cst_146 = arith.constant 0.000000e+00 : f32
    %147 = vector.broadcast %cst_146 : f32 to vector<160x128xf32>
    %148 = arith.maximumf %146, %147 : vector<160x128xf32>
    %c0_147 = arith.constant 0 : index
    %c0_148 = arith.constant 0 : index
    %149 = vector.load %arg6[%c0_147, %c0_148] : memref<160x128xf32, #tpu.memory_space<vmem>>, vector<160x128xf32>
    tpu.vector_store %arg6[%c0_147, %c0_148], %148 {strides = array<i32>} : memref<160x128xf32, #tpu.memory_space<vmem>>, vector<160x128xf32>,
    %c0_149 = arith.constant 0 : index
    %c0_150 = arith.constant 0 : index
    %150 = tpu.strided_load %arg6[%c0_149, %c0_150] {strides = array<i32: 2, 1>} : memref<160x128xf32, #tpu.memory_space<vmem>>, vector<5x128xf32>
    %c1_151 = arith.constant 1 : index
    %c0_152 = arith.constant 0 : index
    %151 = tpu.strided_load %arg6[%c1_151, %c0_152] {strides = array<i32: 2, 1>} : memref<160x128xf32, #tpu.memory_space<vmem>>, vector<5x128xf32>
    %c16_153 = arith.constant 16 : index
    %c0_154 = arith.constant 0 : index
    %152 = tpu.strided_load %arg6[%c16_153, %c0_154] {strides = array<i32: 2, 1>} : memref<160x128xf32, #tpu.memory_space<vmem>>, vector<5x128xf32>
    %c17 = arith.constant 17 : index
    %c0_155 = arith.constant 0 : index
    %153 = tpu.strided_load %arg6[%c17, %c0_155] {strides = array<i32: 2, 1>} : memref<160x128xf32, #tpu.memory_space<vmem>>, vector<5x128xf32>
    %154 = arith.maximumf %150, %151 : vector<5x128xf32>
    %155 = arith.maximumf %152, %153 : vector<5x128xf32>
    %156 = arith.maximumf %154, %155 : vector<5x128xf32>
    %c32_156 = arith.constant 32 : index
    %c0_157 = arith.constant 0 : index
    %157 = tpu.strided_load %arg6[%c32_156, %c0_157] {strides = array<i32: 2, 1>} : memref<160x128xf32, #tpu.memory_space<vmem>>, vector<5x128xf32>
    %c33 = arith.constant 33 : index
    %c0_158 = arith.constant 0 : index
    %158 = tpu.strided_load %arg6[%c33, %c0_158] {strides = array<i32: 2, 1>} : memref<160x128xf32, #tpu.memory_space<vmem>>, vector<5x128xf32>
    %c48_159 = arith.constant 48 : index
    %c0_160 = arith.constant 0 : index
    %159 = tpu.strided_load %arg6[%c48_159, %c0_160] {strides = array<i32: 2, 1>} : memref<160x128xf32, #tpu.memory_space<vmem>>, vector<5x128xf32>
    %c49 = arith.constant 49 : index
    %c0_161 = arith.constant 0 : index
    %160 = tpu.strided_load %arg6[%c49, %c0_161] {strides = array<i32: 2, 1>} : memref<160x128xf32, #tpu.memory_space<vmem>>, vector<5x128xf32>
    %161 = arith.maximumf %157, %158 : vector<5x128xf32>
    %162 = arith.maximumf %159, %160 : vector<5x128xf32>
    %163 = arith.maximumf %161, %162 : vector<5x128xf32>
    %c64_162 = arith.constant 64 : index
    %c0_163 = arith.constant 0 : index
    %164 = tpu.strided_load %arg6[%c64_162, %c0_163] {strides = array<i32: 2, 1>} : memref<160x128xf32, #tpu.memory_space<vmem>>, vector<5x128xf32>
    %c65 = arith.constant 65 : index
    %c0_164 = arith.constant 0 : index
    %165 = tpu.strided_load %arg6[%c65, %c0_164] {strides = array<i32: 2, 1>} : memref<160x128xf32, #tpu.memory_space<vmem>>, vector<5x128xf32>
    %c80 = arith.constant 80 : index
    %c0_165 = arith.constant 0 : index
    %166 = tpu.strided_load %arg6[%c80, %c0_165] {strides = array<i32: 2, 1>} : memref<160x128xf32, #tpu.memory_space<vmem>>, vector<5x128xf32>
    %c81 = arith.constant 81 : index
    %c0_166 = arith.constant 0 : index
    %167 = tpu.strided_load %arg6[%c81, %c0_166] {strides = array<i32: 2, 1>} : memref<160x128xf32, #tpu.memory_space<vmem>>, vector<5x128xf32>
    %168 = arith.maximumf %164, %165 : vector<5x128xf32>
    %169 = arith.maximumf %166, %167 : vector<5x128xf32>
    %170 = arith.maximumf %168, %169 : vector<5x128xf32>
    %c96 = arith.constant 96 : index
    %c0_167 = arith.constant 0 : index
    %171 = tpu.strided_load %arg6[%c96, %c0_167] {strides = array<i32: 2, 1>} : memref<160x128xf32, #tpu.memory_space<vmem>>, vector<5x128xf32>
    %c97 = arith.constant 97 : index
    %c0_168 = arith.constant 0 : index
    %172 = tpu.strided_load %arg6[%c97, %c0_168] {strides = array<i32: 2, 1>} : memref<160x128xf32, #tpu.memory_space<vmem>>, vector<5x128xf32>
    %c112 = arith.constant 112 : index
    %c0_169 = arith.constant 0 : index
    %173 = tpu.strided_load %arg6[%c112, %c0_169] {strides = array<i32: 2, 1>} : memref<160x128xf32, #tpu.memory_space<vmem>>, vector<5x128xf32>
    %c113 = arith.constant 113 : index
    %c0_170 = arith.constant 0 : index
    %174 = tpu.strided_load %arg6[%c113, %c0_170] {strides = array<i32: 2, 1>} : memref<160x128xf32, #tpu.memory_space<vmem>>, vector<5x128xf32>
    %175 = arith.maximumf %171, %172 : vector<5x128xf32>
    %176 = arith.maximumf %173, %174 : vector<5x128xf32>
    %177 = arith.maximumf %175, %176 : vector<5x128xf32>
    %c128 = arith.constant 128 : index
    %c0_171 = arith.constant 0 : index
    %178 = tpu.strided_load %arg6[%c128, %c0_171] {strides = array<i32: 2, 1>} : memref<160x128xf32, #tpu.memory_space<vmem>>, vector<5x128xf32>
    %c129 = arith.constant 129 : index
    %c0_172 = arith.constant 0 : index
    %179 = tpu.strided_load %arg6[%c129, %c0_172] {strides = array<i32: 2, 1>} : memref<160x128xf32, #tpu.memory_space<vmem>>, vector<5x128xf32>
    %c144 = arith.constant 144 : index
    %c0_173 = arith.constant 0 : index
    %180 = tpu.strided_load %arg6[%c144, %c0_173] {strides = array<i32: 2, 1>} : memref<160x128xf32, #tpu.memory_space<vmem>>, vector<5x128xf32>
    %c145 = arith.constant 145 : index
    %c0_174 = arith.constant 0 : index
    %181 = tpu.strided_load %arg6[%c145, %c0_174] {strides = array<i32: 2, 1>} : memref<160x128xf32, #tpu.memory_space<vmem>>, vector<5x128xf32>
    %182 = arith.maximumf %178, %179 : vector<5x128xf32>
    %183 = arith.maximumf %180, %181 : vector<5x128xf32>
    %184 = arith.maximumf %182, %183 : vector<5x128xf32>
    %185 = tpu.concatenate %156, %163, %170, %177, %184, %0 in 0 : vector<5x128xf32>, vector<5x128xf32>, vector<5x128xf32>, vector<5x128xf32>, vector<5x128xf32>, vector<7x128xf32> -> vector<32x128xf32>
    %186 = arith.truncf %185 : vector<32x128xf32> to vector<32x128xbf16>
    %c0_175 = arith.constant 0 : index
    %c0_176 = arith.constant 0 : index
    %c0_177 = arith.constant 0 : index
    %187 = vector.load %arg4[%c0_175, %c0_176, %c0_177] : memref<1x32x128xbf16, #tpu.memory_space<vmem>>, vector<1x32x128xbf16>
    %188 = vector.shape_cast %187 : vector<1x32x128xbf16> to vector<32x128xbf16>
    %189 = vector.shape_cast %186 : vector<32x128xbf16> to vector<1x32x128xbf16>
    tpu.vector_store %arg4[%c0_175, %c0_176, %c0_177], %189 {strides = array<i32>} : memref<1x32x128xbf16, #tpu.memory_space<vmem>>, vector<1x32x128xbf16>,
    return
  }
  func.func @transform_0(%arg0: i32) -> (i32, i32, i32) {
    %c0_i32 = arith.constant 0 : i32
    %c0_i32_0 = arith.constant 0 : i32
    %c0_i32_1 = arith.constant 0 : i32
    return %arg0, %c0_i32, %c0_i32_0 : i32, i32, i32
  }
  func.func @transform_1(%arg0: i32) -> (i32, i32, i32) {
    %c0_i32 = arith.constant 0 : i32
    %c0_i32_0 = arith.constant 0 : i32
    %c0_i32_1 = arith.constant 0 : i32
    %c0_i32_2 = arith.constant 0 : i32
    return %c0_i32, %c0_i32_0, %c0_i32_1 : i32, i32, i32
  }
  func.func @transform_2(%arg0: i32) -> (i32, i32) {
    %c0_i32 = arith.constant 0 : i32
    %c0_i32_0 = arith.constant 0 : i32
    %c0_i32_1 = arith.constant 0 : i32
    return %c0_i32, %c0_i32_0 : i32, i32
  }
  func.func @transform_3(%arg0: i32) -> (i32, i32, i32) {
    %c0_i32 = arith.constant 0 : i32
    %c0_i32_0 = arith.constant 0 : i32
    %c0_i32_1 = arith.constant 0 : i32
    return %arg0, %c0_i32, %c0_i32_0 : i32, i32, i32
  }
}

module attributes {stable_mosaic.version = 11 : i64} {
  func.func @_fc3_kernel(%arg0: i32, %arg1: memref<8x4096xbf16, #tpu.memory_space<vmem>>, %arg2: memref<4096x128xbf16, #tpu.memory_space<vmem>>, %arg3: memref<1x128xf32, #tpu.memory_space<vmem>>, %arg4: memref<128x128xbf16, #tpu.memory_space<vmem>>, %arg5: memref<1x128xf32, #tpu.memory_space<vmem>>, %arg6: memref<128x128xbf16, #tpu.memory_space<vmem>>, %arg7: memref<1x128xf32, #tpu.memory_space<vmem>>, %arg8: memref<8x128xf32, #tpu.memory_space<vmem>>) attributes {dimension_semantics = [#tpu.dimension_semantics<parallel>], iteration_bounds = array<i64: 1>, scalar_prefetch = 0 : i64, scratch_operands = 0 : i64, tpu.core_type = #tpu.core_type<tc>, window_params = [{transform_indices = @transform_0, window_bounds = array<i64: 8, 4096>}, {pipeline_mode = #tpu.pipeline_mode<synchronous>, transform_indices = @transform_1, window_bounds = array<i64: 4096, 128>}, {pipeline_mode = #tpu.pipeline_mode<synchronous>, transform_indices = @transform_2, window_bounds = array<i64: 1, 128>}, {pipeline_mode = #tpu.pipeline_mode<synchronous>, transform_indices = @transform_3, window_bounds = array<i64: 128, 128>}, {pipeline_mode = #tpu.pipeline_mode<synchronous>, transform_indices = @transform_4, window_bounds = array<i64: 1, 128>}, {pipeline_mode = #tpu.pipeline_mode<synchronous>, transform_indices = @transform_5, window_bounds = array<i64: 128, 128>}, {pipeline_mode = #tpu.pipeline_mode<synchronous>, transform_indices = @transform_6, window_bounds = array<i64: 1, 128>}, {transform_indices = @transform_7, window_bounds = array<i64: 8, 128>}]} {
    %c0 = arith.constant 0 : index
    %c0_0 = arith.constant 0 : index
    %0 = vector.load %arg1[%c0, %c0_0] : memref<8x4096xbf16, #tpu.memory_space<vmem>>, vector<8x4096xbf16>
    %c0_1 = arith.constant 0 : index
    %c0_2 = arith.constant 0 : index
    %1 = vector.load %arg2[%c0_1, %c0_2] : memref<4096x128xbf16, #tpu.memory_space<vmem>>, vector<4096x128xbf16>
    %cst = arith.constant dense<0.000000e+00> : vector<8x128xf32>
    %2 = tpu.matmul %0, %1, %cst {dimension_numbers = #tpu.dot_dimension_numbers<[1], [0], [0], [1], [0, 0, 1, 1], [], []>} : vector<8x4096xbf16>, vector<4096x128xbf16>, vector<8x128xf32> -> vector<8x128xf32>
    %c0_3 = arith.constant 0 : index
    %c0_4 = arith.constant 0 : index
    %3 = vector.load %arg3[%c0_3, %c0_4] : memref<1x128xf32, #tpu.memory_space<vmem>>, vector<1x128xf32>
    %4 = vector.broadcast %3 : vector<1x128xf32> to vector<8x128xf32>
    %5 = arith.addf %2, %4 : vector<8x128xf32>
    %cst_5 = arith.constant 0.000000e+00 : f32
    %6 = vector.broadcast %cst_5 : f32 to vector<8x128xf32>
    %7 = arith.maximumf %5, %6 : vector<8x128xf32>
    %8 = arith.truncf %7 : vector<8x128xf32> to vector<8x128xbf16>
    %c0_6 = arith.constant 0 : index
    %c0_7 = arith.constant 0 : index
    %9 = vector.load %arg4[%c0_6, %c0_7] : memref<128x128xbf16, #tpu.memory_space<vmem>>, vector<128x128xbf16>
    %cst_8 = arith.constant dense<0.000000e+00> : vector<8x128xf32>
    %10 = tpu.matmul %8, %9, %cst_8 {dimension_numbers = #tpu.dot_dimension_numbers<[1], [0], [0], [1], [0, 0, 1, 1], [], []>} : vector<8x128xbf16>, vector<128x128xbf16>, vector<8x128xf32> -> vector<8x128xf32>
    %c0_9 = arith.constant 0 : index
    %c0_10 = arith.constant 0 : index
    %11 = vector.load %arg5[%c0_9, %c0_10] : memref<1x128xf32, #tpu.memory_space<vmem>>, vector<1x128xf32>
    %12 = vector.broadcast %11 : vector<1x128xf32> to vector<8x128xf32>
    %13 = arith.addf %10, %12 : vector<8x128xf32>
    %cst_11 = arith.constant 0.000000e+00 : f32
    %14 = vector.broadcast %cst_11 : f32 to vector<8x128xf32>
    %15 = arith.maximumf %13, %14 : vector<8x128xf32>
    %16 = arith.truncf %15 : vector<8x128xf32> to vector<8x128xbf16>
    %c0_12 = arith.constant 0 : index
    %c0_13 = arith.constant 0 : index
    %17 = vector.load %arg6[%c0_12, %c0_13] : memref<128x128xbf16, #tpu.memory_space<vmem>>, vector<128x128xbf16>
    %cst_14 = arith.constant dense<0.000000e+00> : vector<8x128xf32>
    %18 = tpu.matmul %16, %17, %cst_14 {dimension_numbers = #tpu.dot_dimension_numbers<[1], [0], [0], [1], [0, 0, 1, 1], [], []>} : vector<8x128xbf16>, vector<128x128xbf16>, vector<8x128xf32> -> vector<8x128xf32>
    %c0_15 = arith.constant 0 : index
    %c0_16 = arith.constant 0 : index
    %19 = vector.load %arg7[%c0_15, %c0_16] : memref<1x128xf32, #tpu.memory_space<vmem>>, vector<1x128xf32>
    %20 = vector.broadcast %19 : vector<1x128xf32> to vector<8x128xf32>
    %21 = arith.addf %18, %20 : vector<8x128xf32>
    %c0_17 = arith.constant 0 : index
    %c0_18 = arith.constant 0 : index
    %22 = vector.load %arg8[%c0_17, %c0_18] : memref<8x128xf32, #tpu.memory_space<vmem>>, vector<8x128xf32>
    tpu.vector_store %arg8[%c0_17, %c0_18], %21 {strides = array<i32>} : memref<8x128xf32, #tpu.memory_space<vmem>>, vector<8x128xf32>,
    return
  }
  func.func @transform_0(%arg0: i32) -> (i32, i32) {
    %c0_i32 = arith.constant 0 : i32
    %c0_i32_0 = arith.constant 0 : i32
    return %arg0, %c0_i32 : i32, i32
  }
  func.func @transform_1(%arg0: i32) -> (i32, i32) {
    %c0_i32 = arith.constant 0 : i32
    %c0_i32_0 = arith.constant 0 : i32
    %c0_i32_1 = arith.constant 0 : i32
    return %c0_i32, %c0_i32_0 : i32, i32
  }
  func.func @transform_2(%arg0: i32) -> (i32, i32) {
    %c0_i32 = arith.constant 0 : i32
    %c0_i32_0 = arith.constant 0 : i32
    %c0_i32_1 = arith.constant 0 : i32
    return %c0_i32, %c0_i32_0 : i32, i32
  }
  func.func @transform_3(%arg0: i32) -> (i32, i32) {
    %c0_i32 = arith.constant 0 : i32
    %c0_i32_0 = arith.constant 0 : i32
    %c0_i32_1 = arith.constant 0 : i32
    return %c0_i32, %c0_i32_0 : i32, i32
  }
  func.func @transform_4(%arg0: i32) -> (i32, i32) {
    %c0_i32 = arith.constant 0 : i32
    %c0_i32_0 = arith.constant 0 : i32
    %c0_i32_1 = arith.constant 0 : i32
    return %c0_i32, %c0_i32_0 : i32, i32
  }
  func.func @transform_5(%arg0: i32) -> (i32, i32) {
    %c0_i32 = arith.constant 0 : i32
    %c0_i32_0 = arith.constant 0 : i32
    %c0_i32_1 = arith.constant 0 : i32
    return %c0_i32, %c0_i32_0 : i32, i32
  }
  func.func @transform_6(%arg0: i32) -> (i32, i32) {
    %c0_i32 = arith.constant 0 : i32
    %c0_i32_0 = arith.constant 0 : i32
    %c0_i32_1 = arith.constant 0 : i32
    return %c0_i32, %c0_i32_0 : i32, i32
  }
  func.func @transform_7(%arg0: i32) -> (i32, i32) {
    %c0_i32 = arith.constant 0 : i32
    %c0_i32_0 = arith.constant 0 : i32
    return %arg0, %c0_i32 : i32, i32
  }
}

</mosaic_0001>

<llo_original>
// kernel: net_forward.3
$region0: #{net_forward.3}
  #allocation0 [shape = 'u32[]', space=smem, size = 0x4, offset = 0x4, fixed_abs, tag = 'smem constant byte address 0x4 - core index']
  #allocation1 [shape = 'u32[144,128]{1,0:T(1,128)}', space=vmem, size = 0x12000, scoped, tag = 'internal scratch']
  #allocation2 [shape = 'f32[112,128]{1,0:T(8,128)}', space=vmem, size = 0xe000, scoped, tag = 'scratch operand']
  %s0 = inlined_call_operand.vmem [shape: bf16[2,784,256], index: 0, kind: input, shape index: {}]
  %s1 = inlined_call_operand.vmem [shape: bf16[256,128], index: 1, kind: input, shape index: {}]
  %s2 = inlined_call_operand.vmem [shape: f32[1,128], index: 2, kind: input, shape index: {}]
  %s3 = inlined_call_operand.vmem [shape: bf16[2,256,128], index: 3, kind: output, shape index: {}]
  %s4 = sld [smem:[#allocation0]]
  $region53: #{net_forward.3} parent=0
    _
  %s6 = ssub.s32 1, %s4
  %s7 = scalar_select 0, %s6, %s4
  loop: start=0, step=1, limit=18
  $region2: #{net_forward.3} parent=0 // loop_pre_header
    _
  $region3: #{net_forward.3} parent=0 // loop_header
    %s9 = sphi 0, %s13
    %p10 = scmp.ge.s32.totalorder %s9, 18
    %s16 = sphi 0, %s28
    %s17 = sphi 0, %s24
    %s18 = sphi 0, %s16
    %s19 = sphi 0, %s17
    %s20 = sphi 0, %s18
    %s21 = sphi 0, %s19
    %s37 = sphi 0, %s39
    %s40 = sphi 0, %s37
    %s41 = sphi 0, %s40
    %s57 = sphi 0, %s41
    %s61 = sphi 0, %s61
    %s63 = sphi 0, %s61
    %s64 = sphi 0, %s63
    %s78 = sphi 0, %s64
    %s82 = sphi 0, %s82
    %s84 = sphi 0, %s82
    %s85 = sphi 0, %s84
    %s99 = sphi 0, %s85
    %s107 = sphi 0, %s109
    %s110 = sphi 0, %s107
    %s111 = sphi 0, %s110
    %s127 = sphi 0, %s111
  $region4: #{net_forward.3} parent=0 // loop_header_branch
    %12 = sbr.rel (%p10) target = $region8
  $region5: #{net_forward.3} parent=0 // loop_body
    %s14 = ssub.s32 %s9, 1
    %s15 = ssub.s32 %s9, 2
    %s22 = sadd.s32 1, %s17
    %p23 = scmp.ge.s32.totalorder %s22, 8
    %s24 = scalar_select %p23, 0, %s22
    %s25 = sadd.s32 1, %s16
    %s26 = scalar_select %p23, %s25, %s16
    %p27 = scmp.ge.s32.totalorder %s26, 2
    %s28 = scalar_select %p27, 0, %s26
    %p29 = scmp.lt.s32.totalorder %s17, 6
    %s30 = scalar_select %p29, %s17, 6
    %p31 = scmp.lt.s32.totalorder %s24, 6
    %s32 = scalar_select %p31, %s24, 6
    %s33 = ssub.s32 %s16, %s28
    %s34 = ssub.s32 %s30, %s32
    %s35 = sor.u32 %s33, %s34
    %p36 = scmp.eq.s32.totalorder %s35, 0
    %s38 = sadd.s32 %s37, 1
    %s39 = scalar_select %p36, %s37, %s38
    %p42 = pneg %p36
    %p43 = scmp.eq.s32.totalorder %s9, 15
    %p44 = por %p42, %p43
    %p45 = scmp.ne.s32.totalorder %s37, %s40
    %p46 = scmp.eq.s32.totalorder %s9, 0
    %p47 = por %p45, %p46
    %p48 = scmp.ne.s32.totalorder %s37, %s40
    %p49 = scmp.eq.s32.totalorder %s14, 15
    %p50 = por %p48, %p49
    %p51 = scmp.ne.s32.totalorder %s40, %s41
    %p52 = scmp.eq.s32.totalorder %s14, 0
    %p53 = por %p51, %p52
    %p54 = scmp.ne.s32.totalorder %s40, %s41
    %p55 = scmp.eq.s32.totalorder %s15, 15
    %p56 = por %p54, %p55
    %p58 = scmp.ne.s32.totalorder %s41, %s57
    %p59 = scmp.eq.s32.totalorder %s15, 0
    %p60 = por %p58, %p59
    %s62 = sadd.s32 %s61, 1
    %p65 = scmp.eq.s32.totalorder %s9, 15
    %p66 = scmp.ne.s32.totalorder %s61, %s63
    %p67 = scmp.eq.s32.totalorder %s9, 0
    %p68 = por %p66, %p67
    %p69 = scmp.ne.s32.totalorder %s61, %s63
    %p70 = scmp.eq.s32.totalorder %s14, 15
    %p71 = por %p69, %p70
    %p72 = scmp.ne.s32.totalorder %s63, %s64
    %p73 = scmp.eq.s32.totalorder %s14, 0
    %p74 = por %p72, %p73
    %p75 = scmp.ne.s32.totalorder %s63, %s64
    %p76 = scmp.eq.s32.totalorder %s15, 15
    %p77 = por %p75, %p76
    %p79 = scmp.ne.s32.totalorder %s64, %s78
    %p80 = scmp.eq.s32.totalorder %s15, 0
    %p81 = por %p79, %p80
    %s83 = sadd.s32 %s82, 1
    %p86 = scmp.eq.s32.totalorder %s9, 15
    %p87 = scmp.ne.s32.totalorder %s82, %s84
    %p88 = scmp.eq.s32.totalorder %s9, 0
    %p89 = por %p87, %p88
    %p90 = scmp.ne.s32.totalorder %s82, %s84
    %p91 = scmp.eq.s32.totalorder %s14, 15
    %p92 = por %p90, %p91
    %p93 = scmp.ne.s32.totalorder %s84, %s85
    %p94 = scmp.eq.s32.totalorder %s14, 0
    %p95 = por %p93, %p94
    %p96 = scmp.ne.s32.totalorder %s84, %s85
    %p97 = scmp.eq.s32.totalorder %s15, 15
    %p98 = por %p96, %p97
    %p100 = scmp.ne.s32.totalorder %s85, %s99
    %p101 = scmp.eq.s32.totalorder %s15, 0
    %p102 = por %p100, %p101
    %s103 = ssub.s32 %s16, %s28
    %s104 = ssub.s32 %s17, %s24
    %s105 = sor.u32 %s103, %s104
    %p106 = scmp.eq.s32.totalorder %s105, 0
    %s108 = sadd.s32 %s107, 1
    %s109 = scalar_select %p106, %s107, %s108
    %p112 = pneg %p106
    %p113 = scmp.eq.s32.totalorder %s9, 15
    %p114 = por %p112, %p113
    %p115 = scmp.ne.s32.totalorder %s107, %s110
    %p116 = scmp.eq.s32.totalorder %s9, 0
    %p117 = por %p115, %p116
    %p118 = scmp.ne.s32.totalorder %s107, %s110
    %p119 = scmp.eq.s32.totalorder %s14, 15
    %p120 = por %p118, %p119
    %p121 = scmp.ne.s32.totalorder %s110, %s111
    %p122 = scmp.eq.s32.totalorder %s14, 0
    %p123 = por %p121, %p122
    %p124 = scmp.ne.s32.totalorder %s110, %s111
    %p125 = scmp.eq.s32.totalorder %s15, 15
    %p126 = por %p124, %p125
    %p128 = scmp.ne.s32.totalorder %s111, %s127
    %p129 = scmp.eq.s32.totalorder %s15, 0
    %p130 = por %p128, %p129
    %p131 = scmp.le.s32.totalorder 1, %s9
    %p132 = scmp.lt.s32.totalorder %s9, 17
    %p133 = pnand %p131, %p132
    %p134 = pneg %p133
    // Predicated region
    $region9: #{net_forward.3} parent=5 // pred_check
      _
    $region10: #{net_forward.3} parent=5 // pred_check_branch
      %136 = sbr.rel (%p133) target = $region12
    $region11: #{net_forward.3} parent=5 // pred_region
      %s137 = ssub.s32 %s9, 1
      // Predicated region
      $region13: #{net_forward.3} parent=11 // pred_check
        %p138 = pneg %p74
      $region14: #{net_forward.3} parent=11 // pred_check_branch
        %140 = sbr.rel (%p138) target = $region16
      $region15: #{net_forward.3} parent=11 // pred_region
        _
      $region16: #{net_forward.3} parent=11 // pred_fallthru
        _
      // Predicated region
      $region17: #{net_forward.3} parent=11 // pred_check
        %p141 = pneg %p95
      $region18: #{net_forward.3} parent=11 // pred_check_branch
        %143 = sbr.rel (%p141) target = $region20
      $region19: #{net_forward.3} parent=11 // pred_region
        _
      $region20: #{net_forward.3} parent=11 // pred_fallthru
        _
    $region12: #{net_forward.3} parent=5 // pred_fallthru
      _
    %p144 = scmp.lt.s32.totalorder %s9, 16
    // Predicated region
    $region21: #{net_forward.3} parent=5 // pred_check
      %p145 = pneg %p144
    $region22: #{net_forward.3} parent=5 // pred_check_branch
      %147 = sbr.rel (%p145) target = $region24
    $region23: #{net_forward.3} parent=5 // pred_region
      // Predicated region
      $region25: #{net_forward.3} parent=23 // pred_check
        %p148 = pneg %p47
      $region26: #{net_forward.3} parent=23 // pred_check_branch
        %150 = sbr.rel (%p148) target = $region28
      $region27: #{net_forward.3} parent=23 // pred_region
        %p151 = scmp.lt.s32.totalorder %s17, 6
        %s152 = scalar_select %p151, %s17, 6
        %s153 = smul.u32 14, %s152
        %p154 = scmp.lt.s32.totalorder %s16, 1
        %s155 = scalar_select %p154, %s16, 1
        %p156 = scmp.lt.s32.totalorder %s153, 97
        %s157 = scalar_select %p156, %s153, 97
        %s158 = smul.addr %s157, 2
        %s159 = smul.addr %s155, 196
        %s160 = sadd.s32 %s158, %s159
        %s161 = smul.addr %s160, 4
        %s162 = scalar_lea.vmem %s0, %s161
        %p163 = scmp.lt.s32.totalorder %s17, 6
        %s164 = scalar_select %p163, %s17, 6
        %s165 = smul.u32 14, %s164
      $region28: #{net_forward.3} parent=23 // pred_fallthru
        _
    $region24: #{net_forward.3} parent=5 // pred_fallthru
      _
    %p166 = scmp.le.s32.totalorder 1, %s9
    %p167 = scmp.lt.s32.totalorder %s9, 17
    %p168 = pnand %p166, %p167
    %p169 = pneg %p168
    // Predicated region
    $region29: #{net_forward.3} parent=5 // pred_check
      _
    $region30: #{net_forward.3} parent=5 // pred_check_branch
      %171 = sbr.rel (%p168) target = $region32
    $region31: #{net_forward.3} parent=5 // pred_region
      %s172 = ssub.s32 %s9, 1
      %p173 = scmp.lt.s32.totalorder %s19, 6
      %s174 = scalar_select %p173, %s19, 6
      %s175 = smul.u32 14, %s174
      %p176 = scmp.lt.s32.totalorder %s18, 1
      %s177 = scalar_select %p176, %s18, 1
      %p178 = scmp.lt.s32.totalorder %s175, 97
      %s179 = scalar_select %p178, %s175, 97
      %s180 = smul.addr %s179, 2
      %s181 = smul.addr %s177, 196
      %s182 = sadd.s32 %s180, %s181
      %s183 = smul.addr %s182, 4
      %s184 = scalar_lea.vmem %s0, %s183
      %p185 = pneg %p53
      %p186 = pneg %p50
      %p187 = pneg %p74
      %p188 = pneg %p71
      %p189 = pneg %p95
      %p190 = pneg %p92
      %p191 = pneg %p123
      %p192 = pneg %p120
      %s193 = smul.u32 4, %s19
      %p194 = scmp.lt.s32.totalorder %s18, 1
      %s195 = scalar_select %p194, %s18, 1
      %p196 = scmp.lt.s32.totalorder %s193, 31
      %s197 = scalar_select %p196, %s193, 31
      %s198 = smul.addr %s195, 32
      %s199 = sadd.s32 %s197, %s198
      %s200 = smul.addr %s199, 4
      %s201 = scalar_lea.vmem %s3, %s200
      %p202 = scmp.lt.s32.totalorder %s19, 6
      %s203 = scalar_select %p202, %s19, 6
      %s204 = smul.u32 14, %s203
      %p205 = scmp.lt.s32.totalorder %s18, 1
      %s206 = scalar_select %p205, %s18, 1
      %p207 = scmp.lt.s32.totalorder %s204, 97
      %s208 = scalar_select %p207, %s204, 97
      %s209 = smul.addr %s208, 2
      %s210 = smul.addr %s206, 196
      %s211 = sadd.s32 %s209, %s210
      %s212 = smul.addr %s211, 4
      %s213 = scalar_lea.vmem %s0, %s212
      %p214 = scmp.lt.s32.totalorder %s19, 6
      %s215 = scalar_select %p214, %s19, 6
      %s216 = smul.u32 14, %s215
      %s217 = smul.u32 4, %s19
      %p218 = scmp.lt.s32.totalorder %s18, 1
      %s219 = scalar_select %p218, %s18, 1
      %p220 = scmp.lt.s32.totalorder %s217, 31
      %s221 = scalar_select %p220, %s217, 31
      %s222 = smul.addr %s219, 32
      %s223 = sadd.s32 %s221, %s222
      %s224 = smul.addr %s223, 4
      %s225 = scalar_lea.vmem %s3, %s224
      %s226 = smul.u32 4, %s19
      %p228 = scmp.eq.s32.totalorder %s19, 7
      // Predicated region
      $region33: #{net_forward.3} parent=31 // pred_check
        %p229 = pneg %p228
      $region34: #{net_forward.3} parent=31 // pred_check_branch
        %231 = sbr.rel (%p229) target = $region36
      $region35: #{net_forward.3} parent=31 // pred_region
        %232 = vst [vmem:[%s225] sm:$0xf] 0
        %233 = vst [vmem:[%s225 + $0x4] sm:$0xf] 0
        %234 = vst [vmem:[%s225 + $0x8] sm:$0xf] 0
        %235 = vst [vmem:[%s225 + $0xc] sm:$0xf] 0
      $region36: #{net_forward.3} parent=31 // pred_fallthru
        _
      %p236 = scmp.lt.s32.totalorder %s19, 7
      // Predicated region
      $region37: #{net_forward.3} parent=31 // pred_check
        %p237 = pneg %p236
      $region38: #{net_forward.3} parent=31 // pred_check_branch
        %239 = sbr.rel (%p237) target = $region40
      $region39: #{net_forward.3} parent=31 // pred_region
        %v240 = vld [vmem:[%s213] sm:$0xff]
        %v241 = vld [vmem:[%s213 + $0x8] sm:$0xff]
        %v242 = vld [vmem:[%s213 + $0x10] sm:$0xff]
        %v243 = vld [vmem:[%s213 + $0x18] sm:$0xff]
        %v244 = vld [vmem:[%s213 + $0x20] sm:$0xff]
        %v245 = vld [vmem:[%s213 + $0x28] sm:$0xff]
        %v246 = vld [vmem:[%s213 + $0x30] sm:$0xff]
        %v247 = vld [vmem:[%s213 + $0x38] sm:$0xff]
        %v248 = vld [vmem:[%s213 + $0x40] sm:$0xff]
        %v249 = vld [vmem:[%s213 + $0x48] sm:$0xff]
        %v250 = vld [vmem:[%s213 + $0x50] sm:$0xff]
        %v251 = vld [vmem:[%s213 + $0x58] sm:$0xff]
        %v252 = vld [vmem:[%s213 + $0x60] sm:$0xff]
        %v253 = vld [vmem:[%s213 + $0x68] sm:$0xff]
        %v254 = vld [vmem:[%s1] sm:$0xf]
        %v255 = vld [vmem:[%s1 + $0x4] sm:$0xf]
        %v256 = vld [vmem:[%s1 + $0x8] sm:$0xf]
        %v257 = vld [vmem:[%s1 + $0xc] sm:$0xf]
        %v258 = vld [vmem:[%s1 + $0x10] sm:$0xf]
        %v259 = vld [vmem:[%s1 + $0x14] sm:$0xf]
        %v260 = vld [vmem:[%s1 + $0x18] sm:$0xf]
        %v261 = vld [vmem:[%s1 + $0x1c] sm:$0xf]
        %v262 = vld [vmem:[%s1 + $0x20] sm:$0xf]
        %v263 = vld [vmem:[%s1 + $0x24] sm:$0xf]
        %v264 = vld [vmem:[%s1 + $0x28] sm:$0xf]
        %v265 = vld [vmem:[%s1 + $0x2c] sm:$0xf]
        %v266 = vld [vmem:[%s1 + $0x30] sm:$0xf]
        %v267 = vld [vmem:[%s1 + $0x34] sm:$0xf]
        %v268 = vld [vmem:[%s1 + $0x38] sm:$0xf]
        %v269 = vld [vmem:[%s1 + $0x3c] sm:$0xf]
        %v270 = vld [vmem:[%s1 + $0x40] sm:$0xf]
        %v271 = vld [vmem:[%s1 + $0x44] sm:$0xf]
        %v272 = vld [vmem:[%s1 + $0x48] sm:$0xf]
        %v273 = vld [vmem:[%s1 + $0x4c] sm:$0xf]
        %v274 = vld [vmem:[%s1 + $0x50] sm:$0xf]
        %v275 = vld [vmem:[%s1 + $0x54] sm:$0xf]
        %v276 = vld [vmem:[%s1 + $0x58] sm:$0xf]
        %v277 = vld [vmem:[%s1 + $0x5c] sm:$0xf]
        %v278 = vld [vmem:[%s1 + $0x60] sm:$0xf]
        %v279 = vld [vmem:[%s1 + $0x64] sm:$0xf]
        %v280 = vld [vmem:[%s1 + $0x68] sm:$0xf]
        %v281 = vld [vmem:[%s1 + $0x6c] sm:$0xf]
        %v282 = vld [vmem:[%s1 + $0x70] sm:$0xf]
        %v283 = vld [vmem:[%s1 + $0x74] sm:$0xf]
        %v284 = vld [vmem:[%s1 + $0x78] sm:$0xf]
        %v285 = vld [vmem:[%s1 + $0x7c] sm:$0xf]
        %v286 = vld [vmem:[%s2] sm:$0x1]
        %v288 = vlaneseq
        %v289 = vshrl.u32 %v288, 7
        %v290 = vsub.s32 0, %v289
        %v291 = vrot.slane %v286, %v290
        %v307 = vunpack.c.l.b16 %v240
        %v308 = vunpack.c.h.b16 %v240
        %v309 = vunpack.c.l.b16 %v241
        %v310 = vunpack.c.h.b16 %v241
        %v311 = vunpack.c.l.b16 %v242
        %v312 = vunpack.c.h.b16 %v242
        %v313 = vunpack.c.l.b16 %v243
        %v314 = vunpack.c.h.b16 %v243
        %v315 = vunpack.c.l.b16 %v244
        %v316 = vunpack.c.h.b16 %v244
        %v317 = vunpack.c.l.b16 %v245
        %v318 = vunpack.c.h.b16 %v245
        %v319 = vunpack.c.l.b16 %v246
        %v320 = vunpack.c.h.b16 %v246
        %v321 = vunpack.c.l.b16 %v247
        %v322 = vunpack.c.h.b16 %v247
        %v323 = vunpack.c.l.b16 %v248
        %v324 = vunpack.c.h.b16 %v248
        %v325 = vunpack.c.l.b16 %v249
        %v326 = vunpack.c.h.b16 %v249
        %v327 = vunpack.c.l.b16 %v250
        %v328 = vunpack.c.h.b16 %v250
        %v329 = vunpack.c.l.b16 %v251
        %v330 = vunpack.c.h.b16 %v251
        %v331 = vunpack.c.l.b16 %v252
        %v332 = vunpack.c.h.b16 %v252
        %v333 = vunpack.c.l.b16 %v253
        %v334 = vunpack.c.h.b16 %v253
        %v335 = vpack.c.b16 %v309, %v307
        %v336 = vpack.c.b16 %v310, %v308
        %v337 = vpack.c.b16 %v313, %v311
        %v338 = vpack.c.b16 %v314, %v312
        %v339 = vpack.c.b16 %v317, %v315
        %v340 = vpack.c.b16 %v318, %v316
        %v341 = vpack.c.b16 %v321, %v319
        %v342 = vpack.c.b16 %v322, %v320
        %v343 = vpack.c.b16 %v325, %v323
        %v344 = vpack.c.b16 %v326, %v324
        %v345 = vpack.c.b16 %v329, %v327
        %v346 = vpack.c.b16 %v330, %v328
        %v347 = vpack.c.b16 %v333, %v331
        %v348 = vpack.c.b16 %v334, %v332
        %v395 = vunpack.c.l.b16 %v254
        %v396 = vunpack.c.l.b16 %v255
        %v397 = vunpack.c.l.b16 %v256
        %v398 = vunpack.c.l.b16 %v257
        %v399 = vunpack.c.l.b16 %v258
        %v400 = vunpack.c.l.b16 %v259
        %v401 = vunpack.c.l.b16 %v260
        %v402 = vunpack.c.l.b16 %v261
        %v403 = vunpack.c.l.b16 %v262
        %v404 = vunpack.c.l.b16 %v263
        %v405 = vunpack.c.l.b16 %v264
        %v406 = vunpack.c.l.b16 %v265
        %v407 = vunpack.c.l.b16 %v266
        %v408 = vunpack.c.l.b16 %v267
        %v409 = vunpack.c.l.b16 %v268
        %v410 = vunpack.c.l.b16 %v269
        %v411 = vunpack.c.l.b16 %v270
        %v412 = vunpack.c.l.b16 %v271
        %v413 = vunpack.c.l.b16 %v272
        %v414 = vunpack.c.l.b16 %v273
        %v415 = vunpack.c.l.b16 %v274
        %v416 = vunpack.c.l.b16 %v275
        %v417 = vunpack.c.l.b16 %v276
        %v418 = vunpack.c.l.b16 %v277
        %v419 = vunpack.c.l.b16 %v278
        %v420 = vunpack.c.l.b16 %v279
        %v421 = vunpack.c.l.b16 %v280
        %v422 = vunpack.c.l.b16 %v281
        %v423 = vunpack.c.l.b16 %v282
        %v424 = vunpack.c.l.b16 %v283
        %v425 = vunpack.c.l.b16 %v284
        %v426 = vunpack.c.l.b16 %v285
        %v427 = vpack.c.b16 %v396, %v395
        %v428 = vpack.c.b16 %v398, %v397
        %v429 = vpack.c.b16 %v400, %v399
        %v430 = vpack.c.b16 %v402, %v401
        %v431 = vpack.c.b16 %v404, %v403
        %v432 = vpack.c.b16 %v406, %v405
        %v433 = vpack.c.b16 %v408, %v407
        %v434 = vpack.c.b16 %v410, %v409
        %v435 = vpack.c.b16 %v412, %v411
        %v436 = vpack.c.b16 %v414, %v413
        %v437 = vpack.c.b16 %v416, %v415
        %v438 = vpack.c.b16 %v418, %v417
        %v439 = vpack.c.b16 %v420, %v419
        %v440 = vpack.c.b16 %v422, %v421
        %v441 = vpack.c.b16 %v424, %v423
        %v442 = vpack.c.b16 %v426, %v425
        %459 = vmatprep.subr.bf16.mxu0 0
        %460 = vmatpush1.bf16.msra.mxu0 %v427
        %461 = vmatprep.subr.bf16.mxu0 0
        %462 = vmatpush1.bf16.msra.mxu0 %v428
        %463 = vmatprep.subr.bf16.mxu0 0
        %464 = vmatpush1.bf16.msra.mxu0 %v429
        %465 = vmatprep.subr.bf16.mxu0 0
        %466 = vmatpush1.bf16.msra.mxu0 %v430
        %467 = vmatprep.subr.bf16.mxu0 0
        %468 = vmatpush1.bf16.msra.mxu0 %v431
        %469 = vmatprep.subr.bf16.mxu0 0
        %470 = vmatpush1.bf16.msra.mxu0 %v432
        %471 = vmatprep.subr.bf16.mxu0 0
        %472 = vmatpush1.bf16.msra.mxu0 %v433
        %473 = vmatprep.subr.bf16.mxu0 0
        %474 = vmatpush1.bf16.msra.mxu0 %v434
        %475 = vmatprep.subr.bf16.mxu0 0
        %476 = vmatpush1.bf16.msra.mxu0 %v435
        %477 = vmatprep.subr.bf16.mxu0 0
        %478 = vmatpush1.bf16.msra.mxu0 %v436
        %479 = vmatprep.subr.bf16.mxu0 0
        %480 = vmatpush1.bf16.msra.mxu0 %v437
        %481 = vmatprep.subr.bf16.mxu0 0
        %482 = vmatpush1.bf16.msra.mxu0 %v438
        %483 = vmatprep.subr.bf16.mxu0 0
        %484 = vmatpush1.bf16.msra.mxu0 %v439
        %485 = vmatprep.subr.bf16.mxu0 0
        %486 = vmatpush1.bf16.msra.mxu0 %v440
        %487 = vmatprep.subr.bf16.mxu0 0
        %488 = vmatpush1.bf16.msra.mxu0 %v441
        %489 = vmatprep.subr.bf16.mxu0 0
        %490 = vmatpush1.bf16.msra.mxu0 %v442
        %491 = vmatprep.mubr.bf16.mxu0 %v336
        %492 = vmatmul.mubr.bf16.gmra.mrb[0].mxu0 %v335
        %v493 = vpop.f32.mrb[0].mxu0
        %v494 = vadd.f32 %v291, %v493
        %v495 = vpop.f32.mrb[0].mxu0
        %v496 = vpop.f32.mrb[0].mxu0
        %v497 = vadd.f32 %v291, %v496
        %v498 = vpop.f32.mrb[0].mxu0
        %499 = vmatprep.mubr.bf16.mxu0 %v338
        %500 = vmatmul.mubr.bf16.gmra.mrb[0].mxu0 %v337
        %v501 = vpop.f32.mrb[0].mxu0
        %v502 = vadd.f32 %v291, %v501
        %v503 = vpop.f32.mrb[0].mxu0
        %v504 = vpop.f32.mrb[0].mxu0
        %v505 = vadd.f32 %v291, %v504
        %v506 = vpop.f32.mrb[0].mxu0
        %507 = vmatprep.mubr.bf16.mxu0 %v340
        %508 = vmatmul.mubr.bf16.gmra.mrb[0].mxu0 %v339
        %v509 = vpop.f32.mrb[0].mxu0
        %v510 = vadd.f32 %v291, %v509
        %v511 = vpop.f32.mrb[0].mxu0
        %v512 = vpop.f32.mrb[0].mxu0
        %v513 = vadd.f32 %v291, %v512
        %v514 = vpop.f32.mrb[0].mxu0
        %515 = vmatprep.mubr.bf16.mxu0 %v342
        %516 = vmatmul.mubr.bf16.gmra.mrb[0].mxu0 %v341
        %v517 = vpop.f32.mrb[0].mxu0
        %v518 = vadd.f32 %v291, %v517
        %v519 = vpop.f32.mrb[0].mxu0
        %v520 = vpop.f32.mrb[0].mxu0
        %v521 = vadd.f32 %v291, %v520
        %v522 = vpop.f32.mrb[0].mxu0
        %523 = vmatprep.mubr.bf16.mxu0 %v344
        %524 = vmatmul.mubr.bf16.gmra.mrb[0].mxu0 %v343
        %v525 = vpop.f32.mrb[0].mxu0
        %v526 = vadd.f32 %v291, %v525
        %v527 = vpop.f32.mrb[0].mxu0
        %v528 = vpop.f32.mrb[0].mxu0
        %v529 = vadd.f32 %v291, %v528
        %v530 = vpop.f32.mrb[0].mxu0
        %531 = vmatprep.mubr.bf16.mxu0 %v346
        %532 = vmatmul.mubr.bf16.gmra.mrb[0].mxu0 %v345
        %v533 = vpop.f32.mrb[0].mxu0
        %v534 = vadd.f32 %v291, %v533
        %v535 = vpop.f32.mrb[0].mxu0
        %v536 = vpop.f32.mrb[0].mxu0
        %v537 = vadd.f32 %v291, %v536
        %v538 = vpop.f32.mrb[0].mxu0
        %539 = vmatprep.mubr.bf16.mxu0 %v348
        %540 = vmatmul.mubr.bf16.gmra.mrb[0].mxu0 %v347
        %v541 = vpop.f32.mrb[0].mxu0
        %v542 = vadd.f32 %v291, %v541
        %v543 = vpop.f32.mrb[0].mxu0
        %v544 = vpop.f32.mrb[0].mxu0
        %v545 = vadd.f32 %v291, %v544
        %v546 = vpop.f32.mrb[0].mxu0
        %547 = vdwg.mxu0
        %v548 = vmax.f32 %v494, 0.0
        %v549 = vmax.f32 %v497, 0.0
        %v550 = vmax.f32 %v502, 0.0
        %v551 = vmax.f32 %v505, 0.0
        %v552 = vmax.f32 %v510, 0.0
        %v553 = vmax.f32 %v513, 0.0
        %v554 = vmax.f32 %v518, 0.0
        %v555 = vmax.f32 %v521, 0.0
        %v556 = vmax.f32 %v526, 0.0
        %v557 = vmax.f32 %v529, 0.0
        %v558 = vmax.f32 %v534, 0.0
        %v559 = vmax.f32 %v537, 0.0
        %v560 = vmax.f32 %v542, 0.0
        %v561 = vmax.f32 %v545, 0.0
        %562 = vst [vmem:[#allocation2] sm:$0xff] %v548
        %563 = vst [vmem:[#allocation2 + $0x8] sm:$0xff] %v549
        %564 = vst [vmem:[#allocation2 + $0x10] sm:$0xff] %v550
        %565 = vst [vmem:[#allocation2 + $0x18] sm:$0xff] %v551
        %566 = vst [vmem:[#allocation2 + $0x20] sm:$0xff] %v552
        %567 = vst [vmem:[#allocation2 + $0x28] sm:$0xff] %v553
        %568 = vst [vmem:[#allocation2 + $0x30] sm:$0xff] %v554
        %569 = vst [vmem:[#allocation2 + $0x38] sm:$0xff] %v555
        %570 = vst [vmem:[#allocation2 + $0x40] sm:$0xff] %v556
        %571 = vst [vmem:[#allocation2 + $0x48] sm:$0xff] %v557
        %572 = vst [vmem:[#allocation2 + $0x50] sm:$0xff] %v558
        %573 = vst [vmem:[#allocation2 + $0x58] sm:$0xff] %v559
        %574 = vst [vmem:[#allocation2 + $0x60] sm:$0xff] %v560
        %575 = vst [vmem:[#allocation2 + $0x68] sm:$0xff] %v561
        %v576 = vld [vmem:[#allocation2] ss:$2 sm:$0xff]
        %s577 = scalar_lea.vmem [#allocation2], 16
        %v578 = vld [vmem:[%s577] ss:$2 sm:$0x3f]
        %s579 = scalar_lea.vmem [#allocation2], 1
        %v580 = vld [vmem:[%s579] ss:$2 sm:$0xff]
        %s581 = scalar_lea.vmem [#allocation2], 17
        %v582 = vld [vmem:[%s581] ss:$2 sm:$0x3f]
        %s583 = scalar_lea.vmem [#allocation2], 28
        %v584 = vld [vmem:[%s583] ss:$2 sm:$0xff]
        %s585 = scalar_lea.vmem [#allocation2], 44
        %v586 = vld [vmem:[%s585] ss:$2 sm:$0x3f]
        %s587 = scalar_lea.vmem [#allocation2], 29
        %v588 = vld [vmem:[%s587] ss:$2 sm:$0xff]
        %s589 = scalar_lea.vmem [#allocation2], 45
        %v590 = vld [vmem:[%s589] ss:$2 sm:$0x3f]
        %v591 = vmax.f32 %v576, %v580
        %v592 = vmax.f32 %v578, %v582
        %v593 = vmax.f32 %v584, %v588
        %v594 = vmax.f32 %v586, %v590
        %v595 = vmax.f32 %v591, %v593
        %v596 = vmax.f32 %v592, %v594
        %s597 = scalar_lea.vmem [#allocation2], 56
        %v598 = vld [vmem:[%s597] ss:$2 sm:$0xff]
        %s599 = scalar_lea.vmem [#allocation2], 72
        %v600 = vld [vmem:[%s599] ss:$2 sm:$0x3f]
        %s601 = scalar_lea.vmem [#allocation2], 57
        %v602 = vld [vmem:[%s601] ss:$2 sm:$0xff]
        %s603 = scalar_lea.vmem [#allocation2], 73
        %v604 = vld [vmem:[%s603] ss:$2 sm:$0x3f]
        %s605 = scalar_lea.vmem [#allocation2], 84
        %v606 = vld [vmem:[%s605] ss:$2 sm:$0xff]
        %s607 = scalar_lea.vmem [#allocation2], 100
        %v608 = vld [vmem:[%s607] ss:$2 sm:$0x3f]
        %s609 = scalar_lea.vmem [#allocation2], 85
        %v610 = vld [vmem:[%s609] ss:$2 sm:$0xff]
        %s611 = scalar_lea.vmem [#allocation2], 101
        %v612 = vld [vmem:[%s611] ss:$2 sm:$0x3f]
        %v613 = vmax.f32 %v598, %v602
        %v614 = vmax.f32 %v600, %v604
        %v615 = vmax.f32 %v606, %v610
        %v616 = vmax.f32 %v608, %v612
        %v617 = vmax.f32 %v613, %v615
        %v618 = vmax.f32 %v614, %v616
        %vm619 = vcmask 1045504
        %v620 = vsel %vm619, %v596, 0.0
        %v621 = vsel %vm619, %v618, 0.0
        %v622 = vpack.c.bf16 %v620, %v595
        %v623 = vpack.c.bf16 %v621, %v617
        %v626 = vunpack.c.l.b16 %v622
        %v627 = vunpack.c.h.b16 %v622
        %v628 = vunpack.c.l.b16 %v623
        %v629 = vunpack.c.h.b16 %v623
        %v630 = vpack.c.b16 %v626, %v626
        %v631 = vpack.c.b16 %v627, %v627
        %v632 = vpack.c.b16 %v628, %v628
        %v633 = vpack.c.b16 %v629, %v629
        %638 = vst [vmem:[%s225] sm:$0xf] %v630
        %639 = vst [vmem:[%s225 + $0x4] sm:$0xf] %v631
        %640 = vst [vmem:[%s225 + $0x8] sm:$0xf] %v632
        %641 = vst [vmem:[%s225 + $0xc] sm:$0xf] %v633
      $region40: #{net_forward.3} parent=31 // pred_fallthru
        _
      %s642 = smul.u32 4, %s19
      %p643 = scmp.lt.s32.totalorder %s18, 1
      %s644 = scalar_select %p643, %s18, 1
      %p645 = scmp.lt.s32.totalorder %s642, 31
      %s646 = scalar_select %p645, %s642, 31
      %s647 = smul.addr %s644, 32
      %s648 = sadd.s32 %s646, %s647
      %s649 = smul.addr %s648, 4
      %s650 = scalar_lea.vmem %s3, %s649
      // Predicated region
      $region41: #{net_forward.3} parent=31 // pred_check
        %p651 = pneg %p120
      $region42: #{net_forward.3} parent=31 // pred_check_branch
        %653 = sbr.rel (%p651) target = $region44
      $region43: #{net_forward.3} parent=31 // pred_region
        %s654 = smul.u32 4, %s19
      $region44: #{net_forward.3} parent=31 // pred_fallthru
        _
    $region32: #{net_forward.3} parent=5 // pred_fallthru
      _
    %p655 = scmp.le.s32.totalorder 2, %s9
    // Predicated region
    $region45: #{net_forward.3} parent=5 // pred_check
      %p656 = pneg %p655
    $region46: #{net_forward.3} parent=5 // pred_check_branch
      %658 = sbr.rel (%p656) target = $region48
    $region47: #{net_forward.3} parent=5 // pred_region
      %s659 = ssub.s32 %s9, 2
      // Predicated region
      $region49: #{net_forward.3} parent=47 // pred_check
        %p660 = pneg %p126
      $region50: #{net_forward.3} parent=47 // pred_check_branch
        %662 = sbr.rel (%p660) target = $region52
      $region51: #{net_forward.3} parent=47 // pred_region
        %s663 = smul.u32 4, %s21
        %p664 = scmp.lt.s32.totalorder %s20, 1
        %s665 = scalar_select %p664, %s20, 1
        %p666 = scmp.lt.s32.totalorder %s663, 31
        %s667 = scalar_select %p666, %s663, 31
        %s668 = smul.addr %s665, 32
        %s669 = sadd.s32 %s667, %s668
        %s670 = smul.addr %s669, 4
        %s671 = scalar_lea.vmem %s3, %s670
      $region52: #{net_forward.3} parent=47 // pred_fallthru
        _
    $region48: #{net_forward.3} parent=5 // pred_fallthru
      _
  $region6: #{net_forward.3} parent=0 // loop_footer
    %s13 = sadd.s32 1, %s9
  $region7: #{net_forward.3} parent=0 // loop_footer_branch
    %8 = sbr.rel target = $region3
  $region8: #{net_forward.3} parent=0 // loop_exit
    _

// kernel: net_forward.4
$region0: #{net_forward.4}
  #allocation0 [shape = 'u32[]', space=smem, size = 0x4, offset = 0x4, fixed_abs, tag = 'smem constant byte address 0x4 - core index']
  #allocation1 [shape = 'u32[144,128]{1,0:T(1,128)}', space=vmem, size = 0x12000, scoped, tag = 'internal scratch']
  #allocation2 [shape = 'bf16[5,224,128]{2,1,0:T(16,128)(2,1)}', space=vmem, size = 0x46000, scoped, tag = 'scratch operand']
  #allocation3 [shape = 'f32[160,128]{1,0:T(8,128)}', space=vmem, size = 0x14000, scoped, tag = 'scratch operand']
  %s0 = inlined_call_operand.vmem [shape: bf16[2,256,128], index: 0, kind: input, shape index: {}]
  %s1 = inlined_call_operand.vmem [shape: bf16[13,256,128], index: 1, kind: input, shape index: {}]
  %s2 = inlined_call_operand.vmem [shape: f32[1,128], index: 2, kind: input, shape index: {}]
  %s3 = inlined_call_operand.vmem [shape: bf16[2,32,128], index: 3, kind: output, shape index: {}]
  %s4 = sld [smem:[#allocation0]]
  $region45: #{net_forward.4} parent=0
    _
  %s6 = ssub.s32 1, %s4
  %s7 = scalar_select 0, %s6, %s4
  loop: start=0, step=1, limit=4
  $region2: #{net_forward.4} parent=0 // loop_pre_header
    _
  $region3: #{net_forward.4} parent=0 // loop_header
    %s9 = sphi 0, %s13
    %p10 = scmp.ge.s32.totalorder %s9, 4
    %s19 = sphi 0, %s21
    %s22 = sphi 0, %s19
    %s23 = sphi 0, %s22
    %s39 = sphi 0, %s23
    %s43 = sphi 0, %s43
    %s45 = sphi 0, %s43
    %s46 = sphi 0, %s45
    %s60 = sphi 0, %s46
    %s64 = sphi 0, %s64
    %s66 = sphi 0, %s64
    %s67 = sphi 0, %s66
    %s81 = sphi 0, %s67
    %s87 = sphi 0, %s89
    %s90 = sphi 0, %s87
    %s91 = sphi 0, %s90
    %s107 = sphi 0, %s91
  $region4: #{net_forward.4} parent=0 // loop_header_branch
    %12 = sbr.rel (%p10) target = $region8
  $region5: #{net_forward.4} parent=0 // loop_body
    %s14 = ssub.s32 %s9, 1
    %s15 = ssub.s32 %s9, 2
    %s16 = sadd.s32 %s9, 1
    %s17 = ssub.s32 %s9, %s16
    %p18 = scmp.eq.s32.totalorder %s17, 0
    %s20 = sadd.s32 %s19, 1
    %s21 = scalar_select %p18, %s19, %s20
    %p24 = pneg %p18
    %p25 = scmp.eq.s32.totalorder %s9, 1
    %p26 = por %p24, %p25
    %p27 = scmp.ne.s32.totalorder %s19, %s22
    %p28 = scmp.eq.s32.totalorder %s9, 0
    %p29 = por %p27, %p28
    %p30 = scmp.ne.s32.totalorder %s19, %s22
    %p31 = scmp.eq.s32.totalorder %s14, 1
    %p32 = por %p30, %p31
    %p33 = scmp.ne.s32.totalorder %s22, %s23
    %p34 = scmp.eq.s32.totalorder %s14, 0
    %p35 = por %p33, %p34
    %p36 = scmp.ne.s32.totalorder %s22, %s23
    %p37 = scmp.eq.s32.totalorder %s15, 1
    %p38 = por %p36, %p37
    %p40 = scmp.ne.s32.totalorder %s23, %s39
    %p41 = scmp.eq.s32.totalorder %s15, 0
    %p42 = por %p40, %p41
    %s44 = sadd.s32 %s43, 1
    %p47 = scmp.eq.s32.totalorder %s9, 1
    %p48 = scmp.ne.s32.totalorder %s43, %s45
    %p49 = scmp.eq.s32.totalorder %s9, 0
    %p50 = por %p48, %p49
    %p51 = scmp.ne.s32.totalorder %s43, %s45
    %p52 = scmp.eq.s32.totalorder %s14, 1
    %p53 = por %p51, %p52
    %p54 = scmp.ne.s32.totalorder %s45, %s46
    %p55 = scmp.eq.s32.totalorder %s14, 0
    %p56 = por %p54, %p55
    %p57 = scmp.ne.s32.totalorder %s45, %s46
    %p58 = scmp.eq.s32.totalorder %s15, 1
    %p59 = por %p57, %p58
    %p61 = scmp.ne.s32.totalorder %s46, %s60
    %p62 = scmp.eq.s32.totalorder %s15, 0
    %p63 = por %p61, %p62
    %s65 = sadd.s32 %s64, 1
    %p68 = scmp.eq.s32.totalorder %s9, 1
    %p69 = scmp.ne.s32.totalorder %s64, %s66
    %p70 = scmp.eq.s32.totalorder %s9, 0
    %p71 = por %p69, %p70
    %p72 = scmp.ne.s32.totalorder %s64, %s66
    %p73 = scmp.eq.s32.totalorder %s14, 1
    %p74 = por %p72, %p73
    %p75 = scmp.ne.s32.totalorder %s66, %s67
    %p76 = scmp.eq.s32.totalorder %s14, 0
    %p77 = por %p75, %p76
    %p78 = scmp.ne.s32.totalorder %s66, %s67
    %p79 = scmp.eq.s32.totalorder %s15, 1
    %p80 = por %p78, %p79
    %p82 = scmp.ne.s32.totalorder %s67, %s81
    %p83 = scmp.eq.s32.totalorder %s15, 0
    %p84 = por %p82, %p83
    %s85 = ssub.s32 %s9, %s16
    %p86 = scmp.eq.s32.totalorder %s85, 0
    %s88 = sadd.s32 %s87, 1
    %s89 = scalar_select %p86, %s87, %s88
    %p92 = pneg %p86
    %p93 = scmp.eq.s32.totalorder %s9, 1
    %p94 = por %p92, %p93
    %p95 = scmp.ne.s32.totalorder %s87, %s90
    %p96 = scmp.eq.s32.totalorder %s9, 0
    %p97 = por %p95, %p96
    %p98 = scmp.ne.s32.totalorder %s87, %s90
    %p99 = scmp.eq.s32.totalorder %s14, 1
    %p100 = por %p98, %p99
    %p101 = scmp.ne.s32.totalorder %s90, %s91
    %p102 = scmp.eq.s32.totalorder %s14, 0
    %p103 = por %p101, %p102
    %p104 = scmp.ne.s32.totalorder %s90, %s91
    %p105 = scmp.eq.s32.totalorder %s15, 1
    %p106 = por %p104, %p105
    %p108 = scmp.ne.s32.totalorder %s91, %s107
    %p109 = scmp.eq.s32.totalorder %s15, 0
    %p110 = por %p108, %p109
    %p111 = scmp.le.s32.totalorder 1, %s9
    %p112 = scmp.lt.s32.totalorder %s9, 3
    %p113 = pnand %p111, %p112
    %p114 = pneg %p113
    // Predicated region
    $region9: #{net_forward.4} parent=5 // pred_check
      _
    $region10: #{net_forward.4} parent=5 // pred_check_branch
      %116 = sbr.rel (%p113) target = $region12
    $region11: #{net_forward.4} parent=5 // pred_region
      %s117 = ssub.s32 %s9, 1
      // Predicated region
      $region13: #{net_forward.4} parent=11 // pred_check
        %p118 = pneg %p56
      $region14: #{net_forward.4} parent=11 // pred_check_branch
        %120 = sbr.rel (%p118) target = $region16
      $region15: #{net_forward.4} parent=11 // pred_region
        _
      $region16: #{net_forward.4} parent=11 // pred_fallthru
        _
      // Predicated region
      $region17: #{net_forward.4} parent=11 // pred_check
        %p121 = pneg %p77
      $region18: #{net_forward.4} parent=11 // pred_check_branch
        %123 = sbr.rel (%p121) target = $region20
      $region19: #{net_forward.4} parent=11 // pred_region
        _
      $region20: #{net_forward.4} parent=11 // pred_fallthru
        _
    $region12: #{net_forward.4} parent=5 // pred_fallthru
      _
    %p124 = scmp.lt.s32.totalorder %s9, 2
    // Predicated region
    $region21: #{net_forward.4} parent=5 // pred_check
      %p125 = pneg %p124
    $region22: #{net_forward.4} parent=5 // pred_check_branch
      %127 = sbr.rel (%p125) target = $region24
    $region23: #{net_forward.4} parent=5 // pred_region
      // Predicated region
      $region25: #{net_forward.4} parent=23 // pred_check
        %p128 = pneg %p29
      $region26: #{net_forward.4} parent=23 // pred_check_branch
        %130 = sbr.rel (%p128) target = $region28
      $region27: #{net_forward.4} parent=23 // pred_region
        %p131 = scmp.lt.s32.totalorder %s9, 1
        %s132 = scalar_select %p131, %s9, 1
        %s133 = smul.addr %s132, 32
        %s134 = smul.addr %s133, 4
        %s135 = scalar_lea.vmem %s0, %s134
      $region28: #{net_forward.4} parent=23 // pred_fallthru
        _
    $region24: #{net_forward.4} parent=5 // pred_fallthru
      _
    %p136 = scmp.le.s32.totalorder 1, %s9
    %p137 = scmp.lt.s32.totalorder %s9, 3
    %p138 = pnand %p136, %p137
    %p139 = pneg %p138
    // Predicated region
    $region29: #{net_forward.4} parent=5 // pred_check
      _
    $region30: #{net_forward.4} parent=5 // pred_check_branch
      %141 = sbr.rel (%p138) target = $region32
    $region31: #{net_forward.4} parent=5 // pred_region
      %s142 = ssub.s32 %s9, 1
      %p143 = scmp.lt.s32.totalorder %s14, 1
      %s144 = scalar_select %p143, %s14, 1
      %s145 = smul.addr %s144, 32
      %s146 = smul.addr %s145, 4
      %s147 = scalar_lea.vmem %s0, %s146
      %p148 = pneg %p35
      %p149 = pneg %p32
      %p150 = pneg %p56
      %p151 = pneg %p53
      %p152 = pneg %p77
      %p153 = pneg %p74
      %p154 = pneg %p103
      %p155 = pneg %p100
      %p156 = scmp.lt.s32.totalorder %s14, 1
      %s157 = scalar_select %p156, %s14, 1
      %s158 = smul.addr %s157, 4
      %s159 = smul.addr %s158, 4
      %s160 = scalar_lea.vmem %s3, %s159
      %p161 = scmp.lt.s32.totalorder %s14, 1
      %s162 = scalar_select %p161, %s14, 1
      %s163 = smul.addr %s162, 32
      %s164 = smul.addr %s163, 4
      %s165 = scalar_lea.vmem %s0, %s164
      %p166 = scmp.lt.s32.totalorder %s14, 1
      %s167 = scalar_select %p166, %s14, 1
      %s168 = smul.addr %s167, 4
      %s169 = smul.addr %s168, 4
      %s170 = scalar_lea.vmem %s3, %s169
      %v172 = vld [vmem:[%s165] sm:$0xf]
      %v173 = vld [vmem:[%s165 + $0x4] sm:$0xf]
      %v174 = vld [vmem:[%s165 + $0x8] sm:$0xf]
      %v175 = vld [vmem:[%s165 + $0xc] sm:$0xf]
      %v176 = vld [vmem:[%s165 + $0x10] sm:$0xf]
      %v177 = vld [vmem:[%s165 + $0x14] sm:$0xf]
      %v178 = vld [vmem:[%s165 + $0x18] sm:$0xf]
      %v179 = vld [vmem:[%s165 + $0x1c] sm:$0xf]
      %v180 = vld [vmem:[%s165 + $0x20] sm:$0xf]
      %v181 = vld [vmem:[%s165 + $0x24] sm:$0xf]
      %v182 = vld [vmem:[%s165 + $0x28] sm:$0xf]
      %v183 = vld [vmem:[%s165 + $0x2c] sm:$0xf]
      %v184 = vld [vmem:[%s165 + $0x30] sm:$0xf]
      %v185 = vld [vmem:[%s165 + $0x34] sm:$0xf]
      %v186 = vld [vmem:[%s165 + $0x38] sm:$0xf]
      %v187 = vld [vmem:[%s165 + $0x3c] sm:$0xf]
      %v188 = vld [vmem:[%s165 + $0x40] sm:$0xf]
      %v189 = vld [vmem:[%s165 + $0x44] sm:$0xf]
      %v190 = vld [vmem:[%s165 + $0x48] sm:$0xf]
      %v191 = vld [vmem:[%s165 + $0x4c] sm:$0xf]
      %v192 = vld [vmem:[%s165 + $0x50] sm:$0xf]
      %v193 = vld [vmem:[%s165 + $0x54] sm:$0xf]
      %v194 = vld [vmem:[%s165 + $0x58] sm:$0xf]
      %v195 = vld [vmem:[%s165 + $0x5c] sm:$0xf]
      %v196 = vld [vmem:[%s165 + $0x60] sm:$0xf]
      %v197 = vld [vmem:[%s165 + $0x64] sm:$0xf]
      %v198 = vld [vmem:[%s165 + $0x68] sm:$0xf]
      %v199 = vld [vmem:[%s165 + $0x6c] sm:$0xf]
      %v228 = vunpack.c.l.b16 %v172
      %v229 = vunpack.c.l.b16 %v173
      %v230 = vunpack.c.l.b16 %v174
      %v231 = vunpack.c.l.b16 %v175
      %v232 = vunpack.c.l.b16 %v176
      %v233 = vunpack.c.l.b16 %v177
      %v234 = vunpack.c.l.b16 %v178
      %v235 = vunpack.c.l.b16 %v179
      %v236 = vunpack.c.l.b16 %v180
      %v237 = vunpack.c.l.b16 %v181
      %v238 = vunpack.c.l.b16 %v182
      %v239 = vunpack.c.l.b16 %v183
      %v240 = vunpack.c.l.b16 %v184
      %v241 = vunpack.c.l.b16 %v185
      %v242 = vunpack.c.l.b16 %v186
      %v243 = vunpack.c.l.b16 %v187
      %v244 = vunpack.c.l.b16 %v188
      %v245 = vunpack.c.l.b16 %v189
      %v246 = vunpack.c.l.b16 %v190
      %v247 = vunpack.c.l.b16 %v191
      %v248 = vunpack.c.l.b16 %v192
      %v249 = vunpack.c.l.b16 %v193
      %v250 = vunpack.c.l.b16 %v194
      %v251 = vunpack.c.l.b16 %v195
      %v252 = vunpack.c.l.b16 %v196
      %v253 = vunpack.c.l.b16 %v197
      %v254 = vunpack.c.l.b16 %v198
      %v255 = vunpack.c.l.b16 %v199
      %v256 = vpack.c.b16 %v229, %v228
      %v257 = vpack.c.b16 %v231, %v230
      %v258 = vpack.c.b16 %v233, %v232
      %v259 = vpack.c.b16 %v235, %v234
      %v260 = vpack.c.b16 %v237, %v236
      %v261 = vpack.c.b16 %v239, %v238
      %v262 = vpack.c.b16 %v241, %v240
      %v263 = vpack.c.b16 %v243, %v242
      %v264 = vpack.c.b16 %v245, %v244
      %v265 = vpack.c.b16 %v247, %v246
      %v266 = vpack.c.b16 %v249, %v248
      %v267 = vpack.c.b16 %v251, %v250
      %v268 = vpack.c.b16 %v253, %v252
      %v269 = vpack.c.b16 %v255, %v254
      %284 = vst [vmem:[#allocation2] sm:$0xff] %v256
      %285 = vst [vmem:[#allocation2 + $0x8] sm:$0xff] %v257
      %286 = vst [vmem:[#allocation2 + $0x10] sm:$0xff] %v258
      %287 = vst [vmem:[#allocation2 + $0x18] sm:$0xff] %v259
      %288 = vst [vmem:[#allocation2 + $0x20] sm:$0xff] %v260
      %289 = vst [vmem:[#allocation2 + $0x28] sm:$0xff] %v261
      %290 = vst [vmem:[#allocation2 + $0x30] sm:$0xff] %v262
      %291 = vst [vmem:[#allocation2 + $0x38] sm:$0xff] %v263
      %292 = vst [vmem:[#allocation2 + $0x40] sm:$0xff] %v264
      %293 = vst [vmem:[#allocation2 + $0x48] sm:$0xff] %v265
      %294 = vst [vmem:[#allocation2 + $0x50] sm:$0xff] %v266
      %295 = vst [vmem:[#allocation2 + $0x58] sm:$0xff] %v267
      %296 = vst [vmem:[#allocation2 + $0x60] sm:$0xff] %v268
      %297 = vst [vmem:[#allocation2 + $0x68] sm:$0xff] %v269
      %v298 = vld [vmem:[%s165] sm:$0xf]
      %v299 = vld [vmem:[%s165 + $0x4] sm:$0xf]
      %v300 = vld [vmem:[%s165 + $0x8] sm:$0xf]
      %v301 = vld [vmem:[%s165 + $0xc] sm:$0xf]
      %v302 = vld [vmem:[%s165 + $0x10] sm:$0xf]
      %v303 = vld [vmem:[%s165 + $0x14] sm:$0xf]
      %v304 = vld [vmem:[%s165 + $0x18] sm:$0xf]
      %v305 = vld [vmem:[%s165 + $0x1c] sm:$0xf]
      %v306 = vld [vmem:[%s165 + $0x20] sm:$0xf]
      %v307 = vld [vmem:[%s165 + $0x24] sm:$0xf]
      %v308 = vld [vmem:[%s165 + $0x28] sm:$0xf]
      %v309 = vld [vmem:[%s165 + $0x2c] sm:$0xf]
      %v310 = vld [vmem:[%s165 + $0x30] sm:$0xf]
      %v311 = vld [vmem:[%s165 + $0x34] sm:$0xf]
      %v312 = vld [vmem:[%s165 + $0x38] sm:$0xf]
      %v313 = vld [vmem:[%s165 + $0x3c] sm:$0xf]
      %v314 = vld [vmem:[%s165 + $0x40] sm:$0xf]
      %v315 = vld [vmem:[%s165 + $0x44] sm:$0xf]
      %v316 = vld [vmem:[%s165 + $0x48] sm:$0xf]
      %v317 = vld [vmem:[%s165 + $0x4c] sm:$0xf]
      %v318 = vld [vmem:[%s165 + $0x50] sm:$0xf]
      %v319 = vld [vmem:[%s165 + $0x54] sm:$0xf]
      %v320 = vld [vmem:[%s165 + $0x58] sm:$0xf]
      %v321 = vld [vmem:[%s165 + $0x5c] sm:$0xf]
      %v322 = vld [vmem:[%s165 + $0x60] sm:$0xf]
      %v323 = vld [vmem:[%s165 + $0x64] sm:$0xf]
      %v324 = vld [vmem:[%s165 + $0x68] sm:$0xf]
      %v325 = vld [vmem:[%s165 + $0x6c] sm:$0xf]
      %v326 = vld [vmem:[%s165 + $0x70] sm:$0x1]
      %v356 = vunpack.c.l.b16 %v298
      %v357 = vunpack.c.l.b16 %v299
      %v358 = vunpack.c.l.b16 %v300
      %v359 = vunpack.c.l.b16 %v301
      %v360 = vunpack.c.l.b16 %v302
      %v361 = vunpack.c.l.b16 %v303
      %v362 = vunpack.c.l.b16 %v304
      %v363 = vunpack.c.l.b16 %v305
      %v364 = vunpack.c.l.b16 %v306
      %v365 = vunpack.c.l.b16 %v307
      %v366 = vunpack.c.l.b16 %v308
      %v367 = vunpack.c.l.b16 %v309
      %v368 = vunpack.c.l.b16 %v310
      %v369 = vunpack.c.l.b16 %v311
      %v370 = vunpack.c.l.b16 %v312
      %v371 = vunpack.c.l.b16 %v313
      %v372 = vunpack.c.l.b16 %v314
      %v373 = vunpack.c.l.b16 %v315
      %v374 = vunpack.c.l.b16 %v316
      %v375 = vunpack.c.l.b16 %v317
      %v376 = vunpack.c.l.b16 %v318
      %v377 = vunpack.c.l.b16 %v319
      %v378 = vunpack.c.l.b16 %v320
      %v379 = vunpack.c.l.b16 %v321
      %v380 = vunpack.c.l.b16 %v322
      %v381 = vunpack.c.l.b16 %v323
      %v382 = vunpack.c.l.b16 %v324
      %v383 = vunpack.c.l.b16 %v325
      %v384 = vunpack.c.l.b16 %v326
      %v385 = vpack.c.b16 %v357, %v356
      %v386 = vpack.c.b16 %v359, %v358
      %v387 = vpack.c.b16 %v361, %v360
      %v388 = vpack.c.b16 %v363, %v362
      %v389 = vpack.c.b16 %v365, %v364
      %v390 = vpack.c.b16 %v367, %v366
      %v391 = vpack.c.b16 %v369, %v368
      %v392 = vpack.c.b16 %v371, %v370
      %v393 = vpack.c.b16 %v373, %v372
      %v394 = vpack.c.b16 %v375, %v374
      %v395 = vpack.c.b16 %v377, %v376
      %v396 = vpack.c.b16 %v379, %v378
      %v397 = vpack.c.b16 %v381, %v380
      %v398 = vpack.c.b16 %v383, %v382
      %v399 = vpack.c.b16 %v384, %v384
      %vm400 = vsmask.f32 7424
      %v402 = vshrl.u32 %v385, 16
      %v404 = vshll.u32 %v385, 16
      %v406 = vrot.slane %v404, 1
      %v407 = vor.u32 %v402, %v406
      %v409 = vshll.u32 %v386, 16
      %v411 = vrot.slane %v409, 1
      %v412 = vsel %vm400, %v407, %v411
      %v413 = vshrl.u32 %v386, 16
      %v415 = vor.u32 %v413, %v411
      %v417 = vshll.u32 %v387, 16
      %v419 = vrot.slane %v417, 1
      %v420 = vsel %vm400, %v415, %v419
      %v421 = vshrl.u32 %v387, 16
      %v423 = vor.u32 %v421, %v419
      %v425 = vshll.u32 %v388, 16
      %v427 = vrot.slane %v425, 1
      %v428 = vsel %vm400, %v423, %v427
      %v429 = vshrl.u32 %v388, 16
      %v431 = vor.u32 %v429, %v427
      %v433 = vshll.u32 %v389, 16
      %v435 = vrot.slane %v433, 1
      %v436 = vsel %vm400, %v431, %v435
      %v437 = vshrl.u32 %v389, 16
      %v439 = vor.u32 %v437, %v435
      %v441 = vshll.u32 %v390, 16
      %v443 = vrot.slane %v441, 1
      %v444 = vsel %vm400, %v439, %v443
      %v445 = vshrl.u32 %v390, 16
      %v447 = vor.u32 %v445, %v443
      %v449 = vshll.u32 %v391, 16
      %v451 = vrot.slane %v449, 1
      %v452 = vsel %vm400, %v447, %v451
      %v453 = vshrl.u32 %v391, 16
      %v455 = vor.u32 %v453, %v451
      %v457 = vshll.u32 %v392, 16
      %v459 = vrot.slane %v457, 1
      %v460 = vsel %vm400, %v455, %v459
      %v461 = vshrl.u32 %v392, 16
      %v463 = vor.u32 %v461, %v459
      %v465 = vshll.u32 %v393, 16
      %v467 = vrot.slane %v465, 1
      %v468 = vsel %vm400, %v463, %v467
      %v469 = vshrl.u32 %v393, 16
      %v471 = vor.u32 %v469, %v467
      %v473 = vshll.u32 %v394, 16
      %v475 = vrot.slane %v473, 1
      %v476 = vsel %vm400, %v471, %v475
      %v477 = vshrl.u32 %v394, 16
      %v479 = vor.u32 %v477, %v475
      %v481 = vshll.u32 %v395, 16
      %v483 = vrot.slane %v481, 1
      %v484 = vsel %vm400, %v479, %v483
      %v485 = vshrl.u32 %v395, 16
      %v487 = vor.u32 %v485, %v483
      %v489 = vshll.u32 %v396, 16
      %v491 = vrot.slane %v489, 1
      %v492 = vsel %vm400, %v487, %v491
      %v493 = vshrl.u32 %v396, 16
      %v495 = vor.u32 %v493, %v491
      %v497 = vshll.u32 %v397, 16
      %v499 = vrot.slane %v497, 1
      %v500 = vsel %vm400, %v495, %v499
      %v501 = vshrl.u32 %v397, 16
      %v503 = vor.u32 %v501, %v499
      %v505 = vshll.u32 %v398, 16
      %v507 = vrot.slane %v505, 1
      %v508 = vsel %vm400, %v503, %v507
      %v509 = vshrl.u32 %v398, 16
      %v511 = vor.u32 %v509, %v507
      %v513 = vshll.u32 %v399, 16
      %v515 = vrot.slane %v513, 1
      %v516 = vsel %vm400, %v511, %v515
      %s531 = scalar_lea.vmem [#allocation2], 112
      %532 = vst [vmem:[%s531] sm:$0xff] %v412
      %533 = vst [vmem:[%s531 + $0x8] sm:$0xff] %v420
      %534 = vst [vmem:[%s531 + $0x10] sm:$0xff] %v428
      %535 = vst [vmem:[%s531 + $0x18] sm:$0xff] %v436
      %536 = vst [vmem:[%s531 + $0x20] sm:$0xff] %v444
      %537 = vst [vmem:[%s531 + $0x28] sm:$0xff] %v452
      %538 = vst [vmem:[%s531 + $0x30] sm:$0xff] %v460
      %539 = vst [vmem:[%s531 + $0x38] sm:$0xff] %v468
      %540 = vst [vmem:[%s531 + $0x40] sm:$0xff] %v476
      %541 = vst [vmem:[%s531 + $0x48] sm:$0xff] %v484
      %542 = vst [vmem:[%s531 + $0x50] sm:$0xff] %v492
      %543 = vst [vmem:[%s531 + $0x58] sm:$0xff] %v500
      %544 = vst [vmem:[%s531 + $0x60] sm:$0xff] %v508
      %545 = vst [vmem:[%s531 + $0x68] sm:$0xff] %v516
      %v546 = vld [vmem:[%s165] sm:$0xe]
      %v547 = vld [vmem:[%s165 + $0x4] sm:$0xf]
      %v548 = vld [vmem:[%s165 + $0x8] sm:$0xf]
      %v549 = vld [vmem:[%s165 + $0xc] sm:$0xf]
      %v550 = vld [vmem:[%s165 + $0x10] sm:$0xf]
      %v551 = vld [vmem:[%s165 + $0x14] sm:$0xf]
      %v552 = vld [vmem:[%s165 + $0x18] sm:$0xf]
      %v553 = vld [vmem:[%s165 + $0x1c] sm:$0xf]
      %v554 = vld [vmem:[%s165 + $0x20] sm:$0xf]
      %v555 = vld [vmem:[%s165 + $0x24] sm:$0xf]
      %v556 = vld [vmem:[%s165 + $0x28] sm:$0xf]
      %v557 = vld [vmem:[%s165 + $0x2c] sm:$0xf]
      %v558 = vld [vmem:[%s165 + $0x30] sm:$0xf]
      %v559 = vld [vmem:[%s165 + $0x34] sm:$0xf]
      %v560 = vld [vmem:[%s165 + $0x38] sm:$0xf]
      %v561 = vld [vmem:[%s165 + $0x3c] sm:$0xf]
      %v562 = vld [vmem:[%s165 + $0x40] sm:$0xf]
      %v563 = vld [vmem:[%s165 + $0x44] sm:$0xf]
      %v564 = vld [vmem:[%s165 + $0x48] sm:$0xf]
      %v565 = vld [vmem:[%s165 + $0x4c] sm:$0xf]
      %v566 = vld [vmem:[%s165 + $0x50] sm:$0xf]
      %v567 = vld [vmem:[%s165 + $0x54] sm:$0xf]
      %v568 = vld [vmem:[%s165 + $0x58] sm:$0xf]
      %v569 = vld [vmem:[%s165 + $0x5c] sm:$0xf]
      %v570 = vld [vmem:[%s165 + $0x60] sm:$0xf]
      %v571 = vld [vmem:[%s165 + $0x64] sm:$0xf]
      %v572 = vld [vmem:[%s165 + $0x68] sm:$0xf]
      %v573 = vld [vmem:[%s165 + $0x6c] sm:$0xf]
      %v574 = vld [vmem:[%s165 + $0x70] sm:$0x1]
      %v604 = vunpack.c.l.b16 %v546
      %v605 = vunpack.c.l.b16 %v547
      %v606 = vunpack.c.l.b16 %v548
      %v607 = vunpack.c.l.b16 %v549
      %v608 = vunpack.c.l.b16 %v550
      %v609 = vunpack.c.l.b16 %v551
      %v610 = vunpack.c.l.b16 %v552
      %v611 = vunpack.c.l.b16 %v553
      %v612 = vunpack.c.l.b16 %v554
      %v613 = vunpack.c.l.b16 %v555
      %v614 = vunpack.c.l.b16 %v556
      %v615 = vunpack.c.l.b16 %v557
      %v616 = vunpack.c.l.b16 %v558
      %v617 = vunpack.c.l.b16 %v559
      %v618 = vunpack.c.l.b16 %v560
      %v619 = vunpack.c.l.b16 %v561
      %v620 = vunpack.c.l.b16 %v562
      %v621 = vunpack.c.l.b16 %v563
      %v622 = vunpack.c.l.b16 %v564
      %v623 = vunpack.c.l.b16 %v565
      %v624 = vunpack.c.l.b16 %v566
      %v625 = vunpack.c.l.b16 %v567
      %v626 = vunpack.c.l.b16 %v568
      %v627 = vunpack.c.l.b16 %v569
      %v628 = vunpack.c.l.b16 %v570
      %v629 = vunpack.c.l.b16 %v571
      %v630 = vunpack.c.l.b16 %v572
      %v631 = vunpack.c.l.b16 %v573
      %v632 = vunpack.c.l.b16 %v574
      %v633 = vpack.c.b16 %v605, %v604
      %v634 = vpack.c.b16 %v607, %v606
      %v635 = vpack.c.b16 %v609, %v608
      %v636 = vpack.c.b16 %v611, %v610
      %v637 = vpack.c.b16 %v613, %v612
      %v638 = vpack.c.b16 %v615, %v614
      %v639 = vpack.c.b16 %v617, %v616
      %v640 = vpack.c.b16 %v619, %v618
      %v641 = vpack.c.b16 %v621, %v620
      %v642 = vpack.c.b16 %v623, %v622
      %v643 = vpack.c.b16 %v625, %v624
      %v644 = vpack.c.b16 %v627, %v626
      %v645 = vpack.c.b16 %v629, %v628
      %v646 = vpack.c.b16 %v631, %v630
      %v647 = vpack.c.b16 %v632, %v632
      %vm648 = vcmask 1046528
      %v649 = vrot.slane %v633, 1
      %v650 = vrot.slane %v634, 1
      %v651 = vsel %vm648, %v649, %v650
      %v652 = vrot.slane %v635, 1
      %v653 = vsel %vm648, %v650, %v652
      %v654 = vrot.slane %v636, 1
      %v655 = vsel %vm648, %v652, %v654
      %v656 = vrot.slane %v637, 1
      %v657 = vsel %vm648, %v654, %v656
      %v658 = vrot.slane %v638, 1
      %v659 = vsel %vm648, %v656, %v658
      %v660 = vrot.slane %v639, 1
      %v661 = vsel %vm648, %v658, %v660
      %v662 = vrot.slane %v640, 1
      %v663 = vsel %vm648, %v660, %v662
      %v664 = vrot.slane %v641, 1
      %v665 = vsel %vm648, %v662, %v664
      %v666 = vrot.slane %v642, 1
      %v667 = vsel %vm648, %v664, %v666
      %v668 = vrot.slane %v643, 1
      %v669 = vsel %vm648, %v666, %v668
      %v670 = vrot.slane %v644, 1
      %v671 = vsel %vm648, %v668, %v670
      %v672 = vrot.slane %v645, 1
      %v673 = vsel %vm648, %v670, %v672
      %v674 = vrot.slane %v646, 1
      %v675 = vsel %vm648, %v672, %v674
      %v676 = vrot.slane %v647, 1
      %v677 = vsel %vm648, %v674, %v676
      %s692 = scalar_lea.vmem [#allocation2], 224
      %693 = vst [vmem:[%s692] sm:$0xff] %v651
      %694 = vst [vmem:[%s692 + $0x8] sm:$0xff] %v653
      %695 = vst [vmem:[%s692 + $0x10] sm:$0xff] %v655
      %696 = vst [vmem:[%s692 + $0x18] sm:$0xff] %v657
      %697 = vst [vmem:[%s692 + $0x20] sm:$0xff] %v659
      %698 = vst [vmem:[%s692 + $0x28] sm:$0xff] %v661
      %699 = vst [vmem:[%s692 + $0x30] sm:$0xff] %v663
      %700 = vst [vmem:[%s692 + $0x38] sm:$0xff] %v665
      %701 = vst [vmem:[%s692 + $0x40] sm:$0xff] %v667
      %702 = vst [vmem:[%s692 + $0x48] sm:$0xff] %v669
      %703 = vst [vmem:[%s692 + $0x50] sm:$0xff] %v671
      %704 = vst [vmem:[%s692 + $0x58] sm:$0xff] %v673
      %705 = vst [vmem:[%s692 + $0x60] sm:$0xff] %v675
      %706 = vst [vmem:[%s692 + $0x68] sm:$0xff] %v677
      %v707 = vld [vmem:[%s165] sm:$0xe]
      %v708 = vld [vmem:[%s165 + $0x4] sm:$0xf]
      %v709 = vld [vmem:[%s165 + $0x8] sm:$0xf]
      %v710 = vld [vmem:[%s165 + $0xc] sm:$0xf]
      %v711 = vld [vmem:[%s165 + $0x10] sm:$0xf]
      %v712 = vld [vmem:[%s165 + $0x14] sm:$0xf]
      %v713 = vld [vmem:[%s165 + $0x18] sm:$0xf]
      %v714 = vld [vmem:[%s165 + $0x1c] sm:$0xf]
      %v715 = vld [vmem:[%s165 + $0x20] sm:$0xf]
      %v716 = vld [vmem:[%s165 + $0x24] sm:$0xf]
      %v717 = vld [vmem:[%s165 + $0x28] sm:$0xf]
      %v718 = vld [vmem:[%s165 + $0x2c] sm:$0xf]
      %v719 = vld [vmem:[%s165 + $0x30] sm:$0xf]
      %v720 = vld [vmem:[%s165 + $0x34] sm:$0xf]
      %v721 = vld [vmem:[%s165 + $0x38] sm:$0xf]
      %v722 = vld [vmem:[%s165 + $0x3c] sm:$0xf]
      %v723 = vld [vmem:[%s165 + $0x40] sm:$0xf]
      %v724 = vld [vmem:[%s165 + $0x44] sm:$0xf]
      %v725 = vld [vmem:[%s165 + $0x48] sm:$0xf]
      %v726 = vld [vmem:[%s165 + $0x4c] sm:$0xf]
      %v727 = vld [vmem:[%s165 + $0x50] sm:$0xf]
      %v728 = vld [vmem:[%s165 + $0x54] sm:$0xf]
      %v729 = vld [vmem:[%s165 + $0x58] sm:$0xf]
      %v730 = vld [vmem:[%s165 + $0x5c] sm:$0xf]
      %v731 = vld [vmem:[%s165 + $0x60] sm:$0xf]
      %v732 = vld [vmem:[%s165 + $0x64] sm:$0xf]
      %v733 = vld [vmem:[%s165 + $0x68] sm:$0xf]
      %v734 = vld [vmem:[%s165 + $0x6c] sm:$0xf]
      %v735 = vld [vmem:[%s165 + $0x70] sm:$0x3]
      %v765 = vunpack.c.l.b16 %v707
      %v766 = vunpack.c.l.b16 %v708
      %v767 = vunpack.c.l.b16 %v709
      %v768 = vunpack.c.l.b16 %v710
      %v769 = vunpack.c.l.b16 %v711
      %v770 = vunpack.c.l.b16 %v712
      %v771 = vunpack.c.l.b16 %v713
      %v772 = vunpack.c.l.b16 %v714
      %v773 = vunpack.c.l.b16 %v715
      %v774 = vunpack.c.l.b16 %v716
      %v775 = vunpack.c.l.b16 %v717
      %v776 = vunpack.c.l.b16 %v718
      %v777 = vunpack.c.l.b16 %v719
      %v778 = vunpack.c.l.b16 %v720
      %v779 = vunpack.c.l.b16 %v721
      %v780 = vunpack.c.l.b16 %v722
      %v781 = vunpack.c.l.b16 %v723
      %v782 = vunpack.c.l.b16 %v724
      %v783 = vunpack.c.l.b16 %v725
      %v784 = vunpack.c.l.b16 %v726
      %v785 = vunpack.c.l.b16 %v727
      %v786 = vunpack.c.l.b16 %v728
      %v787 = vunpack.c.l.b16 %v729
      %v788 = vunpack.c.l.b16 %v730
      %v789 = vunpack.c.l.b16 %v731
      %v790 = vunpack.c.l.b16 %v732
      %v791 = vunpack.c.l.b16 %v733
      %v792 = vunpack.c.l.b16 %v734
      %v793 = vunpack.c.l.b16 %v735
      %v794 = vpack.c.b16 %v766, %v765
      %v795 = vpack.c.b16 %v768, %v767
      %v796 = vpack.c.b16 %v770, %v769
      %v797 = vpack.c.b16 %v772, %v771
      %v798 = vpack.c.b16 %v774, %v773
      %v799 = vpack.c.b16 %v776, %v775
      %v800 = vpack.c.b16 %v778, %v777
      %v801 = vpack.c.b16 %v780, %v779
      %v802 = vpack.c.b16 %v782, %v781
      %v803 = vpack.c.b16 %v784, %v783
      %v804 = vpack.c.b16 %v786, %v785
      %v805 = vpack.c.b16 %v788, %v787
      %v806 = vpack.c.b16 %v790, %v789
      %v807 = vpack.c.b16 %v792, %v791
      %v808 = vpack.c.b16 %v793, %v793
      %vm809 = vsmask.f32 6400
      %v811 = vshrl.u32 %v794, 16
      %v813 = vrot.slane %v811, 1
      %v814 = vshll.u32 %v794, 16
      %v816 = vrot.slane %v814, 2
      %v817 = vor.u32 %v813, %v816
      %v819 = vshrl.u32 %v795, 16
      %v821 = vrot.slane %v819, 1
      %v822 = vshll.u32 %v795, 16
      %v824 = vrot.slane %v822, 2
      %v825 = vor.u32 %v821, %v824
      %v826 = vsel %vm809, %v817, %v825
      %v828 = vshrl.u32 %v796, 16
      %v830 = vrot.slane %v828, 1
      %v831 = vshll.u32 %v796, 16
      %v833 = vrot.slane %v831, 2
      %v834 = vor.u32 %v830, %v833
      %v835 = vsel %vm809, %v825, %v834
      %v837 = vshrl.u32 %v797, 16
      %v839 = vrot.slane %v837, 1
      %v840 = vshll.u32 %v797, 16
      %v842 = vrot.slane %v840, 2
      %v843 = vor.u32 %v839, %v842
      %v844 = vsel %vm809, %v834, %v843
      %v846 = vshrl.u32 %v798, 16
      %v848 = vrot.slane %v846, 1
      %v849 = vshll.u32 %v798, 16
      %v851 = vrot.slane %v849, 2
      %v852 = vor.u32 %v848, %v851
      %v853 = vsel %vm809, %v843, %v852
      %v855 = vshrl.u32 %v799, 16
      %v857 = vrot.slane %v855, 1
      %v858 = vshll.u32 %v799, 16
      %v860 = vrot.slane %v858, 2
      %v861 = vor.u32 %v857, %v860
      %v862 = vsel %vm809, %v852, %v861
      %v864 = vshrl.u32 %v800, 16
      %v866 = vrot.slane %v864, 1
      %v867 = vshll.u32 %v800, 16
      %v869 = vrot.slane %v867, 2
      %v870 = vor.u32 %v866, %v869
      %v871 = vsel %vm809, %v861, %v870
      %v873 = vshrl.u32 %v801, 16
      %v875 = vrot.slane %v873, 1
      %v876 = vshll.u32 %v801, 16
      %v878 = vrot.slane %v876, 2
      %v879 = vor.u32 %v875, %v878
      %v880 = vsel %vm809, %v870, %v879
      %v882 = vshrl.u32 %v802, 16
      %v884 = vrot.slane %v882, 1
      %v885 = vshll.u32 %v802, 16
      %v887 = vrot.slane %v885, 2
      %v888 = vor.u32 %v884, %v887
      %v889 = vsel %vm809, %v879, %v888
      %v891 = vshrl.u32 %v803, 16
      %v893 = vrot.slane %v891, 1
      %v894 = vshll.u32 %v803, 16
      %v896 = vrot.slane %v894, 2
      %v897 = vor.u32 %v893, %v896
      %v898 = vsel %vm809, %v888, %v897
      %v900 = vshrl.u32 %v804, 16
      %v902 = vrot.slane %v900, 1
      %v903 = vshll.u32 %v804, 16
      %v905 = vrot.slane %v903, 2
      %v906 = vor.u32 %v902, %v905
      %v907 = vsel %vm809, %v897, %v906
      %v909 = vshrl.u32 %v805, 16
      %v911 = vrot.slane %v909, 1
      %v912 = vshll.u32 %v805, 16
      %v914 = vrot.slane %v912, 2
      %v915 = vor.u32 %v911, %v914
      %v916 = vsel %vm809, %v906, %v915
      %v918 = vshrl.u32 %v806, 16
      %v920 = vrot.slane %v918, 1
      %v921 = vshll.u32 %v806, 16
      %v923 = vrot.slane %v921, 2
      %v924 = vor.u32 %v920, %v923
      %v925 = vsel %vm809, %v915, %v924
      %v927 = vshrl.u32 %v807, 16
      %v929 = vrot.slane %v927, 1
      %v930 = vshll.u32 %v807, 16
      %v932 = vrot.slane %v930, 2
      %v933 = vor.u32 %v929, %v932
      %v934 = vsel %vm809, %v924, %v933
      %v936 = vshrl.u32 %v808, 16
      %v938 = vrot.slane %v936, 1
      %v939 = vshll.u32 %v808, 16
      %v941 = vrot.slane %v939, 2
      %v942 = vor.u32 %v938, %v941
      %v943 = vsel %vm809, %v933, %v942
      %s958 = scalar_lea.vmem [#allocation2], 336
      %959 = vst [vmem:[%s958] sm:$0xff] %v826
      %960 = vst [vmem:[%s958 + $0x8] sm:$0xff] %v835
      %961 = vst [vmem:[%s958 + $0x10] sm:$0xff] %v844
      %962 = vst [vmem:[%s958 + $0x18] sm:$0xff] %v853
      %963 = vst [vmem:[%s958 + $0x20] sm:$0xff] %v862
      %964 = vst [vmem:[%s958 + $0x28] sm:$0xff] %v871
      %965 = vst [vmem:[%s958 + $0x30] sm:$0xff] %v880
      %966 = vst [vmem:[%s958 + $0x38] sm:$0xff] %v889
      %967 = vst [vmem:[%s958 + $0x40] sm:$0xff] %v898
      %968 = vst [vmem:[%s958 + $0x48] sm:$0xff] %v907
      %969 = vst [vmem:[%s958 + $0x50] sm:$0xff] %v916
      %970 = vst [vmem:[%s958 + $0x58] sm:$0xff] %v925
      %971 = vst [vmem:[%s958 + $0x60] sm:$0xff] %v934
      %972 = vst [vmem:[%s958 + $0x68] sm:$0xff] %v943
      %v973 = vld [vmem:[%s165] sm:$0xc]
      %v974 = vld [vmem:[%s165 + $0x4] sm:$0xf]
      %v975 = vld [vmem:[%s165 + $0x8] sm:$0xf]
      %v976 = vld [vmem:[%s165 + $0xc] sm:$0xf]
      %v977 = vld [vmem:[%s165 + $0x10] sm:$0xf]
      %v978 = vld [vmem:[%s165 + $0x14] sm:$0xf]
      %v979 = vld [vmem:[%s165 + $0x18] sm:$0xf]
      %v980 = vld [vmem:[%s165 + $0x1c] sm:$0xf]
      %v981 = vld [vmem:[%s165 + $0x20] sm:$0xf]
      %v982 = vld [vmem:[%s165 + $0x24] sm:$0xf]
      %v983 = vld [vmem:[%s165 + $0x28] sm:$0xf]
      %v984 = vld [vmem:[%s165 + $0x2c] sm:$0xf]
      %v985 = vld [vmem:[%s165 + $0x30] sm:$0xf]
      %v986 = vld [vmem:[%s165 + $0x34] sm:$0xf]
      %v987 = vld [vmem:[%s165 + $0x38] sm:$0xf]
      %v988 = vld [vmem:[%s165 + $0x3c] sm:$0xf]
      %v989 = vld [vmem:[%s165 + $0x40] sm:$0xf]
      %v990 = vld [vmem:[%s165 + $0x44] sm:$0xf]
      %v991 = vld [vmem:[%s165 + $0x48] sm:$0xf]
      %v992 = vld [vmem:[%s165 + $0x4c] sm:$0xf]
      %v993 = vld [vmem:[%s165 + $0x50] sm:$0xf]
      %v994 = vld [vmem:[%s165 + $0x54] sm:$0xf]
      %v995 = vld [vmem:[%s165 + $0x58] sm:$0xf]
      %v996 = vld [vmem:[%s165 + $0x5c] sm:$0xf]
      %v997 = vld [vmem:[%s165 + $0x60] sm:$0xf]
      %v998 = vld [vmem:[%s165 + $0x64] sm:$0xf]
      %v999 = vld [vmem:[%s165 + $0x68] sm:$0xf]
      %v1000 = vld [vmem:[%s165 + $0x6c] sm:$0xf]
      %v1001 = vld [vmem:[%s165 + $0x70] sm:$0x3]
      %v1031 = vunpack.c.l.b16 %v973
      %v1032 = vunpack.c.l.b16 %v974
      %v1033 = vunpack.c.l.b16 %v975
      %v1034 = vunpack.c.l.b16 %v976
      %v1035 = vunpack.c.l.b16 %v977
      %v1036 = vunpack.c.l.b16 %v978
      %v1037 = vunpack.c.l.b16 %v979
      %v1038 = vunpack.c.l.b16 %v980
      %v1039 = vunpack.c.l.b16 %v981
      %v1040 = vunpack.c.l.b16 %v982
      %v1041 = vunpack.c.l.b16 %v983
      %v1042 = vunpack.c.l.b16 %v984
      %v1043 = vunpack.c.l.b16 %v985
      %v1044 = vunpack.c.l.b16 %v986
      %v1045 = vunpack.c.l.b16 %v987
      %v1046 = vunpack.c.l.b16 %v988
      %v1047 = vunpack.c.l.b16 %v989
      %v1048 = vunpack.c.l.b16 %v990
      %v1049 = vunpack.c.l.b16 %v991
      %v1050 = vunpack.c.l.b16 %v992
      %v1051 = vunpack.c.l.b16 %v993
      %v1052 = vunpack.c.l.b16 %v994
      %v1053 = vunpack.c.l.b16 %v995
      %v1054 = vunpack.c.l.b16 %v996
      %v1055 = vunpack.c.l.b16 %v997
      %v1056 = vunpack.c.l.b16 %v998
      %v1057 = vunpack.c.l.b16 %v999
      %v1058 = vunpack.c.l.b16 %v1000
      %v1059 = vunpack.c.l.b16 %v1001
      %v1060 = vpack.c.b16 %v1032, %v1031
      %v1061 = vpack.c.b16 %v1034, %v1033
      %v1062 = vpack.c.b16 %v1036, %v1035
      %v1063 = vpack.c.b16 %v1038, %v1037
      %v1064 = vpack.c.b16 %v1040, %v1039
      %v1065 = vpack.c.b16 %v1042, %v1041
      %v1066 = vpack.c.b16 %v1044, %v1043
      %v1067 = vpack.c.b16 %v1046, %v1045
      %v1068 = vpack.c.b16 %v1048, %v1047
      %v1069 = vpack.c.b16 %v1050, %v1049
      %v1070 = vpack.c.b16 %v1052, %v1051
      %v1071 = vpack.c.b16 %v1054, %v1053
      %v1072 = vpack.c.b16 %v1056, %v1055
      %v1073 = vpack.c.b16 %v1058, %v1057
      %v1074 = vpack.c.b16 %v1059, %v1059
      %vm1075 = vcmask 1045504
      %v1076 = vrot.slane %v1060, 2
      %v1077 = vrot.slane %v1061, 2
      %v1078 = vsel %vm1075, %v1076, %v1077
      %v1079 = vrot.slane %v1062, 2
      %v1080 = vsel %vm1075, %v1077, %v1079
      %v1081 = vrot.slane %v1063, 2
      %v1082 = vsel %vm1075, %v1079, %v1081
      %v1083 = vrot.slane %v1064, 2
      %v1084 = vsel %vm1075, %v1081, %v1083
      %v1085 = vrot.slane %v1065, 2
      %v1086 = vsel %vm1075, %v1083, %v1085
      %v1087 = vrot.slane %v1066, 2
      %v1088 = vsel %vm1075, %v1085, %v1087
      %v1089 = vrot.slane %v1067, 2
      %v1090 = vsel %vm1075, %v1087, %v1089
      %v1091 = vrot.slane %v1068, 2
      %v1092 = vsel %vm1075, %v1089, %v1091
      %v1093 = vrot.slane %v1069, 2
      %v1094 = vsel %vm1075, %v1091, %v1093
      %v1095 = vrot.slane %v1070, 2
      %v1096 = vsel %vm1075, %v1093, %v1095
      %v1097 = vrot.slane %v1071, 2
      %v1098 = vsel %vm1075, %v1095, %v1097
      %v1099 = vrot.slane %v1072, 2
      %v1100 = vsel %vm1075, %v1097, %v1099
      %v1101 = vrot.slane %v1073, 2
      %v1102 = vsel %vm1075, %v1099, %v1101
      %v1103 = vrot.slane %v1074, 2
      %v1104 = vsel %vm1075, %v1101, %v1103
      %s1119 = scalar_lea.vmem [#allocation2], 448
      %1120 = vst [vmem:[%s1119] sm:$0xff] %v1078
      %1121 = vst [vmem:[%s1119 + $0x8] sm:$0xff] %v1080
      %1122 = vst [vmem:[%s1119 + $0x10] sm:$0xff] %v1082
      %1123 = vst [vmem:[%s1119 + $0x18] sm:$0xff] %v1084
      %1124 = vst [vmem:[%s1119 + $0x20] sm:$0xff] %v1086
      %1125 = vst [vmem:[%s1119 + $0x28] sm:$0xff] %v1088
      %1126 = vst [vmem:[%s1119 + $0x30] sm:$0xff] %v1090
      %1127 = vst [vmem:[%s1119 + $0x38] sm:$0xff] %v1092
      %1128 = vst [vmem:[%s1119 + $0x40] sm:$0xff] %v1094
      %1129 = vst [vmem:[%s1119 + $0x48] sm:$0xff] %v1096
      %1130 = vst [vmem:[%s1119 + $0x50] sm:$0xff] %v1098
      %1131 = vst [vmem:[%s1119 + $0x58] sm:$0xff] %v1100
      %1132 = vst [vmem:[%s1119 + $0x60] sm:$0xff] %v1102
      %1133 = vst [vmem:[%s1119 + $0x68] sm:$0xff] %v1104
      %v1134 = vld [vmem:[#allocation2] sm:$0xff]
      %v1135 = vld [vmem:[#allocation2 + $0x8] sm:$0xff]
      %v1136 = vld [vmem:[#allocation2 + $0x10] sm:$0xff]
      %v1137 = vld [vmem:[#allocation2 + $0x18] sm:$0xff]
      %v1138 = vld [vmem:[#allocation2 + $0x20] sm:$0xff]
      %v1139 = vld [vmem:[#allocation2 + $0x28] sm:$0xff]
      %v1140 = vld [vmem:[#allocation2 + $0x30] sm:$0xff]
      %v1141 = vld [vmem:[#allocation2 + $0x38] sm:$0xff]
      %v1142 = vld [vmem:[#allocation2 + $0x40] sm:$0xff]
      %v1143 = vld [vmem:[#allocation2 + $0x48] sm:$0xff]
      %v1144 = vld [vmem:[%s531] sm:$0xff]
      %v1145 = vld [vmem:[%s531 + $0x8] sm:$0xff]
      %v1146 = vld [vmem:[%s531 + $0x10] sm:$0xff]
      %v1147 = vld [vmem:[%s531 + $0x18] sm:$0xff]
      %v1148 = vld [vmem:[%s531 + $0x20] sm:$0xff]
      %v1149 = vld [vmem:[%s531 + $0x28] sm:$0xff]
      %v1150 = vld [vmem:[%s531 + $0x30] sm:$0xff]
      %v1151 = vld [vmem:[%s531 + $0x38] sm:$0xff]
      %v1152 = vld [vmem:[%s531 + $0x40] sm:$0xff]
      %v1153 = vld [vmem:[%s531 + $0x48] sm:$0xff]
      %v1154 = vld [vmem:[%s1] sm:$0xf]
      %v1155 = vld [vmem:[%s1 + $0x4] sm:$0xf]
      %v1156 = vld [vmem:[%s1 + $0x8] sm:$0xf]
      %v1157 = vld [vmem:[%s1 + $0xc] sm:$0xf]
      %v1158 = vld [vmem:[%s1 + $0x10] sm:$0xf]
      %v1159 = vld [vmem:[%s1 + $0x14] sm:$0xf]
      %v1160 = vld [vmem:[%s1 + $0x18] sm:$0xf]
      %v1161 = vld [vmem:[%s1 + $0x1c] sm:$0xf]
      %v1162 = vld [vmem:[%s1 + $0x20] sm:$0xf]
      %v1163 = vld [vmem:[%s1 + $0x24] sm:$0xf]
      %v1164 = vld [vmem:[%s1 + $0x28] sm:$0xf]
      %v1165 = vld [vmem:[%s1 + $0x2c] sm:$0xf]
      %v1166 = vld [vmem:[%s1 + $0x30] sm:$0xf]
      %v1167 = vld [vmem:[%s1 + $0x34] sm:$0xf]
      %v1168 = vld [vmem:[%s1 + $0x38] sm:$0xf]
      %v1169 = vld [vmem:[%s1 + $0x3c] sm:$0xf]
      %v1170 = vld [vmem:[%s1 + $0x40] sm:$0xf]
      %v1171 = vld [vmem:[%s1 + $0x44] sm:$0xf]
      %v1172 = vld [vmem:[%s1 + $0x48] sm:$0xf]
      %v1173 = vld [vmem:[%s1 + $0x4c] sm:$0xf]
      %v1174 = vld [vmem:[%s1 + $0x50] sm:$0xf]
      %v1175 = vld [vmem:[%s1 + $0x54] sm:$0xf]
      %v1176 = vld [vmem:[%s1 + $0x58] sm:$0xf]
      %v1177 = vld [vmem:[%s1 + $0x5c] sm:$0xf]
      %v1178 = vld [vmem:[%s1 + $0x60] sm:$0xf]
      %v1179 = vld [vmem:[%s1 + $0x64] sm:$0xf]
      %v1180 = vld [vmem:[%s1 + $0x68] sm:$0xf]
      %v1181 = vld [vmem:[%s1 + $0x6c] sm:$0xf]
      %v1182 = vld [vmem:[%s1 + $0x70] sm:$0xf]
      %v1183 = vld [vmem:[%s1 + $0x74] sm:$0xf]
      %v1184 = vld [vmem:[%s1 + $0x78] sm:$0xf]
      %v1185 = vld [vmem:[%s1 + $0x7c] sm:$0xf]
      %v1186 = vld [vmem:[%s692] sm:$0xff]
      %v1187 = vld [vmem:[%s692 + $0x8] sm:$0xff]
      %v1188 = vld [vmem:[%s692 + $0x10] sm:$0xff]
      %v1189 = vld [vmem:[%s692 + $0x18] sm:$0xff]
      %v1190 = vld [vmem:[%s692 + $0x20] sm:$0xff]
      %v1191 = vld [vmem:[%s692 + $0x28] sm:$0xff]
      %v1192 = vld [vmem:[%s692 + $0x30] sm:$0xff]
      %v1193 = vld [vmem:[%s692 + $0x38] sm:$0xff]
      %v1194 = vld [vmem:[%s692 + $0x40] sm:$0xff]
      %v1195 = vld [vmem:[%s692 + $0x48] sm:$0xff]
      %v1196 = vld [vmem:[%s958] sm:$0xff]
      %v1197 = vld [vmem:[%s958 + $0x8] sm:$0xff]
      %v1198 = vld [vmem:[%s958 + $0x10] sm:$0xff]
      %v1199 = vld [vmem:[%s958 + $0x18] sm:$0xff]
      %v1200 = vld [vmem:[%s958 + $0x20] sm:$0xff]
      %v1201 = vld [vmem:[%s958 + $0x28] sm:$0xff]
      %v1202 = vld [vmem:[%s958 + $0x30] sm:$0xff]
      %v1203 = vld [vmem:[%s958 + $0x38] sm:$0xff]
      %v1204 = vld [vmem:[%s958 + $0x40] sm:$0xff]
      %v1205 = vld [vmem:[%s958 + $0x48] sm:$0xff]
      %s1206 = scalar_lea.vmem %s1, 128
      %v1207 = vld [vmem:[%s1206] sm:$0xf]
      %v1208 = vld [vmem:[%s1206 + $0x4] sm:$0xf]
      %v1209 = vld [vmem:[%s1206 + $0x8] sm:$0xf]
      %v1210 = vld [vmem:[%s1206 + $0xc] sm:$0xf]
      %v1211 = vld [vmem:[%s1206 + $0x10] sm:$0xf]
      %v1212 = vld [vmem:[%s1206 + $0x14] sm:$0xf]
      %v1213 = vld [vmem:[%s1206 + $0x18] sm:$0xf]
      %v1214 = vld [vmem:[%s1206 + $0x1c] sm:$0xf]
      %v1215 = vld [vmem:[%s1206 + $0x20] sm:$0xf]
      %v1216 = vld [vmem:[%s1206 + $0x24] sm:$0xf]
      %v1217 = vld [vmem:[%s1206 + $0x28] sm:$0xf]
      %v1218 = vld [vmem:[%s1206 + $0x2c] sm:$0xf]
      %v1219 = vld [vmem:[%s1206 + $0x30] sm:$0xf]
      %v1220 = vld [vmem:[%s1206 + $0x34] sm:$0xf]
      %v1221 = vld [vmem:[%s1206 + $0x38] sm:$0xf]
      %v1222 = vld [vmem:[%s1206 + $0x3c] sm:$0xf]
      %v1223 = vld [vmem:[%s1206 + $0x40] sm:$0xf]
      %v1224 = vld [vmem:[%s1206 + $0x44] sm:$0xf]
      %v1225 = vld [vmem:[%s1206 + $0x48] sm:$0xf]
      %v1226 = vld [vmem:[%s1206 + $0x4c] sm:$0xf]
      %v1227 = vld [vmem:[%s1206 + $0x50] sm:$0xf]
      %v1228 = vld [vmem:[%s1206 + $0x54] sm:$0xf]
      %v1229 = vld [vmem:[%s1206 + $0x58] sm:$0xf]
      %v1230 = vld [vmem:[%s1206 + $0x5c] sm:$0xf]
      %v1231 = vld [vmem:[%s1206 + $0x60] sm:$0xf]
      %v1232 = vld [vmem:[%s1206 + $0x64] sm:$0xf]
      %v1233 = vld [vmem:[%s1206 + $0x68] sm:$0xf]
      %v1234 = vld [vmem:[%s1206 + $0x6c] sm:$0xf]
      %v1235 = vld [vmem:[%s1206 + $0x70] sm:$0xf]
      %v1236 = vld [vmem:[%s1206 + $0x74] sm:$0xf]
      %v1237 = vld [vmem:[%s1206 + $0x78] sm:$0xf]
      %v1238 = vld [vmem:[%s1206 + $0x7c] sm:$0xf]
      %v1271 = vunpack.c.l.b16 %v1207
      %v1272 = vunpack.c.l.b16 %v1208
      %v1273 = vunpack.c.l.b16 %v1209
      %v1274 = vunpack.c.l.b16 %v1210
      %v1275 = vunpack.c.l.b16 %v1211
      %v1276 = vunpack.c.l.b16 %v1212
      %v1277 = vunpack.c.l.b16 %v1213
      %v1278 = vunpack.c.l.b16 %v1214
      %v1279 = vunpack.c.l.b16 %v1215
      %v1280 = vunpack.c.l.b16 %v1216
      %v1281 = vunpack.c.l.b16 %v1217
      %v1282 = vunpack.c.l.b16 %v1218
      %v1283 = vunpack.c.l.b16 %v1219
      %v1284 = vunpack.c.l.b16 %v1220
      %v1285 = vunpack.c.l.b16 %v1221
      %v1286 = vunpack.c.l.b16 %v1222
      %v1287 = vunpack.c.l.b16 %v1223
      %v1288 = vunpack.c.l.b16 %v1224
      %v1289 = vunpack.c.l.b16 %v1225
      %v1290 = vunpack.c.l.b16 %v1226
      %v1291 = vunpack.c.l.b16 %v1227
      %v1292 = vunpack.c.l.b16 %v1228
      %v1293 = vunpack.c.l.b16 %v1229
      %v1294 = vunpack.c.l.b16 %v1230
      %v1295 = vunpack.c.l.b16 %v1231
      %v1296 = vunpack.c.l.b16 %v1232
      %v1297 = vunpack.c.l.b16 %v1233
      %v1298 = vunpack.c.l.b16 %v1234
      %v1299 = vunpack.c.l.b16 %v1235
      %v1300 = vunpack.c.l.b16 %v1236
      %v1301 = vunpack.c.l.b16 %v1237
      %v1302 = vunpack.c.l.b16 %v1238
      %v1303 = vpack.c.b16 %v1272, %v1271
      %v1304 = vpack.c.b16 %v1274, %v1273
      %v1305 = vpack.c.b16 %v1276, %v1275
      %v1306 = vpack.c.b16 %v1278, %v1277
      %v1307 = vpack.c.b16 %v1280, %v1279
      %v1308 = vpack.c.b16 %v1282, %v1281
      %v1309 = vpack.c.b16 %v1284, %v1283
      %v1310 = vpack.c.b16 %v1286, %v1285
      %v1311 = vpack.c.b16 %v1288, %v1287
      %v1312 = vpack.c.b16 %v1290, %v1289
      %v1313 = vpack.c.b16 %v1292, %v1291
      %v1314 = vpack.c.b16 %v1294, %v1293
      %v1315 = vpack.c.b16 %v1296, %v1295
      %v1316 = vpack.c.b16 %v1298, %v1297
      %v1317 = vpack.c.b16 %v1300, %v1299
      %v1318 = vpack.c.b16 %v1302, %v1301
      %1335 = vmatprep.subr.bf16.mxu0 0
      %1336 = vmatpush1.bf16.msra.mxu0 %v1303
      %1337 = vmatprep.subr.bf16.mxu0 0
      %1338 = vmatpush1.bf16.msra.mxu0 %v1304
      %1339 = vmatprep.subr.bf16.mxu0 0
      %1340 = vmatpush1.bf16.msra.mxu0 %v1305
      %1341 = vmatprep.subr.bf16.mxu0 0
      %1342 = vmatpush1.bf16.msra.mxu0 %v1306
      %1343 = vmatprep.subr.bf16.mxu0 0
      %1344 = vmatpush1.bf16.msra.mxu0 %v1307
      %1345 = vmatprep.subr.bf16.mxu0 0
      %1346 = vmatpush1.bf16.msra.mxu0 %v1308
      %1347 = vmatprep.subr.bf16.mxu0 0
      %1348 = vmatpush1.bf16.msra.mxu0 %v1309
      %1349 = vmatprep.subr.bf16.mxu0 0
      %1350 = vmatpush1.bf16.msra.mxu0 %v1310
      %1351 = vmatprep.subr.bf16.mxu0 0
      %1352 = vmatpush1.bf16.msra.mxu0 %v1311
      %1353 = vmatprep.subr.bf16.mxu0 0
      %1354 = vmatpush1.bf16.msra.mxu0 %v1312
      %1355 = vmatprep.subr.bf16.mxu0 0
      %1356 = vmatpush1.bf16.msra.mxu0 %v1313
      %1357 = vmatprep.subr.bf16.mxu0 0
      %1358 = vmatpush1.bf16.msra.mxu0 %v1314
      %1359 = vmatprep.subr.bf16.mxu0 0
      %1360 = vmatpush1.bf16.msra.mxu0 %v1315
      %1361 = vmatprep.subr.bf16.mxu0 0
      %1362 = vmatpush1.bf16.msra.mxu0 %v1316
      %1363 = vmatprep.subr.bf16.mxu0 0
      %1364 = vmatpush1.bf16.msra.mxu0 %v1317
      %1365 = vmatprep.subr.bf16.mxu0 0
      %1366 = vmatpush1.bf16.msra.mxu0 %v1318
      %1367 = vmatprep.mubr.bf16.mxu0 %v1196
      %1368 = vmatmul.mubr.bf16.gmra.mrb[0].mxu0 %v1186
      %v1369 = vpop.f32.mrb[0].mxu0
      %v1370 = vadd.f32 0.0, %v1369
      %v1371 = vpop.f32.mrb[0].mxu0
      %v1372 = vpop.f32.mrb[0].mxu0
      %v1373 = vadd.f32 0.0, %v1372
      %v1374 = vpop.f32.mrb[0].mxu0
      %1375 = vmatprep.mubr.bf16.mxu0 %v1197
      %1376 = vmatmul.mubr.bf16.gmra.mrb[0].mxu0 %v1187
      %v1377 = vpop.f32.mrb[0].mxu0
      %v1378 = vadd.f32 0.0, %v1377
      %v1379 = vpop.f32.mrb[0].mxu0
      %v1380 = vpop.f32.mrb[0].mxu0
      %v1381 = vadd.f32 0.0, %v1380
      %v1382 = vpop.f32.mrb[0].mxu0
      %1383 = vmatprep.mubr.bf16.mxu0 %v1198
      %1384 = vmatmul.mubr.bf16.gmra.mrb[0].mxu0 %v1188
      %v1385 = vpop.f32.mrb[0].mxu0
      %v1386 = vadd.f32 0.0, %v1385
      %v1387 = vpop.f32.mrb[0].mxu0
      %v1388 = vpop.f32.mrb[0].mxu0
      %v1389 = vadd.f32 0.0, %v1388
      %v1390 = vpop.f32.mrb[0].mxu0
      %1391 = vmatprep.mubr.bf16.mxu0 %v1199
      %1392 = vmatmul.mubr.bf16.gmra.mrb[0].mxu0 %v1189
      %v1393 = vpop.f32.mrb[0].mxu0
      %v1394 = vadd.f32 0.0, %v1393
      %v1395 = vpop.f32.mrb[0].mxu0
      %v1396 = vpop.f32.mrb[0].mxu0
      %v1397 = vadd.f32 0.0, %v1396
      %v1398 = vpop.f32.mrb[0].mxu0
      %1399 = vmatprep.mubr.bf16.mxu0 %v1200
      %1400 = vmatmul.mubr.bf16.gmra.mrb[0].mxu0 %v1190
      %v1401 = vpop.f32.mrb[0].mxu0
      %v1402 = vadd.f32 0.0, %v1401
      %v1403 = vpop.f32.mrb[0].mxu0
      %v1404 = vpop.f32.mrb[0].mxu0
      %v1405 = vadd.f32 0.0, %v1404
      %v1406 = vpop.f32.mrb[0].mxu0
      %1407 = vmatprep.mubr.bf16.mxu0 %v1201
      %1408 = vmatmul.mubr.bf16.gmra.mrb[0].mxu0 %v1191
      %v1409 = vpop.f32.mrb[0].mxu0
      %v1410 = vadd.f32 0.0, %v1409
      %v1411 = vpop.f32.mrb[0].mxu0
      %v1412 = vpop.f32.mrb[0].mxu0
      %v1413 = vadd.f32 0.0, %v1412
      %v1414 = vpop.f32.mrb[0].mxu0
      %1415 = vmatprep.mubr.bf16.mxu0 %v1202
      %1416 = vmatmul.mubr.bf16.gmra.mrb[0].mxu0 %v1192
      %v1417 = vpop.f32.mrb[0].mxu0
      %v1418 = vadd.f32 0.0, %v1417
      %v1419 = vpop.f32.mrb[0].mxu0
      %v1420 = vpop.f32.mrb[0].mxu0
      %v1421 = vadd.f32 0.0, %v1420
      %v1422 = vpop.f32.mrb[0].mxu0
      %1423 = vmatprep.mubr.bf16.mxu0 %v1203
      %1424 = vmatmul.mubr.bf16.gmra.mrb[0].mxu0 %v1193
      %v1425 = vpop.f32.mrb[0].mxu0
      %v1426 = vadd.f32 0.0, %v1425
      %v1427 = vpop.f32.mrb[0].mxu0
      %v1428 = vpop.f32.mrb[0].mxu0
      %v1429 = vadd.f32 0.0, %v1428
      %v1430 = vpop.f32.mrb[0].mxu0
      %1431 = vmatprep.mubr.bf16.mxu0 %v1204
      %1432 = vmatmul.mubr.bf16.gmra.mrb[0].mxu0 %v1194
      %v1433 = vpop.f32.mrb[0].mxu0
      %v1434 = vadd.f32 0.0, %v1433
      %v1435 = vpop.f32.mrb[0].mxu0
      %v1436 = vpop.f32.mrb[0].mxu0
      %v1437 = vadd.f32 0.0, %v1436
      %v1438 = vpop.f32.mrb[0].mxu0
      %1439 = vmatprep.mubr.bf16.mxu0 %v1205
      %1440 = vmatmul.mubr.bf16.gmra.mrb[0].mxu0 %v1195
      %v1441 = vpop.f32.mrb[0].mxu0
      %v1442 = vadd.f32 0.0, %v1441
      %v1443 = vpop.f32.mrb[0].mxu0
      %v1444 = vpop.f32.mrb[0].mxu0
      %v1445 = vadd.f32 0.0, %v1444
      %v1446 = vpop.f32.mrb[0].mxu0
      %1447 = vdwg.mxu0
      %v1480 = vunpack.c.l.b16 %v1154
      %v1481 = vunpack.c.l.b16 %v1155
      %v1482 = vunpack.c.l.b16 %v1156
      %v1483 = vunpack.c.l.b16 %v1157
      %v1484 = vunpack.c.l.b16 %v1158
      %v1485 = vunpack.c.l.b16 %v1159
      %v1486 = vunpack.c.l.b16 %v1160
      %v1487 = vunpack.c.l.b16 %v1161
      %v1488 = vunpack.c.l.b16 %v1162
      %v1489 = vunpack.c.l.b16 %v1163
      %v1490 = vunpack.c.l.b16 %v1164
      %v1491 = vunpack.c.l.b16 %v1165
      %v1492 = vunpack.c.l.b16 %v1166
      %v1493 = vunpack.c.l.b16 %v1167
      %v1494 = vunpack.c.l.b16 %v1168
      %v1495 = vunpack.c.l.b16 %v1169
      %v1496 = vunpack.c.l.b16 %v1170
      %v1497 = vunpack.c.l.b16 %v1171
      %v1498 = vunpack.c.l.b16 %v1172
      %v1499 = vunpack.c.l.b16 %v1173
      %v1500 = vunpack.c.l.b16 %v1174
      %v1501 = vunpack.c.l.b16 %v1175
      %v1502 = vunpack.c.l.b16 %v1176
      %v1503 = vunpack.c.l.b16 %v1177
      %v1504 = vunpack.c.l.b16 %v1178
      %v1505 = vunpack.c.l.b16 %v1179
      %v1506 = vunpack.c.l.b16 %v1180
      %v1507 = vunpack.c.l.b16 %v1181
      %v1508 = vunpack.c.l.b16 %v1182
      %v1509 = vunpack.c.l.b16 %v1183
      %v1510 = vunpack.c.l.b16 %v1184
      %v1511 = vunpack.c.l.b16 %v1185
      %v1512 = vpack.c.b16 %v1481, %v1480
      %v1513 = vpack.c.b16 %v1483, %v1482
      %v1514 = vpack.c.b16 %v1485, %v1484
      %v1515 = vpack.c.b16 %v1487, %v1486
      %v1516 = vpack.c.b16 %v1489, %v1488
      %v1517 = vpack.c.b16 %v1491, %v1490
      %v1518 = vpack.c.b16 %v1493, %v1492
      %v1519 = vpack.c.b16 %v1495, %v1494
      %v1520 = vpack.c.b16 %v1497, %v1496
      %v1521 = vpack.c.b16 %v1499, %v1498
      %v1522 = vpack.c.b16 %v1501, %v1500
      %v1523 = vpack.c.b16 %v1503, %v1502
      %v1524 = vpack.c.b16 %v1505, %v1504
      %v1525 = vpack.c.b16 %v1507, %v1506
      %v1526 = vpack.c.b16 %v1509, %v1508
      %v1527 = vpack.c.b16 %v1511, %v1510
      %1544 = vmatprep.subr.bf16.mxu0 0
      %1545 = vmatpush1.bf16.msra.mxu0 %v1512
      %1546 = vmatprep.subr.bf16.mxu0 0
      %1547 = vmatpush1.bf16.msra.mxu0 %v1513
      %1548 = vmatprep.subr.bf16.mxu0 0
      %1549 = vmatpush1.bf16.msra.mxu0 %v1514
      %1550 = vmatprep.subr.bf16.mxu0 0
      %1551 = vmatpush1.bf16.msra.mxu0 %v1515
      %1552 = vmatprep.subr.bf16.mxu0 0
      %1553 = vmatpush1.bf16.msra.mxu0 %v1516
      %1554 = vmatprep.subr.bf16.mxu0 0
      %1555 = vmatpush1.bf16.msra.mxu0 %v1517
      %1556 = vmatprep.subr.bf16.mxu0 0
      %1557 = vmatpush1.bf16.msra.mxu0 %v1518
      %1558 = vmatprep.subr.bf16.mxu0 0
      %1559 = vmatpush1.bf16.msra.mxu0 %v1519
      %1560 = vmatprep.subr.bf16.mxu0 0
      %1561 = vmatpush1.bf16.msra.mxu0 %v1520
      %1562 = vmatprep.subr.bf16.mxu0 0
      %1563 = vmatpush1.bf16.msra.mxu0 %v1521
      %1564 = vmatprep.subr.bf16.mxu0 0
      %1565 = vmatpush1.bf16.msra.mxu0 %v1522
      %1566 = vmatprep.subr.bf16.mxu0 0
      %1567 = vmatpush1.bf16.msra.mxu0 %v1523
      %1568 = vmatprep.subr.bf16.mxu0 0
      %1569 = vmatpush1.bf16.msra.mxu0 %v1524
      %1570 = vmatprep.subr.bf16.mxu0 0
      %1571 = vmatpush1.bf16.msra.mxu0 %v1525
      %1572 = vmatprep.subr.bf16.mxu0 0
      %1573 = vmatpush1.bf16.msra.mxu0 %v1526
      %1574 = vmatprep.subr.bf16.mxu0 0
      %1575 = vmatpush1.bf16.msra.mxu0 %v1527
      %1576 = vmatprep.mubr.bf16.mxu0 %v1144
      %1577 = vmatmul.mubr.bf16.gmra.mrb[0].mxu0 %v1134
      %v1578 = vpop.f32.mrb[0].mxu0
      %v1579 = vadd.f32 %v1370, %v1578
      %v1580 = vpop.f32.mrb[0].mxu0
      %v1581 = vpop.f32.mrb[0].mxu0
      %v1582 = vadd.f32 %v1373, %v1581
      %v1583 = vpop.f32.mrb[0].mxu0
      %1584 = vmatprep.mubr.bf16.mxu0 %v1145
      %1585 = vmatmul.mubr.bf16.gmra.mrb[0].mxu0 %v1135
      %v1586 = vpop.f32.mrb[0].mxu0
      %v1587 = vadd.f32 %v1378, %v1586
      %v1588 = vpop.f32.mrb[0].mxu0
      %v1589 = vpop.f32.mrb[0].mxu0
      %v1590 = vadd.f32 %v1381, %v1589
      %v1591 = vpop.f32.mrb[0].mxu0
      %1592 = vmatprep.mubr.bf16.mxu0 %v1146
      %1593 = vmatmul.mubr.bf16.gmra.mrb[0].mxu0 %v1136
      %v1594 = vpop.f32.mrb[0].mxu0
      %v1595 = vadd.f32 %v1386, %v1594
      %v1596 = vpop.f32.mrb[0].mxu0
      %v1597 = vpop.f32.mrb[0].mxu0
      %v1598 = vadd.f32 %v1389, %v1597
      %v1599 = vpop.f32.mrb[0].mxu0
      %1600 = vmatprep.mubr.bf16.mxu0 %v1147
      %1601 = vmatmul.mubr.bf16.gmra.mrb[0].mxu0 %v1137
      %v1602 = vpop.f32.mrb[0].mxu0
      %v1603 = vadd.f32 %v1394, %v1602
      %v1604 = vpop.f32.mrb[0].mxu0
      %v1605 = vpop.f32.mrb[0].mxu0
      %v1606 = vadd.f32 %v1397, %v1605
      %v1607 = vpop.f32.mrb[0].mxu0
      %1608 = vmatprep.mubr.bf16.mxu0 %v1148
      %1609 = vmatmul.mubr.bf16.gmra.mrb[0].mxu0 %v1138
      %v1610 = vpop.f32.mrb[0].mxu0
      %v1611 = vadd.f32 %v1402, %v1610
      %v1612 = vpop.f32.mrb[0].mxu0
      %v1613 = vpop.f32.mrb[0].mxu0
      %v1614 = vadd.f32 %v1405, %v1613
      %v1615 = vpop.f32.mrb[0].mxu0
      %1616 = vmatprep.mubr.bf16.mxu0 %v1149
      %1617 = vmatmul.mubr.bf16.gmra.mrb[0].mxu0 %v1139
      %v1618 = vpop.f32.mrb[0].mxu0
      %v1619 = vadd.f32 %v1410, %v1618
      %v1620 = vpop.f32.mrb[0].mxu0
      %v1621 = vpop.f32.mrb[0].mxu0
      %v1622 = vadd.f32 %v1413, %v1621
      %v1623 = vpop.f32.mrb[0].mxu0
      %1624 = vmatprep.mubr.bf16.mxu0 %v1150
      %1625 = vmatmul.mubr.bf16.gmra.mrb[0].mxu0 %v1140
      %v1626 = vpop.f32.mrb[0].mxu0
      %v1627 = vadd.f32 %v1418, %v1626
      %v1628 = vpop.f32.mrb[0].mxu0
      %v1629 = vpop.f32.mrb[0].mxu0
      %v1630 = vadd.f32 %v1421, %v1629
      %v1631 = vpop.f32.mrb[0].mxu0
      %1632 = vmatprep.mubr.bf16.mxu0 %v1151
      %1633 = vmatmul.mubr.bf16.gmra.mrb[0].mxu0 %v1141
      %v1634 = vpop.f32.mrb[0].mxu0
      %v1635 = vadd.f32 %v1426, %v1634
      %v1636 = vpop.f32.mrb[0].mxu0
      %v1637 = vpop.f32.mrb[0].mxu0
      %v1638 = vadd.f32 %v1429, %v1637
      %v1639 = vpop.f32.mrb[0].mxu0
      %1640 = vmatprep.mubr.bf16.mxu0 %v1152
      %1641 = vmatmul.mubr.bf16.gmra.mrb[0].mxu0 %v1142
      %v1642 = vpop.f32.mrb[0].mxu0
      %v1643 = vadd.f32 %v1434, %v1642
      %v1644 = vpop.f32.mrb[0].mxu0
      %v1645 = vpop.f32.mrb[0].mxu0
      %v1646 = vadd.f32 %v1437, %v1645
      %v1647 = vpop.f32.mrb[0].mxu0
      %1648 = vmatprep.mubr.bf16.mxu0 %v1153
      %1649 = vmatmul.mubr.bf16.gmra.mrb[0].mxu0 %v1143
      %v1650 = vpop.f32.mrb[0].mxu0
      %v1651 = vadd.f32 %v1442, %v1650
      %v1652 = vpop.f32.mrb[0].mxu0
      %v1653 = vpop.f32.mrb[0].mxu0
      %v1654 = vadd.f32 %v1445, %v1653
      %v1655 = vpop.f32.mrb[0].mxu0
      %1656 = vdwg.mxu0
      %v1657 = vld [vmem:[%s1119] sm:$0xff]
      %v1658 = vld [vmem:[%s1119 + $0x8] sm:$0xff]
      %v1659 = vld [vmem:[%s1119 + $0x10] sm:$0xff]
      %v1660 = vld [vmem:[%s1119 + $0x18] sm:$0xff]
      %v1661 = vld [vmem:[%s1119 + $0x20] sm:$0xff]
      %v1662 = vld [vmem:[%s1119 + $0x28] sm:$0xff]
      %v1663 = vld [vmem:[%s1119 + $0x30] sm:$0xff]
      %v1664 = vld [vmem:[%s1119 + $0x38] sm:$0xff]
      %v1665 = vld [vmem:[%s1119 + $0x40] sm:$0xff]
      %v1666 = vld [vmem:[%s1119 + $0x48] sm:$0xff]
      %v1667 = vld [vmem:[#allocation2 + $0x8] sm:$0xff]
      %v1668 = vld [vmem:[#allocation2 + $0x10] sm:$0xff]
      %v1669 = vld [vmem:[#allocation2 + $0x18] sm:$0xff]
      %v1670 = vld [vmem:[#allocation2 + $0x20] sm:$0xff]
      %v1671 = vld [vmem:[#allocation2 + $0x28] sm:$0xff]
      %v1672 = vld [vmem:[#allocation2 + $0x30] sm:$0xff]
      %v1673 = vld [vmem:[#allocation2 + $0x38] sm:$0xff]
      %v1674 = vld [vmem:[#allocation2 + $0x40] sm:$0xff]
      %v1675 = vld [vmem:[#allocation2 + $0x48] sm:$0xff]
      %v1676 = vld [vmem:[#allocation2 + $0x50] sm:$0xff]
      %s1677 = scalar_lea.vmem %s1, 256
      %v1678 = vld [vmem:[%s1677] sm:$0xf]
      %v1679 = vld [vmem:[%s1677 + $0x4] sm:$0xf]
      %v1680 = vld [vmem:[%s1677 + $0x8] sm:$0xf]
      %v1681 = vld [vmem:[%s1677 + $0xc] sm:$0xf]
      %v1682 = vld [vmem:[%s1677 + $0x10] sm:$0xf]
      %v1683 = vld [vmem:[%s1677 + $0x14] sm:$0xf]
      %v1684 = vld [vmem:[%s1677 + $0x18] sm:$0xf]
      %v1685 = vld [vmem:[%s1677 + $0x1c] sm:$0xf]
      %v1686 = vld [vmem:[%s1677 + $0x20] sm:$0xf]
      %v1687 = vld [vmem:[%s1677 + $0x24] sm:$0xf]
      %v1688 = vld [vmem:[%s1677 + $0x28] sm:$0xf]
      %v1689 = vld [vmem:[%s1677 + $0x2c] sm:$0xf]
      %v1690 = vld [vmem:[%s1677 + $0x30] sm:$0xf]
      %v1691 = vld [vmem:[%s1677 + $0x34] sm:$0xf]
      %v1692 = vld [vmem:[%s1677 + $0x38] sm:$0xf]
      %v1693 = vld [vmem:[%s1677 + $0x3c] sm:$0xf]
      %v1694 = vld [vmem:[%s1677 + $0x40] sm:$0xf]
      %v1695 = vld [vmem:[%s1677 + $0x44] sm:$0xf]
      %v1696 = vld [vmem:[%s1677 + $0x48] sm:$0xf]
      %v1697 = vld [vmem:[%s1677 + $0x4c] sm:$0xf]
      %v1698 = vld [vmem:[%s1677 + $0x50] sm:$0xf]
      %v1699 = vld [vmem:[%s1677 + $0x54] sm:$0xf]
      %v1700 = vld [vmem:[%s1677 + $0x58] sm:$0xf]
      %v1701 = vld [vmem:[%s1677 + $0x5c] sm:$0xf]
      %v1702 = vld [vmem:[%s1677 + $0x60] sm:$0xf]
      %v1703 = vld [vmem:[%s1677 + $0x64] sm:$0xf]
      %v1704 = vld [vmem:[%s1677 + $0x68] sm:$0xf]
      %v1705 = vld [vmem:[%s1677 + $0x6c] sm:$0xf]
      %v1706 = vld [vmem:[%s1677 + $0x70] sm:$0xf]
      %v1707 = vld [vmem:[%s1677 + $0x74] sm:$0xf]
      %v1708 = vld [vmem:[%s1677 + $0x78] sm:$0xf]
      %v1709 = vld [vmem:[%s1677 + $0x7c] sm:$0xf]
      %v1742 = vunpack.c.l.b16 %v1678
      %v1743 = vunpack.c.l.b16 %v1679
      %v1744 = vunpack.c.l.b16 %v1680
      %v1745 = vunpack.c.l.b16 %v1681
      %v1746 = vunpack.c.l.b16 %v1682
      %v1747 = vunpack.c.l.b16 %v1683
      %v1748 = vunpack.c.l.b16 %v1684
      %v1749 = vunpack.c.l.b16 %v1685
      %v1750 = vunpack.c.l.b16 %v1686
      %v1751 = vunpack.c.l.b16 %v1687
      %v1752 = vunpack.c.l.b16 %v1688
      %v1753 = vunpack.c.l.b16 %v1689
      %v1754 = vunpack.c.l.b16 %v1690
      %v1755 = vunpack.c.l.b16 %v1691
      %v1756 = vunpack.c.l.b16 %v1692
      %v1757 = vunpack.c.l.b16 %v1693
      %v1758 = vunpack.c.l.b16 %v1694
      %v1759 = vunpack.c.l.b16 %v1695
      %v1760 = vunpack.c.l.b16 %v1696
      %v1761 = vunpack.c.l.b16 %v1697
      %v1762 = vunpack.c.l.b16 %v1698
      %v1763 = vunpack.c.l.b16 %v1699
      %v1764 = vunpack.c.l.b16 %v1700
      %v1765 = vunpack.c.l.b16 %v1701
      %v1766 = vunpack.c.l.b16 %v1702
      %v1767 = vunpack.c.l.b16 %v1703
      %v1768 = vunpack.c.l.b16 %v1704
      %v1769 = vunpack.c.l.b16 %v1705
      %v1770 = vunpack.c.l.b16 %v1706
      %v1771 = vunpack.c.l.b16 %v1707
      %v1772 = vunpack.c.l.b16 %v1708
      %v1773 = vunpack.c.l.b16 %v1709
      %v1774 = vpack.c.b16 %v1743, %v1742
      %v1775 = vpack.c.b16 %v1745, %v1744
      %v1776 = vpack.c.b16 %v1747, %v1746
      %v1777 = vpack.c.b16 %v1749, %v1748
      %v1778 = vpack.c.b16 %v1751, %v1750
      %v1779 = vpack.c.b16 %v1753, %v1752
      %v1780 = vpack.c.b16 %v1755, %v1754
      %v1781 = vpack.c.b16 %v1757, %v1756
      %v1782 = vpack.c.b16 %v1759, %v1758
      %v1783 = vpack.c.b16 %v1761, %v1760
      %v1784 = vpack.c.b16 %v1763, %v1762
      %v1785 = vpack.c.b16 %v1765, %v1764
      %v1786 = vpack.c.b16 %v1767, %v1766
      %v1787 = vpack.c.b16 %v1769, %v1768
      %v1788 = vpack.c.b16 %v1771, %v1770
      %v1789 = vpack.c.b16 %v1773, %v1772
      %1806 = vmatprep.subr.bf16.mxu0 0
      %1807 = vmatpush1.bf16.msra.mxu0 %v1774
      %1808 = vmatprep.subr.bf16.mxu0 0
      %1809 = vmatpush1.bf16.msra.mxu0 %v1775
      %1810 = vmatprep.subr.bf16.mxu0 0
      %1811 = vmatpush1.bf16.msra.mxu0 %v1776
      %1812 = vmatprep.subr.bf16.mxu0 0
      %1813 = vmatpush1.bf16.msra.mxu0 %v1777
      %1814 = vmatprep.subr.bf16.mxu0 0
      %1815 = vmatpush1.bf16.msra.mxu0 %v1778
      %1816 = vmatprep.subr.bf16.mxu0 0
      %1817 = vmatpush1.bf16.msra.mxu0 %v1779
      %1818 = vmatprep.subr.bf16.mxu0 0
      %1819 = vmatpush1.bf16.msra.mxu0 %v1780
      %1820 = vmatprep.subr.bf16.mxu0 0
      %1821 = vmatpush1.bf16.msra.mxu0 %v1781
      %1822 = vmatprep.subr.bf16.mxu0 0
      %1823 = vmatpush1.bf16.msra.mxu0 %v1782
      %1824 = vmatprep.subr.bf16.mxu0 0
      %1825 = vmatpush1.bf16.msra.mxu0 %v1783
      %1826 = vmatprep.subr.bf16.mxu0 0
      %1827 = vmatpush1.bf16.msra.mxu0 %v1784
      %1828 = vmatprep.subr.bf16.mxu0 0
      %1829 = vmatpush1.bf16.msra.mxu0 %v1785
      %1830 = vmatprep.subr.bf16.mxu0 0
      %1831 = vmatpush1.bf16.msra.mxu0 %v1786
      %1832 = vmatprep.subr.bf16.mxu0 0
      %1833 = vmatpush1.bf16.msra.mxu0 %v1787
      %1834 = vmatprep.subr.bf16.mxu0 0
      %1835 = vmatpush1.bf16.msra.mxu0 %v1788
      %1836 = vmatprep.subr.bf16.mxu0 0
      %1837 = vmatpush1.bf16.msra.mxu0 %v1789
      %1838 = vmatprep.mubr.bf16.mxu0 %v1667
      %1839 = vmatmul.mubr.bf16.gmra.mrb[0].mxu0 %v1657
      %v1840 = vpop.f32.mrb[0].mxu0
      %v1841 = vadd.f32 0.0, %v1840
      %v1842 = vpop.f32.mrb[0].mxu0
      %v1843 = vpop.f32.mrb[0].mxu0
      %v1844 = vadd.f32 0.0, %v1843
      %v1845 = vpop.f32.mrb[0].mxu0
      %1846 = vmatprep.mubr.bf16.mxu0 %v1668
      %1847 = vmatmul.mubr.bf16.gmra.mrb[0].mxu0 %v1658
      %v1848 = vpop.f32.mrb[0].mxu0
      %v1849 = vadd.f32 0.0, %v1848
      %v1850 = vpop.f32.mrb[0].mxu0
      %v1851 = vpop.f32.mrb[0].mxu0
      %v1852 = vadd.f32 0.0, %v1851
      %v1853 = vpop.f32.mrb[0].mxu0
      %1854 = vmatprep.mubr.bf16.mxu0 %v1669
      %1855 = vmatmul.mubr.bf16.gmra.mrb[0].mxu0 %v1659
      %v1856 = vpop.f32.mrb[0].mxu0
      %v1857 = vadd.f32 0.0, %v1856
      %v1858 = vpop.f32.mrb[0].mxu0
      %v1859 = vpop.f32.mrb[0].mxu0
      %v1860 = vadd.f32 0.0, %v1859
      %v1861 = vpop.f32.mrb[0].mxu0
      %1862 = vmatprep.mubr.bf16.mxu0 %v1670
      %1863 = vmatmul.mubr.bf16.gmra.mrb[0].mxu0 %v1660
      %v1864 = vpop.f32.mrb[0].mxu0
      %v1865 = vadd.f32 0.0, %v1864
      %v1866 = vpop.f32.mrb[0].mxu0
      %v1867 = vpop.f32.mrb[0].mxu0
      %v1868 = vadd.f32 0.0, %v1867
      %v1869 = vpop.f32.mrb[0].mxu0
      %1870 = vmatprep.mubr.bf16.mxu0 %v1671
      %1871 = vmatmul.mubr.bf16.gmra.mrb[0].mxu0 %v1661
      %v1872 = vpop.f32.mrb[0].mxu0
      %v1873 = vadd.f32 0.0, %v1872
      %v1874 = vpop.f32.mrb[0].mxu0
      %v1875 = vpop.f32.mrb[0].mxu0
      %v1876 = vadd.f32 0.0, %v1875
      %v1877 = vpop.f32.mrb[0].mxu0
      %1878 = vmatprep.mubr.bf16.mxu0 %v1672
      %1879 = vmatmul.mubr.bf16.gmra.mrb[0].mxu0 %v1662
      %v1880 = vpop.f32.mrb[0].mxu0
      %v1881 = vadd.f32 0.0, %v1880
      %v1882 = vpop.f32.mrb[0].mxu0
      %v1883 = vpop.f32.mrb[0].mxu0
      %v1884 = vadd.f32 0.0, %v1883
      %v1885 = vpop.f32.mrb[0].mxu0
      %1886 = vmatprep.mubr.bf16.mxu0 %v1673
      %1887 = vmatmul.mubr.bf16.gmra.mrb[0].mxu0 %v1663
      %v1888 = vpop.f32.mrb[0].mxu0
      %v1889 = vadd.f32 0.0, %v1888
      %v1890 = vpop.f32.mrb[0].mxu0
      %v1891 = vpop.f32.mrb[0].mxu0
      %v1892 = vadd.f32 0.0, %v1891
      %v1893 = vpop.f32.mrb[0].mxu0
      %1894 = vmatprep.mubr.bf16.mxu0 %v1674
      %1895 = vmatmul.mubr.bf16.gmra.mrb[0].mxu0 %v1664
      %v1896 = vpop.f32.mrb[0].mxu0
      %v1897 = vadd.f32 0.0, %v1896
      %v1898 = vpop.f32.mrb[0].mxu0
      %v1899 = vpop.f32.mrb[0].mxu0
      %v1900 = vadd.f32 0.0, %v1899
      %v1901 = vpop.f32.mrb[0].mxu0
      %1902 = vmatprep.mubr.bf16.mxu0 %v1675
      %1903 = vmatmul.mubr.bf16.gmra.mrb[0].mxu0 %v1665
      %v1904 = vpop.f32.mrb[0].mxu0
      %v1905 = vadd.f32 0.0, %v1904
      %v1906 = vpop.f32.mrb[0].mxu0
      %v1907 = vpop.f32.mrb[0].mxu0
      %v1908 = vadd.f32 0.0, %v1907
      %v1909 = vpop.f32.mrb[0].mxu0
      %1910 = vmatprep.mubr.bf16.mxu0 %v1676
      %1911 = vmatmul.mubr.bf16.gmra.mrb[0].mxu0 %v1666
      %v1912 = vpop.f32.mrb[0].mxu0
      %v1913 = vadd.f32 0.0, %v1912
      %v1914 = vpop.f32.mrb[0].mxu0
      %v1915 = vpop.f32.mrb[0].mxu0
      %v1916 = vadd.f32 0.0, %v1915
      %v1917 = vpop.f32.mrb[0].mxu0
      %1918 = vdwg.mxu0
      %v1919 = vadd.f32 %v1579, %v1841
      %v1920 = vadd.f32 %v1582, %v1844
      %v1921 = vadd.f32 %v1587, %v1849
      %v1922 = vadd.f32 %v1590, %v1852
      %v1923 = vadd.f32 %v1595, %v1857
      %v1924 = vadd.f32 %v1598, %v1860
      %v1925 = vadd.f32 %v1603, %v1865
      %v1926 = vadd.f32 %v1606, %v1868
      %v1927 = vadd.f32 %v1611, %v1873
      %v1928 = vadd.f32 %v1614, %v1876
      %v1929 = vadd.f32 %v1619, %v1881
      %v1930 = vadd.f32 %v1622, %v1884
      %v1931 = vadd.f32 %v1627, %v1889
      %v1932 = vadd.f32 %v1630, %v1892
      %v1933 = vadd.f32 %v1635, %v1897
      %v1934 = vadd.f32 %v1638, %v1900
      %v1935 = vadd.f32 %v1643, %v1905
      %v1936 = vadd.f32 %v1646, %v1908
      %v1937 = vadd.f32 %v1651, %v1913
      %v1938 = vadd.f32 %v1654, %v1916
      %v1939 = vld [vmem:[%s531 + $0x8] sm:$0xff]
      %v1940 = vld [vmem:[%s531 + $0x10] sm:$0xff]
      %v1941 = vld [vmem:[%s531 + $0x18] sm:$0xff]
      %v1942 = vld [vmem:[%s531 + $0x20] sm:$0xff]
      %v1943 = vld [vmem:[%s531 + $0x28] sm:$0xff]
      %v1944 = vld [vmem:[%s531 + $0x30] sm:$0xff]
      %v1945 = vld [vmem:[%s531 + $0x38] sm:$0xff]
      %v1946 = vld [vmem:[%s531 + $0x40] sm:$0xff]
      %v1947 = vld [vmem:[%s531 + $0x48] sm:$0xff]
      %v1948 = vld [vmem:[%s531 + $0x50] sm:$0xff]
      %v1949 = vld [vmem:[%s692 + $0x8] sm:$0xff]
      %v1950 = vld [vmem:[%s692 + $0x10] sm:$0xff]
      %v1951 = vld [vmem:[%s692 + $0x18] sm:$0xff]
      %v1952 = vld [vmem:[%s692 + $0x20] sm:$0xff]
      %v1953 = vld [vmem:[%s692 + $0x28] sm:$0xff]
      %v1954 = vld [vmem:[%s692 + $0x30] sm:$0xff]
      %v1955 = vld [vmem:[%s692 + $0x38] sm:$0xff]
      %v1956 = vld [vmem:[%s692 + $0x40] sm:$0xff]
      %v1957 = vld [vmem:[%s692 + $0x48] sm:$0xff]
      %v1958 = vld [vmem:[%s692 + $0x50] sm:$0xff]
      %s1959 = scalar_lea.vmem %s1, 384
      %v1960 = vld [vmem:[%s1959] sm:$0xf]
      %v1961 = vld [vmem:[%s1959 + $0x4] sm:$0xf]
      %v1962 = vld [vmem:[%s1959 + $0x8] sm:$0xf]
      %v1963 = vld [vmem:[%s1959 + $0xc] sm:$0xf]
      %v1964 = vld [vmem:[%s1959 + $0x10] sm:$0xf]
      %v1965 = vld [vmem:[%s1959 + $0x14] sm:$0xf]
      %v1966 = vld [vmem:[%s1959 + $0x18] sm:$0xf]
      %v1967 = vld [vmem:[%s1959 + $0x1c] sm:$0xf]
      %v1968 = vld [vmem:[%s1959 + $0x20] sm:$0xf]
      %v1969 = vld [vmem:[%s1959 + $0x24] sm:$0xf]
      %v1970 = vld [vmem:[%s1959 + $0x28] sm:$0xf]
      %v1971 = vld [vmem:[%s1959 + $0x2c] sm:$0xf]
      %v1972 = vld [vmem:[%s1959 + $0x30] sm:$0xf]
      %v1973 = vld [vmem:[%s1959 + $0x34] sm:$0xf]
      %v1974 = vld [vmem:[%s1959 + $0x38] sm:$0xf]
      %v1975 = vld [vmem:[%s1959 + $0x3c] sm:$0xf]
      %v1976 = vld [vmem:[%s1959 + $0x40] sm:$0xf]
      %v1977 = vld [vmem:[%s1959 + $0x44] sm:$0xf]
      %v1978 = vld [vmem:[%s1959 + $0x48] sm:$0xf]
      %v1979 = vld [vmem:[%s1959 + $0x4c] sm:$0xf]
      %v1980 = vld [vmem:[%s1959 + $0x50] sm:$0xf]
      %v1981 = vld [vmem:[%s1959 + $0x54] sm:$0xf]
      %v1982 = vld [vmem:[%s1959 + $0x58] sm:$0xf]
      %v1983 = vld [vmem:[%s1959 + $0x5c] sm:$0xf]
      %v1984 = vld [vmem:[%s1959 + $0x60] sm:$0xf]
      %v1985 = vld [vmem:[%s1959 + $0x64] sm:$0xf]
      %v1986 = vld [vmem:[%s1959 + $0x68] sm:$0xf]
      %v1987 = vld [vmem:[%s1959 + $0x6c] sm:$0xf]
      %v1988 = vld [vmem:[%s1959 + $0x70] sm:$0xf]
      %v1989 = vld [vmem:[%s1959 + $0x74] sm:$0xf]
      %v1990 = vld [vmem:[%s1959 + $0x78] sm:$0xf]
      %v1991 = vld [vmem:[%s1959 + $0x7c] sm:$0xf]
      %v2024 = vunpack.c.l.b16 %v1960
      %v2025 = vunpack.c.l.b16 %v1961
      %v2026 = vunpack.c.l.b16 %v1962
      %v2027 = vunpack.c.l.b16 %v1963
      %v2028 = vunpack.c.l.b16 %v1964
      %v2029 = vunpack.c.l.b16 %v1965
      %v2030 = vunpack.c.l.b16 %v1966
      %v2031 = vunpack.c.l.b16 %v1967
      %v2032 = vunpack.c.l.b16 %v1968
      %v2033 = vunpack.c.l.b16 %v1969
      %v2034 = vunpack.c.l.b16 %v1970
      %v2035 = vunpack.c.l.b16 %v1971
      %v2036 = vunpack.c.l.b16 %v1972
      %v2037 = vunpack.c.l.b16 %v1973
      %v2038 = vunpack.c.l.b16 %v1974
      %v2039 = vunpack.c.l.b16 %v1975
      %v2040 = vunpack.c.l.b16 %v1976
      %v2041 = vunpack.c.l.b16 %v1977
      %v2042 = vunpack.c.l.b16 %v1978
      %v2043 = vunpack.c.l.b16 %v1979
      %v2044 = vunpack.c.l.b16 %v1980
      %v2045 = vunpack.c.l.b16 %v1981
      %v2046 = vunpack.c.l.b16 %v1982
      %v2047 = vunpack.c.l.b16 %v1983
      %v2048 = vunpack.c.l.b16 %v1984
      %v2049 = vunpack.c.l.b16 %v1985
      %v2050 = vunpack.c.l.b16 %v1986
      %v2051 = vunpack.c.l.b16 %v1987
      %v2052 = vunpack.c.l.b16 %v1988
      %v2053 = vunpack.c.l.b16 %v1989
      %v2054 = vunpack.c.l.b16 %v1990
      %v2055 = vunpack.c.l.b16 %v1991
      %v2056 = vpack.c.b16 %v2025, %v2024
      %v2057 = vpack.c.b16 %v2027, %v2026
      %v2058 = vpack.c.b16 %v2029, %v2028
      %v2059 = vpack.c.b16 %v2031, %v2030
      %v2060 = vpack.c.b16 %v2033, %v2032
      %v2061 = vpack.c.b16 %v2035, %v2034
      %v2062 = vpack.c.b16 %v2037, %v2036
      %v2063 = vpack.c.b16 %v2039, %v2038
      %v2064 = vpack.c.b16 %v2041, %v2040
      %v2065 = vpack.c.b16 %v2043, %v2042
      %v2066 = vpack.c.b16 %v2045, %v2044
      %v2067 = vpack.c.b16 %v2047, %v2046
      %v2068 = vpack.c.b16 %v2049, %v2048
      %v2069 = vpack.c.b16 %v2051, %v2050
      %v2070 = vpack.c.b16 %v2053, %v2052
      %v2071 = vpack.c.b16 %v2055, %v2054
      %2088 = vmatprep.subr.bf16.mxu0 0
      %2089 = vmatpush1.bf16.msra.mxu0 %v2056
      %2090 = vmatprep.subr.bf16.mxu0 0
      %2091 = vmatpush1.bf16.msra.mxu0 %v2057
      %2092 = vmatprep.subr.bf16.mxu0 0
      %2093 = vmatpush1.bf16.msra.mxu0 %v2058
      %2094 = vmatprep.subr.bf16.mxu0 0
      %2095 = vmatpush1.bf16.msra.mxu0 %v2059
      %2096 = vmatprep.subr.bf16.mxu0 0
      %2097 = vmatpush1.bf16.msra.mxu0 %v2060
      %2098 = vmatprep.subr.bf16.mxu0 0
      %2099 = vmatpush1.bf16.msra.mxu0 %v2061
      %2100 = vmatprep.subr.bf16.mxu0 0
      %2101 = vmatpush1.bf16.msra.mxu0 %v2062
      %2102 = vmatprep.subr.bf16.mxu0 0
      %2103 = vmatpush1.bf16.msra.mxu0 %v2063
      %2104 = vmatprep.subr.bf16.mxu0 0
      %2105 = vmatpush1.bf16.msra.mxu0 %v2064
      %2106 = vmatprep.subr.bf16.mxu0 0
      %2107 = vmatpush1.bf16.msra.mxu0 %v2065
      %2108 = vmatprep.subr.bf16.mxu0 0
      %2109 = vmatpush1.bf16.msra.mxu0 %v2066
      %2110 = vmatprep.subr.bf16.mxu0 0
      %2111 = vmatpush1.bf16.msra.mxu0 %v2067
      %2112 = vmatprep.subr.bf16.mxu0 0
      %2113 = vmatpush1.bf16.msra.mxu0 %v2068
      %2114 = vmatprep.subr.bf16.mxu0 0
      %2115 = vmatpush1.bf16.msra.mxu0 %v2069
      %2116 = vmatprep.subr.bf16.mxu0 0
      %2117 = vmatpush1.bf16.msra.mxu0 %v2070
      %2118 = vmatprep.subr.bf16.mxu0 0
      %2119 = vmatpush1.bf16.msra.mxu0 %v2071
      %2120 = vmatprep.mubr.bf16.mxu0 %v1949
      %2121 = vmatmul.mubr.bf16.gmra.mrb[0].mxu0 %v1939
      %v2122 = vpop.f32.mrb[0].mxu0
      %v2123 = vadd.f32 0.0, %v2122
      %v2124 = vpop.f32.mrb[0].mxu0
      %v2125 = vpop.f32.mrb[0].mxu0
      %v2126 = vadd.f32 0.0, %v2125
      %v2127 = vpop.f32.mrb[0].mxu0
      %2128 = vmatprep.mubr.bf16.mxu0 %v1950
      %2129 = vmatmul.mubr.bf16.gmra.mrb[0].mxu0 %v1940
      %v2130 = vpop.f32.mrb[0].mxu0
      %v2131 = vadd.f32 0.0, %v2130
      %v2132 = vpop.f32.mrb[0].mxu0
      %v2133 = vpop.f32.mrb[0].mxu0
      %v2134 = vadd.f32 0.0, %v2133
      %v2135 = vpop.f32.mrb[0].mxu0
      %2136 = vmatprep.mubr.bf16.mxu0 %v1951
      %2137 = vmatmul.mubr.bf16.gmra.mrb[0].mxu0 %v1941
      %v2138 = vpop.f32.mrb[0].mxu0
      %v2139 = vadd.f32 0.0, %v2138
      %v2140 = vpop.f32.mrb[0].mxu0
      %v2141 = vpop.f32.mrb[0].mxu0
      %v2142 = vadd.f32 0.0, %v2141
      %v2143 = vpop.f32.mrb[0].mxu0
      %2144 = vmatprep.mubr.bf16.mxu0 %v1952
      %2145 = vmatmul.mubr.bf16.gmra.mrb[0].mxu0 %v1942
      %v2146 = vpop.f32.mrb[0].mxu0
      %v2147 = vadd.f32 0.0, %v2146
      %v2148 = vpop.f32.mrb[0].mxu0
      %v2149 = vpop.f32.mrb[0].mxu0
      %v2150 = vadd.f32 0.0, %v2149
      %v2151 = vpop.f32.mrb[0].mxu0
      %2152 = vmatprep.mubr.bf16.mxu0 %v1953
      %2153 = vmatmul.mubr.bf16.gmra.mrb[0].mxu0 %v1943
      %v2154 = vpop.f32.mrb[0].mxu0
      %v2155 = vadd.f32 0.0, %v2154
      %v2156 = vpop.f32.mrb[0].mxu0
      %v2157 = vpop.f32.mrb[0].mxu0
      %v2158 = vadd.f32 0.0, %v2157
      %v2159 = vpop.f32.mrb[0].mxu0
      %2160 = vmatprep.mubr.bf16.mxu0 %v1954
      %2161 = vmatmul.mubr.bf16.gmra.mrb[0].mxu0 %v1944
      %v2162 = vpop.f32.mrb[0].mxu0
      %v2163 = vadd.f32 0.0, %v2162
      %v2164 = vpop.f32.mrb[0].mxu0
      %v2165 = vpop.f32.mrb[0].mxu0
      %v2166 = vadd.f32 0.0, %v2165
      %v2167 = vpop.f32.mrb[0].mxu0
      %2168 = vmatprep.mubr.bf16.mxu0 %v1955
      %2169 = vmatmul.mubr.bf16.gmra.mrb[0].mxu0 %v1945
      %v2170 = vpop.f32.mrb[0].mxu0
      %v2171 = vadd.f32 0.0, %v2170
      %v2172 = vpop.f32.mrb[0].mxu0
      %v2173 = vpop.f32.mrb[0].mxu0
      %v2174 = vadd.f32 0.0, %v2173
      %v2175 = vpop.f32.mrb[0].mxu0
      %2176 = vmatprep.mubr.bf16.mxu0 %v1956
      %2177 = vmatmul.mubr.bf16.gmra.mrb[0].mxu0 %v1946
      %v2178 = vpop.f32.mrb[0].mxu0
      %v2179 = vadd.f32 0.0, %v2178
      %v2180 = vpop.f32.mrb[0].mxu0
      %v2181 = vpop.f32.mrb[0].mxu0
      %v2182 = vadd.f32 0.0, %v2181
      %v2183 = vpop.f32.mrb[0].mxu0
      %2184 = vmatprep.mubr.bf16.mxu0 %v1957
      %2185 = vmatmul.mubr.bf16.gmra.mrb[0].mxu0 %v1947
      %v2186 = vpop.f32.mrb[0].mxu0
      %v2187 = vadd.f32 0.0, %v2186
      %v2188 = vpop.f32.mrb[0].mxu0
      %v2189 = vpop.f32.mrb[0].mxu0
      %v2190 = vadd.f32 0.0, %v2189
      %v2191 = vpop.f32.mrb[0].mxu0
      %2192 = vmatprep.mubr.bf16.mxu0 %v1958
      %2193 = vmatmul.mubr.bf16.gmra.mrb[0].mxu0 %v1948
      %v2194 = vpop.f32.mrb[0].mxu0
      %v2195 = vadd.f32 0.0, %v2194
      %v2196 = vpop.f32.mrb[0].mxu0
      %v2197 = vpop.f32.mrb[0].mxu0
      %v2198 = vadd.f32 0.0, %v2197
      %v2199 = vpop.f32.mrb[0].mxu0
      %2200 = vdwg.mxu0
      %v2201 = vadd.f32 %v1919, %v2123
      %v2202 = vadd.f32 %v1920, %v2126
      %v2203 = vadd.f32 %v1921, %v2131
      %v2204 = vadd.f32 %v1922, %v2134
      %v2205 = vadd.f32 %v1923, %v2139
      %v2206 = vadd.f32 %v1924, %v2142
      %v2207 = vadd.f32 %v1925, %v2147
      %v2208 = vadd.f32 %v1926, %v2150
      %v2209 = vadd.f32 %v1927, %v2155
      %v2210 = vadd.f32 %v1928, %v2158
      %v2211 = vadd.f32 %v1929, %v2163
      %v2212 = vadd.f32 %v1930, %v2166
      %v2213 = vadd.f32 %v1931, %v2171
      %v2214 = vadd.f32 %v1932, %v2174
      %v2215 = vadd.f32 %v1933, %v2179
      %v2216 = vadd.f32 %v1934, %v2182
      %v2217 = vadd.f32 %v1935, %v2187
      %v2218 = vadd.f32 %v1936, %v2190
      %v2219 = vadd.f32 %v1937, %v2195
      %v2220 = vadd.f32 %v1938, %v2198
      %v2221 = vld [vmem:[%s958 + $0x8] sm:$0xff]
      %v2222 = vld [vmem:[%s958 + $0x10] sm:$0xff]
      %v2223 = vld [vmem:[%s958 + $0x18] sm:$0xff]
      %v2224 = vld [vmem:[%s958 + $0x20] sm:$0xff]
      %v2225 = vld [vmem:[%s958 + $0x28] sm:$0xff]
      %v2226 = vld [vmem:[%s958 + $0x30] sm:$0xff]
      %v2227 = vld [vmem:[%s958 + $0x38] sm:$0xff]
      %v2228 = vld [vmem:[%s958 + $0x40] sm:$0xff]
      %v2229 = vld [vmem:[%s958 + $0x48] sm:$0xff]
      %v2230 = vld [vmem:[%s958 + $0x50] sm:$0xff]
      %v2231 = vld [vmem:[%s1119 + $0x8] sm:$0xff]
      %v2232 = vld [vmem:[%s1119 + $0x10] sm:$0xff]
      %v2233 = vld [vmem:[%s1119 + $0x18] sm:$0xff]
      %v2234 = vld [vmem:[%s1119 + $0x20] sm:$0xff]
      %v2235 = vld [vmem:[%s1119 + $0x28] sm:$0xff]
      %v2236 = vld [vmem:[%s1119 + $0x30] sm:$0xff]
      %v2237 = vld [vmem:[%s1119 + $0x38] sm:$0xff]
      %v2238 = vld [vmem:[%s1119 + $0x40] sm:$0xff]
      %v2239 = vld [vmem:[%s1119 + $0x48] sm:$0xff]
      %v2240 = vld [vmem:[%s1119 + $0x50] sm:$0xff]
      %s2241 = scalar_lea.vmem %s1, 512
      %v2242 = vld [vmem:[%s2241] sm:$0xf]
      %v2243 = vld [vmem:[%s2241 + $0x4] sm:$0xf]
      %v2244 = vld [vmem:[%s2241 + $0x8] sm:$0xf]
      %v2245 = vld [vmem:[%s2241 + $0xc] sm:$0xf]
      %v2246 = vld [vmem:[%s2241 + $0x10] sm:$0xf]
      %v2247 = vld [vmem:[%s2241 + $0x14] sm:$0xf]
      %v2248 = vld [vmem:[%s2241 + $0x18] sm:$0xf]
      %v2249 = vld [vmem:[%s2241 + $0x1c] sm:$0xf]
      %v2250 = vld [vmem:[%s2241 + $0x20] sm:$0xf]
      %v2251 = vld [vmem:[%s2241 + $0x24] sm:$0xf]
      %v2252 = vld [vmem:[%s2241 + $0x28] sm:$0xf]
      %v2253 = vld [vmem:[%s2241 + $0x2c] sm:$0xf]
      %v2254 = vld [vmem:[%s2241 + $0x30] sm:$0xf]
      %v2255 = vld [vmem:[%s2241 + $0x34] sm:$0xf]
      %v2256 = vld [vmem:[%s2241 + $0x38] sm:$0xf]
      %v2257 = vld [vmem:[%s2241 + $0x3c] sm:$0xf]
      %v2258 = vld [vmem:[%s2241 + $0x40] sm:$0xf]
      %v2259 = vld [vmem:[%s2241 + $0x44] sm:$0xf]
      %v2260 = vld [vmem:[%s2241 + $0x48] sm:$0xf]
      %v2261 = vld [vmem:[%s2241 + $0x4c] sm:$0xf]
      %v2262 = vld [vmem:[%s2241 + $0x50] sm:$0xf]
      %v2263 = vld [vmem:[%s2241 + $0x54] sm:$0xf]
      %v2264 = vld [vmem:[%s2241 + $0x58] sm:$0xf]
      %v2265 = vld [vmem:[%s2241 + $0x5c] sm:$0xf]
      %v2266 = vld [vmem:[%s2241 + $0x60] sm:$0xf]
      %v2267 = vld [vmem:[%s2241 + $0x64] sm:$0xf]
      %v2268 = vld [vmem:[%s2241 + $0x68] sm:$0xf]
      %v2269 = vld [vmem:[%s2241 + $0x6c] sm:$0xf]
      %v2270 = vld [vmem:[%s2241 + $0x70] sm:$0xf]
      %v2271 = vld [vmem:[%s2241 + $0x74] sm:$0xf]
      %v2272 = vld [vmem:[%s2241 + $0x78] sm:$0xf]
      %v2273 = vld [vmem:[%s2241 + $0x7c] sm:$0xf]
      %v2306 = vunpack.c.l.b16 %v2242
      %v2307 = vunpack.c.l.b16 %v2243
      %v2308 = vunpack.c.l.b16 %v2244
      %v2309 = vunpack.c.l.b16 %v2245
      %v2310 = vunpack.c.l.b16 %v2246
      %v2311 = vunpack.c.l.b16 %v2247
      %v2312 = vunpack.c.l.b16 %v2248
      %v2313 = vunpack.c.l.b16 %v2249
      %v2314 = vunpack.c.l.b16 %v2250
      %v2315 = vunpack.c.l.b16 %v2251
      %v2316 = vunpack.c.l.b16 %v2252
      %v2317 = vunpack.c.l.b16 %v2253
      %v2318 = vunpack.c.l.b16 %v2254
      %v2319 = vunpack.c.l.b16 %v2255
      %v2320 = vunpack.c.l.b16 %v2256
      %v2321 = vunpack.c.l.b16 %v2257
      %v2322 = vunpack.c.l.b16 %v2258
      %v2323 = vunpack.c.l.b16 %v2259
      %v2324 = vunpack.c.l.b16 %v2260
      %v2325 = vunpack.c.l.b16 %v2261
      %v2326 = vunpack.c.l.b16 %v2262
      %v2327 = vunpack.c.l.b16 %v2263
      %v2328 = vunpack.c.l.b16 %v2264
      %v2329 = vunpack.c.l.b16 %v2265
      %v2330 = vunpack.c.l.b16 %v2266
      %v2331 = vunpack.c.l.b16 %v2267
      %v2332 = vunpack.c.l.b16 %v2268
      %v2333 = vunpack.c.l.b16 %v2269
      %v2334 = vunpack.c.l.b16 %v2270
      %v2335 = vunpack.c.l.b16 %v2271
      %v2336 = vunpack.c.l.b16 %v2272
      %v2337 = vunpack.c.l.b16 %v2273
      %v2338 = vpack.c.b16 %v2307, %v2306
      %v2339 = vpack.c.b16 %v2309, %v2308
      %v2340 = vpack.c.b16 %v2311, %v2310
      %v2341 = vpack.c.b16 %v2313, %v2312
      %v2342 = vpack.c.b16 %v2315, %v2314
      %v2343 = vpack.c.b16 %v2317, %v2316
      %v2344 = vpack.c.b16 %v2319, %v2318
      %v2345 = vpack.c.b16 %v2321, %v2320
      %v2346 = vpack.c.b16 %v2323, %v2322
      %v2347 = vpack.c.b16 %v2325, %v2324
      %v2348 = vpack.c.b16 %v2327, %v2326
      %v2349 = vpack.c.b16 %v2329, %v2328
      %v2350 = vpack.c.b16 %v2331, %v2330
      %v2351 = vpack.c.b16 %v2333, %v2332
      %v2352 = vpack.c.b16 %v2335, %v2334
      %v2353 = vpack.c.b16 %v2337, %v2336
      %2370 = vmatprep.subr.bf16.mxu0 0
      %2371 = vmatpush1.bf16.msra.mxu0 %v2338
      %2372 = vmatprep.subr.bf16.mxu0 0
      %2373 = vmatpush1.bf16.msra.mxu0 %v2339
      %2374 = vmatprep.subr.bf16.mxu0 0
      %2375 = vmatpush1.bf16.msra.mxu0 %v2340
      %2376 = vmatprep.subr.bf16.mxu0 0
      %2377 = vmatpush1.bf16.msra.mxu0 %v2341
      %2378 = vmatprep.subr.bf16.mxu0 0
      %2379 = vmatpush1.bf16.msra.mxu0 %v2342
      %2380 = vmatprep.subr.bf16.mxu0 0
      %2381 = vmatpush1.bf16.msra.mxu0 %v2343
      %2382 = vmatprep.subr.bf16.mxu0 0
      %2383 = vmatpush1.bf16.msra.mxu0 %v2344
      %2384 = vmatprep.subr.bf16.mxu0 0
      %2385 = vmatpush1.bf16.msra.mxu0 %v2345
      %2386 = vmatprep.subr.bf16.mxu0 0
      %2387 = vmatpush1.bf16.msra.mxu0 %v2346
      %2388 = vmatprep.subr.bf16.mxu0 0
      %2389 = vmatpush1.bf16.msra.mxu0 %v2347
      %2390 = vmatprep.subr.bf16.mxu0 0
      %2391 = vmatpush1.bf16.msra.mxu0 %v2348
      %2392 = vmatprep.subr.bf16.mxu0 0
      %2393 = vmatpush1.bf16.msra.mxu0 %v2349
      %2394 = vmatprep.subr.bf16.mxu0 0
      %2395 = vmatpush1.bf16.msra.mxu0 %v2350
      %2396 = vmatprep.subr.bf16.mxu0 0
      %2397 = vmatpush1.bf16.msra.mxu0 %v2351
      %2398 = vmatprep.subr.bf16.mxu0 0
      %2399 = vmatpush1.bf16.msra.mxu0 %v2352
      %2400 = vmatprep.subr.bf16.mxu0 0
      %2401 = vmatpush1.bf16.msra.mxu0 %v2353
      %2402 = vmatprep.mubr.bf16.mxu0 %v2231
      %2403 = vmatmul.mubr.bf16.gmra.mrb[0].mxu0 %v2221
      %v2404 = vpop.f32.mrb[0].mxu0
      %v2405 = vadd.f32 0.0, %v2404
      %v2406 = vpop.f32.mrb[0].mxu0
      %v2407 = vpop.f32.mrb[0].mxu0
      %v2408 = vadd.f32 0.0, %v2407
      %v2409 = vpop.f32.mrb[0].mxu0
      %2410 = vmatprep.mubr.bf16.mxu0 %v2232
      %2411 = vmatmul.mubr.bf16.gmra.mrb[0].mxu0 %v2222
      %v2412 = vpop.f32.mrb[0].mxu0
      %v2413 = vadd.f32 0.0, %v2412
      %v2414 = vpop.f32.mrb[0].mxu0
      %v2415 = vpop.f32.mrb[0].mxu0
      %v2416 = vadd.f32 0.0, %v2415
      %v2417 = vpop.f32.mrb[0].mxu0
      %2418 = vmatprep.mubr.bf16.mxu0 %v2233
      %2419 = vmatmul.mubr.bf16.gmra.mrb[0].mxu0 %v2223
      %v2420 = vpop.f32.mrb[0].mxu0
      %v2421 = vadd.f32 0.0, %v2420
      %v2422 = vpop.f32.mrb[0].mxu0
      %v2423 = vpop.f32.mrb[0].mxu0
      %v2424 = vadd.f32 0.0, %v2423
      %v2425 = vpop.f32.mrb[0].mxu0
      %2426 = vmatprep.mubr.bf16.mxu0 %v2234
      %2427 = vmatmul.mubr.bf16.gmra.mrb[0].mxu0 %v2224
      %v2428 = vpop.f32.mrb[0].mxu0
      %v2429 = vadd.f32 0.0, %v2428
      %v2430 = vpop.f32.mrb[0].mxu0
      %v2431 = vpop.f32.mrb[0].mxu0
      %v2432 = vadd.f32 0.0, %v2431
      %v2433 = vpop.f32.mrb[0].mxu0
      %2434 = vmatprep.mubr.bf16.mxu0 %v2235
      %2435 = vmatmul.mubr.bf16.gmra.mrb[0].mxu0 %v2225
      %v2436 = vpop.f32.mrb[0].mxu0
      %v2437 = vadd.f32 0.0, %v2436
      %v2438 = vpop.f32.mrb[0].mxu0
      %v2439 = vpop.f32.mrb[0].mxu0
      %v2440 = vadd.f32 0.0, %v2439
      %v2441 = vpop.f32.mrb[0].mxu0
      %2442 = vmatprep.mubr.bf16.mxu0 %v2236
      %2443 = vmatmul.mubr.bf16.gmra.mrb[0].mxu0 %v2226
      %v2444 = vpop.f32.mrb[0].mxu0
      %v2445 = vadd.f32 0.0, %v2444
      %v2446 = vpop.f32.mrb[0].mxu0
      %v2447 = vpop.f32.mrb[0].mxu0
      %v2448 = vadd.f32 0.0, %v2447
      %v2449 = vpop.f32.mrb[0].mxu0
      %2450 = vmatprep.mubr.bf16.mxu0 %v2237
      %2451 = vmatmul.mubr.bf16.gmra.mrb[0].mxu0 %v2227
      %v2452 = vpop.f32.mrb[0].mxu0
      %v2453 = vadd.f32 0.0, %v2452
      %v2454 = vpop.f32.mrb[0].mxu0
      %v2455 = vpop.f32.mrb[0].mxu0
      %v2456 = vadd.f32 0.0, %v2455
      %v2457 = vpop.f32.mrb[0].mxu0
      %2458 = vmatprep.mubr.bf16.mxu0 %v2238
      %2459 = vmatmul.mubr.bf16.gmra.mrb[0].mxu0 %v2228
      %v2460 = vpop.f32.mrb[0].mxu0
      %v2461 = vadd.f32 0.0, %v2460
      %v2462 = vpop.f32.mrb[0].mxu0
      %v2463 = vpop.f32.mrb[0].mxu0
      %v2464 = vadd.f32 0.0, %v2463
      %v2465 = vpop.f32.mrb[0].mxu0
      %2466 = vmatprep.mubr.bf16.mxu0 %v2239
      %2467 = vmatmul.mubr.bf16.gmra.mrb[0].mxu0 %v2229
      %v2468 = vpop.f32.mrb[0].mxu0
      %v2469 = vadd.f32 0.0, %v2468
      %v2470 = vpop.f32.mrb[0].mxu0
      %v2471 = vpop.f32.mrb[0].mxu0
      %v2472 = vadd.f32 0.0, %v2471
      %v2473 = vpop.f32.mrb[0].mxu0
      %2474 = vmatprep.mubr.bf16.mxu0 %v2240
      %2475 = vmatmul.mubr.bf16.gmra.mrb[0].mxu0 %v2230
      %v2476 = vpop.f32.mrb[0].mxu0
      %v2477 = vadd.f32 0.0, %v2476
      %v2478 = vpop.f32.mrb[0].mxu0
      %v2479 = vpop.f32.mrb[0].mxu0
      %v2480 = vadd.f32 0.0, %v2479
      %v2481 = vpop.f32.mrb[0].mxu0
      %2482 = vdwg.mxu0
      %v2483 = vadd.f32 %v2201, %v2405
      %v2484 = vadd.f32 %v2202, %v2408
      %v2485 = vadd.f32 %v2203, %v2413
      %v2486 = vadd.f32 %v2204, %v2416
      %v2487 = vadd.f32 %v2205, %v2421
      %v2488 = vadd.f32 %v2206, %v2424
      %v2489 = vadd.f32 %v2207, %v2429
      %v2490 = vadd.f32 %v2208, %v2432
      %v2491 = vadd.f32 %v2209, %v2437
      %v2492 = vadd.f32 %v2210, %v2440
      %v2493 = vadd.f32 %v2211, %v2445
      %v2494 = vadd.f32 %v2212, %v2448
      %v2495 = vadd.f32 %v2213, %v2453
      %v2496 = vadd.f32 %v2214, %v2456
      %v2497 = vadd.f32 %v2215, %v2461
      %v2498 = vadd.f32 %v2216, %v2464
      %v2499 = vadd.f32 %v2217, %v2469
      %v2500 = vadd.f32 %v2218, %v2472
      %v2501 = vadd.f32 %v2219, %v2477
      %v2502 = vadd.f32 %v2220, %v2480
      %v2503 = vld [vmem:[#allocation2 + $0x10] sm:$0xff]
      %v2504 = vld [vmem:[#allocation2 + $0x18] sm:$0xff]
      %v2505 = vld [vmem:[#allocation2 + $0x20] sm:$0xff]
      %v2506 = vld [vmem:[#allocation2 + $0x28] sm:$0xff]
      %v2507 = vld [vmem:[#allocation2 + $0x30] sm:$0xff]
      %v2508 = vld [vmem:[#allocation2 + $0x38] sm:$0xff]
      %v2509 = vld [vmem:[#allocation2 + $0x40] sm:$0xff]
      %v2510 = vld [vmem:[#allocation2 + $0x48] sm:$0xff]
      %v2511 = vld [vmem:[#allocation2 + $0x50] sm:$0xff]
      %v2512 = vld [vmem:[#allocation2 + $0x58] sm:$0xff]
      %v2513 = vld [vmem:[%s531 + $0x10] sm:$0xff]
      %v2514 = vld [vmem:[%s531 + $0x18] sm:$0xff]
      %v2515 = vld [vmem:[%s531 + $0x20] sm:$0xff]
      %v2516 = vld [vmem:[%s531 + $0x28] sm:$0xff]
      %v2517 = vld [vmem:[%s531 + $0x30] sm:$0xff]
      %v2518 = vld [vmem:[%s531 + $0x38] sm:$0xff]
      %v2519 = vld [vmem:[%s531 + $0x40] sm:$0xff]
      %v2520 = vld [vmem:[%s531 + $0x48] sm:$0xff]
      %v2521 = vld [vmem:[%s531 + $0x50] sm:$0xff]
      %v2522 = vld [vmem:[%s531 + $0x58] sm:$0xff]
      %s2523 = scalar_lea.vmem %s1, 640
      %v2524 = vld [vmem:[%s2523] sm:$0xf]
      %v2525 = vld [vmem:[%s2523 + $0x4] sm:$0xf]
      %v2526 = vld [vmem:[%s2523 + $0x8] sm:$0xf]
      %v2527 = vld [vmem:[%s2523 + $0xc] sm:$0xf]
      %v2528 = vld [vmem:[%s2523 + $0x10] sm:$0xf]
      %v2529 = vld [vmem:[%s2523 + $0x14] sm:$0xf]
      %v2530 = vld [vmem:[%s2523 + $0x18] sm:$0xf]
      %v2531 = vld [vmem:[%s2523 + $0x1c] sm:$0xf]
      %v2532 = vld [vmem:[%s2523 + $0x20] sm:$0xf]
      %v2533 = vld [vmem:[%s2523 + $0x24] sm:$0xf]
      %v2534 = vld [vmem:[%s2523 + $0x28] sm:$0xf]
      %v2535 = vld [vmem:[%s2523 + $0x2c] sm:$0xf]
      %v2536 = vld [vmem:[%s2523 + $0x30] sm:$0xf]
      %v2537 = vld [vmem:[%s2523 + $0x34] sm:$0xf]
      %v2538 = vld [vmem:[%s2523 + $0x38] sm:$0xf]
      %v2539 = vld [vmem:[%s2523 + $0x3c] sm:$0xf]
      %v2540 = vld [vmem:[%s2523 + $0x40] sm:$0xf]
      %v2541 = vld [vmem:[%s2523 + $0x44] sm:$0xf]
      %v2542 = vld [vmem:[%s2523 + $0x48] sm:$0xf]
      %v2543 = vld [vmem:[%s2523 + $0x4c] sm:$0xf]
      %v2544 = vld [vmem:[%s2523 + $0x50] sm:$0xf]
      %v2545 = vld [vmem:[%s2523 + $0x54] sm:$0xf]
      %v2546 = vld [vmem:[%s2523 + $0x58] sm:$0xf]
      %v2547 = vld [vmem:[%s2523 + $0x5c] sm:$0xf]
      %v2548 = vld [vmem:[%s2523 + $0x60] sm:$0xf]
      %v2549 = vld [vmem:[%s2523 + $0x64] sm:$0xf]
      %v2550 = vld [vmem:[%s2523 + $0x68] sm:$0xf]
      %v2551 = vld [vmem:[%s2523 + $0x6c] sm:$0xf]
      %v2552 = vld [vmem:[%s2523 + $0x70] sm:$0xf]
      %v2553 = vld [vmem:[%s2523 + $0x74] sm:$0xf]
      %v2554 = vld [vmem:[%s2523 + $0x78] sm:$0xf]
      %v2555 = vld [vmem:[%s2523 + $0x7c] sm:$0xf]
      %v2588 = vunpack.c.l.b16 %v2524
      %v2589 = vunpack.c.l.b16 %v2525
      %v2590 = vunpack.c.l.b16 %v2526
      %v2591 = vunpack.c.l.b16 %v2527
      %v2592 = vunpack.c.l.b16 %v2528
      %v2593 = vunpack.c.l.b16 %v2529
      %v2594 = vunpack.c.l.b16 %v2530
      %v2595 = vunpack.c.l.b16 %v2531
      %v2596 = vunpack.c.l.b16 %v2532
      %v2597 = vunpack.c.l.b16 %v2533
      %v2598 = vunpack.c.l.b16 %v2534
      %v2599 = vunpack.c.l.b16 %v2535
      %v2600 = vunpack.c.l.b16 %v2536
      %v2601 = vunpack.c.l.b16 %v2537
      %v2602 = vunpack.c.l.b16 %v2538
      %v2603 = vunpack.c.l.b16 %v2539
      %v2604 = vunpack.c.l.b16 %v2540
      %v2605 = vunpack.c.l.b16 %v2541
      %v2606 = vunpack.c.l.b16 %v2542
      %v2607 = vunpack.c.l.b16 %v2543
      %v2608 = vunpack.c.l.b16 %v2544
      %v2609 = vunpack.c.l.b16 %v2545
      %v2610 = vunpack.c.l.b16 %v2546
      %v2611 = vunpack.c.l.b16 %v2547
      %v2612 = vunpack.c.l.b16 %v2548
      %v2613 = vunpack.c.l.b16 %v2549
      %v2614 = vunpack.c.l.b16 %v2550
      %v2615 = vunpack.c.l.b16 %v2551
      %v2616 = vunpack.c.l.b16 %v2552
      %v2617 = vunpack.c.l.b16 %v2553
      %v2618 = vunpack.c.l.b16 %v2554
      %v2619 = vunpack.c.l.b16 %v2555
      %v2620 = vpack.c.b16 %v2589, %v2588
      %v2621 = vpack.c.b16 %v2591, %v2590
      %v2622 = vpack.c.b16 %v2593, %v2592
      %v2623 = vpack.c.b16 %v2595, %v2594
      %v2624 = vpack.c.b16 %v2597, %v2596
      %v2625 = vpack.c.b16 %v2599, %v2598
      %v2626 = vpack.c.b16 %v2601, %v2600
      %v2627 = vpack.c.b16 %v2603, %v2602
      %v2628 = vpack.c.b16 %v2605, %v2604
      %v2629 = vpack.c.b16 %v2607, %v2606
      %v2630 = vpack.c.b16 %v2609, %v2608
      %v2631 = vpack.c.b16 %v2611, %v2610
      %v2632 = vpack.c.b16 %v2613, %v2612
      %v2633 = vpack.c.b16 %v2615, %v2614
      %v2634 = vpack.c.b16 %v2617, %v2616
      %v2635 = vpack.c.b16 %v2619, %v2618
      %2652 = vmatprep.subr.bf16.mxu0 0
      %2653 = vmatpush1.bf16.msra.mxu0 %v2620
      %2654 = vmatprep.subr.bf16.mxu0 0
      %2655 = vmatpush1.bf16.msra.mxu0 %v2621
      %2656 = vmatprep.subr.bf16.mxu0 0
      %2657 = vmatpush1.bf16.msra.mxu0 %v2622
      %2658 = vmatprep.subr.bf16.mxu0 0
      %2659 = vmatpush1.bf16.msra.mxu0 %v2623
      %2660 = vmatprep.subr.bf16.mxu0 0
      %2661 = vmatpush1.bf16.msra.mxu0 %v2624
      %2662 = vmatprep.subr.bf16.mxu0 0
      %2663 = vmatpush1.bf16.msra.mxu0 %v2625
      %2664 = vmatprep.subr.bf16.mxu0 0
      %2665 = vmatpush1.bf16.msra.mxu0 %v2626
      %2666 = vmatprep.subr.bf16.mxu0 0
      %2667 = vmatpush1.bf16.msra.mxu0 %v2627
      %2668 = vmatprep.subr.bf16.mxu0 0
      %2669 = vmatpush1.bf16.msra.mxu0 %v2628
      %2670 = vmatprep.subr.bf16.mxu0 0
      %2671 = vmatpush1.bf16.msra.mxu0 %v2629
      %2672 = vmatprep.subr.bf16.mxu0 0
      %2673 = vmatpush1.bf16.msra.mxu0 %v2630
      %2674 = vmatprep.subr.bf16.mxu0 0
      %2675 = vmatpush1.bf16.msra.mxu0 %v2631
      %2676 = vmatprep.subr.bf16.mxu0 0
      %2677 = vmatpush1.bf16.msra.mxu0 %v2632
      %2678 = vmatprep.subr.bf16.mxu0 0
      %2679 = vmatpush1.bf16.msra.mxu0 %v2633
      %2680 = vmatprep.subr.bf16.mxu0 0
      %2681 = vmatpush1.bf16.msra.mxu0 %v2634
      %2682 = vmatprep.subr.bf16.mxu0 0
      %2683 = vmatpush1.bf16.msra.mxu0 %v2635
      %2684 = vmatprep.mubr.bf16.mxu0 %v2513
      %2685 = vmatmul.mubr.bf16.gmra.mrb[0].mxu0 %v2503
      %v2686 = vpop.f32.mrb[0].mxu0
      %v2687 = vadd.f32 0.0, %v2686
      %v2688 = vpop.f32.mrb[0].mxu0
      %v2689 = vpop.f32.mrb[0].mxu0
      %v2690 = vadd.f32 0.0, %v2689
      %v2691 = vpop.f32.mrb[0].mxu0
      %2692 = vmatprep.mubr.bf16.mxu0 %v2514
      %2693 = vmatmul.mubr.bf16.gmra.mrb[0].mxu0 %v2504
      %v2694 = vpop.f32.mrb[0].mxu0
      %v2695 = vadd.f32 0.0, %v2694
      %v2696 = vpop.f32.mrb[0].mxu0
      %v2697 = vpop.f32.mrb[0].mxu0
      %v2698 = vadd.f32 0.0, %v2697
      %v2699 = vpop.f32.mrb[0].mxu0
      %2700 = vmatprep.mubr.bf16.mxu0 %v2515
      %2701 = vmatmul.mubr.bf16.gmra.mrb[0].mxu0 %v2505
      %v2702 = vpop.f32.mrb[0].mxu0
      %v2703 = vadd.f32 0.0, %v2702
      %v2704 = vpop.f32.mrb[0].mxu0
      %v2705 = vpop.f32.mrb[0].mxu0
      %v2706 = vadd.f32 0.0, %v2705
      %v2707 = vpop.f32.mrb[0].mxu0
      %2708 = vmatprep.mubr.bf16.mxu0 %v2516
      %2709 = vmatmul.mubr.bf16.gmra.mrb[0].mxu0 %v2506
      %v2710 = vpop.f32.mrb[0].mxu0
      %v2711 = vadd.f32 0.0, %v2710
      %v2712 = vpop.f32.mrb[0].mxu0
      %v2713 = vpop.f32.mrb[0].mxu0
      %v2714 = vadd.f32 0.0, %v2713
      %v2715 = vpop.f32.mrb[0].mxu0
      %2716 = vmatprep.mubr.bf16.mxu0 %v2517
      %2717 = vmatmul.mubr.bf16.gmra.mrb[0].mxu0 %v2507
      %v2718 = vpop.f32.mrb[0].mxu0
      %v2719 = vadd.f32 0.0, %v2718
      %v2720 = vpop.f32.mrb[0].mxu0
      %v2721 = vpop.f32.mrb[0].mxu0
      %v2722 = vadd.f32 0.0, %v2721
      %v2723 = vpop.f32.mrb[0].mxu0
      %2724 = vmatprep.mubr.bf16.mxu0 %v2518
      %2725 = vmatmul.mubr.bf16.gmra.mrb[0].mxu0 %v2508
      %v2726 = vpop.f32.mrb[0].mxu0
      %v2727 = vadd.f32 0.0, %v2726
      %v2728 = vpop.f32.mrb[0].mxu0
      %v2729 = vpop.f32.mrb[0].mxu0
      %v2730 = vadd.f32 0.0, %v2729
      %v2731 = vpop.f32.mrb[0].mxu0
      %2732 = vmatprep.mubr.bf16.mxu0 %v2519
      %2733 = vmatmul.mubr.bf16.gmra.mrb[0].mxu0 %v2509
      %v2734 = vpop.f32.mrb[0].mxu0
      %v2735 = vadd.f32 0.0, %v2734
      %v2736 = vpop.f32.mrb[0].mxu0
      %v2737 = vpop.f32.mrb[0].mxu0
      %v2738 = vadd.f32 0.0, %v2737
      %v2739 = vpop.f32.mrb[0].mxu0
      %2740 = vmatprep.mubr.bf16.mxu0 %v2520
      %2741 = vmatmul.mubr.bf16.gmra.mrb[0].mxu0 %v2510
      %v2742 = vpop.f32.mrb[0].mxu0
      %v2743 = vadd.f32 0.0, %v2742
      %v2744 = vpop.f32.mrb[0].mxu0
      %v2745 = vpop.f32.mrb[0].mxu0
      %v2746 = vadd.f32 0.0, %v2745
      %v2747 = vpop.f32.mrb[0].mxu0
      %2748 = vmatprep.mubr.bf16.mxu0 %v2521
      %2749 = vmatmul.mubr.bf16.gmra.mrb[0].mxu0 %v2511
      %v2750 = vpop.f32.mrb[0].mxu0
      %v2751 = vadd.f32 0.0, %v2750
      %v2752 = vpop.f32.mrb[0].mxu0
      %v2753 = vpop.f32.mrb[0].mxu0
      %v2754 = vadd.f32 0.0, %v2753
      %v2755 = vpop.f32.mrb[0].mxu0
      %2756 = vmatprep.mubr.bf16.mxu0 %v2522
      %2757 = vmatmul.mubr.bf16.gmra.mrb[0].mxu0 %v2512
      %v2758 = vpop.f32.mrb[0].mxu0
      %v2759 = vadd.f32 0.0, %v2758
      %v2760 = vpop.f32.mrb[0].mxu0
      %v2761 = vpop.f32.mrb[0].mxu0
      %v2762 = vadd.f32 0.0, %v2761
      %v2763 = vpop.f32.mrb[0].mxu0
      %2764 = vdwg.mxu0
      %v2765 = vadd.f32 %v2483, %v2687
      %v2766 = vadd.f32 %v2484, %v2690
      %v2767 = vadd.f32 %v2485, %v2695
      %v2768 = vadd.f32 %v2486, %v2698
      %v2769 = vadd.f32 %v2487, %v2703
      %v2770 = vadd.f32 %v2488, %v2706
      %v2771 = vadd.f32 %v2489, %v2711
      %v2772 = vadd.f32 %v2490, %v2714
      %v2773 = vadd.f32 %v2491, %v2719
      %v2774 = vadd.f32 %v2492, %v2722
      %v2775 = vadd.f32 %v2493, %v2727
      %v2776 = vadd.f32 %v2494, %v2730
      %v2777 = vadd.f32 %v2495, %v2735
      %v2778 = vadd.f32 %v2496, %v2738
      %v2779 = vadd.f32 %v2497, %v2743
      %v2780 = vadd.f32 %v2498, %v2746
      %v2781 = vadd.f32 %v2499, %v2751
      %v2782 = vadd.f32 %v2500, %v2754
      %v2783 = vadd.f32 %v2501, %v2759
      %v2784 = vadd.f32 %v2502, %v2762
      %v2785 = vld [vmem:[%s692 + $0x10] sm:$0xff]
      %v2786 = vld [vmem:[%s692 + $0x18] sm:$0xff]
      %v2787 = vld [vmem:[%s692 + $0x20] sm:$0xff]
      %v2788 = vld [vmem:[%s692 + $0x28] sm:$0xff]
      %v2789 = vld [vmem:[%s692 + $0x30] sm:$0xff]
      %v2790 = vld [vmem:[%s692 + $0x38] sm:$0xff]
      %v2791 = vld [vmem:[%s692 + $0x40] sm:$0xff]
      %v2792 = vld [vmem:[%s692 + $0x48] sm:$0xff]
      %v2793 = vld [vmem:[%s692 + $0x50] sm:$0xff]
      %v2794 = vld [vmem:[%s692 + $0x58] sm:$0xff]
      %v2795 = vld [vmem:[%s958 + $0x10] sm:$0xff]
      %v2796 = vld [vmem:[%s958 + $0x18] sm:$0xff]
      %v2797 = vld [vmem:[%s958 + $0x20] sm:$0xff]
      %v2798 = vld [vmem:[%s958 + $0x28] sm:$0xff]
      %v2799 = vld [vmem:[%s958 + $0x30] sm:$0xff]
      %v2800 = vld [vmem:[%s958 + $0x38] sm:$0xff]
      %v2801 = vld [vmem:[%s958 + $0x40] sm:$0xff]
      %v2802 = vld [vmem:[%s958 + $0x48] sm:$0xff]
      %v2803 = vld [vmem:[%s958 + $0x50] sm:$0xff]
      %v2804 = vld [vmem:[%s958 + $0x58] sm:$0xff]
      %s2805 = scalar_lea.vmem %s1, 768
      %v2806 = vld [vmem:[%s2805] sm:$0xf]
      %v2807 = vld [vmem:[%s2805 + $0x4] sm:$0xf]
      %v2808 = vld [vmem:[%s2805 + $0x8] sm:$0xf]
      %v2809 = vld [vmem:[%s2805 + $0xc] sm:$0xf]
      %v2810 = vld [vmem:[%s2805 + $0x10] sm:$0xf]
      %v2811 = vld [vmem:[%s2805 + $0x14] sm:$0xf]
      %v2812 = vld [vmem:[%s2805 + $0x18] sm:$0xf]
      %v2813 = vld [vmem:[%s2805 + $0x1c] sm:$0xf]
      %v2814 = vld [vmem:[%s2805 + $0x20] sm:$0xf]
      %v2815 = vld [vmem:[%s2805 + $0x24] sm:$0xf]
      %v2816 = vld [vmem:[%s2805 + $0x28] sm:$0xf]
      %v2817 = vld [vmem:[%s2805 + $0x2c] sm:$0xf]
      %v2818 = vld [vmem:[%s2805 + $0x30] sm:$0xf]
      %v2819 = vld [vmem:[%s2805 + $0x34] sm:$0xf]
      %v2820 = vld [vmem:[%s2805 + $0x38] sm:$0xf]
      %v2821 = vld [vmem:[%s2805 + $0x3c] sm:$0xf]
      %v2822 = vld [vmem:[%s2805 + $0x40] sm:$0xf]
      %v2823 = vld [vmem:[%s2805 + $0x44] sm:$0xf]
      %v2824 = vld [vmem:[%s2805 + $0x48] sm:$0xf]
      %v2825 = vld [vmem:[%s2805 + $0x4c] sm:$0xf]
      %v2826 = vld [vmem:[%s2805 + $0x50] sm:$0xf]
      %v2827 = vld [vmem:[%s2805 + $0x54] sm:$0xf]
      %v2828 = vld [vmem:[%s2805 + $0x58] sm:$0xf]
      %v2829 = vld [vmem:[%s2805 + $0x5c] sm:$0xf]
      %v2830 = vld [vmem:[%s2805 + $0x60] sm:$0xf]
      %v2831 = vld [vmem:[%s2805 + $0x64] sm:$0xf]
      %v2832 = vld [vmem:[%s2805 + $0x68] sm:$0xf]
      %v2833 = vld [vmem:[%s2805 + $0x6c] sm:$0xf]
      %v2834 = vld [vmem:[%s2805 + $0x70] sm:$0xf]
      %v2835 = vld [vmem:[%s2805 + $0x74] sm:$0xf]
      %v2836 = vld [vmem:[%s2805 + $0x78] sm:$0xf]
      %v2837 = vld [vmem:[%s2805 + $0x7c] sm:$0xf]
      %v2870 = vunpack.c.l.b16 %v2806
      %v2871 = vunpack.c.l.b16 %v2807
      %v2872 = vunpack.c.l.b16 %v2808
      %v2873 = vunpack.c.l.b16 %v2809
      %v2874 = vunpack.c.l.b16 %v2810
      %v2875 = vunpack.c.l.b16 %v2811
      %v2876 = vunpack.c.l.b16 %v2812
      %v2877 = vunpack.c.l.b16 %v2813
      %v2878 = vunpack.c.l.b16 %v2814
      %v2879 = vunpack.c.l.b16 %v2815
      %v2880 = vunpack.c.l.b16 %v2816
      %v2881 = vunpack.c.l.b16 %v2817
      %v2882 = vunpack.c.l.b16 %v2818
      %v2883 = vunpack.c.l.b16 %v2819
      %v2884 = vunpack.c.l.b16 %v2820
      %v2885 = vunpack.c.l.b16 %v2821
      %v2886 = vunpack.c.l.b16 %v2822
      %v2887 = vunpack.c.l.b16 %v2823
      %v2888 = vunpack.c.l.b16 %v2824
      %v2889 = vunpack.c.l.b16 %v2825
      %v2890 = vunpack.c.l.b16 %v2826
      %v2891 = vunpack.c.l.b16 %v2827
      %v2892 = vunpack.c.l.b16 %v2828
      %v2893 = vunpack.c.l.b16 %v2829
      %v2894 = vunpack.c.l.b16 %v2830
      %v2895 = vunpack.c.l.b16 %v2831
      %v2896 = vunpack.c.l.b16 %v2832
      %v2897 = vunpack.c.l.b16 %v2833
      %v2898 = vunpack.c.l.b16 %v2834
      %v2899 = vunpack.c.l.b16 %v2835
      %v2900 = vunpack.c.l.b16 %v2836
      %v2901 = vunpack.c.l.b16 %v2837
      %v2902 = vpack.c.b16 %v2871, %v2870
      %v2903 = vpack.c.b16 %v2873, %v2872
      %v2904 = vpack.c.b16 %v2875, %v2874
      %v2905 = vpack.c.b16 %v2877, %v2876
      %v2906 = vpack.c.b16 %v2879, %v2878
      %v2907 = vpack.c.b16 %v2881, %v2880
      %v2908 = vpack.c.b16 %v2883, %v2882
      %v2909 = vpack.c.b16 %v2885, %v2884
      %v2910 = vpack.c.b16 %v2887, %v2886
      %v2911 = vpack.c.b16 %v2889, %v2888
      %v2912 = vpack.c.b16 %v2891, %v2890
      %v2913 = vpack.c.b16 %v2893, %v2892
      %v2914 = vpack.c.b16 %v2895, %v2894
      %v2915 = vpack.c.b16 %v2897, %v2896
      %v2916 = vpack.c.b16 %v2899, %v2898
      %v2917 = vpack.c.b16 %v2901, %v2900
      %2934 = vmatprep.subr.bf16.mxu0 0
      %2935 = vmatpush1.bf16.msra.mxu0 %v2902
      %2936 = vmatprep.subr.bf16.mxu0 0
      %2937 = vmatpush1.bf16.msra.mxu0 %v2903
      %2938 = vmatprep.subr.bf16.mxu0 0
      %2939 = vmatpush1.bf16.msra.mxu0 %v2904
      %2940 = vmatprep.subr.bf16.mxu0 0
      %2941 = vmatpush1.bf16.msra.mxu0 %v2905
      %2942 = vmatprep.subr.bf16.mxu0 0
      %2943 = vmatpush1.bf16.msra.mxu0 %v2906
      %2944 = vmatprep.subr.bf16.mxu0 0
      %2945 = vmatpush1.bf16.msra.mxu0 %v2907
      %2946 = vmatprep.subr.bf16.mxu0 0
      %2947 = vmatpush1.bf16.msra.mxu0 %v2908
      %2948 = vmatprep.subr.bf16.mxu0 0
      %2949 = vmatpush1.bf16.msra.mxu0 %v2909
      %2950 = vmatprep.subr.bf16.mxu0 0
      %2951 = vmatpush1.bf16.msra.mxu0 %v2910
      %2952 = vmatprep.subr.bf16.mxu0 0
      %2953 = vmatpush1.bf16.msra.mxu0 %v2911
      %2954 = vmatprep.subr.bf16.mxu0 0
      %2955 = vmatpush1.bf16.msra.mxu0 %v2912
      %2956 = vmatprep.subr.bf16.mxu0 0
      %2957 = vmatpush1.bf16.msra.mxu0 %v2913
      %2958 = vmatprep.subr.bf16.mxu0 0
      %2959 = vmatpush1.bf16.msra.mxu0 %v2914
      %2960 = vmatprep.subr.bf16.mxu0 0
      %2961 = vmatpush1.bf16.msra.mxu0 %v2915
      %2962 = vmatprep.subr.bf16.mxu0 0
      %2963 = vmatpush1.bf16.msra.mxu0 %v2916
      %2964 = vmatprep.subr.bf16.mxu0 0
      %2965 = vmatpush1.bf16.msra.mxu0 %v2917
      %2966 = vmatprep.mubr.bf16.mxu0 %v2795
      %2967 = vmatmul.mubr.bf16.gmra.mrb[0].mxu0 %v2785
      %v2968 = vpop.f32.mrb[0].mxu0
      %v2969 = vadd.f32 0.0, %v2968
      %v2970 = vpop.f32.mrb[0].mxu0
      %v2971 = vpop.f32.mrb[0].mxu0
      %v2972 = vadd.f32 0.0, %v2971
      %v2973 = vpop.f32.mrb[0].mxu0
      %2974 = vmatprep.mubr.bf16.mxu0 %v2796
      %2975 = vmatmul.mubr.bf16.gmra.mrb[0].mxu0 %v2786
      %v2976 = vpop.f32.mrb[0].mxu0
      %v2977 = vadd.f32 0.0, %v2976
      %v2978 = vpop.f32.mrb[0].mxu0
      %v2979 = vpop.f32.mrb[0].mxu0
      %v2980 = vadd.f32 0.0, %v2979
      %v2981 = vpop.f32.mrb[0].mxu0
      %2982 = vmatprep.mubr.bf16.mxu0 %v2797
      %2983 = vmatmul.mubr.bf16.gmra.mrb[0].mxu0 %v2787
      %v2984 = vpop.f32.mrb[0].mxu0
      %v2985 = vadd.f32 0.0, %v2984
      %v2986 = vpop.f32.mrb[0].mxu0
      %v2987 = vpop.f32.mrb[0].mxu0
      %v2988 = vadd.f32 0.0, %v2987
      %v2989 = vpop.f32.mrb[0].mxu0
      %2990 = vmatprep.mubr.bf16.mxu0 %v2798
      %2991 = vmatmul.mubr.bf16.gmra.mrb[0].mxu0 %v2788
      %v2992 = vpop.f32.mrb[0].mxu0
      %v2993 = vadd.f32 0.0, %v2992
      %v2994 = vpop.f32.mrb[0].mxu0
      %v2995 = vpop.f32.mrb[0].mxu0
      %v2996 = vadd.f32 0.0, %v2995
      %v2997 = vpop.f32.mrb[0].mxu0
      %2998 = vmatprep.mubr.bf16.mxu0 %v2799
      %2999 = vmatmul.mubr.bf16.gmra.mrb[0].mxu0 %v2789
      %v3000 = vpop.f32.mrb[0].mxu0
      %v3001 = vadd.f32 0.0, %v3000
      %v3002 = vpop.f32.mrb[0].mxu0
      %v3003 = vpop.f32.mrb[0].mxu0
      %v3004 = vadd.f32 0.0, %v3003
      %v3005 = vpop.f32.mrb[0].mxu0
      %3006 = vmatprep.mubr.bf16.mxu0 %v2800
      %3007 = vmatmul.mubr.bf16.gmra.mrb[0].mxu0 %v2790
      %v3008 = vpop.f32.mrb[0].mxu0
      %v3009 = vadd.f32 0.0, %v3008
      %v3010 = vpop.f32.mrb[0].mxu0
      %v3011 = vpop.f32.mrb[0].mxu0
      %v3012 = vadd.f32 0.0, %v3011
      %v3013 = vpop.f32.mrb[0].mxu0
      %3014 = vmatprep.mubr.bf16.mxu0 %v2801
      %3015 = vmatmul.mubr.bf16.gmra.mrb[0].mxu0 %v2791
      %v3016 = vpop.f32.mrb[0].mxu0
      %v3017 = vadd.f32 0.0, %v3016
      %v3018 = vpop.f32.mrb[0].mxu0
      %v3019 = vpop.f32.mrb[0].mxu0
      %v3020 = vadd.f32 0.0, %v3019
      %v3021 = vpop.f32.mrb[0].mxu0
      %3022 = vmatprep.mubr.bf16.mxu0 %v2802
      %3023 = vmatmul.mubr.bf16.gmra.mrb[0].mxu0 %v2792
      %v3024 = vpop.f32.mrb[0].mxu0
      %v3025 = vadd.f32 0.0, %v3024
      %v3026 = vpop.f32.mrb[0].mxu0
      %v3027 = vpop.f32.mrb[0].mxu0
      %v3028 = vadd.f32 0.0, %v3027
      %v3029 = vpop.f32.mrb[0].mxu0
      %3030 = vmatprep.mubr.bf16.mxu0 %v2803
      %3031 = vmatmul.mubr.bf16.gmra.mrb[0].mxu0 %v2793
      %v3032 = vpop.f32.mrb[0].mxu0
      %v3033 = vadd.f32 0.0, %v3032
      %v3034 = vpop.f32.mrb[0].mxu0
      %v3035 = vpop.f32.mrb[0].mxu0
      %v3036 = vadd.f32 0.0, %v3035
      %v3037 = vpop.f32.mrb[0].mxu0
      %3038 = vmatprep.mubr.bf16.mxu0 %v2804
      %3039 = vmatmul.mubr.bf16.gmra.mrb[0].mxu0 %v2794
      %v3040 = vpop.f32.mrb[0].mxu0
      %v3041 = vadd.f32 0.0, %v3040
      %v3042 = vpop.f32.mrb[0].mxu0
      %v3043 = vpop.f32.mrb[0].mxu0
      %v3044 = vadd.f32 0.0, %v3043
      %v3045 = vpop.f32.mrb[0].mxu0
      %3046 = vdwg.mxu0
      %v3047 = vadd.f32 %v2765, %v2969
      %v3048 = vadd.f32 %v2766, %v2972
      %v3049 = vadd.f32 %v2767, %v2977
      %v3050 = vadd.f32 %v2768, %v2980
      %v3051 = vadd.f32 %v2769, %v2985
      %v3052 = vadd.f32 %v2770, %v2988
      %v3053 = vadd.f32 %v2771, %v2993
      %v3054 = vadd.f32 %v2772, %v2996
      %v3055 = vadd.f32 %v2773, %v3001
      %v3056 = vadd.f32 %v2774, %v3004
      %v3057 = vadd.f32 %v2775, %v3009
      %v3058 = vadd.f32 %v2776, %v3012
      %v3059 = vadd.f32 %v2777, %v3017
      %v3060 = vadd.f32 %v2778, %v3020
      %v3061 = vadd.f32 %v2779, %v3025
      %v3062 = vadd.f32 %v2780, %v3028
      %v3063 = vadd.f32 %v2781, %v3033
      %v3064 = vadd.f32 %v2782, %v3036
      %v3065 = vadd.f32 %v2783, %v3041
      %v3066 = vadd.f32 %v2784, %v3044
      %v3067 = vld [vmem:[%s1119 + $0x10] sm:$0xff]
      %v3068 = vld [vmem:[%s1119 + $0x18] sm:$0xff]
      %v3069 = vld [vmem:[%s1119 + $0x20] sm:$0xff]
      %v3070 = vld [vmem:[%s1119 + $0x28] sm:$0xff]
      %v3071 = vld [vmem:[%s1119 + $0x30] sm:$0xff]
      %v3072 = vld [vmem:[%s1119 + $0x38] sm:$0xff]
      %v3073 = vld [vmem:[%s1119 + $0x40] sm:$0xff]
      %v3074 = vld [vmem:[%s1119 + $0x48] sm:$0xff]
      %v3075 = vld [vmem:[%s1119 + $0x50] sm:$0xff]
      %v3076 = vld [vmem:[%s1119 + $0x58] sm:$0xff]
      %v3077 = vld [vmem:[#allocation2 + $0x18] sm:$0xff]
      %v3078 = vld [vmem:[#allocation2 + $0x20] sm:$0xff]
      %v3079 = vld [vmem:[#allocation2 + $0x28] sm:$0xff]
      %v3080 = vld [vmem:[#allocation2 + $0x30] sm:$0xff]
      %v3081 = vld [vmem:[#allocation2 + $0x38] sm:$0xff]
      %v3082 = vld [vmem:[#allocation2 + $0x40] sm:$0xff]
      %v3083 = vld [vmem:[#allocation2 + $0x48] sm:$0xff]
      %v3084 = vld [vmem:[#allocation2 + $0x50] sm:$0xff]
      %v3085 = vld [vmem:[#allocation2 + $0x58] sm:$0xff]
      %v3086 = vld [vmem:[#allocation2 + $0x60] sm:$0xff]
      %s3087 = scalar_lea.vmem %s1, 896
      %v3088 = vld [vmem:[%s3087] sm:$0xf]
      %v3089 = vld [vmem:[%s3087 + $0x4] sm:$0xf]
      %v3090 = vld [vmem:[%s3087 + $0x8] sm:$0xf]
      %v3091 = vld [vmem:[%s3087 + $0xc] sm:$0xf]
      %v3092 = vld [vmem:[%s3087 + $0x10] sm:$0xf]
      %v3093 = vld [vmem:[%s3087 + $0x14] sm:$0xf]
      %v3094 = vld [vmem:[%s3087 + $0x18] sm:$0xf]
      %v3095 = vld [vmem:[%s3087 + $0x1c] sm:$0xf]
      %v3096 = vld [vmem:[%s3087 + $0x20] sm:$0xf]
      %v3097 = vld [vmem:[%s3087 + $0x24] sm:$0xf]
      %v3098 = vld [vmem:[%s3087 + $0x28] sm:$0xf]
      %v3099 = vld [vmem:[%s3087 + $0x2c] sm:$0xf]
      %v3100 = vld [vmem:[%s3087 + $0x30] sm:$0xf]
      %v3101 = vld [vmem:[%s3087 + $0x34] sm:$0xf]
      %v3102 = vld [vmem:[%s3087 + $0x38] sm:$0xf]
      %v3103 = vld [vmem:[%s3087 + $0x3c] sm:$0xf]
      %v3104 = vld [vmem:[%s3087 + $0x40] sm:$0xf]
      %v3105 = vld [vmem:[%s3087 + $0x44] sm:$0xf]
      %v3106 = vld [vmem:[%s3087 + $0x48] sm:$0xf]
      %v3107 = vld [vmem:[%s3087 + $0x4c] sm:$0xf]
      %v3108 = vld [vmem:[%s3087 + $0x50] sm:$0xf]
      %v3109 = vld [vmem:[%s3087 + $0x54] sm:$0xf]
      %v3110 = vld [vmem:[%s3087 + $0x58] sm:$0xf]
      %v3111 = vld [vmem:[%s3087 + $0x5c] sm:$0xf]
      %v3112 = vld [vmem:[%s3087 + $0x60] sm:$0xf]
      %v3113 = vld [vmem:[%s3087 + $0x64] sm:$0xf]
      %v3114 = vld [vmem:[%s3087 + $0x68] sm:$0xf]
      %v3115 = vld [vmem:[%s3087 + $0x6c] sm:$0xf]
      %v3116 = vld [vmem:[%s3087 + $0x70] sm:$0xf]
      %v3117 = vld [vmem:[%s3087 + $0x74] sm:$0xf]
      %v3118 = vld [vmem:[%s3087 + $0x78] sm:$0xf]
      %v3119 = vld [vmem:[%s3087 + $0x7c] sm:$0xf]
      %v3152 = vunpack.c.l.b16 %v3088
      %v3153 = vunpack.c.l.b16 %v3089
      %v3154 = vunpack.c.l.b16 %v3090
      %v3155 = vunpack.c.l.b16 %v3091
      %v3156 = vunpack.c.l.b16 %v3092
      %v3157 = vunpack.c.l.b16 %v3093
      %v3158 = vunpack.c.l.b16 %v3094
      %v3159 = vunpack.c.l.b16 %v3095
      %v3160 = vunpack.c.l.b16 %v3096
      %v3161 = vunpack.c.l.b16 %v3097
      %v3162 = vunpack.c.l.b16 %v3098
      %v3163 = vunpack.c.l.b16 %v3099
      %v3164 = vunpack.c.l.b16 %v3100
      %v3165 = vunpack.c.l.b16 %v3101
      %v3166 = vunpack.c.l.b16 %v3102
      %v3167 = vunpack.c.l.b16 %v3103
      %v3168 = vunpack.c.l.b16 %v3104
      %v3169 = vunpack.c.l.b16 %v3105
      %v3170 = vunpack.c.l.b16 %v3106
      %v3171 = vunpack.c.l.b16 %v3107
      %v3172 = vunpack.c.l.b16 %v3108
      %v3173 = vunpack.c.l.b16 %v3109
      %v3174 = vunpack.c.l.b16 %v3110
      %v3175 = vunpack.c.l.b16 %v3111
      %v3176 = vunpack.c.l.b16 %v3112
      %v3177 = vunpack.c.l.b16 %v3113
      %v3178 = vunpack.c.l.b16 %v3114
      %v3179 = vunpack.c.l.b16 %v3115
      %v3180 = vunpack.c.l.b16 %v3116
      %v3181 = vunpack.c.l.b16 %v3117
      %v3182 = vunpack.c.l.b16 %v3118
      %v3183 = vunpack.c.l.b16 %v3119
      %v3184 = vpack.c.b16 %v3153, %v3152
      %v3185 = vpack.c.b16 %v3155, %v3154
      %v3186 = vpack.c.b16 %v3157, %v3156
      %v3187 = vpack.c.b16 %v3159, %v3158
      %v3188 = vpack.c.b16 %v3161, %v3160
      %v3189 = vpack.c.b16 %v3163, %v3162
      %v3190 = vpack.c.b16 %v3165, %v3164
      %v3191 = vpack.c.b16 %v3167, %v3166
      %v3192 = vpack.c.b16 %v3169, %v3168
      %v3193 = vpack.c.b16 %v3171, %v3170
      %v3194 = vpack.c.b16 %v3173, %v3172
      %v3195 = vpack.c.b16 %v3175, %v3174
      %v3196 = vpack.c.b16 %v3177, %v3176
      %v3197 = vpack.c.b16 %v3179, %v3178
      %v3198 = vpack.c.b16 %v3181, %v3180
      %v3199 = vpack.c.b16 %v3183, %v3182
      %3216 = vmatprep.subr.bf16.mxu0 0
      %3217 = vmatpush1.bf16.msra.mxu0 %v3184
      %3218 = vmatprep.subr.bf16.mxu0 0
      %3219 = vmatpush1.bf16.msra.mxu0 %v3185
      %3220 = vmatprep.subr.bf16.mxu0 0
      %3221 = vmatpush1.bf16.msra.mxu0 %v3186
      %3222 = vmatprep.subr.bf16.mxu0 0
      %3223 = vmatpush1.bf16.msra.mxu0 %v3187
      %3224 = vmatprep.subr.bf16.mxu0 0
      %3225 = vmatpush1.bf16.msra.mxu0 %v3188
      %3226 = vmatprep.subr.bf16.mxu0 0
      %3227 = vmatpush1.bf16.msra.mxu0 %v3189
      %3228 = vmatprep.subr.bf16.mxu0 0
      %3229 = vmatpush1.bf16.msra.mxu0 %v3190
      %3230 = vmatprep.subr.bf16.mxu0 0
      %3231 = vmatpush1.bf16.msra.mxu0 %v3191
      %3232 = vmatprep.subr.bf16.mxu0 0
      %3233 = vmatpush1.bf16.msra.mxu0 %v3192
      %3234 = vmatprep.subr.bf16.mxu0 0
      %3235 = vmatpush1.bf16.msra.mxu0 %v3193
      %3236 = vmatprep.subr.bf16.mxu0 0
      %3237 = vmatpush1.bf16.msra.mxu0 %v3194
      %3238 = vmatprep.subr.bf16.mxu0 0
      %3239 = vmatpush1.bf16.msra.mxu0 %v3195
      %3240 = vmatprep.subr.bf16.mxu0 0
      %3241 = vmatpush1.bf16.msra.mxu0 %v3196
      %3242 = vmatprep.subr.bf16.mxu0 0
      %3243 = vmatpush1.bf16.msra.mxu0 %v3197
      %3244 = vmatprep.subr.bf16.mxu0 0
      %3245 = vmatpush1.bf16.msra.mxu0 %v3198
      %3246 = vmatprep.subr.bf16.mxu0 0
      %3247 = vmatpush1.bf16.msra.mxu0 %v3199
      %3248 = vmatprep.mubr.bf16.mxu0 %v3077
      %3249 = vmatmul.mubr.bf16.gmra.mrb[0].mxu0 %v3067
      %v3250 = vpop.f32.mrb[0].mxu0
      %v3251 = vadd.f32 0.0, %v3250
      %v3252 = vpop.f32.mrb[0].mxu0
      %v3253 = vpop.f32.mrb[0].mxu0
      %v3254 = vadd.f32 0.0, %v3253
      %v3255 = vpop.f32.mrb[0].mxu0
      %3256 = vmatprep.mubr.bf16.mxu0 %v3078
      %3257 = vmatmul.mubr.bf16.gmra.mrb[0].mxu0 %v3068
      %v3258 = vpop.f32.mrb[0].mxu0
      %v3259 = vadd.f32 0.0, %v3258
      %v3260 = vpop.f32.mrb[0].mxu0
      %v3261 = vpop.f32.mrb[0].mxu0
      %v3262 = vadd.f32 0.0, %v3261
      %v3263 = vpop.f32.mrb[0].mxu0
      %3264 = vmatprep.mubr.bf16.mxu0 %v3079
      %3265 = vmatmul.mubr.bf16.gmra.mrb[0].mxu0 %v3069
      %v3266 = vpop.f32.mrb[0].mxu0
      %v3267 = vadd.f32 0.0, %v3266
      %v3268 = vpop.f32.mrb[0].mxu0
      %v3269 = vpop.f32.mrb[0].mxu0
      %v3270 = vadd.f32 0.0, %v3269
      %v3271 = vpop.f32.mrb[0].mxu0
      %3272 = vmatprep.mubr.bf16.mxu0 %v3080
      %3273 = vmatmul.mubr.bf16.gmra.mrb[0].mxu0 %v3070
      %v3274 = vpop.f32.mrb[0].mxu0
      %v3275 = vadd.f32 0.0, %v3274
      %v3276 = vpop.f32.mrb[0].mxu0
      %v3277 = vpop.f32.mrb[0].mxu0
      %v3278 = vadd.f32 0.0, %v3277
      %v3279 = vpop.f32.mrb[0].mxu0
      %3280 = vmatprep.mubr.bf16.mxu0 %v3081
      %3281 = vmatmul.mubr.bf16.gmra.mrb[0].mxu0 %v3071
      %v3282 = vpop.f32.mrb[0].mxu0
      %v3283 = vadd.f32 0.0, %v3282
      %v3284 = vpop.f32.mrb[0].mxu0
      %v3285 = vpop.f32.mrb[0].mxu0
      %v3286 = vadd.f32 0.0, %v3285
      %v3287 = vpop.f32.mrb[0].mxu0
      %3288 = vmatprep.mubr.bf16.mxu0 %v3082
      %3289 = vmatmul.mubr.bf16.gmra.mrb[0].mxu0 %v3072
      %v3290 = vpop.f32.mrb[0].mxu0
      %v3291 = vadd.f32 0.0, %v3290
      %v3292 = vpop.f32.mrb[0].mxu0
      %v3293 = vpop.f32.mrb[0].mxu0
      %v3294 = vadd.f32 0.0, %v3293
      %v3295 = vpop.f32.mrb[0].mxu0
      %3296 = vmatprep.mubr.bf16.mxu0 %v3083
      %3297 = vmatmul.mubr.bf16.gmra.mrb[0].mxu0 %v3073
      %v3298 = vpop.f32.mrb[0].mxu0
      %v3299 = vadd.f32 0.0, %v3298
      %v3300 = vpop.f32.mrb[0].mxu0
      %v3301 = vpop.f32.mrb[0].mxu0
      %v3302 = vadd.f32 0.0, %v3301
      %v3303 = vpop.f32.mrb[0].mxu0
      %3304 = vmatprep.mubr.bf16.mxu0 %v3084
      %3305 = vmatmul.mubr.bf16.gmra.mrb[0].mxu0 %v3074
      %v3306 = vpop.f32.mrb[0].mxu0
      %v3307 = vadd.f32 0.0, %v3306
      %v3308 = vpop.f32.mrb[0].mxu0
      %v3309 = vpop.f32.mrb[0].mxu0
      %v3310 = vadd.f32 0.0, %v3309
      %v3311 = vpop.f32.mrb[0].mxu0
      %3312 = vmatprep.mubr.bf16.mxu0 %v3085
      %3313 = vmatmul.mubr.bf16.gmra.mrb[0].mxu0 %v3075
      %v3314 = vpop.f32.mrb[0].mxu0
      %v3315 = vadd.f32 0.0, %v3314
      %v3316 = vpop.f32.mrb[0].mxu0
      %v3317 = vpop.f32.mrb[0].mxu0
      %v3318 = vadd.f32 0.0, %v3317
      %v3319 = vpop.f32.mrb[0].mxu0
      %3320 = vmatprep.mubr.bf16.mxu0 %v3086
      %3321 = vmatmul.mubr.bf16.gmra.mrb[0].mxu0 %v3076
      %v3322 = vpop.f32.mrb[0].mxu0
      %v3323 = vadd.f32 0.0, %v3322
      %v3324 = vpop.f32.mrb[0].mxu0
      %v3325 = vpop.f32.mrb[0].mxu0
      %v3326 = vadd.f32 0.0, %v3325
      %v3327 = vpop.f32.mrb[0].mxu0
      %3328 = vdwg.mxu0
      %v3329 = vadd.f32 %v3047, %v3251
      %v3330 = vadd.f32 %v3048, %v3254
      %v3331 = vadd.f32 %v3049, %v3259
      %v3332 = vadd.f32 %v3050, %v3262
      %v3333 = vadd.f32 %v3051, %v3267
      %v3334 = vadd.f32 %v3052, %v3270
      %v3335 = vadd.f32 %v3053, %v3275
      %v3336 = vadd.f32 %v3054, %v3278
      %v3337 = vadd.f32 %v3055, %v3283
      %v3338 = vadd.f32 %v3056, %v3286
      %v3339 = vadd.f32 %v3057, %v3291
      %v3340 = vadd.f32 %v3058, %v3294
      %v3341 = vadd.f32 %v3059, %v3299
      %v3342 = vadd.f32 %v3060, %v3302
      %v3343 = vadd.f32 %v3061, %v3307
      %v3344 = vadd.f32 %v3062, %v3310
      %v3345 = vadd.f32 %v3063, %v3315
      %v3346 = vadd.f32 %v3064, %v3318
      %v3347 = vadd.f32 %v3065, %v3323
      %v3348 = vadd.f32 %v3066, %v3326
      %v3349 = vld [vmem:[%s531 + $0x18] sm:$0xff]
      %v3350 = vld [vmem:[%s531 + $0x20] sm:$0xff]
      %v3351 = vld [vmem:[%s531 + $0x28] sm:$0xff]
      %v3352 = vld [vmem:[%s531 + $0x30] sm:$0xff]
      %v3353 = vld [vmem:[%s531 + $0x38] sm:$0xff]
      %v3354 = vld [vmem:[%s531 + $0x40] sm:$0xff]
      %v3355 = vld [vmem:[%s531 + $0x48] sm:$0xff]
      %v3356 = vld [vmem:[%s531 + $0x50] sm:$0xff]
      %v3357 = vld [vmem:[%s531 + $0x58] sm:$0xff]
      %v3358 = vld [vmem:[%s531 + $0x60] sm:$0xff]
      %v3359 = vld [vmem:[%s692 + $0x18] sm:$0xff]
      %v3360 = vld [vmem:[%s692 + $0x20] sm:$0xff]
      %v3361 = vld [vmem:[%s692 + $0x28] sm:$0xff]
      %v3362 = vld [vmem:[%s692 + $0x30] sm:$0xff]
      %v3363 = vld [vmem:[%s692 + $0x38] sm:$0xff]
      %v3364 = vld [vmem:[%s692 + $0x40] sm:$0xff]
      %v3365 = vld [vmem:[%s692 + $0x48] sm:$0xff]
      %v3366 = vld [vmem:[%s692 + $0x50] sm:$0xff]
      %v3367 = vld [vmem:[%s692 + $0x58] sm:$0xff]
      %v3368 = vld [vmem:[%s692 + $0x60] sm:$0xff]
      %s3369 = scalar_lea.vmem %s1, 1024
      %v3370 = vld [vmem:[%s3369] sm:$0xf]
      %v3371 = vld [vmem:[%s3369 + $0x4] sm:$0xf]
      %v3372 = vld [vmem:[%s3369 + $0x8] sm:$0xf]
      %v3373 = vld [vmem:[%s3369 + $0xc] sm:$0xf]
      %v3374 = vld [vmem:[%s3369 + $0x10] sm:$0xf]
      %v3375 = vld [vmem:[%s3369 + $0x14] sm:$0xf]
      %v3376 = vld [vmem:[%s3369 + $0x18] sm:$0xf]
      %v3377 = vld [vmem:[%s3369 + $0x1c] sm:$0xf]
      %v3378 = vld [vmem:[%s3369 + $0x20] sm:$0xf]
      %v3379 = vld [vmem:[%s3369 + $0x24] sm:$0xf]
      %v3380 = vld [vmem:[%s3369 + $0x28] sm:$0xf]
      %v3381 = vld [vmem:[%s3369 + $0x2c] sm:$0xf]
      %v3382 = vld [vmem:[%s3369 + $0x30] sm:$0xf]
      %v3383 = vld [vmem:[%s3369 + $0x34] sm:$0xf]
      %v3384 = vld [vmem:[%s3369 + $0x38] sm:$0xf]
      %v3385 = vld [vmem:[%s3369 + $0x3c] sm:$0xf]
      %v3386 = vld [vmem:[%s3369 + $0x40] sm:$0xf]
      %v3387 = vld [vmem:[%s3369 + $0x44] sm:$0xf]
      %v3388 = vld [vmem:[%s3369 + $0x48] sm:$0xf]
      %v3389 = vld [vmem:[%s3369 + $0x4c] sm:$0xf]
      %v3390 = vld [vmem:[%s3369 + $0x50] sm:$0xf]
      %v3391 = vld [vmem:[%s3369 + $0x54] sm:$0xf]
      %v3392 = vld [vmem:[%s3369 + $0x58] sm:$0xf]
      %v3393 = vld [vmem:[%s3369 + $0x5c] sm:$0xf]
      %v3394 = vld [vmem:[%s3369 + $0x60] sm:$0xf]
      %v3395 = vld [vmem:[%s3369 + $0x64] sm:$0xf]
      %v3396 = vld [vmem:[%s3369 + $0x68] sm:$0xf]
      %v3397 = vld [vmem:[%s3369 + $0x6c] sm:$0xf]
      %v3398 = vld [vmem:[%s3369 + $0x70] sm:$0xf]
      %v3399 = vld [vmem:[%s3369 + $0x74] sm:$0xf]
      %v3400 = vld [vmem:[%s3369 + $0x78] sm:$0xf]
      %v3401 = vld [vmem:[%s3369 + $0x7c] sm:$0xf]
      %v3434 = vunpack.c.l.b16 %v3370
      %v3435 = vunpack.c.l.b16 %v3371
      %v3436 = vunpack.c.l.b16 %v3372
      %v3437 = vunpack.c.l.b16 %v3373
      %v3438 = vunpack.c.l.b16 %v3374
      %v3439 = vunpack.c.l.b16 %v3375
      %v3440 = vunpack.c.l.b16 %v3376
      %v3441 = vunpack.c.l.b16 %v3377
      %v3442 = vunpack.c.l.b16 %v3378
      %v3443 = vunpack.c.l.b16 %v3379
      %v3444 = vunpack.c.l.b16 %v3380
      %v3445 = vunpack.c.l.b16 %v3381
      %v3446 = vunpack.c.l.b16 %v3382
      %v3447 = vunpack.c.l.b16 %v3383
      %v3448 = vunpack.c.l.b16 %v3384
      %v3449 = vunpack.c.l.b16 %v3385
      %v3450 = vunpack.c.l.b16 %v3386
      %v3451 = vunpack.c.l.b16 %v3387
      %v3452 = vunpack.c.l.b16 %v3388
      %v3453 = vunpack.c.l.b16 %v3389
      %v3454 = vunpack.c.l.b16 %v3390
      %v3455 = vunpack.c.l.b16 %v3391
      %v3456 = vunpack.c.l.b16 %v3392
      %v3457 = vunpack.c.l.b16 %v3393
      %v3458 = vunpack.c.l.b16 %v3394
      %v3459 = vunpack.c.l.b16 %v3395
      %v3460 = vunpack.c.l.b16 %v3396
      %v3461 = vunpack.c.l.b16 %v3397
      %v3462 = vunpack.c.l.b16 %v3398
      %v3463 = vunpack.c.l.b16 %v3399
      %v3464 = vunpack.c.l.b16 %v3400
      %v3465 = vunpack.c.l.b16 %v3401
      %v3466 = vpack.c.b16 %v3435, %v3434
      %v3467 = vpack.c.b16 %v3437, %v3436
      %v3468 = vpack.c.b16 %v3439, %v3438
      %v3469 = vpack.c.b16 %v3441, %v3440
      %v3470 = vpack.c.b16 %v3443, %v3442
      %v3471 = vpack.c.b16 %v3445, %v3444
      %v3472 = vpack.c.b16 %v3447, %v3446
      %v3473 = vpack.c.b16 %v3449, %v3448
      %v3474 = vpack.c.b16 %v3451, %v3450
      %v3475 = vpack.c.b16 %v3453, %v3452
      %v3476 = vpack.c.b16 %v3455, %v3454
      %v3477 = vpack.c.b16 %v3457, %v3456
      %v3478 = vpack.c.b16 %v3459, %v3458
      %v3479 = vpack.c.b16 %v3461, %v3460
      %v3480 = vpack.c.b16 %v3463, %v3462
      %v3481 = vpack.c.b16 %v3465, %v3464
      %3498 = vmatprep.subr.bf16.mxu0 0
      %3499 = vmatpush1.bf16.msra.mxu0 %v3466
      %3500 = vmatprep.subr.bf16.mxu0 0
      %3501 = vmatpush1.bf16.msra.mxu0 %v3467
      %3502 = vmatprep.subr.bf16.mxu0 0
      %3503 = vmatpush1.bf16.msra.mxu0 %v3468
      %3504 = vmatprep.subr.bf16.mxu0 0
      %3505 = vmatpush1.bf16.msra.mxu0 %v3469
      %3506 = vmatprep.subr.bf16.mxu0 0
      %3507 = vmatpush1.bf16.msra.mxu0 %v3470
      %3508 = vmatprep.subr.bf16.mxu0 0
      %3509 = vmatpush1.bf16.msra.mxu0 %v3471
      %3510 = vmatprep.subr.bf16.mxu0 0
      %3511 = vmatpush1.bf16.msra.mxu0 %v3472
      %3512 = vmatprep.subr.bf16.mxu0 0
      %3513 = vmatpush1.bf16.msra.mxu0 %v3473
      %3514 = vmatprep.subr.bf16.mxu0 0
      %3515 = vmatpush1.bf16.msra.mxu0 %v3474
      %3516 = vmatprep.subr.bf16.mxu0 0
      %3517 = vmatpush1.bf16.msra.mxu0 %v3475
      %3518 = vmatprep.subr.bf16.mxu0 0
      %3519 = vmatpush1.bf16.msra.mxu0 %v3476
      %3520 = vmatprep.subr.bf16.mxu0 0
      %3521 = vmatpush1.bf16.msra.mxu0 %v3477
      %3522 = vmatprep.subr.bf16.mxu0 0
      %3523 = vmatpush1.bf16.msra.mxu0 %v3478
      %3524 = vmatprep.subr.bf16.mxu0 0
      %3525 = vmatpush1.bf16.msra.mxu0 %v3479
      %3526 = vmatprep.subr.bf16.mxu0 0
      %3527 = vmatpush1.bf16.msra.mxu0 %v3480
      %3528 = vmatprep.subr.bf16.mxu0 0
      %3529 = vmatpush1.bf16.msra.mxu0 %v3481
      %3530 = vmatprep.mubr.bf16.mxu0 %v3359
      %3531 = vmatmul.mubr.bf16.gmra.mrb[0].mxu0 %v3349
      %v3532 = vpop.f32.mrb[0].mxu0
      %v3533 = vadd.f32 0.0, %v3532
      %v3534 = vpop.f32.mrb[0].mxu0
      %v3535 = vpop.f32.mrb[0].mxu0
      %v3536 = vadd.f32 0.0, %v3535
      %v3537 = vpop.f32.mrb[0].mxu0
      %3538 = vmatprep.mubr.bf16.mxu0 %v3360
      %3539 = vmatmul.mubr.bf16.gmra.mrb[0].mxu0 %v3350
      %v3540 = vpop.f32.mrb[0].mxu0
      %v3541 = vadd.f32 0.0, %v3540
      %v3542 = vpop.f32.mrb[0].mxu0
      %v3543 = vpop.f32.mrb[0].mxu0
      %v3544 = vadd.f32 0.0, %v3543
      %v3545 = vpop.f32.mrb[0].mxu0
      %3546 = vmatprep.mubr.bf16.mxu0 %v3361
      %3547 = vmatmul.mubr.bf16.gmra.mrb[0].mxu0 %v3351
      %v3548 = vpop.f32.mrb[0].mxu0
      %v3549 = vadd.f32 0.0, %v3548
      %v3550 = vpop.f32.mrb[0].mxu0
      %v3551 = vpop.f32.mrb[0].mxu0
      %v3552 = vadd.f32 0.0, %v3551
      %v3553 = vpop.f32.mrb[0].mxu0
      %3554 = vmatprep.mubr.bf16.mxu0 %v3362
      %3555 = vmatmul.mubr.bf16.gmra.mrb[0].mxu0 %v3352
      %v3556 = vpop.f32.mrb[0].mxu0
      %v3557 = vadd.f32 0.0, %v3556
      %v3558 = vpop.f32.mrb[0].mxu0
      %v3559 = vpop.f32.mrb[0].mxu0
      %v3560 = vadd.f32 0.0, %v3559
      %v3561 = vpop.f32.mrb[0].mxu0
      %3562 = vmatprep.mubr.bf16.mxu0 %v3363
      %3563 = vmatmul.mubr.bf16.gmra.mrb[0].mxu0 %v3353
      %v3564 = vpop.f32.mrb[0].mxu0
      %v3565 = vadd.f32 0.0, %v3564
      %v3566 = vpop.f32.mrb[0].mxu0
      %v3567 = vpop.f32.mrb[0].mxu0
      %v3568 = vadd.f32 0.0, %v3567
      %v3569 = vpop.f32.mrb[0].mxu0
      %3570 = vmatprep.mubr.bf16.mxu0 %v3364
      %3571 = vmatmul.mubr.bf16.gmra.mrb[0].mxu0 %v3354
      %v3572 = vpop.f32.mrb[0].mxu0
      %v3573 = vadd.f32 0.0, %v3572
      %v3574 = vpop.f32.mrb[0].mxu0
      %v3575 = vpop.f32.mrb[0].mxu0
      %v3576 = vadd.f32 0.0, %v3575
      %v3577 = vpop.f32.mrb[0].mxu0
      %3578 = vmatprep.mubr.bf16.mxu0 %v3365
      %3579 = vmatmul.mubr.bf16.gmra.mrb[0].mxu0 %v3355
      %v3580 = vpop.f32.mrb[0].mxu0
      %v3581 = vadd.f32 0.0, %v3580
      %v3582 = vpop.f32.mrb[0].mxu0
      %v3583 = vpop.f32.mrb[0].mxu0
      %v3584 = vadd.f32 0.0, %v3583
      %v3585 = vpop.f32.mrb[0].mxu0
      %3586 = vmatprep.mubr.bf16.mxu0 %v3366
      %3587 = vmatmul.mubr.bf16.gmra.mrb[0].mxu0 %v3356
      %v3588 = vpop.f32.mrb[0].mxu0
      %v3589 = vadd.f32 0.0, %v3588
      %v3590 = vpop.f32.mrb[0].mxu0
      %v3591 = vpop.f32.mrb[0].mxu0
      %v3592 = vadd.f32 0.0, %v3591
      %v3593 = vpop.f32.mrb[0].mxu0
      %3594 = vmatprep.mubr.bf16.mxu0 %v3367
      %3595 = vmatmul.mubr.bf16.gmra.mrb[0].mxu0 %v3357
      %v3596 = vpop.f32.mrb[0].mxu0
      %v3597 = vadd.f32 0.0, %v3596
      %v3598 = vpop.f32.mrb[0].mxu0
      %v3599 = vpop.f32.mrb[0].mxu0
      %v3600 = vadd.f32 0.0, %v3599
      %v3601 = vpop.f32.mrb[0].mxu0
      %3602 = vmatprep.mubr.bf16.mxu0 %v3368
      %3603 = vmatmul.mubr.bf16.gmra.mrb[0].mxu0 %v3358
      %v3604 = vpop.f32.mrb[0].mxu0
      %v3605 = vadd.f32 0.0, %v3604
      %v3606 = vpop.f32.mrb[0].mxu0
      %v3607 = vpop.f32.mrb[0].mxu0
      %v3608 = vadd.f32 0.0, %v3607
      %v3609 = vpop.f32.mrb[0].mxu0
      %3610 = vdwg.mxu0
      %v3611 = vadd.f32 %v3329, %v3533
      %v3612 = vadd.f32 %v3330, %v3536
      %v3613 = vadd.f32 %v3331, %v3541
      %v3614 = vadd.f32 %v3332, %v3544
      %v3615 = vadd.f32 %v3333, %v3549
      %v3616 = vadd.f32 %v3334, %v3552
      %v3617 = vadd.f32 %v3335, %v3557
      %v3618 = vadd.f32 %v3336, %v3560
      %v3619 = vadd.f32 %v3337, %v3565
      %v3620 = vadd.f32 %v3338, %v3568
      %v3621 = vadd.f32 %v3339, %v3573
      %v3622 = vadd.f32 %v3340, %v3576
      %v3623 = vadd.f32 %v3341, %v3581
      %v3624 = vadd.f32 %v3342, %v3584
      %v3625 = vadd.f32 %v3343, %v3589
      %v3626 = vadd.f32 %v3344, %v3592
      %v3627 = vadd.f32 %v3345, %v3597
      %v3628 = vadd.f32 %v3346, %v3600
      %v3629 = vadd.f32 %v3347, %v3605
      %v3630 = vadd.f32 %v3348, %v3608
      %v3631 = vld [vmem:[%s958 + $0x18] sm:$0xff]
      %v3632 = vld [vmem:[%s958 + $0x20] sm:$0xff]
      %v3633 = vld [vmem:[%s958 + $0x28] sm:$0xff]
      %v3634 = vld [vmem:[%s958 + $0x30] sm:$0xff]
      %v3635 = vld [vmem:[%s958 + $0x38] sm:$0xff]
      %v3636 = vld [vmem:[%s958 + $0x40] sm:$0xff]
      %v3637 = vld [vmem:[%s958 + $0x48] sm:$0xff]
      %v3638 = vld [vmem:[%s958 + $0x50] sm:$0xff]
      %v3639 = vld [vmem:[%s958 + $0x58] sm:$0xff]
      %v3640 = vld [vmem:[%s958 + $0x60] sm:$0xff]
      %v3641 = vld [vmem:[%s1119 + $0x18] sm:$0xff]
      %v3642 = vld [vmem:[%s1119 + $0x20] sm:$0xff]
      %v3643 = vld [vmem:[%s1119 + $0x28] sm:$0xff]
      %v3644 = vld [vmem:[%s1119 + $0x30] sm:$0xff]
      %v3645 = vld [vmem:[%s1119 + $0x38] sm:$0xff]
      %v3646 = vld [vmem:[%s1119 + $0x40] sm:$0xff]
      %v3647 = vld [vmem:[%s1119 + $0x48] sm:$0xff]
      %v3648 = vld [vmem:[%s1119 + $0x50] sm:$0xff]
      %v3649 = vld [vmem:[%s1119 + $0x58] sm:$0xff]
      %v3650 = vld [vmem:[%s1119 + $0x60] sm:$0xff]
      %s3651 = scalar_lea.vmem %s1, 1152
      %v3652 = vld [vmem:[%s3651] sm:$0xf]
      %v3653 = vld [vmem:[%s3651 + $0x4] sm:$0xf]
      %v3654 = vld [vmem:[%s3651 + $0x8] sm:$0xf]
      %v3655 = vld [vmem:[%s3651 + $0xc] sm:$0xf]
      %v3656 = vld [vmem:[%s3651 + $0x10] sm:$0xf]
      %v3657 = vld [vmem:[%s3651 + $0x14] sm:$0xf]
      %v3658 = vld [vmem:[%s3651 + $0x18] sm:$0xf]
      %v3659 = vld [vmem:[%s3651 + $0x1c] sm:$0xf]
      %v3660 = vld [vmem:[%s3651 + $0x20] sm:$0xf]
      %v3661 = vld [vmem:[%s3651 + $0x24] sm:$0xf]
      %v3662 = vld [vmem:[%s3651 + $0x28] sm:$0xf]
      %v3663 = vld [vmem:[%s3651 + $0x2c] sm:$0xf]
      %v3664 = vld [vmem:[%s3651 + $0x30] sm:$0xf]
      %v3665 = vld [vmem:[%s3651 + $0x34] sm:$0xf]
      %v3666 = vld [vmem:[%s3651 + $0x38] sm:$0xf]
      %v3667 = vld [vmem:[%s3651 + $0x3c] sm:$0xf]
      %v3668 = vld [vmem:[%s3651 + $0x40] sm:$0xf]
      %v3669 = vld [vmem:[%s3651 + $0x44] sm:$0xf]
      %v3670 = vld [vmem:[%s3651 + $0x48] sm:$0xf]
      %v3671 = vld [vmem:[%s3651 + $0x4c] sm:$0xf]
      %v3672 = vld [vmem:[%s3651 + $0x50] sm:$0xf]
      %v3673 = vld [vmem:[%s3651 + $0x54] sm:$0xf]
      %v3674 = vld [vmem:[%s3651 + $0x58] sm:$0xf]
      %v3675 = vld [vmem:[%s3651 + $0x5c] sm:$0xf]
      %v3676 = vld [vmem:[%s3651 + $0x60] sm:$0xf]
      %v3677 = vld [vmem:[%s3651 + $0x64] sm:$0xf]
      %v3678 = vld [vmem:[%s3651 + $0x68] sm:$0xf]
      %v3679 = vld [vmem:[%s3651 + $0x6c] sm:$0xf]
      %v3680 = vld [vmem:[%s3651 + $0x70] sm:$0xf]
      %v3681 = vld [vmem:[%s3651 + $0x74] sm:$0xf]
      %v3682 = vld [vmem:[%s3651 + $0x78] sm:$0xf]
      %v3683 = vld [vmem:[%s3651 + $0x7c] sm:$0xf]
      %v3716 = vunpack.c.l.b16 %v3652
      %v3717 = vunpack.c.l.b16 %v3653
      %v3718 = vunpack.c.l.b16 %v3654
      %v3719 = vunpack.c.l.b16 %v3655
      %v3720 = vunpack.c.l.b16 %v3656
      %v3721 = vunpack.c.l.b16 %v3657
      %v3722 = vunpack.c.l.b16 %v3658
      %v3723 = vunpack.c.l.b16 %v3659
      %v3724 = vunpack.c.l.b16 %v3660
      %v3725 = vunpack.c.l.b16 %v3661
      %v3726 = vunpack.c.l.b16 %v3662
      %v3727 = vunpack.c.l.b16 %v3663
      %v3728 = vunpack.c.l.b16 %v3664
      %v3729 = vunpack.c.l.b16 %v3665
      %v3730 = vunpack.c.l.b16 %v3666
      %v3731 = vunpack.c.l.b16 %v3667
      %v3732 = vunpack.c.l.b16 %v3668
      %v3733 = vunpack.c.l.b16 %v3669
      %v3734 = vunpack.c.l.b16 %v3670
      %v3735 = vunpack.c.l.b16 %v3671
      %v3736 = vunpack.c.l.b16 %v3672
      %v3737 = vunpack.c.l.b16 %v3673
      %v3738 = vunpack.c.l.b16 %v3674
      %v3739 = vunpack.c.l.b16 %v3675
      %v3740 = vunpack.c.l.b16 %v3676
      %v3741 = vunpack.c.l.b16 %v3677
      %v3742 = vunpack.c.l.b16 %v3678
      %v3743 = vunpack.c.l.b16 %v3679
      %v3744 = vunpack.c.l.b16 %v3680
      %v3745 = vunpack.c.l.b16 %v3681
      %v3746 = vunpack.c.l.b16 %v3682
      %v3747 = vunpack.c.l.b16 %v3683
      %v3748 = vpack.c.b16 %v3717, %v3716
      %v3749 = vpack.c.b16 %v3719, %v3718
      %v3750 = vpack.c.b16 %v3721, %v3720
      %v3751 = vpack.c.b16 %v3723, %v3722
      %v3752 = vpack.c.b16 %v3725, %v3724
      %v3753 = vpack.c.b16 %v3727, %v3726
      %v3754 = vpack.c.b16 %v3729, %v3728
      %v3755 = vpack.c.b16 %v3731, %v3730
      %v3756 = vpack.c.b16 %v3733, %v3732
      %v3757 = vpack.c.b16 %v3735, %v3734
      %v3758 = vpack.c.b16 %v3737, %v3736
      %v3759 = vpack.c.b16 %v3739, %v3738
      %v3760 = vpack.c.b16 %v3741, %v3740
      %v3761 = vpack.c.b16 %v3743, %v3742
      %v3762 = vpack.c.b16 %v3745, %v3744
      %v3763 = vpack.c.b16 %v3747, %v3746
      %3780 = vmatprep.subr.bf16.mxu0 0
      %3781 = vmatpush1.bf16.msra.mxu0 %v3748
      %3782 = vmatprep.subr.bf16.mxu0 0
      %3783 = vmatpush1.bf16.msra.mxu0 %v3749
      %3784 = vmatprep.subr.bf16.mxu0 0
      %3785 = vmatpush1.bf16.msra.mxu0 %v3750
      %3786 = vmatprep.subr.bf16.mxu0 0
      %3787 = vmatpush1.bf16.msra.mxu0 %v3751
      %3788 = vmatprep.subr.bf16.mxu0 0
      %3789 = vmatpush1.bf16.msra.mxu0 %v3752
      %3790 = vmatprep.subr.bf16.mxu0 0
      %3791 = vmatpush1.bf16.msra.mxu0 %v3753
      %3792 = vmatprep.subr.bf16.mxu0 0
      %3793 = vmatpush1.bf16.msra.mxu0 %v3754
      %3794 = vmatprep.subr.bf16.mxu0 0
      %3795 = vmatpush1.bf16.msra.mxu0 %v3755
      %3796 = vmatprep.subr.bf16.mxu0 0
      %3797 = vmatpush1.bf16.msra.mxu0 %v3756
      %3798 = vmatprep.subr.bf16.mxu0 0
      %3799 = vmatpush1.bf16.msra.mxu0 %v3757
      %3800 = vmatprep.subr.bf16.mxu0 0
      %3801 = vmatpush1.bf16.msra.mxu0 %v3758
      %3802 = vmatprep.subr.bf16.mxu0 0
      %3803 = vmatpush1.bf16.msra.mxu0 %v3759
      %3804 = vmatprep.subr.bf16.mxu0 0
      %3805 = vmatpush1.bf16.msra.mxu0 %v3760
      %3806 = vmatprep.subr.bf16.mxu0 0
      %3807 = vmatpush1.bf16.msra.mxu0 %v3761
      %3808 = vmatprep.subr.bf16.mxu0 0
      %3809 = vmatpush1.bf16.msra.mxu0 %v3762
      %3810 = vmatprep.subr.bf16.mxu0 0
      %3811 = vmatpush1.bf16.msra.mxu0 %v3763
      %3812 = vmatprep.mubr.bf16.mxu0 %v3641
      %3813 = vmatmul.mubr.bf16.gmra.mrb[0].mxu0 %v3631
      %v3814 = vpop.f32.mrb[0].mxu0
      %v3815 = vadd.f32 0.0, %v3814
      %v3816 = vpop.f32.mrb[0].mxu0
      %v3817 = vpop.f32.mrb[0].mxu0
      %v3818 = vadd.f32 0.0, %v3817
      %v3819 = vpop.f32.mrb[0].mxu0
      %3820 = vmatprep.mubr.bf16.mxu0 %v3642
      %3821 = vmatmul.mubr.bf16.gmra.mrb[0].mxu0 %v3632
      %v3822 = vpop.f32.mrb[0].mxu0
      %v3823 = vadd.f32 0.0, %v3822
      %v3824 = vpop.f32.mrb[0].mxu0
      %v3825 = vpop.f32.mrb[0].mxu0
      %v3826 = vadd.f32 0.0, %v3825
      %v3827 = vpop.f32.mrb[0].mxu0
      %3828 = vmatprep.mubr.bf16.mxu0 %v3643
      %3829 = vmatmul.mubr.bf16.gmra.mrb[0].mxu0 %v3633
      %v3830 = vpop.f32.mrb[0].mxu0
      %v3831 = vadd.f32 0.0, %v3830
      %v3832 = vpop.f32.mrb[0].mxu0
      %v3833 = vpop.f32.mrb[0].mxu0
      %v3834 = vadd.f32 0.0, %v3833
      %v3835 = vpop.f32.mrb[0].mxu0
      %3836 = vmatprep.mubr.bf16.mxu0 %v3644
      %3837 = vmatmul.mubr.bf16.gmra.mrb[0].mxu0 %v3634
      %v3838 = vpop.f32.mrb[0].mxu0
      %v3839 = vadd.f32 0.0, %v3838
      %v3840 = vpop.f32.mrb[0].mxu0
      %v3841 = vpop.f32.mrb[0].mxu0
      %v3842 = vadd.f32 0.0, %v3841
      %v3843 = vpop.f32.mrb[0].mxu0
      %3844 = vmatprep.mubr.bf16.mxu0 %v3645
      %3845 = vmatmul.mubr.bf16.gmra.mrb[0].mxu0 %v3635
      %v3846 = vpop.f32.mrb[0].mxu0
      %v3847 = vadd.f32 0.0, %v3846
      %v3848 = vpop.f32.mrb[0].mxu0
      %v3849 = vpop.f32.mrb[0].mxu0
      %v3850 = vadd.f32 0.0, %v3849
      %v3851 = vpop.f32.mrb[0].mxu0
      %3852 = vmatprep.mubr.bf16.mxu0 %v3646
      %3853 = vmatmul.mubr.bf16.gmra.mrb[0].mxu0 %v3636
      %v3854 = vpop.f32.mrb[0].mxu0
      %v3855 = vadd.f32 0.0, %v3854
      %v3856 = vpop.f32.mrb[0].mxu0
      %v3857 = vpop.f32.mrb[0].mxu0
      %v3858 = vadd.f32 0.0, %v3857
      %v3859 = vpop.f32.mrb[0].mxu0
      %3860 = vmatprep.mubr.bf16.mxu0 %v3647
      %3861 = vmatmul.mubr.bf16.gmra.mrb[0].mxu0 %v3637
      %v3862 = vpop.f32.mrb[0].mxu0
      %v3863 = vadd.f32 0.0, %v3862
      %v3864 = vpop.f32.mrb[0].mxu0
      %v3865 = vpop.f32.mrb[0].mxu0
      %v3866 = vadd.f32 0.0, %v3865
      %v3867 = vpop.f32.mrb[0].mxu0
      %3868 = vmatprep.mubr.bf16.mxu0 %v3648
      %3869 = vmatmul.mubr.bf16.gmra.mrb[0].mxu0 %v3638
      %v3870 = vpop.f32.mrb[0].mxu0
      %v3871 = vadd.f32 0.0, %v3870
      %v3872 = vpop.f32.mrb[0].mxu0
      %v3873 = vpop.f32.mrb[0].mxu0
      %v3874 = vadd.f32 0.0, %v3873
      %v3875 = vpop.f32.mrb[0].mxu0
      %3876 = vmatprep.mubr.bf16.mxu0 %v3649
      %3877 = vmatmul.mubr.bf16.gmra.mrb[0].mxu0 %v3639
      %v3878 = vpop.f32.mrb[0].mxu0
      %v3879 = vadd.f32 0.0, %v3878
      %v3880 = vpop.f32.mrb[0].mxu0
      %v3881 = vpop.f32.mrb[0].mxu0
      %v3882 = vadd.f32 0.0, %v3881
      %v3883 = vpop.f32.mrb[0].mxu0
      %3884 = vmatprep.mubr.bf16.mxu0 %v3650
      %3885 = vmatmul.mubr.bf16.gmra.mrb[0].mxu0 %v3640
      %v3886 = vpop.f32.mrb[0].mxu0
      %v3887 = vadd.f32 0.0, %v3886
      %v3888 = vpop.f32.mrb[0].mxu0
      %v3889 = vpop.f32.mrb[0].mxu0
      %v3890 = vadd.f32 0.0, %v3889
      %v3891 = vpop.f32.mrb[0].mxu0
      %3892 = vdwg.mxu0
      %v3893 = vadd.f32 %v3611, %v3815
      %v3894 = vadd.f32 %v3612, %v3818
      %v3895 = vadd.f32 %v3613, %v3823
      %v3896 = vadd.f32 %v3614, %v3826
      %v3897 = vadd.f32 %v3615, %v3831
      %v3898 = vadd.f32 %v3616, %v3834
      %v3899 = vadd.f32 %v3617, %v3839
      %v3900 = vadd.f32 %v3618, %v3842
      %v3901 = vadd.f32 %v3619, %v3847
      %v3902 = vadd.f32 %v3620, %v3850
      %v3903 = vadd.f32 %v3621, %v3855
      %v3904 = vadd.f32 %v3622, %v3858
      %v3905 = vadd.f32 %v3623, %v3863
      %v3906 = vadd.f32 %v3624, %v3866
      %v3907 = vadd.f32 %v3625, %v3871
      %v3908 = vadd.f32 %v3626, %v3874
      %v3909 = vadd.f32 %v3627, %v3879
      %v3910 = vadd.f32 %v3628, %v3882
      %v3911 = vadd.f32 %v3629, %v3887
      %v3912 = vadd.f32 %v3630, %v3890
      %v3913 = vld [vmem:[#allocation2 + $0x20] sm:$0xff]
      %v3914 = vld [vmem:[#allocation2 + $0x28] sm:$0xff]
      %v3915 = vld [vmem:[#allocation2 + $0x30] sm:$0xff]
      %v3916 = vld [vmem:[#allocation2 + $0x38] sm:$0xff]
      %v3917 = vld [vmem:[#allocation2 + $0x40] sm:$0xff]
      %v3918 = vld [vmem:[#allocation2 + $0x48] sm:$0xff]
      %v3919 = vld [vmem:[#allocation2 + $0x50] sm:$0xff]
      %v3920 = vld [vmem:[#allocation2 + $0x58] sm:$0xff]
      %v3921 = vld [vmem:[#allocation2 + $0x60] sm:$0xff]
      %v3922 = vld [vmem:[#allocation2 + $0x68] sm:$0xff]
      %v3923 = vld [vmem:[%s531 + $0x20] sm:$0xff]
      %v3924 = vld [vmem:[%s531 + $0x28] sm:$0xff]
      %v3925 = vld [vmem:[%s531 + $0x30] sm:$0xff]
      %v3926 = vld [vmem:[%s531 + $0x38] sm:$0xff]
      %v3927 = vld [vmem:[%s531 + $0x40] sm:$0xff]
      %v3928 = vld [vmem:[%s531 + $0x48] sm:$0xff]
      %v3929 = vld [vmem:[%s531 + $0x50] sm:$0xff]
      %v3930 = vld [vmem:[%s531 + $0x58] sm:$0xff]
      %v3931 = vld [vmem:[%s531 + $0x60] sm:$0xff]
      %v3932 = vld [vmem:[%s531 + $0x68] sm:$0xff]
      %s3933 = scalar_lea.vmem %s1, 1280
      %v3934 = vld [vmem:[%s3933] sm:$0xf]
      %v3935 = vld [vmem:[%s3933 + $0x4] sm:$0xf]
      %v3936 = vld [vmem:[%s3933 + $0x8] sm:$0xf]
      %v3937 = vld [vmem:[%s3933 + $0xc] sm:$0xf]
      %v3938 = vld [vmem:[%s3933 + $0x10] sm:$0xf]
      %v3939 = vld [vmem:[%s3933 + $0x14] sm:$0xf]
      %v3940 = vld [vmem:[%s3933 + $0x18] sm:$0xf]
      %v3941 = vld [vmem:[%s3933 + $0x1c] sm:$0xf]
      %v3942 = vld [vmem:[%s3933 + $0x20] sm:$0xf]
      %v3943 = vld [vmem:[%s3933 + $0x24] sm:$0xf]
      %v3944 = vld [vmem:[%s3933 + $0x28] sm:$0xf]
      %v3945 = vld [vmem:[%s3933 + $0x2c] sm:$0xf]
      %v3946 = vld [vmem:[%s3933 + $0x30] sm:$0xf]
      %v3947 = vld [vmem:[%s3933 + $0x34] sm:$0xf]
      %v3948 = vld [vmem:[%s3933 + $0x38] sm:$0xf]
      %v3949 = vld [vmem:[%s3933 + $0x3c] sm:$0xf]
      %v3950 = vld [vmem:[%s3933 + $0x40] sm:$0xf]
      %v3951 = vld [vmem:[%s3933 + $0x44] sm:$0xf]
      %v3952 = vld [vmem:[%s3933 + $0x48] sm:$0xf]
      %v3953 = vld [vmem:[%s3933 + $0x4c] sm:$0xf]
      %v3954 = vld [vmem:[%s3933 + $0x50] sm:$0xf]
      %v3955 = vld [vmem:[%s3933 + $0x54] sm:$0xf]
      %v3956 = vld [vmem:[%s3933 + $0x58] sm:$0xf]
      %v3957 = vld [vmem:[%s3933 + $0x5c] sm:$0xf]
      %v3958 = vld [vmem:[%s3933 + $0x60] sm:$0xf]
      %v3959 = vld [vmem:[%s3933 + $0x64] sm:$0xf]
      %v3960 = vld [vmem:[%s3933 + $0x68] sm:$0xf]
      %v3961 = vld [vmem:[%s3933 + $0x6c] sm:$0xf]
      %v3962 = vld [vmem:[%s3933 + $0x70] sm:$0xf]
      %v3963 = vld [vmem:[%s3933 + $0x74] sm:$0xf]
      %v3964 = vld [vmem:[%s3933 + $0x78] sm:$0xf]
      %v3965 = vld [vmem:[%s3933 + $0x7c] sm:$0xf]
      %v3998 = vunpack.c.l.b16 %v3934
      %v3999 = vunpack.c.l.b16 %v3935
      %v4000 = vunpack.c.l.b16 %v3936
      %v4001 = vunpack.c.l.b16 %v3937
      %v4002 = vunpack.c.l.b16 %v3938
      %v4003 = vunpack.c.l.b16 %v3939
      %v4004 = vunpack.c.l.b16 %v3940
      %v4005 = vunpack.c.l.b16 %v3941
      %v4006 = vunpack.c.l.b16 %v3942
      %v4007 = vunpack.c.l.b16 %v3943
      %v4008 = vunpack.c.l.b16 %v3944
      %v4009 = vunpack.c.l.b16 %v3945
      %v4010 = vunpack.c.l.b16 %v3946
      %v4011 = vunpack.c.l.b16 %v3947
      %v4012 = vunpack.c.l.b16 %v3948
      %v4013 = vunpack.c.l.b16 %v3949
      %v4014 = vunpack.c.l.b16 %v3950
      %v4015 = vunpack.c.l.b16 %v3951
      %v4016 = vunpack.c.l.b16 %v3952
      %v4017 = vunpack.c.l.b16 %v3953
      %v4018 = vunpack.c.l.b16 %v3954
      %v4019 = vunpack.c.l.b16 %v3955
      %v4020 = vunpack.c.l.b16 %v3956
      %v4021 = vunpack.c.l.b16 %v3957
      %v4022 = vunpack.c.l.b16 %v3958
      %v4023 = vunpack.c.l.b16 %v3959
      %v4024 = vunpack.c.l.b16 %v3960
      %v4025 = vunpack.c.l.b16 %v3961
      %v4026 = vunpack.c.l.b16 %v3962
      %v4027 = vunpack.c.l.b16 %v3963
      %v4028 = vunpack.c.l.b16 %v3964
      %v4029 = vunpack.c.l.b16 %v3965
      %v4030 = vpack.c.b16 %v3999, %v3998
      %v4031 = vpack.c.b16 %v4001, %v4000
      %v4032 = vpack.c.b16 %v4003, %v4002
      %v4033 = vpack.c.b16 %v4005, %v4004
      %v4034 = vpack.c.b16 %v4007, %v4006
      %v4035 = vpack.c.b16 %v4009, %v4008
      %v4036 = vpack.c.b16 %v4011, %v4010
      %v4037 = vpack.c.b16 %v4013, %v4012
      %v4038 = vpack.c.b16 %v4015, %v4014
      %v4039 = vpack.c.b16 %v4017, %v4016
      %v4040 = vpack.c.b16 %v4019, %v4018
      %v4041 = vpack.c.b16 %v4021, %v4020
      %v4042 = vpack.c.b16 %v4023, %v4022
      %v4043 = vpack.c.b16 %v4025, %v4024
      %v4044 = vpack.c.b16 %v4027, %v4026
      %v4045 = vpack.c.b16 %v4029, %v4028
      %4062 = vmatprep.subr.bf16.mxu0 0
      %4063 = vmatpush1.bf16.msra.mxu0 %v4030
      %4064 = vmatprep.subr.bf16.mxu0 0
      %4065 = vmatpush1.bf16.msra.mxu0 %v4031
      %4066 = vmatprep.subr.bf16.mxu0 0
      %4067 = vmatpush1.bf16.msra.mxu0 %v4032
      %4068 = vmatprep.subr.bf16.mxu0 0
      %4069 = vmatpush1.bf16.msra.mxu0 %v4033
      %4070 = vmatprep.subr.bf16.mxu0 0
      %4071 = vmatpush1.bf16.msra.mxu0 %v4034
      %4072 = vmatprep.subr.bf16.mxu0 0
      %4073 = vmatpush1.bf16.msra.mxu0 %v4035
      %4074 = vmatprep.subr.bf16.mxu0 0
      %4075 = vmatpush1.bf16.msra.mxu0 %v4036
      %4076 = vmatprep.subr.bf16.mxu0 0
      %4077 = vmatpush1.bf16.msra.mxu0 %v4037
      %4078 = vmatprep.subr.bf16.mxu0 0
      %4079 = vmatpush1.bf16.msra.mxu0 %v4038
      %4080 = vmatprep.subr.bf16.mxu0 0
      %4081 = vmatpush1.bf16.msra.mxu0 %v4039
      %4082 = vmatprep.subr.bf16.mxu0 0
      %4083 = vmatpush1.bf16.msra.mxu0 %v4040
      %4084 = vmatprep.subr.bf16.mxu0 0
      %4085 = vmatpush1.bf16.msra.mxu0 %v4041
      %4086 = vmatprep.subr.bf16.mxu0 0
      %4087 = vmatpush1.bf16.msra.mxu0 %v4042
      %4088 = vmatprep.subr.bf16.mxu0 0
      %4089 = vmatpush1.bf16.msra.mxu0 %v4043
      %4090 = vmatprep.subr.bf16.mxu0 0
      %4091 = vmatpush1.bf16.msra.mxu0 %v4044
      %4092 = vmatprep.subr.bf16.mxu0 0
      %4093 = vmatpush1.bf16.msra.mxu0 %v4045
      %4094 = vmatprep.mubr.bf16.mxu0 %v3923
      %4095 = vmatmul.mubr.bf16.gmra.mrb[0].mxu0 %v3913
      %v4096 = vpop.f32.mrb[0].mxu0
      %v4097 = vadd.f32 0.0, %v4096
      %v4098 = vpop.f32.mrb[0].mxu0
      %v4099 = vpop.f32.mrb[0].mxu0
      %v4100 = vadd.f32 0.0, %v4099
      %v4101 = vpop.f32.mrb[0].mxu0
      %4102 = vmatprep.mubr.bf16.mxu0 %v3924
      %4103 = vmatmul.mubr.bf16.gmra.mrb[0].mxu0 %v3914
      %v4104 = vpop.f32.mrb[0].mxu0
      %v4105 = vadd.f32 0.0, %v4104
      %v4106 = vpop.f32.mrb[0].mxu0
      %v4107 = vpop.f32.mrb[0].mxu0
      %v4108 = vadd.f32 0.0, %v4107
      %v4109 = vpop.f32.mrb[0].mxu0
      %4110 = vmatprep.mubr.bf16.mxu0 %v3925
      %4111 = vmatmul.mubr.bf16.gmra.mrb[0].mxu0 %v3915
      %v4112 = vpop.f32.mrb[0].mxu0
      %v4113 = vadd.f32 0.0, %v4112
      %v4114 = vpop.f32.mrb[0].mxu0
      %v4115 = vpop.f32.mrb[0].mxu0
      %v4116 = vadd.f32 0.0, %v4115
      %v4117 = vpop.f32.mrb[0].mxu0
      %4118 = vmatprep.mubr.bf16.mxu0 %v3926
      %4119 = vmatmul.mubr.bf16.gmra.mrb[0].mxu0 %v3916
      %v4120 = vpop.f32.mrb[0].mxu0
      %v4121 = vadd.f32 0.0, %v4120
      %v4122 = vpop.f32.mrb[0].mxu0
      %v4123 = vpop.f32.mrb[0].mxu0
      %v4124 = vadd.f32 0.0, %v4123
      %v4125 = vpop.f32.mrb[0].mxu0
      %4126 = vmatprep.mubr.bf16.mxu0 %v3927
      %4127 = vmatmul.mubr.bf16.gmra.mrb[0].mxu0 %v3917
      %v4128 = vpop.f32.mrb[0].mxu0
      %v4129 = vadd.f32 0.0, %v4128
      %v4130 = vpop.f32.mrb[0].mxu0
      %v4131 = vpop.f32.mrb[0].mxu0
      %v4132 = vadd.f32 0.0, %v4131
      %v4133 = vpop.f32.mrb[0].mxu0
      %4134 = vmatprep.mubr.bf16.mxu0 %v3928
      %4135 = vmatmul.mubr.bf16.gmra.mrb[0].mxu0 %v3918
      %v4136 = vpop.f32.mrb[0].mxu0
      %v4137 = vadd.f32 0.0, %v4136
      %v4138 = vpop.f32.mrb[0].mxu0
      %v4139 = vpop.f32.mrb[0].mxu0
      %v4140 = vadd.f32 0.0, %v4139
      %v4141 = vpop.f32.mrb[0].mxu0
      %4142 = vmatprep.mubr.bf16.mxu0 %v3929
      %4143 = vmatmul.mubr.bf16.gmra.mrb[0].mxu0 %v3919
      %v4144 = vpop.f32.mrb[0].mxu0
      %v4145 = vadd.f32 0.0, %v4144
      %v4146 = vpop.f32.mrb[0].mxu0
      %v4147 = vpop.f32.mrb[0].mxu0
      %v4148 = vadd.f32 0.0, %v4147
      %v4149 = vpop.f32.mrb[0].mxu0
      %4150 = vmatprep.mubr.bf16.mxu0 %v3930
      %4151 = vmatmul.mubr.bf16.gmra.mrb[0].mxu0 %v3920
      %v4152 = vpop.f32.mrb[0].mxu0
      %v4153 = vadd.f32 0.0, %v4152
      %v4154 = vpop.f32.mrb[0].mxu0
      %v4155 = vpop.f32.mrb[0].mxu0
      %v4156 = vadd.f32 0.0, %v4155
      %v4157 = vpop.f32.mrb[0].mxu0
      %4158 = vmatprep.mubr.bf16.mxu0 %v3931
      %4159 = vmatmul.mubr.bf16.gmra.mrb[0].mxu0 %v3921
      %v4160 = vpop.f32.mrb[0].mxu0
      %v4161 = vadd.f32 0.0, %v4160
      %v4162 = vpop.f32.mrb[0].mxu0
      %v4163 = vpop.f32.mrb[0].mxu0
      %v4164 = vadd.f32 0.0, %v4163
      %v4165 = vpop.f32.mrb[0].mxu0
      %4166 = vmatprep.mubr.bf16.mxu0 %v3932
      %4167 = vmatmul.mubr.bf16.gmra.mrb[0].mxu0 %v3922
      %v4168 = vpop.f32.mrb[0].mxu0
      %v4169 = vadd.f32 0.0, %v4168
      %v4170 = vpop.f32.mrb[0].mxu0
      %v4171 = vpop.f32.mrb[0].mxu0
      %v4172 = vadd.f32 0.0, %v4171
      %v4173 = vpop.f32.mrb[0].mxu0
      %4174 = vdwg.mxu0
      %v4175 = vadd.f32 %v3893, %v4097
      %v4176 = vadd.f32 %v3894, %v4100
      %v4177 = vadd.f32 %v3895, %v4105
      %v4178 = vadd.f32 %v3896, %v4108
      %v4179 = vadd.f32 %v3897, %v4113
      %v4180 = vadd.f32 %v3898, %v4116
      %v4181 = vadd.f32 %v3899, %v4121
      %v4182 = vadd.f32 %v3900, %v4124
      %v4183 = vadd.f32 %v3901, %v4129
      %v4184 = vadd.f32 %v3902, %v4132
      %v4185 = vadd.f32 %v3903, %v4137
      %v4186 = vadd.f32 %v3904, %v4140
      %v4187 = vadd.f32 %v3905, %v4145
      %v4188 = vadd.f32 %v3906, %v4148
      %v4189 = vadd.f32 %v3907, %v4153
      %v4190 = vadd.f32 %v3908, %v4156
      %v4191 = vadd.f32 %v3909, %v4161
      %v4192 = vadd.f32 %v3910, %v4164
      %v4193 = vadd.f32 %v3911, %v4169
      %v4194 = vadd.f32 %v3912, %v4172
      %v4195 = vld [vmem:[%s692 + $0x20] sm:$0xff]
      %v4196 = vld [vmem:[%s692 + $0x28] sm:$0xff]
      %v4197 = vld [vmem:[%s692 + $0x30] sm:$0xff]
      %v4198 = vld [vmem:[%s692 + $0x38] sm:$0xff]
      %v4199 = vld [vmem:[%s692 + $0x40] sm:$0xff]
      %v4200 = vld [vmem:[%s692 + $0x48] sm:$0xff]
      %v4201 = vld [vmem:[%s692 + $0x50] sm:$0xff]
      %v4202 = vld [vmem:[%s692 + $0x58] sm:$0xff]
      %v4203 = vld [vmem:[%s692 + $0x60] sm:$0xff]
      %v4204 = vld [vmem:[%s692 + $0x68] sm:$0xff]
      %v4205 = vld [vmem:[%s958 + $0x20] sm:$0xff]
      %v4206 = vld [vmem:[%s958 + $0x28] sm:$0xff]
      %v4207 = vld [vmem:[%s958 + $0x30] sm:$0xff]
      %v4208 = vld [vmem:[%s958 + $0x38] sm:$0xff]
      %v4209 = vld [vmem:[%s958 + $0x40] sm:$0xff]
      %v4210 = vld [vmem:[%s958 + $0x48] sm:$0xff]
      %v4211 = vld [vmem:[%s958 + $0x50] sm:$0xff]
      %v4212 = vld [vmem:[%s958 + $0x58] sm:$0xff]
      %v4213 = vld [vmem:[%s958 + $0x60] sm:$0xff]
      %v4214 = vld [vmem:[%s958 + $0x68] sm:$0xff]
      %s4215 = scalar_lea.vmem %s1, 1408
      %v4216 = vld [vmem:[%s4215] sm:$0xf]
      %v4217 = vld [vmem:[%s4215 + $0x4] sm:$0xf]
      %v4218 = vld [vmem:[%s4215 + $0x8] sm:$0xf]
      %v4219 = vld [vmem:[%s4215 + $0xc] sm:$0xf]
      %v4220 = vld [vmem:[%s4215 + $0x10] sm:$0xf]
      %v4221 = vld [vmem:[%s4215 + $0x14] sm:$0xf]
      %v4222 = vld [vmem:[%s4215 + $0x18] sm:$0xf]
      %v4223 = vld [vmem:[%s4215 + $0x1c] sm:$0xf]
      %v4224 = vld [vmem:[%s4215 + $0x20] sm:$0xf]
      %v4225 = vld [vmem:[%s4215 + $0x24] sm:$0xf]
      %v4226 = vld [vmem:[%s4215 + $0x28] sm:$0xf]
      %v4227 = vld [vmem:[%s4215 + $0x2c] sm:$0xf]
      %v4228 = vld [vmem:[%s4215 + $0x30] sm:$0xf]
      %v4229 = vld [vmem:[%s4215 + $0x34] sm:$0xf]
      %v4230 = vld [vmem:[%s4215 + $0x38] sm:$0xf]
      %v4231 = vld [vmem:[%s4215 + $0x3c] sm:$0xf]
      %v4232 = vld [vmem:[%s4215 + $0x40] sm:$0xf]
      %v4233 = vld [vmem:[%s4215 + $0x44] sm:$0xf]
      %v4234 = vld [vmem:[%s4215 + $0x48] sm:$0xf]
      %v4235 = vld [vmem:[%s4215 + $0x4c] sm:$0xf]
      %v4236 = vld [vmem:[%s4215 + $0x50] sm:$0xf]
      %v4237 = vld [vmem:[%s4215 + $0x54] sm:$0xf]
      %v4238 = vld [vmem:[%s4215 + $0x58] sm:$0xf]
      %v4239 = vld [vmem:[%s4215 + $0x5c] sm:$0xf]
      %v4240 = vld [vmem:[%s4215 + $0x60] sm:$0xf]
      %v4241 = vld [vmem:[%s4215 + $0x64] sm:$0xf]
      %v4242 = vld [vmem:[%s4215 + $0x68] sm:$0xf]
      %v4243 = vld [vmem:[%s4215 + $0x6c] sm:$0xf]
      %v4244 = vld [vmem:[%s4215 + $0x70] sm:$0xf]
      %v4245 = vld [vmem:[%s4215 + $0x74] sm:$0xf]
      %v4246 = vld [vmem:[%s4215 + $0x78] sm:$0xf]
      %v4247 = vld [vmem:[%s4215 + $0x7c] sm:$0xf]
      %v4280 = vunpack.c.l.b16 %v4216
      %v4281 = vunpack.c.l.b16 %v4217
      %v4282 = vunpack.c.l.b16 %v4218
      %v4283 = vunpack.c.l.b16 %v4219
      %v4284 = vunpack.c.l.b16 %v4220
      %v4285 = vunpack.c.l.b16 %v4221
      %v4286 = vunpack.c.l.b16 %v4222
      %v4287 = vunpack.c.l.b16 %v4223
      %v4288 = vunpack.c.l.b16 %v4224
      %v4289 = vunpack.c.l.b16 %v4225
      %v4290 = vunpack.c.l.b16 %v4226
      %v4291 = vunpack.c.l.b16 %v4227
      %v4292 = vunpack.c.l.b16 %v4228
      %v4293 = vunpack.c.l.b16 %v4229
      %v4294 = vunpack.c.l.b16 %v4230
      %v4295 = vunpack.c.l.b16 %v4231
      %v4296 = vunpack.c.l.b16 %v4232
      %v4297 = vunpack.c.l.b16 %v4233
      %v4298 = vunpack.c.l.b16 %v4234
      %v4299 = vunpack.c.l.b16 %v4235
      %v4300 = vunpack.c.l.b16 %v4236
      %v4301 = vunpack.c.l.b16 %v4237
      %v4302 = vunpack.c.l.b16 %v4238
      %v4303 = vunpack.c.l.b16 %v4239
      %v4304 = vunpack.c.l.b16 %v4240
      %v4305 = vunpack.c.l.b16 %v4241
      %v4306 = vunpack.c.l.b16 %v4242
      %v4307 = vunpack.c.l.b16 %v4243
      %v4308 = vunpack.c.l.b16 %v4244
      %v4309 = vunpack.c.l.b16 %v4245
      %v4310 = vunpack.c.l.b16 %v4246
      %v4311 = vunpack.c.l.b16 %v4247
      %v4312 = vpack.c.b16 %v4281, %v4280
      %v4313 = vpack.c.b16 %v4283, %v4282
      %v4314 = vpack.c.b16 %v4285, %v4284
      %v4315 = vpack.c.b16 %v4287, %v4286
      %v4316 = vpack.c.b16 %v4289, %v4288
      %v4317 = vpack.c.b16 %v4291, %v4290
      %v4318 = vpack.c.b16 %v4293, %v4292
      %v4319 = vpack.c.b16 %v4295, %v4294
      %v4320 = vpack.c.b16 %v4297, %v4296
      %v4321 = vpack.c.b16 %v4299, %v4298
      %v4322 = vpack.c.b16 %v4301, %v4300
      %v4323 = vpack.c.b16 %v4303, %v4302
      %v4324 = vpack.c.b16 %v4305, %v4304
      %v4325 = vpack.c.b16 %v4307, %v4306
      %v4326 = vpack.c.b16 %v4309, %v4308
      %v4327 = vpack.c.b16 %v4311, %v4310
      %4344 = vmatprep.subr.bf16.mxu0 0
      %4345 = vmatpush1.bf16.msra.mxu0 %v4312
      %4346 = vmatprep.subr.bf16.mxu0 0
      %4347 = vmatpush1.bf16.msra.mxu0 %v4313
      %4348 = vmatprep.subr.bf16.mxu0 0
      %4349 = vmatpush1.bf16.msra.mxu0 %v4314
      %4350 = vmatprep.subr.bf16.mxu0 0
      %4351 = vmatpush1.bf16.msra.mxu0 %v4315
      %4352 = vmatprep.subr.bf16.mxu0 0
      %4353 = vmatpush1.bf16.msra.mxu0 %v4316
      %4354 = vmatprep.subr.bf16.mxu0 0
      %4355 = vmatpush1.bf16.msra.mxu0 %v4317
      %4356 = vmatprep.subr.bf16.mxu0 0
      %4357 = vmatpush1.bf16.msra.mxu0 %v4318
      %4358 = vmatprep.subr.bf16.mxu0 0
      %4359 = vmatpush1.bf16.msra.mxu0 %v4319
      %4360 = vmatprep.subr.bf16.mxu0 0
      %4361 = vmatpush1.bf16.msra.mxu0 %v4320
      %4362 = vmatprep.subr.bf16.mxu0 0
      %4363 = vmatpush1.bf16.msra.mxu0 %v4321
      %4364 = vmatprep.subr.bf16.mxu0 0
      %4365 = vmatpush1.bf16.msra.mxu0 %v4322
      %4366 = vmatprep.subr.bf16.mxu0 0
      %4367 = vmatpush1.bf16.msra.mxu0 %v4323
      %4368 = vmatprep.subr.bf16.mxu0 0
      %4369 = vmatpush1.bf16.msra.mxu0 %v4324
      %4370 = vmatprep.subr.bf16.mxu0 0
      %4371 = vmatpush1.bf16.msra.mxu0 %v4325
      %4372 = vmatprep.subr.bf16.mxu0 0
      %4373 = vmatpush1.bf16.msra.mxu0 %v4326
      %4374 = vmatprep.subr.bf16.mxu0 0
      %4375 = vmatpush1.bf16.msra.mxu0 %v4327
      %4376 = vmatprep.mubr.bf16.mxu0 %v4205
      %4377 = vmatmul.mubr.bf16.gmra.mrb[0].mxu0 %v4195
      %v4378 = vpop.f32.mrb[0].mxu0
      %v4379 = vadd.f32 0.0, %v4378
      %v4380 = vpop.f32.mrb[0].mxu0
      %v4381 = vpop.f32.mrb[0].mxu0
      %v4382 = vadd.f32 0.0, %v4381
      %v4383 = vpop.f32.mrb[0].mxu0
      %4384 = vmatprep.mubr.bf16.mxu0 %v4206
      %4385 = vmatmul.mubr.bf16.gmra.mrb[0].mxu0 %v4196
      %v4386 = vpop.f32.mrb[0].mxu0
      %v4387 = vadd.f32 0.0, %v4386
      %v4388 = vpop.f32.mrb[0].mxu0
      %v4389 = vpop.f32.mrb[0].mxu0
      %v4390 = vadd.f32 0.0, %v4389
      %v4391 = vpop.f32.mrb[0].mxu0
      %4392 = vmatprep.mubr.bf16.mxu0 %v4207
      %4393 = vmatmul.mubr.bf16.gmra.mrb[0].mxu0 %v4197
      %v4394 = vpop.f32.mrb[0].mxu0
      %v4395 = vadd.f32 0.0, %v4394
      %v4396 = vpop.f32.mrb[0].mxu0
      %v4397 = vpop.f32.mrb[0].mxu0
      %v4398 = vadd.f32 0.0, %v4397
      %v4399 = vpop.f32.mrb[0].mxu0
      %4400 = vmatprep.mubr.bf16.mxu0 %v4208
      %4401 = vmatmul.mubr.bf16.gmra.mrb[0].mxu0 %v4198
      %v4402 = vpop.f32.mrb[0].mxu0
      %v4403 = vadd.f32 0.0, %v4402
      %v4404 = vpop.f32.mrb[0].mxu0
      %v4405 = vpop.f32.mrb[0].mxu0
      %v4406 = vadd.f32 0.0, %v4405
      %v4407 = vpop.f32.mrb[0].mxu0
      %4408 = vmatprep.mubr.bf16.mxu0 %v4209
      %4409 = vmatmul.mubr.bf16.gmra.mrb[0].mxu0 %v4199
      %v4410 = vpop.f32.mrb[0].mxu0
      %v4411 = vadd.f32 0.0, %v4410
      %v4412 = vpop.f32.mrb[0].mxu0
      %v4413 = vpop.f32.mrb[0].mxu0
      %v4414 = vadd.f32 0.0, %v4413
      %v4415 = vpop.f32.mrb[0].mxu0
      %4416 = vmatprep.mubr.bf16.mxu0 %v4210
      %4417 = vmatmul.mubr.bf16.gmra.mrb[0].mxu0 %v4200
      %v4418 = vpop.f32.mrb[0].mxu0
      %v4419 = vadd.f32 0.0, %v4418
      %v4420 = vpop.f32.mrb[0].mxu0
      %v4421 = vpop.f32.mrb[0].mxu0
      %v4422 = vadd.f32 0.0, %v4421
      %v4423 = vpop.f32.mrb[0].mxu0
      %4424 = vmatprep.mubr.bf16.mxu0 %v4211
      %4425 = vmatmul.mubr.bf16.gmra.mrb[0].mxu0 %v4201
      %v4426 = vpop.f32.mrb[0].mxu0
      %v4427 = vadd.f32 0.0, %v4426
      %v4428 = vpop.f32.mrb[0].mxu0
      %v4429 = vpop.f32.mrb[0].mxu0
      %v4430 = vadd.f32 0.0, %v4429
      %v4431 = vpop.f32.mrb[0].mxu0
      %4432 = vmatprep.mubr.bf16.mxu0 %v4212
      %4433 = vmatmul.mubr.bf16.gmra.mrb[0].mxu0 %v4202
      %v4434 = vpop.f32.mrb[0].mxu0
      %v4435 = vadd.f32 0.0, %v4434
      %v4436 = vpop.f32.mrb[0].mxu0
      %v4437 = vpop.f32.mrb[0].mxu0
      %v4438 = vadd.f32 0.0, %v4437
      %v4439 = vpop.f32.mrb[0].mxu0
      %4440 = vmatprep.mubr.bf16.mxu0 %v4213
      %4441 = vmatmul.mubr.bf16.gmra.mrb[0].mxu0 %v4203
      %v4442 = vpop.f32.mrb[0].mxu0
      %v4443 = vadd.f32 0.0, %v4442
      %v4444 = vpop.f32.mrb[0].mxu0
      %v4445 = vpop.f32.mrb[0].mxu0
      %v4446 = vadd.f32 0.0, %v4445
      %v4447 = vpop.f32.mrb[0].mxu0
      %4448 = vmatprep.mubr.bf16.mxu0 %v4214
      %4449 = vmatmul.mubr.bf16.gmra.mrb[0].mxu0 %v4204
      %v4450 = vpop.f32.mrb[0].mxu0
      %v4451 = vadd.f32 0.0, %v4450
      %v4452 = vpop.f32.mrb[0].mxu0
      %v4453 = vpop.f32.mrb[0].mxu0
      %v4454 = vadd.f32 0.0, %v4453
      %v4455 = vpop.f32.mrb[0].mxu0
      %4456 = vdwg.mxu0
      %v4457 = vadd.f32 %v4175, %v4379
      %v4458 = vadd.f32 %v4176, %v4382
      %v4459 = vadd.f32 %v4177, %v4387
      %v4460 = vadd.f32 %v4178, %v4390
      %v4461 = vadd.f32 %v4179, %v4395
      %v4462 = vadd.f32 %v4180, %v4398
      %v4463 = vadd.f32 %v4181, %v4403
      %v4464 = vadd.f32 %v4182, %v4406
      %v4465 = vadd.f32 %v4183, %v4411
      %v4466 = vadd.f32 %v4184, %v4414
      %v4467 = vadd.f32 %v4185, %v4419
      %v4468 = vadd.f32 %v4186, %v4422
      %v4469 = vadd.f32 %v4187, %v4427
      %v4470 = vadd.f32 %v4188, %v4430
      %v4471 = vadd.f32 %v4189, %v4435
      %v4472 = vadd.f32 %v4190, %v4438
      %v4473 = vadd.f32 %v4191, %v4443
      %v4474 = vadd.f32 %v4192, %v4446
      %v4475 = vadd.f32 %v4193, %v4451
      %v4476 = vadd.f32 %v4194, %v4454
      %v4477 = vld [vmem:[%s1119 + $0x20] sm:$0xff]
      %v4478 = vld [vmem:[%s1119 + $0x28] sm:$0xff]
      %v4479 = vld [vmem:[%s1119 + $0x30] sm:$0xff]
      %v4480 = vld [vmem:[%s1119 + $0x38] sm:$0xff]
      %v4481 = vld [vmem:[%s1119 + $0x40] sm:$0xff]
      %v4482 = vld [vmem:[%s1119 + $0x48] sm:$0xff]
      %v4483 = vld [vmem:[%s1119 + $0x50] sm:$0xff]
      %v4484 = vld [vmem:[%s1119 + $0x58] sm:$0xff]
      %v4485 = vld [vmem:[%s1119 + $0x60] sm:$0xff]
      %v4486 = vld [vmem:[%s1119 + $0x68] sm:$0xff]
      %s4487 = scalar_lea.vmem %s1, 1536
      %v4488 = vld [vmem:[%s4487] sm:$0xf]
      %v4489 = vld [vmem:[%s4487 + $0x4] sm:$0xf]
      %v4490 = vld [vmem:[%s4487 + $0x8] sm:$0xf]
      %v4491 = vld [vmem:[%s4487 + $0xc] sm:$0xf]
      %v4492 = vld [vmem:[%s4487 + $0x10] sm:$0xf]
      %v4493 = vld [vmem:[%s4487 + $0x14] sm:$0xf]
      %v4494 = vld [vmem:[%s4487 + $0x18] sm:$0xf]
      %v4495 = vld [vmem:[%s4487 + $0x1c] sm:$0xf]
      %v4496 = vld [vmem:[%s4487 + $0x20] sm:$0xf]
      %v4497 = vld [vmem:[%s4487 + $0x24] sm:$0xf]
      %v4498 = vld [vmem:[%s4487 + $0x28] sm:$0xf]
      %v4499 = vld [vmem:[%s4487 + $0x2c] sm:$0xf]
      %v4500 = vld [vmem:[%s4487 + $0x30] sm:$0xf]
      %v4501 = vld [vmem:[%s4487 + $0x34] sm:$0xf]
      %v4502 = vld [vmem:[%s4487 + $0x38] sm:$0xf]
      %v4503 = vld [vmem:[%s4487 + $0x3c] sm:$0xf]
      %v4504 = vld [vmem:[%s4487 + $0x40] sm:$0xf]
      %v4505 = vld [vmem:[%s4487 + $0x44] sm:$0xf]
      %v4506 = vld [vmem:[%s4487 + $0x48] sm:$0xf]
      %v4507 = vld [vmem:[%s4487 + $0x4c] sm:$0xf]
      %v4508 = vld [vmem:[%s4487 + $0x50] sm:$0xf]
      %v4509 = vld [vmem:[%s4487 + $0x54] sm:$0xf]
      %v4510 = vld [vmem:[%s4487 + $0x58] sm:$0xf]
      %v4511 = vld [vmem:[%s4487 + $0x5c] sm:$0xf]
      %v4512 = vld [vmem:[%s4487 + $0x60] sm:$0xf]
      %v4513 = vld [vmem:[%s4487 + $0x64] sm:$0xf]
      %v4514 = vld [vmem:[%s4487 + $0x68] sm:$0xf]
      %v4515 = vld [vmem:[%s4487 + $0x6c] sm:$0xf]
      %v4516 = vld [vmem:[%s4487 + $0x70] sm:$0xf]
      %v4517 = vld [vmem:[%s4487 + $0x74] sm:$0xf]
      %v4518 = vld [vmem:[%s4487 + $0x78] sm:$0xf]
      %v4519 = vld [vmem:[%s4487 + $0x7c] sm:$0xf]
      %v4552 = vunpack.c.l.b16 %v4488
      %v4553 = vunpack.c.l.b16 %v4489
      %v4554 = vunpack.c.l.b16 %v4490
      %v4555 = vunpack.c.l.b16 %v4491
      %v4556 = vunpack.c.l.b16 %v4492
      %v4557 = vunpack.c.l.b16 %v4493
      %v4558 = vunpack.c.l.b16 %v4494
      %v4559 = vunpack.c.l.b16 %v4495
      %v4560 = vunpack.c.l.b16 %v4496
      %v4561 = vunpack.c.l.b16 %v4497
      %v4562 = vunpack.c.l.b16 %v4498
      %v4563 = vunpack.c.l.b16 %v4499
      %v4564 = vunpack.c.l.b16 %v4500
      %v4565 = vunpack.c.l.b16 %v4501
      %v4566 = vunpack.c.l.b16 %v4502
      %v4567 = vunpack.c.l.b16 %v4503
      %v4568 = vunpack.c.l.b16 %v4504
      %v4569 = vunpack.c.l.b16 %v4505
      %v4570 = vunpack.c.l.b16 %v4506
      %v4571 = vunpack.c.l.b16 %v4507
      %v4572 = vunpack.c.l.b16 %v4508
      %v4573 = vunpack.c.l.b16 %v4509
      %v4574 = vunpack.c.l.b16 %v4510
      %v4575 = vunpack.c.l.b16 %v4511
      %v4576 = vunpack.c.l.b16 %v4512
      %v4577 = vunpack.c.l.b16 %v4513
      %v4578 = vunpack.c.l.b16 %v4514
      %v4579 = vunpack.c.l.b16 %v4515
      %v4580 = vunpack.c.l.b16 %v4516
      %v4581 = vunpack.c.l.b16 %v4517
      %v4582 = vunpack.c.l.b16 %v4518
      %v4583 = vunpack.c.l.b16 %v4519
      %v4584 = vpack.c.b16 %v4553, %v4552
      %v4585 = vpack.c.b16 %v4555, %v4554
      %v4586 = vpack.c.b16 %v4557, %v4556
      %v4587 = vpack.c.b16 %v4559, %v4558
      %v4588 = vpack.c.b16 %v4561, %v4560
      %v4589 = vpack.c.b16 %v4563, %v4562
      %v4590 = vpack.c.b16 %v4565, %v4564
      %v4591 = vpack.c.b16 %v4567, %v4566
      %v4592 = vpack.c.b16 %v4569, %v4568
      %v4593 = vpack.c.b16 %v4571, %v4570
      %v4594 = vpack.c.b16 %v4573, %v4572
      %v4595 = vpack.c.b16 %v4575, %v4574
      %v4596 = vpack.c.b16 %v4577, %v4576
      %v4597 = vpack.c.b16 %v4579, %v4578
      %v4598 = vpack.c.b16 %v4581, %v4580
      %v4599 = vpack.c.b16 %v4583, %v4582
      %4616 = vmatprep.subr.bf16.mxu0 0
      %4617 = vmatpush1.bf16.msra.mxu0 %v4584
      %4618 = vmatprep.subr.bf16.mxu0 0
      %4619 = vmatpush1.bf16.msra.mxu0 %v4585
      %4620 = vmatprep.subr.bf16.mxu0 0
      %4621 = vmatpush1.bf16.msra.mxu0 %v4586
      %4622 = vmatprep.subr.bf16.mxu0 0
      %4623 = vmatpush1.bf16.msra.mxu0 %v4587
      %4624 = vmatprep.subr.bf16.mxu0 0
      %4625 = vmatpush1.bf16.msra.mxu0 %v4588
      %4626 = vmatprep.subr.bf16.mxu0 0
      %4627 = vmatpush1.bf16.msra.mxu0 %v4589
      %4628 = vmatprep.subr.bf16.mxu0 0
      %4629 = vmatpush1.bf16.msra.mxu0 %v4590
      %4630 = vmatprep.subr.bf16.mxu0 0
      %4631 = vmatpush1.bf16.msra.mxu0 %v4591
      %4632 = vmatprep.subr.bf16.mxu0 0
      %4633 = vmatpush1.bf16.msra.mxu0 %v4592
      %4634 = vmatprep.subr.bf16.mxu0 0
      %4635 = vmatpush1.bf16.msra.mxu0 %v4593
      %4636 = vmatprep.subr.bf16.mxu0 0
      %4637 = vmatpush1.bf16.msra.mxu0 %v4594
      %4638 = vmatprep.subr.bf16.mxu0 0
      %4639 = vmatpush1.bf16.msra.mxu0 %v4595
      %4640 = vmatprep.subr.bf16.mxu0 0
      %4641 = vmatpush1.bf16.msra.mxu0 %v4596
      %4642 = vmatprep.subr.bf16.mxu0 0
      %4643 = vmatpush1.bf16.msra.mxu0 %v4597
      %4644 = vmatprep.subr.bf16.mxu0 0
      %4645 = vmatpush1.bf16.msra.mxu0 %v4598
      %4646 = vmatprep.subr.bf16.mxu0 0
      %4647 = vmatpush1.bf16.msra.mxu0 %v4599
      %4648 = vmatprep.mubr.bf16.mxu0 %v4477
      %4649 = vmatmul.mubr.bf16.gmra.mrb[0].mxu0 %v4477
      %v4650 = vpop.f32.mrb[0].mxu0
      %v4651 = vadd.f32 0.0, %v4650
      %v4652 = vpop.f32.mrb[0].mxu0
      %v4653 = vpop.f32.mrb[0].mxu0
      %v4654 = vadd.f32 0.0, %v4653
      %v4655 = vpop.f32.mrb[0].mxu0
      %4656 = vmatprep.mubr.bf16.mxu0 %v4478
      %4657 = vmatmul.mubr.bf16.gmra.mrb[0].mxu0 %v4478
      %v4658 = vpop.f32.mrb[0].mxu0
      %v4659 = vadd.f32 0.0, %v4658
      %v4660 = vpop.f32.mrb[0].mxu0
      %v4661 = vpop.f32.mrb[0].mxu0
      %v4662 = vadd.f32 0.0, %v4661
      %v4663 = vpop.f32.mrb[0].mxu0
      %4664 = vmatprep.mubr.bf16.mxu0 %v4479
      %4665 = vmatmul.mubr.bf16.gmra.mrb[0].mxu0 %v4479
      %v4666 = vpop.f32.mrb[0].mxu0
      %v4667 = vadd.f32 0.0, %v4666
      %v4668 = vpop.f32.mrb[0].mxu0
      %v4669 = vpop.f32.mrb[0].mxu0
      %v4670 = vadd.f32 0.0, %v4669
      %v4671 = vpop.f32.mrb[0].mxu0
      %4672 = vmatprep.mubr.bf16.mxu0 %v4480
      %4673 = vmatmul.mubr.bf16.gmra.mrb[0].mxu0 %v4480
      %v4674 = vpop.f32.mrb[0].mxu0
      %v4675 = vadd.f32 0.0, %v4674
      %v4676 = vpop.f32.mrb[0].mxu0
      %v4677 = vpop.f32.mrb[0].mxu0
      %v4678 = vadd.f32 0.0, %v4677
      %v4679 = vpop.f32.mrb[0].mxu0
      %4680 = vmatprep.mubr.bf16.mxu0 %v4481
      %4681 = vmatmul.mubr.bf16.gmra.mrb[0].mxu0 %v4481
      %v4682 = vpop.f32.mrb[0].mxu0
      %v4683 = vadd.f32 0.0, %v4682
      %v4684 = vpop.f32.mrb[0].mxu0
      %v4685 = vpop.f32.mrb[0].mxu0
      %v4686 = vadd.f32 0.0, %v4685
      %v4687 = vpop.f32.mrb[0].mxu0
      %4688 = vmatprep.mubr.bf16.mxu0 %v4482
      %4689 = vmatmul.mubr.bf16.gmra.mrb[0].mxu0 %v4482
      %v4690 = vpop.f32.mrb[0].mxu0
      %v4691 = vadd.f32 0.0, %v4690
      %v4692 = vpop.f32.mrb[0].mxu0
      %v4693 = vpop.f32.mrb[0].mxu0
      %v4694 = vadd.f32 0.0, %v4693
      %v4695 = vpop.f32.mrb[0].mxu0
      %4696 = vmatprep.mubr.bf16.mxu0 %v4483
      %4697 = vmatmul.mubr.bf16.gmra.mrb[0].mxu0 %v4483
      %v4698 = vpop.f32.mrb[0].mxu0
      %v4699 = vadd.f32 0.0, %v4698
      %v4700 = vpop.f32.mrb[0].mxu0
      %v4701 = vpop.f32.mrb[0].mxu0
      %v4702 = vadd.f32 0.0, %v4701
      %v4703 = vpop.f32.mrb[0].mxu0
      %4704 = vmatprep.mubr.bf16.mxu0 %v4484
      %4705 = vmatmul.mubr.bf16.gmra.mrb[0].mxu0 %v4484
      %v4706 = vpop.f32.mrb[0].mxu0
      %v4707 = vadd.f32 0.0, %v4706
      %v4708 = vpop.f32.mrb[0].mxu0
      %v4709 = vpop.f32.mrb[0].mxu0
      %v4710 = vadd.f32 0.0, %v4709
      %v4711 = vpop.f32.mrb[0].mxu0
      %4712 = vmatprep.mubr.bf16.mxu0 %v4485
      %4713 = vmatmul.mubr.bf16.gmra.mrb[0].mxu0 %v4485
      %v4714 = vpop.f32.mrb[0].mxu0
      %v4715 = vadd.f32 0.0, %v4714
      %v4716 = vpop.f32.mrb[0].mxu0
      %v4717 = vpop.f32.mrb[0].mxu0
      %v4718 = vadd.f32 0.0, %v4717
      %v4719 = vpop.f32.mrb[0].mxu0
      %4720 = vmatprep.mubr.bf16.mxu0 %v4486
      %4721 = vmatmul.mubr.bf16.gmra.mrb[0].mxu0 %v4486
      %v4722 = vpop.f32.mrb[0].mxu0
      %v4723 = vadd.f32 0.0, %v4722
      %v4724 = vpop.f32.mrb[0].mxu0
      %v4725 = vpop.f32.mrb[0].mxu0
      %v4726 = vadd.f32 0.0, %v4725
      %v4727 = vpop.f32.mrb[0].mxu0
      %4728 = vdwg.mxu0
      %v4729 = vadd.f32 %v4457, %v4651
      %v4730 = vadd.f32 %v4458, %v4654
      %v4731 = vadd.f32 %v4459, %v4659
      %v4732 = vadd.f32 %v4460, %v4662
      %v4733 = vadd.f32 %v4461, %v4667
      %v4734 = vadd.f32 %v4462, %v4670
      %v4735 = vadd.f32 %v4463, %v4675
      %v4736 = vadd.f32 %v4464, %v4678
      %v4737 = vadd.f32 %v4465, %v4683
      %v4738 = vadd.f32 %v4466, %v4686
      %v4739 = vadd.f32 %v4467, %v4691
      %v4740 = vadd.f32 %v4468, %v4694
      %v4741 = vadd.f32 %v4469, %v4699
      %v4742 = vadd.f32 %v4470, %v4702
      %v4743 = vadd.f32 %v4471, %v4707
      %v4744 = vadd.f32 %v4472, %v4710
      %v4745 = vadd.f32 %v4473, %v4715
      %v4746 = vadd.f32 %v4474, %v4718
      %v4747 = vadd.f32 %v4475, %v4723
      %v4748 = vadd.f32 %v4476, %v4726
      %v4749 = vld [vmem:[%s2] sm:$0x1]
      %v4751 = vlaneseq
      %v4752 = vshrl.u32 %v4751, 7
      %v4753 = vsub.s32 0, %v4752
      %v4754 = vrot.slane %v4749, %v4753
      %v4756 = vadd.f32 %v4729, %v4754
      %v4757 = vadd.f32 %v4730, %v4754
      %v4758 = vadd.f32 %v4731, %v4754
      %v4759 = vadd.f32 %v4732, %v4754
      %v4760 = vadd.f32 %v4733, %v4754
      %v4761 = vadd.f32 %v4734, %v4754
      %v4762 = vadd.f32 %v4735, %v4754
      %v4763 = vadd.f32 %v4736, %v4754
      %v4764 = vadd.f32 %v4737, %v4754
      %v4765 = vadd.f32 %v4738, %v4754
      %v4766 = vadd.f32 %v4739, %v4754
      %v4767 = vadd.f32 %v4740, %v4754
      %v4768 = vadd.f32 %v4741, %v4754
      %v4769 = vadd.f32 %v4742, %v4754
      %v4770 = vadd.f32 %v4743, %v4754
      %v4771 = vadd.f32 %v4744, %v4754
      %v4772 = vadd.f32 %v4745, %v4754
      %v4773 = vadd.f32 %v4746, %v4754
      %v4774 = vadd.f32 %v4747, %v4754
      %v4775 = vadd.f32 %v4748, %v4754
      %v4776 = vmax.f32 %v4756, 0.0
      %v4777 = vmax.f32 %v4757, 0.0
      %v4778 = vmax.f32 %v4758, 0.0
      %v4779 = vmax.f32 %v4759, 0.0
      %v4780 = vmax.f32 %v4760, 0.0
      %v4781 = vmax.f32 %v4761, 0.0
      %v4782 = vmax.f32 %v4762, 0.0
      %v4783 = vmax.f32 %v4763, 0.0
      %v4784 = vmax.f32 %v4764, 0.0
      %v4785 = vmax.f32 %v4765, 0.0
      %v4786 = vmax.f32 %v4766, 0.0
      %v4787 = vmax.f32 %v4767, 0.0
      %v4788 = vmax.f32 %v4768, 0.0
      %v4789 = vmax.f32 %v4769, 0.0
      %v4790 = vmax.f32 %v4770, 0.0
      %v4791 = vmax.f32 %v4771, 0.0
      %v4792 = vmax.f32 %v4772, 0.0
      %v4793 = vmax.f32 %v4773, 0.0
      %v4794 = vmax.f32 %v4774, 0.0
      %v4795 = vmax.f32 %v4775, 0.0
      %4796 = vst [vmem:[#allocation3] sm:$0xff] %v4776
      %4797 = vst [vmem:[#allocation3 + $0x8] sm:$0xff] %v4777
      %4798 = vst [vmem:[#allocation3 + $0x10] sm:$0xff] %v4778
      %4799 = vst [vmem:[#allocation3 + $0x18] sm:$0xff] %v4779
      %4800 = vst [vmem:[#allocation3 + $0x20] sm:$0xff] %v4780
      %4801 = vst [vmem:[#allocation3 + $0x28] sm:$0xff] %v4781
      %4802 = vst [vmem:[#allocation3 + $0x30] sm:$0xff] %v4782
      %4803 = vst [vmem:[#allocation3 + $0x38] sm:$0xff] %v4783
      %4804 = vst [vmem:[#allocation3 + $0x40] sm:$0xff] %v4784
      %4805 = vst [vmem:[#allocation3 + $0x48] sm:$0xff] %v4785
      %4806 = vst [vmem:[#allocation3 + $0x50] sm:$0xff] %v4786
      %4807 = vst [vmem:[#allocation3 + $0x58] sm:$0xff] %v4787
      %4808 = vst [vmem:[#allocation3 + $0x60] sm:$0xff] %v4788
      %4809 = vst [vmem:[#allocation3 + $0x68] sm:$0xff] %v4789
      %4810 = vst [vmem:[#allocation3 + $0x70] sm:$0xff] %v4790
      %4811 = vst [vmem:[#allocation3 + $0x78] sm:$0xff] %v4791
      %4812 = vst [vmem:[#allocation3 + $0x80] sm:$0xff] %v4792
      %4813 = vst [vmem:[#allocation3 + $0x88] sm:$0xff] %v4793
      %4814 = vst [vmem:[#allocation3 + $0x90] sm:$0xff] %v4794
      %4815 = vst [vmem:[#allocation3 + $0x98] sm:$0xff] %v4795
      %v4816 = vld [vmem:[#allocation3] ss:$2 sm:$0x1f]
      %s4817 = scalar_lea.vmem [#allocation3], 1
      %v4818 = vld [vmem:[%s4817] ss:$2 sm:$0x1f]
      %s4819 = scalar_lea.vmem [#allocation3], 16
      %v4820 = vld [vmem:[%s4819] ss:$2 sm:$0x1f]
      %s4821 = scalar_lea.vmem [#allocation3], 17
      %v4822 = vld [vmem:[%s4821] ss:$2 sm:$0x1f]
      %v4823 = vmax.f32 %v4816, %v4818
      %v4824 = vmax.f32 %v4820, %v4822
      %v4825 = vmax.f32 %v4823, %v4824
      %s4826 = scalar_lea.vmem [#allocation3], 32
      %v4827 = vld [vmem:[%s4826] ss:$2 sm:$0x1f]
      %s4828 = scalar_lea.vmem [#allocation3], 33
      %v4829 = vld [vmem:[%s4828] ss:$2 sm:$0x1f]
      %s4830 = scalar_lea.vmem [#allocation3], 48
      %v4831 = vld [vmem:[%s4830] ss:$2 sm:$0x1f]
      %s4832 = scalar_lea.vmem [#allocation3], 49
      %v4833 = vld [vmem:[%s4832] ss:$2 sm:$0x1f]
      %v4834 = vmax.f32 %v4827, %v4829
      %v4835 = vmax.f32 %v4831, %v4833
      %v4836 = vmax.f32 %v4834, %v4835
      %s4837 = scalar_lea.vmem [#allocation3], 64
      %v4838 = vld [vmem:[%s4837] ss:$2 sm:$0x1f]
      %s4839 = scalar_lea.vmem [#allocation3], 65
      %v4840 = vld [vmem:[%s4839] ss:$2 sm:$0x1f]
      %s4841 = scalar_lea.vmem [#allocation3], 80
      %v4842 = vld [vmem:[%s4841] ss:$2 sm:$0x1f]
      %s4843 = scalar_lea.vmem [#allocation3], 81
      %v4844 = vld [vmem:[%s4843] ss:$2 sm:$0x1f]
      %v4845 = vmax.f32 %v4838, %v4840
      %v4846 = vmax.f32 %v4842, %v4844
      %v4847 = vmax.f32 %v4845, %v4846
      %s4848 = scalar_lea.vmem [#allocation3], 96
      %v4849 = vld [vmem:[%s4848] ss:$2 sm:$0x1f]
      %s4850 = scalar_lea.vmem [#allocation3], 97
      %v4851 = vld [vmem:[%s4850] ss:$2 sm:$0x1f]
      %s4852 = scalar_lea.vmem [#allocation3], 112
      %v4853 = vld [vmem:[%s4852] ss:$2 sm:$0x1f]
      %s4854 = scalar_lea.vmem [#allocation3], 113
      %v4855 = vld [vmem:[%s4854] ss:$2 sm:$0x1f]
      %v4856 = vmax.f32 %v4849, %v4851
      %v4857 = vmax.f32 %v4853, %v4855
      %v4858 = vmax.f32 %v4856, %v4857
      %s4859 = scalar_lea.vmem [#allocation3], 128
      %v4860 = vld [vmem:[%s4859] ss:$2 sm:$0x1f]
      %s4861 = scalar_lea.vmem [#allocation3], 129
      %v4862 = vld [vmem:[%s4861] ss:$2 sm:$0x1f]
      %s4863 = scalar_lea.vmem [#allocation3], 144
      %v4864 = vld [vmem:[%s4863] ss:$2 sm:$0x1f]
      %s4865 = scalar_lea.vmem [#allocation3], 145
      %v4866 = vld [vmem:[%s4865] ss:$2 sm:$0x1f]
      %v4867 = vmax.f32 %v4860, %v4862
      %v4868 = vmax.f32 %v4864, %v4866
      %v4869 = vmax.f32 %v4867, %v4868
      %v4871 = vrot.slane %v4836, 3
      %v4874 = vrot.slane %v4847, 6
      %v4877 = vrot.slane %v4858, 1
      %v4880 = vrot.slane %v4869, 4
      %vm4882 = vcmask 1044480
      %v4883 = vsel %vm4882, %v4825, %v4871
      %vm4884 = vcmask 1041408
      %v4885 = vsel %vm4884, %v4871, %v4874
      %vm4886 = vcmask 1046528
      %v4887 = vsel %vm4886, %v4885, %v4877
      %vm4888 = vcmask 1043456
      %v4889 = vsel %vm4888, %v4877, %v4880
      %vm4890 = vcmask 1040384
      %v4891 = vsel %vm4890, %v4880, 0.0
      %v4892 = vpack.c.bf16 %v4887, %v4883
      %v4893 = vpack.c.bf16 %v4891, %v4889
      %v4896 = vunpack.c.l.b16 %v4892
      %v4897 = vunpack.c.h.b16 %v4892
      %v4898 = vunpack.c.l.b16 %v4893
      %v4899 = vunpack.c.h.b16 %v4893
      %v4900 = vpack.c.b16 %v4896, %v4896
      %v4901 = vpack.c.b16 %v4897, %v4897
      %v4902 = vpack.c.b16 %v4898, %v4898
      %v4903 = vpack.c.b16 %v4899, %v4899
      %4908 = vst [vmem:[%s170] sm:$0xf] %v4900
      %4909 = vst [vmem:[%s170 + $0x4] sm:$0xf] %v4901
      %4910 = vst [vmem:[%s170 + $0x8] sm:$0xf] %v4902
      %4911 = vst [vmem:[%s170 + $0xc] sm:$0xf] %v4903
      %p4912 = scmp.lt.s32.totalorder %s14, 1
      %s4913 = scalar_select %p4912, %s14, 1
      %s4914 = smul.addr %s4913, 4
      %s4915 = smul.addr %s4914, 4
      %s4916 = scalar_lea.vmem %s3, %s4915
      // Predicated region
      $region33: #{net_forward.4} parent=31 // pred_check
        %p4917 = pneg %p100
      $region34: #{net_forward.4} parent=31 // pred_check_branch
        %4919 = sbr.rel (%p4917) target = $region36
      $region35: #{net_forward.4} parent=31 // pred_region
        _
      $region36: #{net_forward.4} parent=31 // pred_fallthru
        _
    $region32: #{net_forward.4} parent=5 // pred_fallthru
      _
    %p4920 = scmp.le.s32.totalorder 2, %s9
    // Predicated region
    $region37: #{net_forward.4} parent=5 // pred_check
      %p4921 = pneg %p4920
    $region38: #{net_forward.4} parent=5 // pred_check_branch
      %4923 = sbr.rel (%p4921) target = $region40
    $region39: #{net_forward.4} parent=5 // pred_region
      %s4924 = ssub.s32 %s9, 2
      // Predicated region
      $region41: #{net_forward.4} parent=39 // pred_check
        %p4925 = pneg %p106
      $region42: #{net_forward.4} parent=39 // pred_check_branch
        %4927 = sbr.rel (%p4925) target = $region44
      $region43: #{net_forward.4} parent=39 // pred_region
        %p4928 = scmp.lt.s32.totalorder %s15, 1
        %s4929 = scalar_select %p4928, %s15, 1
        %s4930 = smul.addr %s4929, 4
        %s4931 = smul.addr %s4930, 4
        %s4932 = scalar_lea.vmem %s3, %s4931
      $region44: #{net_forward.4} parent=39 // pred_fallthru
        _
    $region40: #{net_forward.4} parent=5 // pred_fallthru
      _
  $region6: #{net_forward.4} parent=0 // loop_footer
    %s13 = sadd.s32 1, %s9
  $region7: #{net_forward.4} parent=0 // loop_footer_branch
    %8 = sbr.rel target = $region3
  $region8: #{net_forward.4} parent=0 // loop_exit
    _

// kernel: net_forward.5
$region0: #{net_forward.5}
  #allocation0 [shape = 'u32[]', space=smem, size = 0x4, offset = 0x4, fixed_abs, tag = 'smem constant byte address 0x4 - core index']
  #allocation1 [shape = 'u32[144,128]{1,0:T(1,128)}', space=vmem, size = 0x12000, scoped, tag = 'internal scratch']
  %s0 = inlined_call_operand.vmem [shape: bf16[8,4096], index: 0, kind: input, shape index: {}]
  %s1 = inlined_call_operand.vmem [shape: bf16[4096,128], index: 1, kind: input, shape index: {}]
  %s2 = inlined_call_operand.vmem [shape: f32[1,128], index: 2, kind: input, shape index: {}]
  %s3 = inlined_call_operand.vmem [shape: bf16[128,128], index: 3, kind: input, shape index: {}]
  %s4 = inlined_call_operand.vmem [shape: f32[1,128], index: 4, kind: input, shape index: {}]
  %s5 = inlined_call_operand.vmem [shape: bf16[128,128], index: 5, kind: input, shape index: {}]
  %s6 = inlined_call_operand.vmem [shape: f32[1,128], index: 6, kind: input, shape index: {}]
  %s7 = inlined_call_operand.vmem [shape: f32[8,128], index: 7, kind: output, shape index: {}]
  %s8 = sld [smem:[#allocation0]]
  $region38: #{net_forward.5} parent=0
    _
  %s10 = ssub.s32 1, %s8
  %s11 = scalar_select 0, %s10, %s8
  // Predicated region
  $region2: #{net_forward.5} parent=0 // pred_check
    _
  $region3: #{net_forward.5} parent=0 // pred_check_branch
    %13 = sbr.rel (0) target = $region5
  $region4: #{net_forward.5} parent=0 // pred_region
    _
  $region5: #{net_forward.5} parent=0 // pred_fallthru
    _
  // Predicated region
  $region6: #{net_forward.5} parent=0 // pred_check
    _
  $region7: #{net_forward.5} parent=0 // pred_check_branch
    %15 = sbr.rel (0) target = $region9
  $region8: #{net_forward.5} parent=0 // pred_region
    _
  $region9: #{net_forward.5} parent=0 // pred_fallthru
    _
  // Predicated region
  $region10: #{net_forward.5} parent=0 // pred_check
    _
  $region11: #{net_forward.5} parent=0 // pred_check_branch
    %17 = sbr.rel (0) target = $region13
  $region12: #{net_forward.5} parent=0 // pred_region
    _
  $region13: #{net_forward.5} parent=0 // pred_fallthru
    _
  // Predicated region
  $region14: #{net_forward.5} parent=0 // pred_check
    _
  $region15: #{net_forward.5} parent=0 // pred_check_branch
    %19 = sbr.rel (0) target = $region17
  $region16: #{net_forward.5} parent=0 // pred_region
    _
  $region17: #{net_forward.5} parent=0 // pred_fallthru
    _
  // Predicated region
  $region18: #{net_forward.5} parent=0 // pred_check
    _
  $region19: #{net_forward.5} parent=0 // pred_check_branch
    %21 = sbr.rel (0) target = $region21
  $region20: #{net_forward.5} parent=0 // pred_region
    _
  $region21: #{net_forward.5} parent=0 // pred_fallthru
    _
  // Predicated region
  $region22: #{net_forward.5} parent=0 // pred_check
    _
  $region23: #{net_forward.5} parent=0 // pred_check_branch
    %23 = sbr.rel (0) target = $region25
  $region24: #{net_forward.5} parent=0 // pred_region
    _
  $region25: #{net_forward.5} parent=0 // pred_fallthru
    _
  // Predicated region
  $region26: #{net_forward.5} parent=0 // pred_check
    _
  $region27: #{net_forward.5} parent=0 // pred_check_branch
    %25 = sbr.rel (0) target = $region29
  $region28: #{net_forward.5} parent=0 // pred_region
    _
  $region29: #{net_forward.5} parent=0 // pred_fallthru
    _
  %v27 = vld [vmem:[%s0] sm:$0xff]
  %v28 = vld [vmem:[%s0 + $0x8] sm:$0xff]
  %v29 = vld [vmem:[%s0 + $0x10] sm:$0xff]
  %v30 = vld [vmem:[%s0 + $0x18] sm:$0xff]
  %v31 = vld [vmem:[%s0 + $0x20] sm:$0xff]
  %v32 = vld [vmem:[%s0 + $0x28] sm:$0xff]
  %v33 = vld [vmem:[%s0 + $0x30] sm:$0xff]
  %v34 = vld [vmem:[%s0 + $0x38] sm:$0xff]
  %v35 = vld [vmem:[%s0 + $0x40] sm:$0xff]
  %v36 = vld [vmem:[%s0 + $0x48] sm:$0xff]
  %v37 = vld [vmem:[%s0 + $0x50] sm:$0xff]
  %v38 = vld [vmem:[%s0 + $0x58] sm:$0xff]
  %v39 = vld [vmem:[%s0 + $0x60] sm:$0xff]
  %v40 = vld [vmem:[%s0 + $0x68] sm:$0xff]
  %v41 = vld [vmem:[%s0 + $0x70] sm:$0xff]
  %v42 = vld [vmem:[%s0 + $0x78] sm:$0xff]
  %v43 = vld [vmem:[%s1] sm:$0xf]
  %v44 = vld [vmem:[%s1 + $0x4] sm:$0xf]
  %v45 = vld [vmem:[%s1 + $0x8] sm:$0xf]
  %v46 = vld [vmem:[%s1 + $0xc] sm:$0xf]
  %v47 = vld [vmem:[%s1 + $0x10] sm:$0xf]
  %v48 = vld [vmem:[%s1 + $0x14] sm:$0xf]
  %v49 = vld [vmem:[%s1 + $0x18] sm:$0xf]
  %v50 = vld [vmem:[%s1 + $0x1c] sm:$0xf]
  %v51 = vld [vmem:[%s1 + $0x20] sm:$0xf]
  %v52 = vld [vmem:[%s1 + $0x24] sm:$0xf]
  %v53 = vld [vmem:[%s1 + $0x28] sm:$0xf]
  %v54 = vld [vmem:[%s1 + $0x2c] sm:$0xf]
  %v55 = vld [vmem:[%s1 + $0x30] sm:$0xf]
  %v56 = vld [vmem:[%s1 + $0x34] sm:$0xf]
  %v57 = vld [vmem:[%s1 + $0x38] sm:$0xf]
  %v58 = vld [vmem:[%s1 + $0x3c] sm:$0xf]
  %v59 = vld [vmem:[%s1 + $0x40] sm:$0xf]
  %v60 = vld [vmem:[%s1 + $0x44] sm:$0xf]
  %v61 = vld [vmem:[%s1 + $0x48] sm:$0xf]
  %v62 = vld [vmem:[%s1 + $0x4c] sm:$0xf]
  %v63 = vld [vmem:[%s1 + $0x50] sm:$0xf]
  %v64 = vld [vmem:[%s1 + $0x54] sm:$0xf]
  %v65 = vld [vmem:[%s1 + $0x58] sm:$0xf]
  %v66 = vld [vmem:[%s1 + $0x5c] sm:$0xf]
  %v67 = vld [vmem:[%s1 + $0x60] sm:$0xf]
  %v68 = vld [vmem:[%s1 + $0x64] sm:$0xf]
  %v69 = vld [vmem:[%s1 + $0x68] sm:$0xf]
  %v70 = vld [vmem:[%s1 + $0x6c] sm:$0xf]
  %v71 = vld [vmem:[%s1 + $0x70] sm:$0xf]
  %v72 = vld [vmem:[%s1 + $0x74] sm:$0xf]
  %v73 = vld [vmem:[%s1 + $0x78] sm:$0xf]
  %v74 = vld [vmem:[%s1 + $0x7c] sm:$0xf]
  %v75 = vld [vmem:[%s1 + $0x80] sm:$0xf]
  %v76 = vld [vmem:[%s1 + $0x84] sm:$0xf]
  %v77 = vld [vmem:[%s1 + $0x88] sm:$0xf]
  %v78 = vld [vmem:[%s1 + $0x8c] sm:$0xf]
  %v79 = vld [vmem:[%s1 + $0x90] sm:$0xf]
  %v80 = vld [vmem:[%s1 + $0x94] sm:$0xf]
  %v81 = vld [vmem:[%s1 + $0x98] sm:$0xf]
  %v82 = vld [vmem:[%s1 + $0x9c] sm:$0xf]
  %v83 = vld [vmem:[%s1 + $0xa0] sm:$0xf]
  %v84 = vld [vmem:[%s1 + $0xa4] sm:$0xf]
  %v85 = vld [vmem:[%s1 + $0xa8] sm:$0xf]
  %v86 = vld [vmem:[%s1 + $0xac] sm:$0xf]
  %v87 = vld [vmem:[%s1 + $0xb0] sm:$0xf]
  %v88 = vld [vmem:[%s1 + $0xb4] sm:$0xf]
  %v89 = vld [vmem:[%s1 + $0xb8] sm:$0xf]
  %v90 = vld [vmem:[%s1 + $0xbc] sm:$0xf]
  %v91 = vld [vmem:[%s1 + $0xc0] sm:$0xf]
  %v92 = vld [vmem:[%s1 + $0xc4] sm:$0xf]
  %v93 = vld [vmem:[%s1 + $0xc8] sm:$0xf]
  %v94 = vld [vmem:[%s1 + $0xcc] sm:$0xf]
  %v95 = vld [vmem:[%s1 + $0xd0] sm:$0xf]
  %v96 = vld [vmem:[%s1 + $0xd4] sm:$0xf]
  %v97 = vld [vmem:[%s1 + $0xd8] sm:$0xf]
  %v98 = vld [vmem:[%s1 + $0xdc] sm:$0xf]
  %v99 = vld [vmem:[%s1 + $0xe0] sm:$0xf]
  %v100 = vld [vmem:[%s1 + $0xe4] sm:$0xf]
  %v101 = vld [vmem:[%s1 + $0xe8] sm:$0xf]
  %v102 = vld [vmem:[%s1 + $0xec] sm:$0xf]
  %v103 = vld [vmem:[%s1 + $0xf0] sm:$0xf]
  %v104 = vld [vmem:[%s1 + $0xf4] sm:$0xf]
  %v105 = vld [vmem:[%s1 + $0xf8] sm:$0xf]
  %v106 = vld [vmem:[%s1 + $0xfc] sm:$0xf]
  %v107 = vld [vmem:[%s1 + $0x100] sm:$0xf]
  %v108 = vld [vmem:[%s1 + $0x104] sm:$0xf]
  %v109 = vld [vmem:[%s1 + $0x108] sm:$0xf]
  %v110 = vld [vmem:[%s1 + $0x10c] sm:$0xf]
  %v111 = vld [vmem:[%s1 + $0x110] sm:$0xf]
  %v112 = vld [vmem:[%s1 + $0x114] sm:$0xf]
  %v113 = vld [vmem:[%s1 + $0x118] sm:$0xf]
  %v114 = vld [vmem:[%s1 + $0x11c] sm:$0xf]
  %v115 = vld [vmem:[%s1 + $0x120] sm:$0xf]
  %v116 = vld [vmem:[%s1 + $0x124] sm:$0xf]
  %v117 = vld [vmem:[%s1 + $0x128] sm:$0xf]
  %v118 = vld [vmem:[%s1 + $0x12c] sm:$0xf]
  %v119 = vld [vmem:[%s1 + $0x130] sm:$0xf]
  %v120 = vld [vmem:[%s1 + $0x134] sm:$0xf]
  %v121 = vld [vmem:[%s1 + $0x138] sm:$0xf]
  %v122 = vld [vmem:[%s1 + $0x13c] sm:$0xf]
  %v123 = vld [vmem:[%s1 + $0x140] sm:$0xf]
  %v124 = vld [vmem:[%s1 + $0x144] sm:$0xf]
  %v125 = vld [vmem:[%s1 + $0x148] sm:$0xf]
  %v126 = vld [vmem:[%s1 + $0x14c] sm:$0xf]
  %v127 = vld [vmem:[%s1 + $0x150] sm:$0xf]
  %v128 = vld [vmem:[%s1 + $0x154] sm:$0xf]
  %v129 = vld [vmem:[%s1 + $0x158] sm:$0xf]
  %v130 = vld [vmem:[%s1 + $0x15c] sm:$0xf]
  %v131 = vld [vmem:[%s1 + $0x160] sm:$0xf]
  %v132 = vld [vmem:[%s1 + $0x164] sm:$0xf]
  %v133 = vld [vmem:[%s1 + $0x168] sm:$0xf]
  %v134 = vld [vmem:[%s1 + $0x16c] sm:$0xf]
  %v135 = vld [vmem:[%s1 + $0x170] sm:$0xf]
  %v136 = vld [vmem:[%s1 + $0x174] sm:$0xf]
  %v137 = vld [vmem:[%s1 + $0x178] sm:$0xf]
  %v138 = vld [vmem:[%s1 + $0x17c] sm:$0xf]
  %v139 = vld [vmem:[%s1 + $0x180] sm:$0xf]
  %v140 = vld [vmem:[%s1 + $0x184] sm:$0xf]
  %v141 = vld [vmem:[%s1 + $0x188] sm:$0xf]
  %v142 = vld [vmem:[%s1 + $0x18c] sm:$0xf]
  %v143 = vld [vmem:[%s1 + $0x190] sm:$0xf]
  %v144 = vld [vmem:[%s1 + $0x194] sm:$0xf]
  %v145 = vld [vmem:[%s1 + $0x198] sm:$0xf]
  %v146 = vld [vmem:[%s1 + $0x19c] sm:$0xf]
  %v147 = vld [vmem:[%s1 + $0x1a0] sm:$0xf]
  %v148 = vld [vmem:[%s1 + $0x1a4] sm:$0xf]
  %v149 = vld [vmem:[%s1 + $0x1a8] sm:$0xf]
  %v150 = vld [vmem:[%s1 + $0x1ac] sm:$0xf]
  %v151 = vld [vmem:[%s1 + $0x1b0] sm:$0xf]
  %v152 = vld [vmem:[%s1 + $0x1b4] sm:$0xf]
  %v153 = vld [vmem:[%s1 + $0x1b8] sm:$0xf]
  %v154 = vld [vmem:[%s1 + $0x1bc] sm:$0xf]
  %v155 = vld [vmem:[%s1 + $0x1c0] sm:$0xf]
  %v156 = vld [vmem:[%s1 + $0x1c4] sm:$0xf]
  %v157 = vld [vmem:[%s1 + $0x1c8] sm:$0xf]
  %v158 = vld [vmem:[%s1 + $0x1cc] sm:$0xf]
  %v159 = vld [vmem:[%s1 + $0x1d0] sm:$0xf]
  %v160 = vld [vmem:[%s1 + $0x1d4] sm:$0xf]
  %v161 = vld [vmem:[%s1 + $0x1d8] sm:$0xf]
  %v162 = vld [vmem:[%s1 + $0x1dc] sm:$0xf]
  %v163 = vld [vmem:[%s1 + $0x1e0] sm:$0xf]
  %v164 = vld [vmem:[%s1 + $0x1e4] sm:$0xf]
  %v165 = vld [vmem:[%s1 + $0x1e8] sm:$0xf]
  %v166 = vld [vmem:[%s1 + $0x1ec] sm:$0xf]
  %v167 = vld [vmem:[%s1 + $0x1f0] sm:$0xf]
  %v168 = vld [vmem:[%s1 + $0x1f4] sm:$0xf]
  %v169 = vld [vmem:[%s1 + $0x1f8] sm:$0xf]
  %v170 = vld [vmem:[%s1 + $0x1fc] sm:$0xf]
  %v171 = vld [vmem:[%s1 + $0x200] sm:$0xf]
  %v172 = vld [vmem:[%s1 + $0x204] sm:$0xf]
  %v173 = vld [vmem:[%s1 + $0x208] sm:$0xf]
  %v174 = vld [vmem:[%s1 + $0x20c] sm:$0xf]
  %v175 = vld [vmem:[%s1 + $0x210] sm:$0xf]
  %v176 = vld [vmem:[%s1 + $0x214] sm:$0xf]
  %v177 = vld [vmem:[%s1 + $0x218] sm:$0xf]
  %v178 = vld [vmem:[%s1 + $0x21c] sm:$0xf]
  %v179 = vld [vmem:[%s1 + $0x220] sm:$0xf]
  %v180 = vld [vmem:[%s1 + $0x224] sm:$0xf]
  %v181 = vld [vmem:[%s1 + $0x228] sm:$0xf]
  %v182 = vld [vmem:[%s1 + $0x22c] sm:$0xf]
  %v183 = vld [vmem:[%s1 + $0x230] sm:$0xf]
  %v184 = vld [vmem:[%s1 + $0x234] sm:$0xf]
  %v185 = vld [vmem:[%s1 + $0x238] sm:$0xf]
  %v186 = vld [vmem:[%s1 + $0x23c] sm:$0xf]
  %v187 = vld [vmem:[%s1 + $0x240] sm:$0xf]
  %v188 = vld [vmem:[%s1 + $0x244] sm:$0xf]
  %v189 = vld [vmem:[%s1 + $0x248] sm:$0xf]
  %v190 = vld [vmem:[%s1 + $0x24c] sm:$0xf]
  %v191 = vld [vmem:[%s1 + $0x250] sm:$0xf]
  %v192 = vld [vmem:[%s1 + $0x254] sm:$0xf]
  %v193 = vld [vmem:[%s1 + $0x258] sm:$0xf]
  %v194 = vld [vmem:[%s1 + $0x25c] sm:$0xf]
  %v195 = vld [vmem:[%s1 + $0x260] sm:$0xf]
  %v196 = vld [vmem:[%s1 + $0x264] sm:$0xf]
  %v197 = vld [vmem:[%s1 + $0x268] sm:$0xf]
  %v198 = vld [vmem:[%s1 + $0x26c] sm:$0xf]
  %v199 = vld [vmem:[%s1 + $0x270] sm:$0xf]
  %v200 = vld [vmem:[%s1 + $0x274] sm:$0xf]
  %v201 = vld [vmem:[%s1 + $0x278] sm:$0xf]
  %v202 = vld [vmem:[%s1 + $0x27c] sm:$0xf]
  %v203 = vld [vmem:[%s1 + $0x280] sm:$0xf]
  %v204 = vld [vmem:[%s1 + $0x284] sm:$0xf]
  %v205 = vld [vmem:[%s1 + $0x288] sm:$0xf]
  %v206 = vld [vmem:[%s1 + $0x28c] sm:$0xf]
  %v207 = vld [vmem:[%s1 + $0x290] sm:$0xf]
  %v208 = vld [vmem:[%s1 + $0x294] sm:$0xf]
  %v209 = vld [vmem:[%s1 + $0x298] sm:$0xf]
  %v210 = vld [vmem:[%s1 + $0x29c] sm:$0xf]
  %v211 = vld [vmem:[%s1 + $0x2a0] sm:$0xf]
  %v212 = vld [vmem:[%s1 + $0x2a4] sm:$0xf]
  %v213 = vld [vmem:[%s1 + $0x2a8] sm:$0xf]
  %v214 = vld [vmem:[%s1 + $0x2ac] sm:$0xf]
  %v215 = vld [vmem:[%s1 + $0x2b0] sm:$0xf]
  %v216 = vld [vmem:[%s1 + $0x2b4] sm:$0xf]
  %v217 = vld [vmem:[%s1 + $0x2b8] sm:$0xf]
  %v218 = vld [vmem:[%s1 + $0x2bc] sm:$0xf]
  %v219 = vld [vmem:[%s1 + $0x2c0] sm:$0xf]
  %v220 = vld [vmem:[%s1 + $0x2c4] sm:$0xf]
  %v221 = vld [vmem:[%s1 + $0x2c8] sm:$0xf]
  %v222 = vld [vmem:[%s1 + $0x2cc] sm:$0xf]
  %v223 = vld [vmem:[%s1 + $0x2d0] sm:$0xf]
  %v224 = vld [vmem:[%s1 + $0x2d4] sm:$0xf]
  %v225 = vld [vmem:[%s1 + $0x2d8] sm:$0xf]
  %v226 = vld [vmem:[%s1 + $0x2dc] sm:$0xf]
  %v227 = vld [vmem:[%s1 + $0x2e0] sm:$0xf]
  %v228 = vld [vmem:[%s1 + $0x2e4] sm:$0xf]
  %v229 = vld [vmem:[%s1 + $0x2e8] sm:$0xf]
  %v230 = vld [vmem:[%s1 + $0x2ec] sm:$0xf]
  %v231 = vld [vmem:[%s1 + $0x2f0] sm:$0xf]
  %v232 = vld [vmem:[%s1 + $0x2f4] sm:$0xf]
  %v233 = vld [vmem:[%s1 + $0x2f8] sm:$0xf]
  %v234 = vld [vmem:[%s1 + $0x2fc] sm:$0xf]
  %v235 = vld [vmem:[%s1 + $0x300] sm:$0xf]
  %v236 = vld [vmem:[%s1 + $0x304] sm:$0xf]
  %v237 = vld [vmem:[%s1 + $0x308] sm:$0xf]
  %v238 = vld [vmem:[%s1 + $0x30c] sm:$0xf]
  %v239 = vld [vmem:[%s1 + $0x310] sm:$0xf]
  %v240 = vld [vmem:[%s1 + $0x314] sm:$0xf]
  %v241 = vld [vmem:[%s1 + $0x318] sm:$0xf]
  %v242 = vld [vmem:[%s1 + $0x31c] sm:$0xf]
  %v243 = vld [vmem:[%s1 + $0x320] sm:$0xf]
  %v244 = vld [vmem:[%s1 + $0x324] sm:$0xf]
  %v245 = vld [vmem:[%s1 + $0x328] sm:$0xf]
  %v246 = vld [vmem:[%s1 + $0x32c] sm:$0xf]
  %v247 = vld [vmem:[%s1 + $0x330] sm:$0xf]
  %v248 = vld [vmem:[%s1 + $0x334] sm:$0xf]
  %v249 = vld [vmem:[%s1 + $0x338] sm:$0xf]
  %v250 = vld [vmem:[%s1 + $0x33c] sm:$0xf]
  %v251 = vld [vmem:[%s1 + $0x340] sm:$0xf]
  %v252 = vld [vmem:[%s1 + $0x344] sm:$0xf]
  %v253 = vld [vmem:[%s1 + $0x348] sm:$0xf]
  %v254 = vld [vmem:[%s1 + $0x34c] sm:$0xf]
  %v255 = vld [vmem:[%s1 + $0x350] sm:$0xf]
  %v256 = vld [vmem:[%s1 + $0x354] sm:$0xf]
  %v257 = vld [vmem:[%s1 + $0x358] sm:$0xf]
  %v258 = vld [vmem:[%s1 + $0x35c] sm:$0xf]
  %v259 = vld [vmem:[%s1 + $0x360] sm:$0xf]
  %v260 = vld [vmem:[%s1 + $0x364] sm:$0xf]
  %v261 = vld [vmem:[%s1 + $0x368] sm:$0xf]
  %v262 = vld [vmem:[%s1 + $0x36c] sm:$0xf]
  %v263 = vld [vmem:[%s1 + $0x370] sm:$0xf]
  %v264 = vld [vmem:[%s1 + $0x374] sm:$0xf]
  %v265 = vld [vmem:[%s1 + $0x378] sm:$0xf]
  %v266 = vld [vmem:[%s1 + $0x37c] sm:$0xf]
  %v267 = vld [vmem:[%s1 + $0x380] sm:$0xf]
  %v268 = vld [vmem:[%s1 + $0x384] sm:$0xf]
  %v269 = vld [vmem:[%s1 + $0x388] sm:$0xf]
  %v270 = vld [vmem:[%s1 + $0x38c] sm:$0xf]
  %v271 = vld [vmem:[%s1 + $0x390] sm:$0xf]
  %v272 = vld [vmem:[%s1 + $0x394] sm:$0xf]
  %v273 = vld [vmem:[%s1 + $0x398] sm:$0xf]
  %v274 = vld [vmem:[%s1 + $0x39c] sm:$0xf]
  %v275 = vld [vmem:[%s1 + $0x3a0] sm:$0xf]
  %v276 = vld [vmem:[%s1 + $0x3a4] sm:$0xf]
  %v277 = vld [vmem:[%s1 + $0x3a8] sm:$0xf]
  %v278 = vld [vmem:[%s1 + $0x3ac] sm:$0xf]
  %v279 = vld [vmem:[%s1 + $0x3b0] sm:$0xf]
  %v280 = vld [vmem:[%s1 + $0x3b4] sm:$0xf]
  %v281 = vld [vmem:[%s1 + $0x3b8] sm:$0xf]
  %v282 = vld [vmem:[%s1 + $0x3bc] sm:$0xf]
  %v283 = vld [vmem:[%s1 + $0x3c0] sm:$0xf]
  %v284 = vld [vmem:[%s1 + $0x3c4] sm:$0xf]
  %v285 = vld [vmem:[%s1 + $0x3c8] sm:$0xf]
  %v286 = vld [vmem:[%s1 + $0x3cc] sm:$0xf]
  %v287 = vld [vmem:[%s1 + $0x3d0] sm:$0xf]
  %v288 = vld [vmem:[%s1 + $0x3d4] sm:$0xf]
  %v289 = vld [vmem:[%s1 + $0x3d8] sm:$0xf]
  %v290 = vld [vmem:[%s1 + $0x3dc] sm:$0xf]
  %v291 = vld [vmem:[%s1 + $0x3e0] sm:$0xf]
  %v292 = vld [vmem:[%s1 + $0x3e4] sm:$0xf]
  %v293 = vld [vmem:[%s1 + $0x3e8] sm:$0xf]
  %v294 = vld [vmem:[%s1 + $0x3ec] sm:$0xf]
  %v295 = vld [vmem:[%s1 + $0x3f0] sm:$0xf]
  %v296 = vld [vmem:[%s1 + $0x3f4] sm:$0xf]
  %v297 = vld [vmem:[%s1 + $0x3f8] sm:$0xf]
  %v298 = vld [vmem:[%s1 + $0x3fc] sm:$0xf]
  %v299 = vld [vmem:[%s1 + $0x400] sm:$0xf]
  %v300 = vld [vmem:[%s1 + $0x404] sm:$0xf]
  %v301 = vld [vmem:[%s1 + $0x408] sm:$0xf]
  %v302 = vld [vmem:[%s1 + $0x40c] sm:$0xf]
  %v303 = vld [vmem:[%s1 + $0x410] sm:$0xf]
  %v304 = vld [vmem:[%s1 + $0x414] sm:$0xf]
  %v305 = vld [vmem:[%s1 + $0x418] sm:$0xf]
  %v306 = vld [vmem:[%s1 + $0x41c] sm:$0xf]
  %v307 = vld [vmem:[%s1 + $0x420] sm:$0xf]
  %v308 = vld [vmem:[%s1 + $0x424] sm:$0xf]
  %v309 = vld [vmem:[%s1 + $0x428] sm:$0xf]
  %v310 = vld [vmem:[%s1 + $0x42c] sm:$0xf]
  %v311 = vld [vmem:[%s1 + $0x430] sm:$0xf]
  %v312 = vld [vmem:[%s1 + $0x434] sm:$0xf]
  %v313 = vld [vmem:[%s1 + $0x438] sm:$0xf]
  %v314 = vld [vmem:[%s1 + $0x43c] sm:$0xf]
  %v315 = vld [vmem:[%s1 + $0x440] sm:$0xf]
  %v316 = vld [vmem:[%s1 + $0x444] sm:$0xf]
  %v317 = vld [vmem:[%s1 + $0x448] sm:$0xf]
  %v318 = vld [vmem:[%s1 + $0x44c] sm:$0xf]
  %v319 = vld [vmem:[%s1 + $0x450] sm:$0xf]
  %v320 = vld [vmem:[%s1 + $0x454] sm:$0xf]
  %v321 = vld [vmem:[%s1 + $0x458] sm:$0xf]
  %v322 = vld [vmem:[%s1 + $0x45c] sm:$0xf]
  %v323 = vld [vmem:[%s1 + $0x460] sm:$0xf]
  %v324 = vld [vmem:[%s1 + $0x464] sm:$0xf]
  %v325 = vld [vmem:[%s1 + $0x468] sm:$0xf]
  %v326 = vld [vmem:[%s1 + $0x46c] sm:$0xf]
  %v327 = vld [vmem:[%s1 + $0x470] sm:$0xf]
  %v328 = vld [vmem:[%s1 + $0x474] sm:$0xf]
  %v329 = vld [vmem:[%s1 + $0x478] sm:$0xf]
  %v330 = vld [vmem:[%s1 + $0x47c] sm:$0xf]
  %v331 = vld [vmem:[%s1 + $0x480] sm:$0xf]
  %v332 = vld [vmem:[%s1 + $0x484] sm:$0xf]
  %v333 = vld [vmem:[%s1 + $0x488] sm:$0xf]
  %v334 = vld [vmem:[%s1 + $0x48c] sm:$0xf]
  %v335 = vld [vmem:[%s1 + $0x490] sm:$0xf]
  %v336 = vld [vmem:[%s1 + $0x494] sm:$0xf]
  %v337 = vld [vmem:[%s1 + $0x498] sm:$0xf]
  %v338 = vld [vmem:[%s1 + $0x49c] sm:$0xf]
  %v339 = vld [vmem:[%s1 + $0x4a0] sm:$0xf]
  %v340 = vld [vmem:[%s1 + $0x4a4] sm:$0xf]
  %v341 = vld [vmem:[%s1 + $0x4a8] sm:$0xf]
  %v342 = vld [vmem:[%s1 + $0x4ac] sm:$0xf]
  %v343 = vld [vmem:[%s1 + $0x4b0] sm:$0xf]
  %v344 = vld [vmem:[%s1 + $0x4b4] sm:$0xf]
  %v345 = vld [vmem:[%s1 + $0x4b8] sm:$0xf]
  %v346 = vld [vmem:[%s1 + $0x4bc] sm:$0xf]
  %v347 = vld [vmem:[%s1 + $0x4c0] sm:$0xf]
  %v348 = vld [vmem:[%s1 + $0x4c4] sm:$0xf]
  %v349 = vld [vmem:[%s1 + $0x4c8] sm:$0xf]
  %v350 = vld [vmem:[%s1 + $0x4cc] sm:$0xf]
  %v351 = vld [vmem:[%s1 + $0x4d0] sm:$0xf]
  %v352 = vld [vmem:[%s1 + $0x4d4] sm:$0xf]
  %v353 = vld [vmem:[%s1 + $0x4d8] sm:$0xf]
  %v354 = vld [vmem:[%s1 + $0x4dc] sm:$0xf]
  %v355 = vld [vmem:[%s1 + $0x4e0] sm:$0xf]
  %v356 = vld [vmem:[%s1 + $0x4e4] sm:$0xf]
  %v357 = vld [vmem:[%s1 + $0x4e8] sm:$0xf]
  %v358 = vld [vmem:[%s1 + $0x4ec] sm:$0xf]
  %v359 = vld [vmem:[%s1 + $0x4f0] sm:$0xf]
  %v360 = vld [vmem:[%s1 + $0x4f4] sm:$0xf]
  %v361 = vld [vmem:[%s1 + $0x4f8] sm:$0xf]
  %v362 = vld [vmem:[%s1 + $0x4fc] sm:$0xf]
  %v363 = vld [vmem:[%s1 + $0x500] sm:$0xf]
  %v364 = vld [vmem:[%s1 + $0x504] sm:$0xf]
  %v365 = vld [vmem:[%s1 + $0x508] sm:$0xf]
  %v366 = vld [vmem:[%s1 + $0x50c] sm:$0xf]
  %v367 = vld [vmem:[%s1 + $0x510] sm:$0xf]
  %v368 = vld [vmem:[%s1 + $0x514] sm:$0xf]
  %v369 = vld [vmem:[%s1 + $0x518] sm:$0xf]
  %v370 = vld [vmem:[%s1 + $0x51c] sm:$0xf]
  %v371 = vld [vmem:[%s1 + $0x520] sm:$0xf]
  %v372 = vld [vmem:[%s1 + $0x524] sm:$0xf]
  %v373 = vld [vmem:[%s1 + $0x528] sm:$0xf]
  %v374 = vld [vmem:[%s1 + $0x52c] sm:$0xf]
  %v375 = vld [vmem:[%s1 + $0x530] sm:$0xf]
  %v376 = vld [vmem:[%s1 + $0x534] sm:$0xf]
  %v377 = vld [vmem:[%s1 + $0x538] sm:$0xf]
  %v378 = vld [vmem:[%s1 + $0x53c] sm:$0xf]
  %v379 = vld [vmem:[%s1 + $0x540] sm:$0xf]
  %v380 = vld [vmem:[%s1 + $0x544] sm:$0xf]
  %v381 = vld [vmem:[%s1 + $0x548] sm:$0xf]
  %v382 = vld [vmem:[%s1 + $0x54c] sm:$0xf]
  %v383 = vld [vmem:[%s1 + $0x550] sm:$0xf]
  %v384 = vld [vmem:[%s1 + $0x554] sm:$0xf]
  %v385 = vld [vmem:[%s1 + $0x558] sm:$0xf]
  %v386 = vld [vmem:[%s1 + $0x55c] sm:$0xf]
  %v387 = vld [vmem:[%s1 + $0x560] sm:$0xf]
  %v388 = vld [vmem:[%s1 + $0x564] sm:$0xf]
  %v389 = vld [vmem:[%s1 + $0x568] sm:$0xf]
  %v390 = vld [vmem:[%s1 + $0x56c] sm:$0xf]
  %v391 = vld [vmem:[%s1 + $0x570] sm:$0xf]
  %v392 = vld [vmem:[%s1 + $0x574] sm:$0xf]
  %v393 = vld [vmem:[%s1 + $0x578] sm:$0xf]
  %v394 = vld [vmem:[%s1 + $0x57c] sm:$0xf]
  %v395 = vld [vmem:[%s1 + $0x580] sm:$0xf]
  %v396 = vld [vmem:[%s1 + $0x584] sm:$0xf]
  %v397 = vld [vmem:[%s1 + $0x588] sm:$0xf]
  %v398 = vld [vmem:[%s1 + $0x58c] sm:$0xf]
  %v399 = vld [vmem:[%s1 + $0x590] sm:$0xf]
  %v400 = vld [vmem:[%s1 + $0x594] sm:$0xf]
  %v401 = vld [vmem:[%s1 + $0x598] sm:$0xf]
  %v402 = vld [vmem:[%s1 + $0x59c] sm:$0xf]
  %v403 = vld [vmem:[%s1 + $0x5a0] sm:$0xf]
  %v404 = vld [vmem:[%s1 + $0x5a4] sm:$0xf]
  %v405 = vld [vmem:[%s1 + $0x5a8] sm:$0xf]
  %v406 = vld [vmem:[%s1 + $0x5ac] sm:$0xf]
  %v407 = vld [vmem:[%s1 + $0x5b0] sm:$0xf]
  %v408 = vld [vmem:[%s1 + $0x5b4] sm:$0xf]
  %v409 = vld [vmem:[%s1 + $0x5b8] sm:$0xf]
  %v410 = vld [vmem:[%s1 + $0x5bc] sm:$0xf]
  %v411 = vld [vmem:[%s1 + $0x5c0] sm:$0xf]
  %v412 = vld [vmem:[%s1 + $0x5c4] sm:$0xf]
  %v413 = vld [vmem:[%s1 + $0x5c8] sm:$0xf]
  %v414 = vld [vmem:[%s1 + $0x5cc] sm:$0xf]
  %v415 = vld [vmem:[%s1 + $0x5d0] sm:$0xf]
  %v416 = vld [vmem:[%s1 + $0x5d4] sm:$0xf]
  %v417 = vld [vmem:[%s1 + $0x5d8] sm:$0xf]
  %v418 = vld [vmem:[%s1 + $0x5dc] sm:$0xf]
  %v419 = vld [vmem:[%s1 + $0x5e0] sm:$0xf]
  %v420 = vld [vmem:[%s1 + $0x5e4] sm:$0xf]
  %v421 = vld [vmem:[%s1 + $0x5e8] sm:$0xf]
  %v422 = vld [vmem:[%s1 + $0x5ec] sm:$0xf]
  %v423 = vld [vmem:[%s1 + $0x5f0] sm:$0xf]
  %v424 = vld [vmem:[%s1 + $0x5f4] sm:$0xf]
  %v425 = vld [vmem:[%s1 + $0x5f8] sm:$0xf]
  %v426 = vld [vmem:[%s1 + $0x5fc] sm:$0xf]
  %v427 = vld [vmem:[%s1 + $0x600] sm:$0xf]
  %v428 = vld [vmem:[%s1 + $0x604] sm:$0xf]
  %v429 = vld [vmem:[%s1 + $0x608] sm:$0xf]
  %v430 = vld [vmem:[%s1 + $0x60c] sm:$0xf]
  %v431 = vld [vmem:[%s1 + $0x610] sm:$0xf]
  %v432 = vld [vmem:[%s1 + $0x614] sm:$0xf]
  %v433 = vld [vmem:[%s1 + $0x618] sm:$0xf]
  %v434 = vld [vmem:[%s1 + $0x61c] sm:$0xf]
  %v435 = vld [vmem:[%s1 + $0x620] sm:$0xf]
  %v436 = vld [vmem:[%s1 + $0x624] sm:$0xf]
  %v437 = vld [vmem:[%s1 + $0x628] sm:$0xf]
  %v438 = vld [vmem:[%s1 + $0x62c] sm:$0xf]
  %v439 = vld [vmem:[%s1 + $0x630] sm:$0xf]
  %v440 = vld [vmem:[%s1 + $0x634] sm:$0xf]
  %v441 = vld [vmem:[%s1 + $0x638] sm:$0xf]
  %v442 = vld [vmem:[%s1 + $0x63c] sm:$0xf]
  %v443 = vld [vmem:[%s1 + $0x640] sm:$0xf]
  %v444 = vld [vmem:[%s1 + $0x644] sm:$0xf]
  %v445 = vld [vmem:[%s1 + $0x648] sm:$0xf]
  %v446 = vld [vmem:[%s1 + $0x64c] sm:$0xf]
  %v447 = vld [vmem:[%s1 + $0x650] sm:$0xf]
  %v448 = vld [vmem:[%s1 + $0x654] sm:$0xf]
  %v449 = vld [vmem:[%s1 + $0x658] sm:$0xf]
  %v450 = vld [vmem:[%s1 + $0x65c] sm:$0xf]
  %v451 = vld [vmem:[%s1 + $0x660] sm:$0xf]
  %v452 = vld [vmem:[%s1 + $0x664] sm:$0xf]
  %v453 = vld [vmem:[%s1 + $0x668] sm:$0xf]
  %v454 = vld [vmem:[%s1 + $0x66c] sm:$0xf]
  %v455 = vld [vmem:[%s1 + $0x670] sm:$0xf]
  %v456 = vld [vmem:[%s1 + $0x674] sm:$0xf]
  %v457 = vld [vmem:[%s1 + $0x678] sm:$0xf]
  %v458 = vld [vmem:[%s1 + $0x67c] sm:$0xf]
  %v459 = vld [vmem:[%s1 + $0x680] sm:$0xf]
  %v460 = vld [vmem:[%s1 + $0x684] sm:$0xf]
  %v461 = vld [vmem:[%s1 + $0x688] sm:$0xf]
  %v462 = vld [vmem:[%s1 + $0x68c] sm:$0xf]
  %v463 = vld [vmem:[%s1 + $0x690] sm:$0xf]
  %v464 = vld [vmem:[%s1 + $0x694] sm:$0xf]
  %v465 = vld [vmem:[%s1 + $0x698] sm:$0xf]
  %v466 = vld [vmem:[%s1 + $0x69c] sm:$0xf]
  %v467 = vld [vmem:[%s1 + $0x6a0] sm:$0xf]
  %v468 = vld [vmem:[%s1 + $0x6a4] sm:$0xf]
  %v469 = vld [vmem:[%s1 + $0x6a8] sm:$0xf]
  %v470 = vld [vmem:[%s1 + $0x6ac] sm:$0xf]
  %v471 = vld [vmem:[%s1 + $0x6b0] sm:$0xf]
  %v472 = vld [vmem:[%s1 + $0x6b4] sm:$0xf]
  %v473 = vld [vmem:[%s1 + $0x6b8] sm:$0xf]
  %v474 = vld [vmem:[%s1 + $0x6bc] sm:$0xf]
  %v475 = vld [vmem:[%s1 + $0x6c0] sm:$0xf]
  %v476 = vld [vmem:[%s1 + $0x6c4] sm:$0xf]
  %v477 = vld [vmem:[%s1 + $0x6c8] sm:$0xf]
  %v478 = vld [vmem:[%s1 + $0x6cc] sm:$0xf]
  %v479 = vld [vmem:[%s1 + $0x6d0] sm:$0xf]
  %v480 = vld [vmem:[%s1 + $0x6d4] sm:$0xf]
  %v481 = vld [vmem:[%s1 + $0x6d8] sm:$0xf]
  %v482 = vld [vmem:[%s1 + $0x6dc] sm:$0xf]
  %v483 = vld [vmem:[%s1 + $0x6e0] sm:$0xf]
  %v484 = vld [vmem:[%s1 + $0x6e4] sm:$0xf]
  %v485 = vld [vmem:[%s1 + $0x6e8] sm:$0xf]
  %v486 = vld [vmem:[%s1 + $0x6ec] sm:$0xf]
  %v487 = vld [vmem:[%s1 + $0x6f0] sm:$0xf]
  %v488 = vld [vmem:[%s1 + $0x6f4] sm:$0xf]
  %v489 = vld [vmem:[%s1 + $0x6f8] sm:$0xf]
  %v490 = vld [vmem:[%s1 + $0x6fc] sm:$0xf]
  %v491 = vld [vmem:[%s1 + $0x700] sm:$0xf]
  %v492 = vld [vmem:[%s1 + $0x704] sm:$0xf]
  %v493 = vld [vmem:[%s1 + $0x708] sm:$0xf]
  %v494 = vld [vmem:[%s1 + $0x70c] sm:$0xf]
  %v495 = vld [vmem:[%s1 + $0x710] sm:$0xf]
  %v496 = vld [vmem:[%s1 + $0x714] sm:$0xf]
  %v497 = vld [vmem:[%s1 + $0x718] sm:$0xf]
  %v498 = vld [vmem:[%s1 + $0x71c] sm:$0xf]
  %v499 = vld [vmem:[%s1 + $0x720] sm:$0xf]
  %v500 = vld [vmem:[%s1 + $0x724] sm:$0xf]
  %v501 = vld [vmem:[%s1 + $0x728] sm:$0xf]
  %v502 = vld [vmem:[%s1 + $0x72c] sm:$0xf]
  %v503 = vld [vmem:[%s1 + $0x730] sm:$0xf]
  %v504 = vld [vmem:[%s1 + $0x734] sm:$0xf]
  %v505 = vld [vmem:[%s1 + $0x738] sm:$0xf]
  %v506 = vld [vmem:[%s1 + $0x73c] sm:$0xf]
  %v507 = vld [vmem:[%s1 + $0x740] sm:$0xf]
  %v508 = vld [vmem:[%s1 + $0x744] sm:$0xf]
  %v509 = vld [vmem:[%s1 + $0x748] sm:$0xf]
  %v510 = vld [vmem:[%s1 + $0x74c] sm:$0xf]
  %v511 = vld [vmem:[%s1 + $0x750] sm:$0xf]
  %v512 = vld [vmem:[%s1 + $0x754] sm:$0xf]
  %v513 = vld [vmem:[%s1 + $0x758] sm:$0xf]
  %v514 = vld [vmem:[%s1 + $0x75c] sm:$0xf]
  %v515 = vld [vmem:[%s1 + $0x760] sm:$0xf]
  %v516 = vld [vmem:[%s1 + $0x764] sm:$0xf]
  %v517 = vld [vmem:[%s1 + $0x768] sm:$0xf]
  %v518 = vld [vmem:[%s1 + $0x76c] sm:$0xf]
  %v519 = vld [vmem:[%s1 + $0x770] sm:$0xf]
  %v520 = vld [vmem:[%s1 + $0x774] sm:$0xf]
  %v521 = vld [vmem:[%s1 + $0x778] sm:$0xf]
  %v522 = vld [vmem:[%s1 + $0x77c] sm:$0xf]
  %v523 = vld [vmem:[%s1 + $0x780] sm:$0xf]
  %v524 = vld [vmem:[%s1 + $0x784] sm:$0xf]
  %v525 = vld [vmem:[%s1 + $0x788] sm:$0xf]
  %v526 = vld [vmem:[%s1 + $0x78c] sm:$0xf]
  %v527 = vld [vmem:[%s1 + $0x790] sm:$0xf]
  %v528 = vld [vmem:[%s1 + $0x794] sm:$0xf]
  %v529 = vld [vmem:[%s1 + $0x798] sm:$0xf]
  %v530 = vld [vmem:[%s1 + $0x79c] sm:$0xf]
  %v531 = vld [vmem:[%s1 + $0x7a0] sm:$0xf]
  %v532 = vld [vmem:[%s1 + $0x7a4] sm:$0xf]
  %v533 = vld [vmem:[%s1 + $0x7a8] sm:$0xf]
  %v534 = vld [vmem:[%s1 + $0x7ac] sm:$0xf]
  %v535 = vld [vmem:[%s1 + $0x7b0] sm:$0xf]
  %v536 = vld [vmem:[%s1 + $0x7b4] sm:$0xf]
  %v537 = vld [vmem:[%s1 + $0x7b8] sm:$0xf]
  %v538 = vld [vmem:[%s1 + $0x7bc] sm:$0xf]
  %v539 = vld [vmem:[%s1 + $0x7c0] sm:$0xf]
  %v540 = vld [vmem:[%s1 + $0x7c4] sm:$0xf]
  %v541 = vld [vmem:[%s1 + $0x7c8] sm:$0xf]
  %v542 = vld [vmem:[%s1 + $0x7cc] sm:$0xf]
  %v543 = vld [vmem:[%s1 + $0x7d0] sm:$0xf]
  %v544 = vld [vmem:[%s1 + $0x7d4] sm:$0xf]
  %v545 = vld [vmem:[%s1 + $0x7d8] sm:$0xf]
  %v546 = vld [vmem:[%s1 + $0x7dc] sm:$0xf]
  %v547 = vld [vmem:[%s1 + $0x7e0] sm:$0xf]
  %v548 = vld [vmem:[%s1 + $0x7e4] sm:$0xf]
  %v549 = vld [vmem:[%s1 + $0x7e8] sm:$0xf]
  %v550 = vld [vmem:[%s1 + $0x7ec] sm:$0xf]
  %v551 = vld [vmem:[%s1 + $0x7f0] sm:$0xf]
  %v552 = vld [vmem:[%s1 + $0x7f4] sm:$0xf]
  %v553 = vld [vmem:[%s1 + $0x7f8] sm:$0xf]
  %v554 = vld [vmem:[%s1 + $0x7fc] sm:$0xf]
  %v555 = vld [vmem:[%s2] sm:$0x1]
  %v557 = vlaneseq
  %v558 = vshrl.u32 %v557, 7
  %v559 = vsub.s32 0, %v558
  %v560 = vrot.slane %v555, %v559
  %v578 = vunpack.c.l.b16 %v27
  %v579 = vunpack.c.h.b16 %v27
  %v580 = vunpack.c.l.b16 %v28
  %v581 = vunpack.c.h.b16 %v28
  %v582 = vunpack.c.l.b16 %v29
  %v583 = vunpack.c.h.b16 %v29
  %v584 = vunpack.c.l.b16 %v30
  %v585 = vunpack.c.h.b16 %v30
  %v586 = vunpack.c.l.b16 %v31
  %v587 = vunpack.c.h.b16 %v31
  %v588 = vunpack.c.l.b16 %v32
  %v589 = vunpack.c.h.b16 %v32
  %v590 = vunpack.c.l.b16 %v33
  %v591 = vunpack.c.h.b16 %v33
  %v592 = vunpack.c.l.b16 %v34
  %v593 = vunpack.c.h.b16 %v34
  %v594 = vunpack.c.l.b16 %v35
  %v595 = vunpack.c.h.b16 %v35
  %v596 = vunpack.c.l.b16 %v36
  %v597 = vunpack.c.h.b16 %v36
  %v598 = vunpack.c.l.b16 %v37
  %v599 = vunpack.c.h.b16 %v37
  %v600 = vunpack.c.l.b16 %v38
  %v601 = vunpack.c.h.b16 %v38
  %v602 = vunpack.c.l.b16 %v39
  %v603 = vunpack.c.h.b16 %v39
  %v604 = vunpack.c.l.b16 %v40
  %v605 = vunpack.c.h.b16 %v40
  %v606 = vunpack.c.l.b16 %v41
  %v607 = vunpack.c.h.b16 %v41
  %v608 = vunpack.c.l.b16 %v42
  %v609 = vunpack.c.h.b16 %v42
  %v610 = vpack.c.b16 %v578, %v578
  %v611 = vpack.c.b16 %v579, %v579
  %v612 = vpack.c.b16 %v580, %v580
  %v613 = vpack.c.b16 %v581, %v581
  %v614 = vpack.c.b16 %v582, %v582
  %v615 = vpack.c.b16 %v583, %v583
  %v616 = vpack.c.b16 %v584, %v584
  %v617 = vpack.c.b16 %v585, %v585
  %v618 = vpack.c.b16 %v586, %v586
  %v619 = vpack.c.b16 %v587, %v587
  %v620 = vpack.c.b16 %v588, %v588
  %v621 = vpack.c.b16 %v589, %v589
  %v622 = vpack.c.b16 %v590, %v590
  %v623 = vpack.c.b16 %v591, %v591
  %v624 = vpack.c.b16 %v592, %v592
  %v625 = vpack.c.b16 %v593, %v593
  %v626 = vpack.c.b16 %v594, %v594
  %v627 = vpack.c.b16 %v595, %v595
  %v628 = vpack.c.b16 %v596, %v596
  %v629 = vpack.c.b16 %v597, %v597
  %v630 = vpack.c.b16 %v598, %v598
  %v631 = vpack.c.b16 %v599, %v599
  %v632 = vpack.c.b16 %v600, %v600
  %v633 = vpack.c.b16 %v601, %v601
  %v634 = vpack.c.b16 %v602, %v602
  %v635 = vpack.c.b16 %v603, %v603
  %v636 = vpack.c.b16 %v604, %v604
  %v637 = vpack.c.b16 %v605, %v605
  %v638 = vpack.c.b16 %v606, %v606
  %v639 = vpack.c.b16 %v607, %v607
  %v640 = vpack.c.b16 %v608, %v608
  %v641 = vpack.c.b16 %v609, %v609
  %v1186 = vunpack.c.l.b16 %v43
  %v1187 = vunpack.c.l.b16 %v44
  %v1188 = vunpack.c.l.b16 %v45
  %v1189 = vunpack.c.l.b16 %v46
  %v1190 = vunpack.c.l.b16 %v47
  %v1191 = vunpack.c.l.b16 %v48
  %v1192 = vunpack.c.l.b16 %v49
  %v1193 = vunpack.c.l.b16 %v50
  %v1194 = vunpack.c.l.b16 %v51
  %v1195 = vunpack.c.l.b16 %v52
  %v1196 = vunpack.c.l.b16 %v53
  %v1197 = vunpack.c.l.b16 %v54
  %v1198 = vunpack.c.l.b16 %v55
  %v1199 = vunpack.c.l.b16 %v56
  %v1200 = vunpack.c.l.b16 %v57
  %v1201 = vunpack.c.l.b16 %v58
  %v1202 = vunpack.c.l.b16 %v59
  %v1203 = vunpack.c.l.b16 %v60
  %v1204 = vunpack.c.l.b16 %v61
  %v1205 = vunpack.c.l.b16 %v62
  %v1206 = vunpack.c.l.b16 %v63
  %v1207 = vunpack.c.l.b16 %v64
  %v1208 = vunpack.c.l.b16 %v65
  %v1209 = vunpack.c.l.b16 %v66
  %v1210 = vunpack.c.l.b16 %v67
  %v1211 = vunpack.c.l.b16 %v68
  %v1212 = vunpack.c.l.b16 %v69
  %v1213 = vunpack.c.l.b16 %v70
  %v1214 = vunpack.c.l.b16 %v71
  %v1215 = vunpack.c.l.b16 %v72
  %v1216 = vunpack.c.l.b16 %v73
  %v1217 = vunpack.c.l.b16 %v74
  %v1218 = vunpack.c.l.b16 %v75
  %v1219 = vunpack.c.l.b16 %v76
  %v1220 = vunpack.c.l.b16 %v77
  %v1221 = vunpack.c.l.b16 %v78
  %v1222 = vunpack.c.l.b16 %v79
  %v1223 = vunpack.c.l.b16 %v80
  %v1224 = vunpack.c.l.b16 %v81
  %v1225 = vunpack.c.l.b16 %v82
  %v1226 = vunpack.c.l.b16 %v83
  %v1227 = vunpack.c.l.b16 %v84
  %v1228 = vunpack.c.l.b16 %v85
  %v1229 = vunpack.c.l.b16 %v86
  %v1230 = vunpack.c.l.b16 %v87
  %v1231 = vunpack.c.l.b16 %v88
  %v1232 = vunpack.c.l.b16 %v89
  %v1233 = vunpack.c.l.b16 %v90
  %v1234 = vunpack.c.l.b16 %v91
  %v1235 = vunpack.c.l.b16 %v92
  %v1236 = vunpack.c.l.b16 %v93
  %v1237 = vunpack.c.l.b16 %v94
  %v1238 = vunpack.c.l.b16 %v95
  %v1239 = vunpack.c.l.b16 %v96
  %v1240 = vunpack.c.l.b16 %v97
  %v1241 = vunpack.c.l.b16 %v98
  %v1242 = vunpack.c.l.b16 %v99
  %v1243 = vunpack.c.l.b16 %v100
  %v1244 = vunpack.c.l.b16 %v101
  %v1245 = vunpack.c.l.b16 %v102
  %v1246 = vunpack.c.l.b16 %v103
  %v1247 = vunpack.c.l.b16 %v104
  %v1248 = vunpack.c.l.b16 %v105
  %v1249 = vunpack.c.l.b16 %v106
  %v1250 = vunpack.c.l.b16 %v107
  %v1251 = vunpack.c.l.b16 %v108
  %v1252 = vunpack.c.l.b16 %v109
  %v1253 = vunpack.c.l.b16 %v110
  %v1254 = vunpack.c.l.b16 %v111
  %v1255 = vunpack.c.l.b16 %v112
  %v1256 = vunpack.c.l.b16 %v113
  %v1257 = vunpack.c.l.b16 %v114
  %v1258 = vunpack.c.l.b16 %v115
  %v1259 = vunpack.c.l.b16 %v116
  %v1260 = vunpack.c.l.b16 %v117
  %v1261 = vunpack.c.l.b16 %v118
  %v1262 = vunpack.c.l.b16 %v119
  %v1263 = vunpack.c.l.b16 %v120
  %v1264 = vunpack.c.l.b16 %v121
  %v1265 = vunpack.c.l.b16 %v122
  %v1266 = vunpack.c.l.b16 %v123
  %v1267 = vunpack.c.l.b16 %v124
  %v1268 = vunpack.c.l.b16 %v125
  %v1269 = vunpack.c.l.b16 %v126
  %v1270 = vunpack.c.l.b16 %v127
  %v1271 = vunpack.c.l.b16 %v128
  %v1272 = vunpack.c.l.b16 %v129
  %v1273 = vunpack.c.l.b16 %v130
  %v1274 = vunpack.c.l.b16 %v131
  %v1275 = vunpack.c.l.b16 %v132
  %v1276 = vunpack.c.l.b16 %v133
  %v1277 = vunpack.c.l.b16 %v134
  %v1278 = vunpack.c.l.b16 %v135
  %v1279 = vunpack.c.l.b16 %v136
  %v1280 = vunpack.c.l.b16 %v137
  %v1281 = vunpack.c.l.b16 %v138
  %v1282 = vunpack.c.l.b16 %v139
  %v1283 = vunpack.c.l.b16 %v140
  %v1284 = vunpack.c.l.b16 %v141
  %v1285 = vunpack.c.l.b16 %v142
  %v1286 = vunpack.c.l.b16 %v143
  %v1287 = vunpack.c.l.b16 %v144
  %v1288 = vunpack.c.l.b16 %v145
  %v1289 = vunpack.c.l.b16 %v146
  %v1290 = vunpack.c.l.b16 %v147
  %v1291 = vunpack.c.l.b16 %v148
  %v1292 = vunpack.c.l.b16 %v149
  %v1293 = vunpack.c.l.b16 %v150
  %v1294 = vunpack.c.l.b16 %v151
  %v1295 = vunpack.c.l.b16 %v152
  %v1296 = vunpack.c.l.b16 %v153
  %v1297 = vunpack.c.l.b16 %v154
  %v1298 = vunpack.c.l.b16 %v155
  %v1299 = vunpack.c.l.b16 %v156
  %v1300 = vunpack.c.l.b16 %v157
  %v1301 = vunpack.c.l.b16 %v158
  %v1302 = vunpack.c.l.b16 %v159
  %v1303 = vunpack.c.l.b16 %v160
  %v1304 = vunpack.c.l.b16 %v161
  %v1305 = vunpack.c.l.b16 %v162
  %v1306 = vunpack.c.l.b16 %v163
  %v1307 = vunpack.c.l.b16 %v164
  %v1308 = vunpack.c.l.b16 %v165
  %v1309 = vunpack.c.l.b16 %v166
  %v1310 = vunpack.c.l.b16 %v167
  %v1311 = vunpack.c.l.b16 %v168
  %v1312 = vunpack.c.l.b16 %v169
  %v1313 = vunpack.c.l.b16 %v170
  %v1314 = vunpack.c.l.b16 %v171
  %v1315 = vunpack.c.l.b16 %v172
  %v1316 = vunpack.c.l.b16 %v173
  %v1317 = vunpack.c.l.b16 %v174
  %v1318 = vunpack.c.l.b16 %v175
  %v1319 = vunpack.c.l.b16 %v176
  %v1320 = vunpack.c.l.b16 %v177
  %v1321 = vunpack.c.l.b16 %v178
  %v1322 = vunpack.c.l.b16 %v179
  %v1323 = vunpack.c.l.b16 %v180
  %v1324 = vunpack.c.l.b16 %v181
  %v1325 = vunpack.c.l.b16 %v182
  %v1326 = vunpack.c.l.b16 %v183
  %v1327 = vunpack.c.l.b16 %v184
  %v1328 = vunpack.c.l.b16 %v185
  %v1329 = vunpack.c.l.b16 %v186
  %v1330 = vunpack.c.l.b16 %v187
  %v1331 = vunpack.c.l.b16 %v188
  %v1332 = vunpack.c.l.b16 %v189
  %v1333 = vunpack.c.l.b16 %v190
  %v1334 = vunpack.c.l.b16 %v191
  %v1335 = vunpack.c.l.b16 %v192
  %v1336 = vunpack.c.l.b16 %v193
  %v1337 = vunpack.c.l.b16 %v194
  %v1338 = vunpack.c.l.b16 %v195
  %v1339 = vunpack.c.l.b16 %v196
  %v1340 = vunpack.c.l.b16 %v197
  %v1341 = vunpack.c.l.b16 %v198
  %v1342 = vunpack.c.l.b16 %v199
  %v1343 = vunpack.c.l.b16 %v200
  %v1344 = vunpack.c.l.b16 %v201
  %v1345 = vunpack.c.l.b16 %v202
  %v1346 = vunpack.c.l.b16 %v203
  %v1347 = vunpack.c.l.b16 %v204
  %v1348 = vunpack.c.l.b16 %v205
  %v1349 = vunpack.c.l.b16 %v206
  %v1350 = vunpack.c.l.b16 %v207
  %v1351 = vunpack.c.l.b16 %v208
  %v1352 = vunpack.c.l.b16 %v209
  %v1353 = vunpack.c.l.b16 %v210
  %v1354 = vunpack.c.l.b16 %v211
  %v1355 = vunpack.c.l.b16 %v212
  %v1356 = vunpack.c.l.b16 %v213
  %v1357 = vunpack.c.l.b16 %v214
  %v1358 = vunpack.c.l.b16 %v215
  %v1359 = vunpack.c.l.b16 %v216
  %v1360 = vunpack.c.l.b16 %v217
  %v1361 = vunpack.c.l.b16 %v218
  %v1362 = vunpack.c.l.b16 %v219
  %v1363 = vunpack.c.l.b16 %v220
  %v1364 = vunpack.c.l.b16 %v221
  %v1365 = vunpack.c.l.b16 %v222
  %v1366 = vunpack.c.l.b16 %v223
  %v1367 = vunpack.c.l.b16 %v224
  %v1368 = vunpack.c.l.b16 %v225
  %v1369 = vunpack.c.l.b16 %v226
  %v1370 = vunpack.c.l.b16 %v227
  %v1371 = vunpack.c.l.b16 %v228
  %v1372 = vunpack.c.l.b16 %v229
  %v1373 = vunpack.c.l.b16 %v230
  %v1374 = vunpack.c.l.b16 %v231
  %v1375 = vunpack.c.l.b16 %v232
  %v1376 = vunpack.c.l.b16 %v233
  %v1377 = vunpack.c.l.b16 %v234
  %v1378 = vunpack.c.l.b16 %v235
  %v1379 = vunpack.c.l.b16 %v236
  %v1380 = vunpack.c.l.b16 %v237
  %v1381 = vunpack.c.l.b16 %v238
  %v1382 = vunpack.c.l.b16 %v239
  %v1383 = vunpack.c.l.b16 %v240
  %v1384 = vunpack.c.l.b16 %v241
  %v1385 = vunpack.c.l.b16 %v242
  %v1386 = vunpack.c.l.b16 %v243
  %v1387 = vunpack.c.l.b16 %v244
  %v1388 = vunpack.c.l.b16 %v245
  %v1389 = vunpack.c.l.b16 %v246
  %v1390 = vunpack.c.l.b16 %v247
  %v1391 = vunpack.c.l.b16 %v248
  %v1392 = vunpack.c.l.b16 %v249
  %v1393 = vunpack.c.l.b16 %v250
  %v1394 = vunpack.c.l.b16 %v251
  %v1395 = vunpack.c.l.b16 %v252
  %v1396 = vunpack.c.l.b16 %v253
  %v1397 = vunpack.c.l.b16 %v254
  %v1398 = vunpack.c.l.b16 %v255
  %v1399 = vunpack.c.l.b16 %v256
  %v1400 = vunpack.c.l.b16 %v257
  %v1401 = vunpack.c.l.b16 %v258
  %v1402 = vunpack.c.l.b16 %v259
  %v1403 = vunpack.c.l.b16 %v260
  %v1404 = vunpack.c.l.b16 %v261
  %v1405 = vunpack.c.l.b16 %v262
  %v1406 = vunpack.c.l.b16 %v263
  %v1407 = vunpack.c.l.b16 %v264
  %v1408 = vunpack.c.l.b16 %v265
  %v1409 = vunpack.c.l.b16 %v266
  %v1410 = vunpack.c.l.b16 %v267
  %v1411 = vunpack.c.l.b16 %v268
  %v1412 = vunpack.c.l.b16 %v269
  %v1413 = vunpack.c.l.b16 %v270
  %v1414 = vunpack.c.l.b16 %v271
  %v1415 = vunpack.c.l.b16 %v272
  %v1416 = vunpack.c.l.b16 %v273
  %v1417 = vunpack.c.l.b16 %v274
  %v1418 = vunpack.c.l.b16 %v275
  %v1419 = vunpack.c.l.b16 %v276
  %v1420 = vunpack.c.l.b16 %v277
  %v1421 = vunpack.c.l.b16 %v278
  %v1422 = vunpack.c.l.b16 %v279
  %v1423 = vunpack.c.l.b16 %v280
  %v1424 = vunpack.c.l.b16 %v281
  %v1425 = vunpack.c.l.b16 %v282
  %v1426 = vunpack.c.l.b16 %v283
  %v1427 = vunpack.c.l.b16 %v284
  %v1428 = vunpack.c.l.b16 %v285
  %v1429 = vunpack.c.l.b16 %v286
  %v1430 = vunpack.c.l.b16 %v287
  %v1431 = vunpack.c.l.b16 %v288
  %v1432 = vunpack.c.l.b16 %v289
  %v1433 = vunpack.c.l.b16 %v290
  %v1434 = vunpack.c.l.b16 %v291
  %v1435 = vunpack.c.l.b16 %v292
  %v1436 = vunpack.c.l.b16 %v293
  %v1437 = vunpack.c.l.b16 %v294
  %v1438 = vunpack.c.l.b16 %v295
  %v1439 = vunpack.c.l.b16 %v296
  %v1440 = vunpack.c.l.b16 %v297
  %v1441 = vunpack.c.l.b16 %v298
  %v1442 = vunpack.c.l.b16 %v299
  %v1443 = vunpack.c.l.b16 %v300
  %v1444 = vunpack.c.l.b16 %v301
  %v1445 = vunpack.c.l.b16 %v302
  %v1446 = vunpack.c.l.b16 %v303
  %v1447 = vunpack.c.l.b16 %v304
  %v1448 = vunpack.c.l.b16 %v305
  %v1449 = vunpack.c.l.b16 %v306
  %v1450 = vunpack.c.l.b16 %v307
  %v1451 = vunpack.c.l.b16 %v308
  %v1452 = vunpack.c.l.b16 %v309
  %v1453 = vunpack.c.l.b16 %v310
  %v1454 = vunpack.c.l.b16 %v311
  %v1455 = vunpack.c.l.b16 %v312
  %v1456 = vunpack.c.l.b16 %v313
  %v1457 = vunpack.c.l.b16 %v314
  %v1458 = vunpack.c.l.b16 %v315
  %v1459 = vunpack.c.l.b16 %v316
  %v1460 = vunpack.c.l.b16 %v317
  %v1461 = vunpack.c.l.b16 %v318
  %v1462 = vunpack.c.l.b16 %v319
  %v1463 = vunpack.c.l.b16 %v320
  %v1464 = vunpack.c.l.b16 %v321
  %v1465 = vunpack.c.l.b16 %v322
  %v1466 = vunpack.c.l.b16 %v323
  %v1467 = vunpack.c.l.b16 %v324
  %v1468 = vunpack.c.l.b16 %v325
  %v1469 = vunpack.c.l.b16 %v326
  %v1470 = vunpack.c.l.b16 %v327
  %v1471 = vunpack.c.l.b16 %v328
  %v1472 = vunpack.c.l.b16 %v329
  %v1473 = vunpack.c.l.b16 %v330
  %v1474 = vunpack.c.l.b16 %v331
  %v1475 = vunpack.c.l.b16 %v332
  %v1476 = vunpack.c.l.b16 %v333
  %v1477 = vunpack.c.l.b16 %v334
  %v1478 = vunpack.c.l.b16 %v335
  %v1479 = vunpack.c.l.b16 %v336
  %v1480 = vunpack.c.l.b16 %v337
  %v1481 = vunpack.c.l.b16 %v338
  %v1482 = vunpack.c.l.b16 %v339
  %v1483 = vunpack.c.l.b16 %v340
  %v1484 = vunpack.c.l.b16 %v341
  %v1485 = vunpack.c.l.b16 %v342
  %v1486 = vunpack.c.l.b16 %v343
  %v1487 = vunpack.c.l.b16 %v344
  %v1488 = vunpack.c.l.b16 %v345
  %v1489 = vunpack.c.l.b16 %v346
  %v1490 = vunpack.c.l.b16 %v347
  %v1491 = vunpack.c.l.b16 %v348
  %v1492 = vunpack.c.l.b16 %v349
  %v1493 = vunpack.c.l.b16 %v350
  %v1494 = vunpack.c.l.b16 %v351
  %v1495 = vunpack.c.l.b16 %v352
  %v1496 = vunpack.c.l.b16 %v353
  %v1497 = vunpack.c.l.b16 %v354
  %v1498 = vunpack.c.l.b16 %v355
  %v1499 = vunpack.c.l.b16 %v356
  %v1500 = vunpack.c.l.b16 %v357
  %v1501 = vunpack.c.l.b16 %v358
  %v1502 = vunpack.c.l.b16 %v359
  %v1503 = vunpack.c.l.b16 %v360
  %v1504 = vunpack.c.l.b16 %v361
  %v1505 = vunpack.c.l.b16 %v362
  %v1506 = vunpack.c.l.b16 %v363
  %v1507 = vunpack.c.l.b16 %v364
  %v1508 = vunpack.c.l.b16 %v365
  %v1509 = vunpack.c.l.b16 %v366
  %v1510 = vunpack.c.l.b16 %v367
  %v1511 = vunpack.c.l.b16 %v368
  %v1512 = vunpack.c.l.b16 %v369
  %v1513 = vunpack.c.l.b16 %v370
  %v1514 = vunpack.c.l.b16 %v371
  %v1515 = vunpack.c.l.b16 %v372
  %v1516 = vunpack.c.l.b16 %v373
  %v1517 = vunpack.c.l.b16 %v374
  %v1518 = vunpack.c.l.b16 %v375
  %v1519 = vunpack.c.l.b16 %v376
  %v1520 = vunpack.c.l.b16 %v377
  %v1521 = vunpack.c.l.b16 %v378
  %v1522 = vunpack.c.l.b16 %v379
  %v1523 = vunpack.c.l.b16 %v380
  %v1524 = vunpack.c.l.b16 %v381
  %v1525 = vunpack.c.l.b16 %v382
  %v1526 = vunpack.c.l.b16 %v383
  %v1527 = vunpack.c.l.b16 %v384
  %v1528 = vunpack.c.l.b16 %v385
  %v1529 = vunpack.c.l.b16 %v386
  %v1530 = vunpack.c.l.b16 %v387
  %v1531 = vunpack.c.l.b16 %v388
  %v1532 = vunpack.c.l.b16 %v389
  %v1533 = vunpack.c.l.b16 %v390
  %v1534 = vunpack.c.l.b16 %v391
  %v1535 = vunpack.c.l.b16 %v392
  %v1536 = vunpack.c.l.b16 %v393
  %v1537 = vunpack.c.l.b16 %v394
  %v1538 = vunpack.c.l.b16 %v395
  %v1539 = vunpack.c.l.b16 %v396
  %v1540 = vunpack.c.l.b16 %v397
  %v1541 = vunpack.c.l.b16 %v398
  %v1542 = vunpack.c.l.b16 %v399
  %v1543 = vunpack.c.l.b16 %v400
  %v1544 = vunpack.c.l.b16 %v401
  %v1545 = vunpack.c.l.b16 %v402
  %v1546 = vunpack.c.l.b16 %v403
  %v1547 = vunpack.c.l.b16 %v404
  %v1548 = vunpack.c.l.b16 %v405
  %v1549 = vunpack.c.l.b16 %v406
  %v1550 = vunpack.c.l.b16 %v407
  %v1551 = vunpack.c.l.b16 %v408
  %v1552 = vunpack.c.l.b16 %v409
  %v1553 = vunpack.c.l.b16 %v410
  %v1554 = vunpack.c.l.b16 %v411
  %v1555 = vunpack.c.l.b16 %v412
  %v1556 = vunpack.c.l.b16 %v413
  %v1557 = vunpack.c.l.b16 %v414
  %v1558 = vunpack.c.l.b16 %v415
  %v1559 = vunpack.c.l.b16 %v416
  %v1560 = vunpack.c.l.b16 %v417
  %v1561 = vunpack.c.l.b16 %v418
  %v1562 = vunpack.c.l.b16 %v419
  %v1563 = vunpack.c.l.b16 %v420
  %v1564 = vunpack.c.l.b16 %v421
  %v1565 = vunpack.c.l.b16 %v422
  %v1566 = vunpack.c.l.b16 %v423
  %v1567 = vunpack.c.l.b16 %v424
  %v1568 = vunpack.c.l.b16 %v425
  %v1569 = vunpack.c.l.b16 %v426
  %v1570 = vunpack.c.l.b16 %v427
  %v1571 = vunpack.c.l.b16 %v428
  %v1572 = vunpack.c.l.b16 %v429
  %v1573 = vunpack.c.l.b16 %v430
  %v1574 = vunpack.c.l.b16 %v431
  %v1575 = vunpack.c.l.b16 %v432
  %v1576 = vunpack.c.l.b16 %v433
  %v1577 = vunpack.c.l.b16 %v434
  %v1578 = vunpack.c.l.b16 %v435
  %v1579 = vunpack.c.l.b16 %v436
  %v1580 = vunpack.c.l.b16 %v437
  %v1581 = vunpack.c.l.b16 %v438
  %v1582 = vunpack.c.l.b16 %v439
  %v1583 = vunpack.c.l.b16 %v440
  %v1584 = vunpack.c.l.b16 %v441
  %v1585 = vunpack.c.l.b16 %v442
  %v1586 = vunpack.c.l.b16 %v443
  %v1587 = vunpack.c.l.b16 %v444
  %v1588 = vunpack.c.l.b16 %v445
  %v1589 = vunpack.c.l.b16 %v446
  %v1590 = vunpack.c.l.b16 %v447
  %v1591 = vunpack.c.l.b16 %v448
  %v1592 = vunpack.c.l.b16 %v449
  %v1593 = vunpack.c.l.b16 %v450
  %v1594 = vunpack.c.l.b16 %v451
  %v1595 = vunpack.c.l.b16 %v452
  %v1596 = vunpack.c.l.b16 %v453
  %v1597 = vunpack.c.l.b16 %v454
  %v1598 = vunpack.c.l.b16 %v455
  %v1599 = vunpack.c.l.b16 %v456
  %v1600 = vunpack.c.l.b16 %v457
  %v1601 = vunpack.c.l.b16 %v458
  %v1602 = vunpack.c.l.b16 %v459
  %v1603 = vunpack.c.l.b16 %v460
  %v1604 = vunpack.c.l.b16 %v461
  %v1605 = vunpack.c.l.b16 %v462
  %v1606 = vunpack.c.l.b16 %v463
  %v1607 = vunpack.c.l.b16 %v464
  %v1608 = vunpack.c.l.b16 %v465
  %v1609 = vunpack.c.l.b16 %v466
  %v1610 = vunpack.c.l.b16 %v467
  %v1611 = vunpack.c.l.b16 %v468
  %v1612 = vunpack.c.l.b16 %v469
  %v1613 = vunpack.c.l.b16 %v470
  %v1614 = vunpack.c.l.b16 %v471
  %v1615 = vunpack.c.l.b16 %v472
  %v1616 = vunpack.c.l.b16 %v473
  %v1617 = vunpack.c.l.b16 %v474
  %v1618 = vunpack.c.l.b16 %v475
  %v1619 = vunpack.c.l.b16 %v476
  %v1620 = vunpack.c.l.b16 %v477
  %v1621 = vunpack.c.l.b16 %v478
  %v1622 = vunpack.c.l.b16 %v479
  %v1623 = vunpack.c.l.b16 %v480
  %v1624 = vunpack.c.l.b16 %v481
  %v1625 = vunpack.c.l.b16 %v482
  %v1626 = vunpack.c.l.b16 %v483
  %v1627 = vunpack.c.l.b16 %v484
  %v1628 = vunpack.c.l.b16 %v485
  %v1629 = vunpack.c.l.b16 %v486
  %v1630 = vunpack.c.l.b16 %v487
  %v1631 = vunpack.c.l.b16 %v488
  %v1632 = vunpack.c.l.b16 %v489
  %v1633 = vunpack.c.l.b16 %v490
  %v1634 = vunpack.c.l.b16 %v491
  %v1635 = vunpack.c.l.b16 %v492
  %v1636 = vunpack.c.l.b16 %v493
  %v1637 = vunpack.c.l.b16 %v494
  %v1638 = vunpack.c.l.b16 %v495
  %v1639 = vunpack.c.l.b16 %v496
  %v1640 = vunpack.c.l.b16 %v497
  %v1641 = vunpack.c.l.b16 %v498
  %v1642 = vunpack.c.l.b16 %v499
  %v1643 = vunpack.c.l.b16 %v500
  %v1644 = vunpack.c.l.b16 %v501
  %v1645 = vunpack.c.l.b16 %v502
  %v1646 = vunpack.c.l.b16 %v503
  %v1647 = vunpack.c.l.b16 %v504
  %v1648 = vunpack.c.l.b16 %v505
  %v1649 = vunpack.c.l.b16 %v506
  %v1650 = vunpack.c.l.b16 %v507
  %v1651 = vunpack.c.l.b16 %v508
  %v1652 = vunpack.c.l.b16 %v509
  %v1653 = vunpack.c.l.b16 %v510
  %v1654 = vunpack.c.l.b16 %v511
  %v1655 = vunpack.c.l.b16 %v512
  %v1656 = vunpack.c.l.b16 %v513
  %v1657 = vunpack.c.l.b16 %v514
  %v1658 = vunpack.c.l.b16 %v515
  %v1659 = vunpack.c.l.b16 %v516
  %v1660 = vunpack.c.l.b16 %v517
  %v1661 = vunpack.c.l.b16 %v518
  %v1662 = vunpack.c.l.b16 %v519
  %v1663 = vunpack.c.l.b16 %v520
  %v1664 = vunpack.c.l.b16 %v521
  %v1665 = vunpack.c.l.b16 %v522
  %v1666 = vunpack.c.l.b16 %v523
  %v1667 = vunpack.c.l.b16 %v524
  %v1668 = vunpack.c.l.b16 %v525
  %v1669 = vunpack.c.l.b16 %v526
  %v1670 = vunpack.c.l.b16 %v527
  %v1671 = vunpack.c.l.b16 %v528
  %v1672 = vunpack.c.l.b16 %v529
  %v1673 = vunpack.c.l.b16 %v530
  %v1674 = vunpack.c.l.b16 %v531
  %v1675 = vunpack.c.l.b16 %v532
  %v1676 = vunpack.c.l.b16 %v533
  %v1677 = vunpack.c.l.b16 %v534
  %v1678 = vunpack.c.l.b16 %v535
  %v1679 = vunpack.c.l.b16 %v536
  %v1680 = vunpack.c.l.b16 %v537
  %v1681 = vunpack.c.l.b16 %v538
  %v1682 = vunpack.c.l.b16 %v539
  %v1683 = vunpack.c.l.b16 %v540
  %v1684 = vunpack.c.l.b16 %v541
  %v1685 = vunpack.c.l.b16 %v542
  %v1686 = vunpack.c.l.b16 %v543
  %v1687 = vunpack.c.l.b16 %v544
  %v1688 = vunpack.c.l.b16 %v545
  %v1689 = vunpack.c.l.b16 %v546
  %v1690 = vunpack.c.l.b16 %v547
  %v1691 = vunpack.c.l.b16 %v548
  %v1692 = vunpack.c.l.b16 %v549
  %v1693 = vunpack.c.l.b16 %v550
  %v1694 = vunpack.c.l.b16 %v551
  %v1695 = vunpack.c.l.b16 %v552
  %v1696 = vunpack.c.l.b16 %v553
  %v1697 = vunpack.c.l.b16 %v554
  %v1698 = vpack.c.b16 %v1187, %v1186
  %v1699 = vpack.c.b16 %v1189, %v1188
  %v1700 = vpack.c.b16 %v1191, %v1190
  %v1701 = vpack.c.b16 %v1193, %v1192
  %v1702 = vpack.c.b16 %v1195, %v1194
  %v1703 = vpack.c.b16 %v1197, %v1196
  %v1704 = vpack.c.b16 %v1199, %v1198
  %v1705 = vpack.c.b16 %v1201, %v1200
  %v1706 = vpack.c.b16 %v1203, %v1202
  %v1707 = vpack.c.b16 %v1205, %v1204
  %v1708 = vpack.c.b16 %v1207, %v1206
  %v1709 = vpack.c.b16 %v1209, %v1208
  %v1710 = vpack.c.b16 %v1211, %v1210
  %v1711 = vpack.c.b16 %v1213, %v1212
  %v1712 = vpack.c.b16 %v1215, %v1214
  %v1713 = vpack.c.b16 %v1217, %v1216
  %v1714 = vpack.c.b16 %v1219, %v1218
  %v1715 = vpack.c.b16 %v1221, %v1220
  %v1716 = vpack.c.b16 %v1223, %v1222
  %v1717 = vpack.c.b16 %v1225, %v1224
  %v1718 = vpack.c.b16 %v1227, %v1226
  %v1719 = vpack.c.b16 %v1229, %v1228
  %v1720 = vpack.c.b16 %v1231, %v1230
  %v1721 = vpack.c.b16 %v1233, %v1232
  %v1722 = vpack.c.b16 %v1235, %v1234
  %v1723 = vpack.c.b16 %v1237, %v1236
  %v1724 = vpack.c.b16 %v1239, %v1238
  %v1725 = vpack.c.b16 %v1241, %v1240
  %v1726 = vpack.c.b16 %v1243, %v1242
  %v1727 = vpack.c.b16 %v1245, %v1244
  %v1728 = vpack.c.b16 %v1247, %v1246
  %v1729 = vpack.c.b16 %v1249, %v1248
  %v1730 = vpack.c.b16 %v1251, %v1250
  %v1731 = vpack.c.b16 %v1253, %v1252
  %v1732 = vpack.c.b16 %v1255, %v1254
  %v1733 = vpack.c.b16 %v1257, %v1256
  %v1734 = vpack.c.b16 %v1259, %v1258
  %v1735 = vpack.c.b16 %v1261, %v1260
  %v1736 = vpack.c.b16 %v1263, %v1262
  %v1737 = vpack.c.b16 %v1265, %v1264
  %v1738 = vpack.c.b16 %v1267, %v1266
  %v1739 = vpack.c.b16 %v1269, %v1268
  %v1740 = vpack.c.b16 %v1271, %v1270
  %v1741 = vpack.c.b16 %v1273, %v1272
  %v1742 = vpack.c.b16 %v1275, %v1274
  %v1743 = vpack.c.b16 %v1277, %v1276
  %v1744 = vpack.c.b16 %v1279, %v1278
  %v1745 = vpack.c.b16 %v1281, %v1280
  %v1746 = vpack.c.b16 %v1283, %v1282
  %v1747 = vpack.c.b16 %v1285, %v1284
  %v1748 = vpack.c.b16 %v1287, %v1286
  %v1749 = vpack.c.b16 %v1289, %v1288
  %v1750 = vpack.c.b16 %v1291, %v1290
  %v1751 = vpack.c.b16 %v1293, %v1292
  %v1752 = vpack.c.b16 %v1295, %v1294
  %v1753 = vpack.c.b16 %v1297, %v1296
  %v1754 = vpack.c.b16 %v1299, %v1298
  %v1755 = vpack.c.b16 %v1301, %v1300
  %v1756 = vpack.c.b16 %v1303, %v1302
  %v1757 = vpack.c.b16 %v1305, %v1304
  %v1758 = vpack.c.b16 %v1307, %v1306
  %v1759 = vpack.c.b16 %v1309, %v1308
  %v1760 = vpack.c.b16 %v1311, %v1310
  %v1761 = vpack.c.b16 %v1313, %v1312
  %v1762 = vpack.c.b16 %v1315, %v1314
  %v1763 = vpack.c.b16 %v1317, %v1316
  %v1764 = vpack.c.b16 %v1319, %v1318
  %v1765 = vpack.c.b16 %v1321, %v1320
  %v1766 = vpack.c.b16 %v1323, %v1322
  %v1767 = vpack.c.b16 %v1325, %v1324
  %v1768 = vpack.c.b16 %v1327, %v1326
  %v1769 = vpack.c.b16 %v1329, %v1328
  %v1770 = vpack.c.b16 %v1331, %v1330
  %v1771 = vpack.c.b16 %v1333, %v1332
  %v1772 = vpack.c.b16 %v1335, %v1334
  %v1773 = vpack.c.b16 %v1337, %v1336
  %v1774 = vpack.c.b16 %v1339, %v1338
  %v1775 = vpack.c.b16 %v1341, %v1340
  %v1776 = vpack.c.b16 %v1343, %v1342
  %v1777 = vpack.c.b16 %v1345, %v1344
  %v1778 = vpack.c.b16 %v1347, %v1346
  %v1779 = vpack.c.b16 %v1349, %v1348
  %v1780 = vpack.c.b16 %v1351, %v1350
  %v1781 = vpack.c.b16 %v1353, %v1352
  %v1782 = vpack.c.b16 %v1355, %v1354
  %v1783 = vpack.c.b16 %v1357, %v1356
  %v1784 = vpack.c.b16 %v1359, %v1358
  %v1785 = vpack.c.b16 %v1361, %v1360
  %v1786 = vpack.c.b16 %v1363, %v1362
  %v1787 = vpack.c.b16 %v1365, %v1364
  %v1788 = vpack.c.b16 %v1367, %v1366
  %v1789 = vpack.c.b16 %v1369, %v1368
  %v1790 = vpack.c.b16 %v1371, %v1370
  %v1791 = vpack.c.b16 %v1373, %v1372
  %v1792 = vpack.c.b16 %v1375, %v1374
  %v1793 = vpack.c.b16 %v1377, %v1376
  %v1794 = vpack.c.b16 %v1379, %v1378
  %v1795 = vpack.c.b16 %v1381, %v1380
  %v1796 = vpack.c.b16 %v1383, %v1382
  %v1797 = vpack.c.b16 %v1385, %v1384
  %v1798 = vpack.c.b16 %v1387, %v1386
  %v1799 = vpack.c.b16 %v1389, %v1388
  %v1800 = vpack.c.b16 %v1391, %v1390
  %v1801 = vpack.c.b16 %v1393, %v1392
  %v1802 = vpack.c.b16 %v1395, %v1394
  %v1803 = vpack.c.b16 %v1397, %v1396
  %v1804 = vpack.c.b16 %v1399, %v1398
  %v1805 = vpack.c.b16 %v1401, %v1400
  %v1806 = vpack.c.b16 %v1403, %v1402
  %v1807 = vpack.c.b16 %v1405, %v1404
  %v1808 = vpack.c.b16 %v1407, %v1406
  %v1809 = vpack.c.b16 %v1409, %v1408
  %v1810 = vpack.c.b16 %v1411, %v1410
  %v1811 = vpack.c.b16 %v1413, %v1412
  %v1812 = vpack.c.b16 %v1415, %v1414
  %v1813 = vpack.c.b16 %v1417, %v1416
  %v1814 = vpack.c.b16 %v1419, %v1418
  %v1815 = vpack.c.b16 %v1421, %v1420
  %v1816 = vpack.c.b16 %v1423, %v1422
  %v1817 = vpack.c.b16 %v1425, %v1424
  %v1818 = vpack.c.b16 %v1427, %v1426
  %v1819 = vpack.c.b16 %v1429, %v1428
  %v1820 = vpack.c.b16 %v1431, %v1430
  %v1821 = vpack.c.b16 %v1433, %v1432
  %v1822 = vpack.c.b16 %v1435, %v1434
  %v1823 = vpack.c.b16 %v1437, %v1436
  %v1824 = vpack.c.b16 %v1439, %v1438
  %v1825 = vpack.c.b16 %v1441, %v1440
  %v1826 = vpack.c.b16 %v1443, %v1442
  %v1827 = vpack.c.b16 %v1445, %v1444
  %v1828 = vpack.c.b16 %v1447, %v1446
  %v1829 = vpack.c.b16 %v1449, %v1448
  %v1830 = vpack.c.b16 %v1451, %v1450
  %v1831 = vpack.c.b16 %v1453, %v1452
  %v1832 = vpack.c.b16 %v1455, %v1454
  %v1833 = vpack.c.b16 %v1457, %v1456
  %v1834 = vpack.c.b16 %v1459, %v1458
  %v1835 = vpack.c.b16 %v1461, %v1460
  %v1836 = vpack.c.b16 %v1463, %v1462
  %v1837 = vpack.c.b16 %v1465, %v1464
  %v1838 = vpack.c.b16 %v1467, %v1466
  %v1839 = vpack.c.b16 %v1469, %v1468
  %v1840 = vpack.c.b16 %v1471, %v1470
  %v1841 = vpack.c.b16 %v1473, %v1472
  %v1842 = vpack.c.b16 %v1475, %v1474
  %v1843 = vpack.c.b16 %v1477, %v1476
  %v1844 = vpack.c.b16 %v1479, %v1478
  %v1845 = vpack.c.b16 %v1481, %v1480
  %v1846 = vpack.c.b16 %v1483, %v1482
  %v1847 = vpack.c.b16 %v1485, %v1484
  %v1848 = vpack.c.b16 %v1487, %v1486
  %v1849 = vpack.c.b16 %v1489, %v1488
  %v1850 = vpack.c.b16 %v1491, %v1490
  %v1851 = vpack.c.b16 %v1493, %v1492
  %v1852 = vpack.c.b16 %v1495, %v1494
  %v1853 = vpack.c.b16 %v1497, %v1496
  %v1854 = vpack.c.b16 %v1499, %v1498
  %v1855 = vpack.c.b16 %v1501, %v1500
  %v1856 = vpack.c.b16 %v1503, %v1502
  %v1857 = vpack.c.b16 %v1505, %v1504
  %v1858 = vpack.c.b16 %v1507, %v1506
  %v1859 = vpack.c.b16 %v1509, %v1508
  %v1860 = vpack.c.b16 %v1511, %v1510
  %v1861 = vpack.c.b16 %v1513, %v1512
  %v1862 = vpack.c.b16 %v1515, %v1514
  %v1863 = vpack.c.b16 %v1517, %v1516
  %v1864 = vpack.c.b16 %v1519, %v1518
  %v1865 = vpack.c.b16 %v1521, %v1520
  %v1866 = vpack.c.b16 %v1523, %v1522
  %v1867 = vpack.c.b16 %v1525, %v1524
  %v1868 = vpack.c.b16 %v1527, %v1526
  %v1869 = vpack.c.b16 %v1529, %v1528
  %v1870 = vpack.c.b16 %v1531, %v1530
  %v1871 = vpack.c.b16 %v1533, %v1532
  %v1872 = vpack.c.b16 %v1535, %v1534
  %v1873 = vpack.c.b16 %v1537, %v1536
  %v1874 = vpack.c.b16 %v1539, %v1538
  %v1875 = vpack.c.b16 %v1541, %v1540
  %v1876 = vpack.c.b16 %v1543, %v1542
  %v1877 = vpack.c.b16 %v1545, %v1544
  %v1878 = vpack.c.b16 %v1547, %v1546
  %v1879 = vpack.c.b16 %v1549, %v1548
  %v1880 = vpack.c.b16 %v1551, %v1550
  %v1881 = vpack.c.b16 %v1553, %v1552
  %v1882 = vpack.c.b16 %v1555, %v1554
  %v1883 = vpack.c.b16 %v1557, %v1556
  %v1884 = vpack.c.b16 %v1559, %v1558
  %v1885 = vpack.c.b16 %v1561, %v1560
  %v1886 = vpack.c.b16 %v1563, %v1562
  %v1887 = vpack.c.b16 %v1565, %v1564
  %v1888 = vpack.c.b16 %v1567, %v1566
  %v1889 = vpack.c.b16 %v1569, %v1568
  %v1890 = vpack.c.b16 %v1571, %v1570
  %v1891 = vpack.c.b16 %v1573, %v1572
  %v1892 = vpack.c.b16 %v1575, %v1574
  %v1893 = vpack.c.b16 %v1577, %v1576
  %v1894 = vpack.c.b16 %v1579, %v1578
  %v1895 = vpack.c.b16 %v1581, %v1580
  %v1896 = vpack.c.b16 %v1583, %v1582
  %v1897 = vpack.c.b16 %v1585, %v1584
  %v1898 = vpack.c.b16 %v1587, %v1586
  %v1899 = vpack.c.b16 %v1589, %v1588
  %v1900 = vpack.c.b16 %v1591, %v1590
  %v1901 = vpack.c.b16 %v1593, %v1592
  %v1902 = vpack.c.b16 %v1595, %v1594
  %v1903 = vpack.c.b16 %v1597, %v1596
  %v1904 = vpack.c.b16 %v1599, %v1598
  %v1905 = vpack.c.b16 %v1601, %v1600
  %v1906 = vpack.c.b16 %v1603, %v1602
  %v1907 = vpack.c.b16 %v1605, %v1604
  %v1908 = vpack.c.b16 %v1607, %v1606
  %v1909 = vpack.c.b16 %v1609, %v1608
  %v1910 = vpack.c.b16 %v1611, %v1610
  %v1911 = vpack.c.b16 %v1613, %v1612
  %v1912 = vpack.c.b16 %v1615, %v1614
  %v1913 = vpack.c.b16 %v1617, %v1616
  %v1914 = vpack.c.b16 %v1619, %v1618
  %v1915 = vpack.c.b16 %v1621, %v1620
  %v1916 = vpack.c.b16 %v1623, %v1622
  %v1917 = vpack.c.b16 %v1625, %v1624
  %v1918 = vpack.c.b16 %v1627, %v1626
  %v1919 = vpack.c.b16 %v1629, %v1628
  %v1920 = vpack.c.b16 %v1631, %v1630
  %v1921 = vpack.c.b16 %v1633, %v1632
  %v1922 = vpack.c.b16 %v1635, %v1634
  %v1923 = vpack.c.b16 %v1637, %v1636
  %v1924 = vpack.c.b16 %v1639, %v1638
  %v1925 = vpack.c.b16 %v1641, %v1640
  %v1926 = vpack.c.b16 %v1643, %v1642
  %v1927 = vpack.c.b16 %v1645, %v1644
  %v1928 = vpack.c.b16 %v1647, %v1646
  %v1929 = vpack.c.b16 %v1649, %v1648
  %v1930 = vpack.c.b16 %v1651, %v1650
  %v1931 = vpack.c.b16 %v1653, %v1652
  %v1932 = vpack.c.b16 %v1655, %v1654
  %v1933 = vpack.c.b16 %v1657, %v1656
  %v1934 = vpack.c.b16 %v1659, %v1658
  %v1935 = vpack.c.b16 %v1661, %v1660
  %v1936 = vpack.c.b16 %v1663, %v1662
  %v1937 = vpack.c.b16 %v1665, %v1664
  %v1938 = vpack.c.b16 %v1667, %v1666
  %v1939 = vpack.c.b16 %v1669, %v1668
  %v1940 = vpack.c.b16 %v1671, %v1670
  %v1941 = vpack.c.b16 %v1673, %v1672
  %v1942 = vpack.c.b16 %v1675, %v1674
  %v1943 = vpack.c.b16 %v1677, %v1676
  %v1944 = vpack.c.b16 %v1679, %v1678
  %v1945 = vpack.c.b16 %v1681, %v1680
  %v1946 = vpack.c.b16 %v1683, %v1682
  %v1947 = vpack.c.b16 %v1685, %v1684
  %v1948 = vpack.c.b16 %v1687, %v1686
  %v1949 = vpack.c.b16 %v1689, %v1688
  %v1950 = vpack.c.b16 %v1691, %v1690
  %v1951 = vpack.c.b16 %v1693, %v1692
  %v1952 = vpack.c.b16 %v1695, %v1694
  %v1953 = vpack.c.b16 %v1697, %v1696
  %2210 = vmatprep.subr.bf16.mxu0 0
  %2211 = vmatpush1.bf16.msra.mxu0 %v1698
  %2212 = vmatprep.subr.bf16.mxu0 0
  %2213 = vmatpush1.bf16.msra.mxu0 %v1699
  %2214 = vmatprep.subr.bf16.mxu0 0
  %2215 = vmatpush1.bf16.msra.mxu0 %v1700
  %2216 = vmatprep.subr.bf16.mxu0 0
  %2217 = vmatpush1.bf16.msra.mxu0 %v1701
  %2218 = vmatprep.subr.bf16.mxu0 0
  %2219 = vmatpush1.bf16.msra.mxu0 %v1702
  %2220 = vmatprep.subr.bf16.mxu0 0
  %2221 = vmatpush1.bf16.msra.mxu0 %v1703
  %2222 = vmatprep.subr.bf16.mxu0 0
  %2223 = vmatpush1.bf16.msra.mxu0 %v1704
  %2224 = vmatprep.subr.bf16.mxu0 0
  %2225 = vmatpush1.bf16.msra.mxu0 %v1705
  %2226 = vmatprep.subr.bf16.mxu0 0
  %2227 = vmatpush1.bf16.msra.mxu0 %v1706
  %2228 = vmatprep.subr.bf16.mxu0 0
  %2229 = vmatpush1.bf16.msra.mxu0 %v1707
  %2230 = vmatprep.subr.bf16.mxu0 0
  %2231 = vmatpush1.bf16.msra.mxu0 %v1708
  %2232 = vmatprep.subr.bf16.mxu0 0
  %2233 = vmatpush1.bf16.msra.mxu0 %v1709
  %2234 = vmatprep.subr.bf16.mxu0 0
  %2235 = vmatpush1.bf16.msra.mxu0 %v1710
  %2236 = vmatprep.subr.bf16.mxu0 0
  %2237 = vmatpush1.bf16.msra.mxu0 %v1711
  %2238 = vmatprep.subr.bf16.mxu0 0
  %2239 = vmatpush1.bf16.msra.mxu0 %v1712
  %2240 = vmatprep.subr.bf16.mxu0 0
  %2241 = vmatpush1.bf16.msra.mxu0 %v1713
  %2242 = vmatprep.mubr.bf16.mxu0 %v611
  %2243 = vmatmul.mubr.bf16.gmra.mrb[0].mxu0 %v610
  %v2244 = vpop.f32.mrb[0].mxu0
  %v2245 = vadd.f32 %v560, %v2244
  %v2246 = vpop.f32.mrb[0].mxu0
  %v2247 = vpop.f32.mrb[0].mxu0
  %v2248 = vpop.f32.mrb[0].mxu0
  %2249 = vdwg.mxu0
  %2250 = vmatprep.subr.bf16.mxu0 0
  %2251 = vmatpush1.bf16.msra.mxu0 %v1714
  %2252 = vmatprep.subr.bf16.mxu0 0
  %2253 = vmatpush1.bf16.msra.mxu0 %v1715
  %2254 = vmatprep.subr.bf16.mxu0 0
  %2255 = vmatpush1.bf16.msra.mxu0 %v1716
  %2256 = vmatprep.subr.bf16.mxu0 0
  %2257 = vmatpush1.bf16.msra.mxu0 %v1717
  %2258 = vmatprep.subr.bf16.mxu0 0
  %2259 = vmatpush1.bf16.msra.mxu0 %v1718
  %2260 = vmatprep.subr.bf16.mxu0 0
  %2261 = vmatpush1.bf16.msra.mxu0 %v1719
  %2262 = vmatprep.subr.bf16.mxu0 0
  %2263 = vmatpush1.bf16.msra.mxu0 %v1720
  %2264 = vmatprep.subr.bf16.mxu0 0
  %2265 = vmatpush1.bf16.msra.mxu0 %v1721
  %2266 = vmatprep.subr.bf16.mxu0 0
  %2267 = vmatpush1.bf16.msra.mxu0 %v1722
  %2268 = vmatprep.subr.bf16.mxu0 0
  %2269 = vmatpush1.bf16.msra.mxu0 %v1723
  %2270 = vmatprep.subr.bf16.mxu0 0
  %2271 = vmatpush1.bf16.msra.mxu0 %v1724
  %2272 = vmatprep.subr.bf16.mxu0 0
  %2273 = vmatpush1.bf16.msra.mxu0 %v1725
  %2274 = vmatprep.subr.bf16.mxu0 0
  %2275 = vmatpush1.bf16.msra.mxu0 %v1726
  %2276 = vmatprep.subr.bf16.mxu0 0
  %2277 = vmatpush1.bf16.msra.mxu0 %v1727
  %2278 = vmatprep.subr.bf16.mxu0 0
  %2279 = vmatpush1.bf16.msra.mxu0 %v1728
  %2280 = vmatprep.subr.bf16.mxu0 0
  %2281 = vmatpush1.bf16.msra.mxu0 %v1729
  %2282 = vmatprep.mubr.bf16.mxu0 %v613
  %2283 = vmatmul.mubr.bf16.gmra.mrb[0].mxu0 %v612
  %v2284 = vpop.f32.mrb[0].mxu0
  %v2285 = vadd.f32 %v2245, %v2284
  %v2286 = vpop.f32.mrb[0].mxu0
  %v2287 = vpop.f32.mrb[0].mxu0
  %v2288 = vpop.f32.mrb[0].mxu0
  %2289 = vdwg.mxu0
  %2290 = vmatprep.subr.bf16.mxu0 0
  %2291 = vmatpush1.bf16.msra.mxu0 %v1730
  %2292 = vmatprep.subr.bf16.mxu0 0
  %2293 = vmatpush1.bf16.msra.mxu0 %v1731
  %2294 = vmatprep.subr.bf16.mxu0 0
  %2295 = vmatpush1.bf16.msra.mxu0 %v1732
  %2296 = vmatprep.subr.bf16.mxu0 0
  %2297 = vmatpush1.bf16.msra.mxu0 %v1733
  %2298 = vmatprep.subr.bf16.mxu0 0
  %2299 = vmatpush1.bf16.msra.mxu0 %v1734
  %2300 = vmatprep.subr.bf16.mxu0 0
  %2301 = vmatpush1.bf16.msra.mxu0 %v1735
  %2302 = vmatprep.subr.bf16.mxu0 0
  %2303 = vmatpush1.bf16.msra.mxu0 %v1736
  %2304 = vmatprep.subr.bf16.mxu0 0
  %2305 = vmatpush1.bf16.msra.mxu0 %v1737
  %2306 = vmatprep.subr.bf16.mxu0 0
  %2307 = vmatpush1.bf16.msra.mxu0 %v1738
  %2308 = vmatprep.subr.bf16.mxu0 0
  %2309 = vmatpush1.bf16.msra.mxu0 %v1739
  %2310 = vmatprep.subr.bf16.mxu0 0
  %2311 = vmatpush1.bf16.msra.mxu0 %v1740
  %2312 = vmatprep.subr.bf16.mxu0 0
  %2313 = vmatpush1.bf16.msra.mxu0 %v1741
  %2314 = vmatprep.subr.bf16.mxu0 0
  %2315 = vmatpush1.bf16.msra.mxu0 %v1742
  %2316 = vmatprep.subr.bf16.mxu0 0
  %2317 = vmatpush1.bf16.msra.mxu0 %v1743
  %2318 = vmatprep.subr.bf16.mxu0 0
  %2319 = vmatpush1.bf16.msra.mxu0 %v1744
  %2320 = vmatprep.subr.bf16.mxu0 0
  %2321 = vmatpush1.bf16.msra.mxu0 %v1745
  %2322 = vmatprep.mubr.bf16.mxu0 %v615
  %2323 = vmatmul.mubr.bf16.gmra.mrb[0].mxu0 %v614
  %v2324 = vpop.f32.mrb[0].mxu0
  %v2325 = vadd.f32 %v2285, %v2324
  %v2326 = vpop.f32.mrb[0].mxu0
  %v2327 = vpop.f32.mrb[0].mxu0
  %v2328 = vpop.f32.mrb[0].mxu0
  %2329 = vdwg.mxu0
  %2330 = vmatprep.subr.bf16.mxu0 0
  %2331 = vmatpush1.bf16.msra.mxu0 %v1746
  %2332 = vmatprep.subr.bf16.mxu0 0
  %2333 = vmatpush1.bf16.msra.mxu0 %v1747
  %2334 = vmatprep.subr.bf16.mxu0 0
  %2335 = vmatpush1.bf16.msra.mxu0 %v1748
  %2336 = vmatprep.subr.bf16.mxu0 0
  %2337 = vmatpush1.bf16.msra.mxu0 %v1749
  %2338 = vmatprep.subr.bf16.mxu0 0
  %2339 = vmatpush1.bf16.msra.mxu0 %v1750
  %2340 = vmatprep.subr.bf16.mxu0 0
  %2341 = vmatpush1.bf16.msra.mxu0 %v1751
  %2342 = vmatprep.subr.bf16.mxu0 0
  %2343 = vmatpush1.bf16.msra.mxu0 %v1752
  %2344 = vmatprep.subr.bf16.mxu0 0
  %2345 = vmatpush1.bf16.msra.mxu0 %v1753
  %2346 = vmatprep.subr.bf16.mxu0 0
  %2347 = vmatpush1.bf16.msra.mxu0 %v1754
  %2348 = vmatprep.subr.bf16.mxu0 0
  %2349 = vmatpush1.bf16.msra.mxu0 %v1755
  %2350 = vmatprep.subr.bf16.mxu0 0
  %2351 = vmatpush1.bf16.msra.mxu0 %v1756
  %2352 = vmatprep.subr.bf16.mxu0 0
  %2353 = vmatpush1.bf16.msra.mxu0 %v1757
  %2354 = vmatprep.subr.bf16.mxu0 0
  %2355 = vmatpush1.bf16.msra.mxu0 %v1758
  %2356 = vmatprep.subr.bf16.mxu0 0
  %2357 = vmatpush1.bf16.msra.mxu0 %v1759
  %2358 = vmatprep.subr.bf16.mxu0 0
  %2359 = vmatpush1.bf16.msra.mxu0 %v1760
  %2360 = vmatprep.subr.bf16.mxu0 0
  %2361 = vmatpush1.bf16.msra.mxu0 %v1761
  %2362 = vmatprep.mubr.bf16.mxu0 %v617
  %2363 = vmatmul.mubr.bf16.gmra.mrb[0].mxu0 %v616
  %v2364 = vpop.f32.mrb[0].mxu0
  %v2365 = vadd.f32 %v2325, %v2364
  %v2366 = vpop.f32.mrb[0].mxu0
  %v2367 = vpop.f32.mrb[0].mxu0
  %v2368 = vpop.f32.mrb[0].mxu0
  %2369 = vdwg.mxu0
  %2370 = vmatprep.subr.bf16.mxu0 0
  %2371 = vmatpush1.bf16.msra.mxu0 %v1762
  %2372 = vmatprep.subr.bf16.mxu0 0
  %2373 = vmatpush1.bf16.msra.mxu0 %v1763
  %2374 = vmatprep.subr.bf16.mxu0 0
  %2375 = vmatpush1.bf16.msra.mxu0 %v1764
  %2376 = vmatprep.subr.bf16.mxu0 0
  %2377 = vmatpush1.bf16.msra.mxu0 %v1765
  %2378 = vmatprep.subr.bf16.mxu0 0
  %2379 = vmatpush1.bf16.msra.mxu0 %v1766
  %2380 = vmatprep.subr.bf16.mxu0 0
  %2381 = vmatpush1.bf16.msra.mxu0 %v1767
  %2382 = vmatprep.subr.bf16.mxu0 0
  %2383 = vmatpush1.bf16.msra.mxu0 %v1768
  %2384 = vmatprep.subr.bf16.mxu0 0
  %2385 = vmatpush1.bf16.msra.mxu0 %v1769
  %2386 = vmatprep.subr.bf16.mxu0 0
  %2387 = vmatpush1.bf16.msra.mxu0 %v1770
  %2388 = vmatprep.subr.bf16.mxu0 0
  %2389 = vmatpush1.bf16.msra.mxu0 %v1771
  %2390 = vmatprep.subr.bf16.mxu0 0
  %2391 = vmatpush1.bf16.msra.mxu0 %v1772
  %2392 = vmatprep.subr.bf16.mxu0 0
  %2393 = vmatpush1.bf16.msra.mxu0 %v1773
  %2394 = vmatprep.subr.bf16.mxu0 0
  %2395 = vmatpush1.bf16.msra.mxu0 %v1774
  %2396 = vmatprep.subr.bf16.mxu0 0
  %2397 = vmatpush1.bf16.msra.mxu0 %v1775
  %2398 = vmatprep.subr.bf16.mxu0 0
  %2399 = vmatpush1.bf16.msra.mxu0 %v1776
  %2400 = vmatprep.subr.bf16.mxu0 0
  %2401 = vmatpush1.bf16.msra.mxu0 %v1777
  %2402 = vmatprep.mubr.bf16.mxu0 %v619
  %2403 = vmatmul.mubr.bf16.gmra.mrb[0].mxu0 %v618
  %v2404 = vpop.f32.mrb[0].mxu0
  %v2405 = vadd.f32 %v2365, %v2404
  %v2406 = vpop.f32.mrb[0].mxu0
  %v2407 = vpop.f32.mrb[0].mxu0
  %v2408 = vpop.f32.mrb[0].mxu0
  %2409 = vdwg.mxu0
  %2410 = vmatprep.subr.bf16.mxu0 0
  %2411 = vmatpush1.bf16.msra.mxu0 %v1778
  %2412 = vmatprep.subr.bf16.mxu0 0
  %2413 = vmatpush1.bf16.msra.mxu0 %v1779
  %2414 = vmatprep.subr.bf16.mxu0 0
  %2415 = vmatpush1.bf16.msra.mxu0 %v1780
  %2416 = vmatprep.subr.bf16.mxu0 0
  %2417 = vmatpush1.bf16.msra.mxu0 %v1781
  %2418 = vmatprep.subr.bf16.mxu0 0
  %2419 = vmatpush1.bf16.msra.mxu0 %v1782
  %2420 = vmatprep.subr.bf16.mxu0 0
  %2421 = vmatpush1.bf16.msra.mxu0 %v1783
  %2422 = vmatprep.subr.bf16.mxu0 0
  %2423 = vmatpush1.bf16.msra.mxu0 %v1784
  %2424 = vmatprep.subr.bf16.mxu0 0
  %2425 = vmatpush1.bf16.msra.mxu0 %v1785
  %2426 = vmatprep.subr.bf16.mxu0 0
  %2427 = vmatpush1.bf16.msra.mxu0 %v1786
  %2428 = vmatprep.subr.bf16.mxu0 0
  %2429 = vmatpush1.bf16.msra.mxu0 %v1787
  %2430 = vmatprep.subr.bf16.mxu0 0
  %2431 = vmatpush1.bf16.msra.mxu0 %v1788
  %2432 = vmatprep.subr.bf16.mxu0 0
  %2433 = vmatpush1.bf16.msra.mxu0 %v1789
  %2434 = vmatprep.subr.bf16.mxu0 0
  %2435 = vmatpush1.bf16.msra.mxu0 %v1790
  %2436 = vmatprep.subr.bf16.mxu0 0
  %2437 = vmatpush1.bf16.msra.mxu0 %v1791
  %2438 = vmatprep.subr.bf16.mxu0 0
  %2439 = vmatpush1.bf16.msra.mxu0 %v1792
  %2440 = vmatprep.subr.bf16.mxu0 0
  %2441 = vmatpush1.bf16.msra.mxu0 %v1793
  %2442 = vmatprep.mubr.bf16.mxu0 %v621
  %2443 = vmatmul.mubr.bf16.gmra.mrb[0].mxu0 %v620
  %v2444 = vpop.f32.mrb[0].mxu0
  %v2445 = vadd.f32 %v2405, %v2444
  %v2446 = vpop.f32.mrb[0].mxu0
  %v2447 = vpop.f32.mrb[0].mxu0
  %v2448 = vpop.f32.mrb[0].mxu0
  %2449 = vdwg.mxu0
  %2450 = vmatprep.subr.bf16.mxu0 0
  %2451 = vmatpush1.bf16.msra.mxu0 %v1794
  %2452 = vmatprep.subr.bf16.mxu0 0
  %2453 = vmatpush1.bf16.msra.mxu0 %v1795
  %2454 = vmatprep.subr.bf16.mxu0 0
  %2455 = vmatpush1.bf16.msra.mxu0 %v1796
  %2456 = vmatprep.subr.bf16.mxu0 0
  %2457 = vmatpush1.bf16.msra.mxu0 %v1797
  %2458 = vmatprep.subr.bf16.mxu0 0
  %2459 = vmatpush1.bf16.msra.mxu0 %v1798
  %2460 = vmatprep.subr.bf16.mxu0 0
  %2461 = vmatpush1.bf16.msra.mxu0 %v1799
  %2462 = vmatprep.subr.bf16.mxu0 0
  %2463 = vmatpush1.bf16.msra.mxu0 %v1800
  %2464 = vmatprep.subr.bf16.mxu0 0
  %2465 = vmatpush1.bf16.msra.mxu0 %v1801
  %2466 = vmatprep.subr.bf16.mxu0 0
  %2467 = vmatpush1.bf16.msra.mxu0 %v1802
  %2468 = vmatprep.subr.bf16.mxu0 0
  %2469 = vmatpush1.bf16.msra.mxu0 %v1803
  %2470 = vmatprep.subr.bf16.mxu0 0
  %2471 = vmatpush1.bf16.msra.mxu0 %v1804
  %2472 = vmatprep.subr.bf16.mxu0 0
  %2473 = vmatpush1.bf16.msra.mxu0 %v1805
  %2474 = vmatprep.subr.bf16.mxu0 0
  %2475 = vmatpush1.bf16.msra.mxu0 %v1806
  %2476 = vmatprep.subr.bf16.mxu0 0
  %2477 = vmatpush1.bf16.msra.mxu0 %v1807
  %2478 = vmatprep.subr.bf16.mxu0 0
  %2479 = vmatpush1.bf16.msra.mxu0 %v1808
  %2480 = vmatprep.subr.bf16.mxu0 0
  %2481 = vmatpush1.bf16.msra.mxu0 %v1809
  %2482 = vmatprep.mubr.bf16.mxu0 %v623
  %2483 = vmatmul.mubr.bf16.gmra.mrb[0].mxu0 %v622
  %v2484 = vpop.f32.mrb[0].mxu0
  %v2485 = vadd.f32 %v2445, %v2484
  %v2486 = vpop.f32.mrb[0].mxu0
  %v2487 = vpop.f32.mrb[0].mxu0
  %v2488 = vpop.f32.mrb[0].mxu0
  %2489 = vdwg.mxu0
  %2490 = vmatprep.subr.bf16.mxu0 0
  %2491 = vmatpush1.bf16.msra.mxu0 %v1810
  %2492 = vmatprep.subr.bf16.mxu0 0
  %2493 = vmatpush1.bf16.msra.mxu0 %v1811
  %2494 = vmatprep.subr.bf16.mxu0 0
  %2495 = vmatpush1.bf16.msra.mxu0 %v1812
  %2496 = vmatprep.subr.bf16.mxu0 0
  %2497 = vmatpush1.bf16.msra.mxu0 %v1813
  %2498 = vmatprep.subr.bf16.mxu0 0
  %2499 = vmatpush1.bf16.msra.mxu0 %v1814
  %2500 = vmatprep.subr.bf16.mxu0 0
  %2501 = vmatpush1.bf16.msra.mxu0 %v1815
  %2502 = vmatprep.subr.bf16.mxu0 0
  %2503 = vmatpush1.bf16.msra.mxu0 %v1816
  %2504 = vmatprep.subr.bf16.mxu0 0
  %2505 = vmatpush1.bf16.msra.mxu0 %v1817
  %2506 = vmatprep.subr.bf16.mxu0 0
  %2507 = vmatpush1.bf16.msra.mxu0 %v1818
  %2508 = vmatprep.subr.bf16.mxu0 0
  %2509 = vmatpush1.bf16.msra.mxu0 %v1819
  %2510 = vmatprep.subr.bf16.mxu0 0
  %2511 = vmatpush1.bf16.msra.mxu0 %v1820
  %2512 = vmatprep.subr.bf16.mxu0 0
  %2513 = vmatpush1.bf16.msra.mxu0 %v1821
  %2514 = vmatprep.subr.bf16.mxu0 0
  %2515 = vmatpush1.bf16.msra.mxu0 %v1822
  %2516 = vmatprep.subr.bf16.mxu0 0
  %2517 = vmatpush1.bf16.msra.mxu0 %v1823
  %2518 = vmatprep.subr.bf16.mxu0 0
  %2519 = vmatpush1.bf16.msra.mxu0 %v1824
  %2520 = vmatprep.subr.bf16.mxu0 0
  %2521 = vmatpush1.bf16.msra.mxu0 %v1825
  %2522 = vmatprep.mubr.bf16.mxu0 %v625
  %2523 = vmatmul.mubr.bf16.gmra.mrb[0].mxu0 %v624
  %v2524 = vpop.f32.mrb[0].mxu0
  %v2525 = vadd.f32 %v2485, %v2524
  %v2526 = vpop.f32.mrb[0].mxu0
  %v2527 = vpop.f32.mrb[0].mxu0
  %v2528 = vpop.f32.mrb[0].mxu0
  %2529 = vdwg.mxu0
  %2530 = vmatprep.subr.bf16.mxu0 0
  %2531 = vmatpush1.bf16.msra.mxu0 %v1826
  %2532 = vmatprep.subr.bf16.mxu0 0
  %2533 = vmatpush1.bf16.msra.mxu0 %v1827
  %2534 = vmatprep.subr.bf16.mxu0 0
  %2535 = vmatpush1.bf16.msra.mxu0 %v1828
  %2536 = vmatprep.subr.bf16.mxu0 0
  %2537 = vmatpush1.bf16.msra.mxu0 %v1829
  %2538 = vmatprep.subr.bf16.mxu0 0
  %2539 = vmatpush1.bf16.msra.mxu0 %v1830
  %2540 = vmatprep.subr.bf16.mxu0 0
  %2541 = vmatpush1.bf16.msra.mxu0 %v1831
  %2542 = vmatprep.subr.bf16.mxu0 0
  %2543 = vmatpush1.bf16.msra.mxu0 %v1832
  %2544 = vmatprep.subr.bf16.mxu0 0
  %2545 = vmatpush1.bf16.msra.mxu0 %v1833
  %2546 = vmatprep.subr.bf16.mxu0 0
  %2547 = vmatpush1.bf16.msra.mxu0 %v1834
  %2548 = vmatprep.subr.bf16.mxu0 0
  %2549 = vmatpush1.bf16.msra.mxu0 %v1835
  %2550 = vmatprep.subr.bf16.mxu0 0
  %2551 = vmatpush1.bf16.msra.mxu0 %v1836
  %2552 = vmatprep.subr.bf16.mxu0 0
  %2553 = vmatpush1.bf16.msra.mxu0 %v1837
  %2554 = vmatprep.subr.bf16.mxu0 0
  %2555 = vmatpush1.bf16.msra.mxu0 %v1838
  %2556 = vmatprep.subr.bf16.mxu0 0
  %2557 = vmatpush1.bf16.msra.mxu0 %v1839
  %2558 = vmatprep.subr.bf16.mxu0 0
  %2559 = vmatpush1.bf16.msra.mxu0 %v1840
  %2560 = vmatprep.subr.bf16.mxu0 0
  %2561 = vmatpush1.bf16.msra.mxu0 %v1841
  %2562 = vmatprep.mubr.bf16.mxu0 %v627
  %2563 = vmatmul.mubr.bf16.gmra.mrb[0].mxu0 %v626
  %v2564 = vpop.f32.mrb[0].mxu0
  %v2565 = vadd.f32 %v2525, %v2564
  %v2566 = vpop.f32.mrb[0].mxu0
  %v2567 = vpop.f32.mrb[0].mxu0
  %v2568 = vpop.f32.mrb[0].mxu0
  %2569 = vdwg.mxu0
  %2570 = vmatprep.subr.bf16.mxu0 0
  %2571 = vmatpush1.bf16.msra.mxu0 %v1842
  %2572 = vmatprep.subr.bf16.mxu0 0
  %2573 = vmatpush1.bf16.msra.mxu0 %v1843
  %2574 = vmatprep.subr.bf16.mxu0 0
  %2575 = vmatpush1.bf16.msra.mxu0 %v1844
  %2576 = vmatprep.subr.bf16.mxu0 0
  %2577 = vmatpush1.bf16.msra.mxu0 %v1845
  %2578 = vmatprep.subr.bf16.mxu0 0
  %2579 = vmatpush1.bf16.msra.mxu0 %v1846
  %2580 = vmatprep.subr.bf16.mxu0 0
  %2581 = vmatpush1.bf16.msra.mxu0 %v1847
  %2582 = vmatprep.subr.bf16.mxu0 0
  %2583 = vmatpush1.bf16.msra.mxu0 %v1848
  %2584 = vmatprep.subr.bf16.mxu0 0
  %2585 = vmatpush1.bf16.msra.mxu0 %v1849
  %2586 = vmatprep.subr.bf16.mxu0 0
  %2587 = vmatpush1.bf16.msra.mxu0 %v1850
  %2588 = vmatprep.subr.bf16.mxu0 0
  %2589 = vmatpush1.bf16.msra.mxu0 %v1851
  %2590 = vmatprep.subr.bf16.mxu0 0
  %2591 = vmatpush1.bf16.msra.mxu0 %v1852
  %2592 = vmatprep.subr.bf16.mxu0 0
  %2593 = vmatpush1.bf16.msra.mxu0 %v1853
  %2594 = vmatprep.subr.bf16.mxu0 0
  %2595 = vmatpush1.bf16.msra.mxu0 %v1854
  %2596 = vmatprep.subr.bf16.mxu0 0
  %2597 = vmatpush1.bf16.msra.mxu0 %v1855
  %2598 = vmatprep.subr.bf16.mxu0 0
  %2599 = vmatpush1.bf16.msra.mxu0 %v1856
  %2600 = vmatprep.subr.bf16.mxu0 0
  %2601 = vmatpush1.bf16.msra.mxu0 %v1857
  %2602 = vmatprep.mubr.bf16.mxu0 %v629
  %2603 = vmatmul.mubr.bf16.gmra.mrb[0].mxu0 %v628
  %v2604 = vpop.f32.mrb[0].mxu0
  %v2605 = vadd.f32 %v2565, %v2604
  %v2606 = vpop.f32.mrb[0].mxu0
  %v2607 = vpop.f32.mrb[0].mxu0
  %v2608 = vpop.f32.mrb[0].mxu0
  %2609 = vdwg.mxu0
  %2610 = vmatprep.subr.bf16.mxu0 0
  %2611 = vmatpush1.bf16.msra.mxu0 %v1858
  %2612 = vmatprep.subr.bf16.mxu0 0
  %2613 = vmatpush1.bf16.msra.mxu0 %v1859
  %2614 = vmatprep.subr.bf16.mxu0 0
  %2615 = vmatpush1.bf16.msra.mxu0 %v1860
  %2616 = vmatprep.subr.bf16.mxu0 0
  %2617 = vmatpush1.bf16.msra.mxu0 %v1861
  %2618 = vmatprep.subr.bf16.mxu0 0
  %2619 = vmatpush1.bf16.msra.mxu0 %v1862
  %2620 = vmatprep.subr.bf16.mxu0 0
  %2621 = vmatpush1.bf16.msra.mxu0 %v1863
  %2622 = vmatprep.subr.bf16.mxu0 0
  %2623 = vmatpush1.bf16.msra.mxu0 %v1864
  %2624 = vmatprep.subr.bf16.mxu0 0
  %2625 = vmatpush1.bf16.msra.mxu0 %v1865
  %2626 = vmatprep.subr.bf16.mxu0 0
  %2627 = vmatpush1.bf16.msra.mxu0 %v1866
  %2628 = vmatprep.subr.bf16.mxu0 0
  %2629 = vmatpush1.bf16.msra.mxu0 %v1867
  %2630 = vmatprep.subr.bf16.mxu0 0
  %2631 = vmatpush1.bf16.msra.mxu0 %v1868
  %2632 = vmatprep.subr.bf16.mxu0 0
  %2633 = vmatpush1.bf16.msra.mxu0 %v1869
  %2634 = vmatprep.subr.bf16.mxu0 0
  %2635 = vmatpush1.bf16.msra.mxu0 %v1870
  %2636 = vmatprep.subr.bf16.mxu0 0
  %2637 = vmatpush1.bf16.msra.mxu0 %v1871
  %2638 = vmatprep.subr.bf16.mxu0 0
  %2639 = vmatpush1.bf16.msra.mxu0 %v1872
  %2640 = vmatprep.subr.bf16.mxu0 0
  %2641 = vmatpush1.bf16.msra.mxu0 %v1873
  %2642 = vmatprep.mubr.bf16.mxu0 %v631
  %2643 = vmatmul.mubr.bf16.gmra.mrb[0].mxu0 %v630
  %v2644 = vpop.f32.mrb[0].mxu0
  %v2645 = vadd.f32 %v2605, %v2644
  %v2646 = vpop.f32.mrb[0].mxu0
  %v2647 = vpop.f32.mrb[0].mxu0
  %v2648 = vpop.f32.mrb[0].mxu0
  %2649 = vdwg.mxu0
  %2650 = vmatprep.subr.bf16.mxu0 0
  %2651 = vmatpush1.bf16.msra.mxu0 %v1874
  %2652 = vmatprep.subr.bf16.mxu0 0
  %2653 = vmatpush1.bf16.msra.mxu0 %v1875
  %2654 = vmatprep.subr.bf16.mxu0 0
  %2655 = vmatpush1.bf16.msra.mxu0 %v1876
  %2656 = vmatprep.subr.bf16.mxu0 0
  %2657 = vmatpush1.bf16.msra.mxu0 %v1877
  %2658 = vmatprep.subr.bf16.mxu0 0
  %2659 = vmatpush1.bf16.msra.mxu0 %v1878
  %2660 = vmatprep.subr.bf16.mxu0 0
  %2661 = vmatpush1.bf16.msra.mxu0 %v1879
  %2662 = vmatprep.subr.bf16.mxu0 0
  %2663 = vmatpush1.bf16.msra.mxu0 %v1880
  %2664 = vmatprep.subr.bf16.mxu0 0
  %2665 = vmatpush1.bf16.msra.mxu0 %v1881
  %2666 = vmatprep.subr.bf16.mxu0 0
  %2667 = vmatpush1.bf16.msra.mxu0 %v1882
  %2668 = vmatprep.subr.bf16.mxu0 0
  %2669 = vmatpush1.bf16.msra.mxu0 %v1883
  %2670 = vmatprep.subr.bf16.mxu0 0
  %2671 = vmatpush1.bf16.msra.mxu0 %v1884
  %2672 = vmatprep.subr.bf16.mxu0 0
  %2673 = vmatpush1.bf16.msra.mxu0 %v1885
  %2674 = vmatprep.subr.bf16.mxu0 0
  %2675 = vmatpush1.bf16.msra.mxu0 %v1886
  %2676 = vmatprep.subr.bf16.mxu0 0
  %2677 = vmatpush1.bf16.msra.mxu0 %v1887
  %2678 = vmatprep.subr.bf16.mxu0 0
  %2679 = vmatpush1.bf16.msra.mxu0 %v1888
  %2680 = vmatprep.subr.bf16.mxu0 0
  %2681 = vmatpush1.bf16.msra.mxu0 %v1889
  %2682 = vmatprep.mubr.bf16.mxu0 %v633
  %2683 = vmatmul.mubr.bf16.gmra.mrb[0].mxu0 %v632
  %v2684 = vpop.f32.mrb[0].mxu0
  %v2685 = vadd.f32 %v2645, %v2684
  %v2686 = vpop.f32.mrb[0].mxu0
  %v2687 = vpop.f32.mrb[0].mxu0
  %v2688 = vpop.f32.mrb[0].mxu0
  %2689 = vdwg.mxu0
  %2690 = vmatprep.subr.bf16.mxu0 0
  %2691 = vmatpush1.bf16.msra.mxu0 %v1890
  %2692 = vmatprep.subr.bf16.mxu0 0
  %2693 = vmatpush1.bf16.msra.mxu0 %v1891
  %2694 = vmatprep.subr.bf16.mxu0 0
  %2695 = vmatpush1.bf16.msra.mxu0 %v1892
  %2696 = vmatprep.subr.bf16.mxu0 0
  %2697 = vmatpush1.bf16.msra.mxu0 %v1893
  %2698 = vmatprep.subr.bf16.mxu0 0
  %2699 = vmatpush1.bf16.msra.mxu0 %v1894
  %2700 = vmatprep.subr.bf16.mxu0 0
  %2701 = vmatpush1.bf16.msra.mxu0 %v1895
  %2702 = vmatprep.subr.bf16.mxu0 0
  %2703 = vmatpush1.bf16.msra.mxu0 %v1896
  %2704 = vmatprep.subr.bf16.mxu0 0
  %2705 = vmatpush1.bf16.msra.mxu0 %v1897
  %2706 = vmatprep.subr.bf16.mxu0 0
  %2707 = vmatpush1.bf16.msra.mxu0 %v1898
  %2708 = vmatprep.subr.bf16.mxu0 0
  %2709 = vmatpush1.bf16.msra.mxu0 %v1899
  %2710 = vmatprep.subr.bf16.mxu0 0
  %2711 = vmatpush1.bf16.msra.mxu0 %v1900
  %2712 = vmatprep.subr.bf16.mxu0 0
  %2713 = vmatpush1.bf16.msra.mxu0 %v1901
  %2714 = vmatprep.subr.bf16.mxu0 0
  %2715 = vmatpush1.bf16.msra.mxu0 %v1902
  %2716 = vmatprep.subr.bf16.mxu0 0
  %2717 = vmatpush1.bf16.msra.mxu0 %v1903
  %2718 = vmatprep.subr.bf16.mxu0 0
  %2719 = vmatpush1.bf16.msra.mxu0 %v1904
  %2720 = vmatprep.subr.bf16.mxu0 0
  %2721 = vmatpush1.bf16.msra.mxu0 %v1905
  %2722 = vmatprep.mubr.bf16.mxu0 %v635
  %2723 = vmatmul.mubr.bf16.gmra.mrb[0].mxu0 %v634
  %v2724 = vpop.f32.mrb[0].mxu0
  %v2725 = vadd.f32 %v2685, %v2724
  %v2726 = vpop.f32.mrb[0].mxu0
  %v2727 = vpop.f32.mrb[0].mxu0
  %v2728 = vpop.f32.mrb[0].mxu0
  %2729 = vdwg.mxu0
  %2730 = vmatprep.subr.bf16.mxu0 0
  %2731 = vmatpush1.bf16.msra.mxu0 %v1906
  %2732 = vmatprep.subr.bf16.mxu0 0
  %2733 = vmatpush1.bf16.msra.mxu0 %v1907
  %2734 = vmatprep.subr.bf16.mxu0 0
  %2735 = vmatpush1.bf16.msra.mxu0 %v1908
  %2736 = vmatprep.subr.bf16.mxu0 0
  %2737 = vmatpush1.bf16.msra.mxu0 %v1909
  %2738 = vmatprep.subr.bf16.mxu0 0
  %2739 = vmatpush1.bf16.msra.mxu0 %v1910
  %2740 = vmatprep.subr.bf16.mxu0 0
  %2741 = vmatpush1.bf16.msra.mxu0 %v1911
  %2742 = vmatprep.subr.bf16.mxu0 0
  %2743 = vmatpush1.bf16.msra.mxu0 %v1912
  %2744 = vmatprep.subr.bf16.mxu0 0
  %2745 = vmatpush1.bf16.msra.mxu0 %v1913
  %2746 = vmatprep.subr.bf16.mxu0 0
  %2747 = vmatpush1.bf16.msra.mxu0 %v1914
  %2748 = vmatprep.subr.bf16.mxu0 0
  %2749 = vmatpush1.bf16.msra.mxu0 %v1915
  %2750 = vmatprep.subr.bf16.mxu0 0
  %2751 = vmatpush1.bf16.msra.mxu0 %v1916
  %2752 = vmatprep.subr.bf16.mxu0 0
  %2753 = vmatpush1.bf16.msra.mxu0 %v1917
  %2754 = vmatprep.subr.bf16.mxu0 0
  %2755 = vmatpush1.bf16.msra.mxu0 %v1918
  %2756 = vmatprep.subr.bf16.mxu0 0
  %2757 = vmatpush1.bf16.msra.mxu0 %v1919
  %2758 = vmatprep.subr.bf16.mxu0 0
  %2759 = vmatpush1.bf16.msra.mxu0 %v1920
  %2760 = vmatprep.subr.bf16.mxu0 0
  %2761 = vmatpush1.bf16.msra.mxu0 %v1921
  %2762 = vmatprep.mubr.bf16.mxu0 %v637
  %2763 = vmatmul.mubr.bf16.gmra.mrb[0].mxu0 %v636
  %v2764 = vpop.f32.mrb[0].mxu0
  %v2765 = vadd.f32 %v2725, %v2764
  %v2766 = vpop.f32.mrb[0].mxu0
  %v2767 = vpop.f32.mrb[0].mxu0
  %v2768 = vpop.f32.mrb[0].mxu0
  %2769 = vdwg.mxu0
  %2770 = vmatprep.subr.bf16.mxu0 0
  %2771 = vmatpush1.bf16.msra.mxu0 %v1922
  %2772 = vmatprep.subr.bf16.mxu0 0
  %2773 = vmatpush1.bf16.msra.mxu0 %v1923
  %2774 = vmatprep.subr.bf16.mxu0 0
  %2775 = vmatpush1.bf16.msra.mxu0 %v1924
  %2776 = vmatprep.subr.bf16.mxu0 0
  %2777 = vmatpush1.bf16.msra.mxu0 %v1925
  %2778 = vmatprep.subr.bf16.mxu0 0
  %2779 = vmatpush1.bf16.msra.mxu0 %v1926
  %2780 = vmatprep.subr.bf16.mxu0 0
  %2781 = vmatpush1.bf16.msra.mxu0 %v1927
  %2782 = vmatprep.subr.bf16.mxu0 0
  %2783 = vmatpush1.bf16.msra.mxu0 %v1928
  %2784 = vmatprep.subr.bf16.mxu0 0
  %2785 = vmatpush1.bf16.msra.mxu0 %v1929
  %2786 = vmatprep.subr.bf16.mxu0 0
  %2787 = vmatpush1.bf16.msra.mxu0 %v1930
  %2788 = vmatprep.subr.bf16.mxu0 0
  %2789 = vmatpush1.bf16.msra.mxu0 %v1931
  %2790 = vmatprep.subr.bf16.mxu0 0
  %2791 = vmatpush1.bf16.msra.mxu0 %v1932
  %2792 = vmatprep.subr.bf16.mxu0 0
  %2793 = vmatpush1.bf16.msra.mxu0 %v1933
  %2794 = vmatprep.subr.bf16.mxu0 0
  %2795 = vmatpush1.bf16.msra.mxu0 %v1934
  %2796 = vmatprep.subr.bf16.mxu0 0
  %2797 = vmatpush1.bf16.msra.mxu0 %v1935
  %2798 = vmatprep.subr.bf16.mxu0 0
  %2799 = vmatpush1.bf16.msra.mxu0 %v1936
  %2800 = vmatprep.subr.bf16.mxu0 0
  %2801 = vmatpush1.bf16.msra.mxu0 %v1937
  %2802 = vmatprep.mubr.bf16.mxu0 %v639
  %2803 = vmatmul.mubr.bf16.gmra.mrb[0].mxu0 %v638
  %v2804 = vpop.f32.mrb[0].mxu0
  %v2805 = vadd.f32 %v2765, %v2804
  %v2806 = vpop.f32.mrb[0].mxu0
  %v2807 = vpop.f32.mrb[0].mxu0
  %v2808 = vpop.f32.mrb[0].mxu0
  %2809 = vdwg.mxu0
  %2810 = vmatprep.subr.bf16.mxu0 0
  %2811 = vmatpush1.bf16.msra.mxu0 %v1938
  %2812 = vmatprep.subr.bf16.mxu0 0
  %2813 = vmatpush1.bf16.msra.mxu0 %v1939
  %2814 = vmatprep.subr.bf16.mxu0 0
  %2815 = vmatpush1.bf16.msra.mxu0 %v1940
  %2816 = vmatprep.subr.bf16.mxu0 0
  %2817 = vmatpush1.bf16.msra.mxu0 %v1941
  %2818 = vmatprep.subr.bf16.mxu0 0
  %2819 = vmatpush1.bf16.msra.mxu0 %v1942
  %2820 = vmatprep.subr.bf16.mxu0 0
  %2821 = vmatpush1.bf16.msra.mxu0 %v1943
  %2822 = vmatprep.subr.bf16.mxu0 0
  %2823 = vmatpush1.bf16.msra.mxu0 %v1944
  %2824 = vmatprep.subr.bf16.mxu0 0
  %2825 = vmatpush1.bf16.msra.mxu0 %v1945
  %2826 = vmatprep.subr.bf16.mxu0 0
  %2827 = vmatpush1.bf16.msra.mxu0 %v1946
  %2828 = vmatprep.subr.bf16.mxu0 0
  %2829 = vmatpush1.bf16.msra.mxu0 %v1947
  %2830 = vmatprep.subr.bf16.mxu0 0
  %2831 = vmatpush1.bf16.msra.mxu0 %v1948
  %2832 = vmatprep.subr.bf16.mxu0 0
  %2833 = vmatpush1.bf16.msra.mxu0 %v1949
  %2834 = vmatprep.subr.bf16.mxu0 0
  %2835 = vmatpush1.bf16.msra.mxu0 %v1950
  %2836 = vmatprep.subr.bf16.mxu0 0
  %2837 = vmatpush1.bf16.msra.mxu0 %v1951
  %2838 = vmatprep.subr.bf16.mxu0 0
  %2839 = vmatpush1.bf16.msra.mxu0 %v1952
  %2840 = vmatprep.subr.bf16.mxu0 0
  %2841 = vmatpush1.bf16.msra.mxu0 %v1953
  %2842 = vmatprep.mubr.bf16.mxu0 %v641
  %2843 = vmatmul.mubr.bf16.gmra.mrb[0].mxu0 %v640
  %v2844 = vpop.f32.mrb[0].mxu0
  %v2845 = vadd.f32 %v2805, %v2844
  %v2846 = vpop.f32.mrb[0].mxu0
  %v2847 = vpop.f32.mrb[0].mxu0
  %v2848 = vpop.f32.mrb[0].mxu0
  %2849 = vdwg.mxu0
  %v2850 = vmax.f32 %v2845, 0.0
  %v2851 = vpack.c.bf16 %v2850, %v2850
  %v2852 = vld [vmem:[%s3] sm:$0xf]
  %v2853 = vld [vmem:[%s3 + $0x4] sm:$0xf]
  %v2854 = vld [vmem:[%s3 + $0x8] sm:$0xf]
  %v2855 = vld [vmem:[%s3 + $0xc] sm:$0xf]
  %v2856 = vld [vmem:[%s3 + $0x10] sm:$0xf]
  %v2857 = vld [vmem:[%s3 + $0x14] sm:$0xf]
  %v2858 = vld [vmem:[%s3 + $0x18] sm:$0xf]
  %v2859 = vld [vmem:[%s3 + $0x1c] sm:$0xf]
  %v2860 = vld [vmem:[%s3 + $0x20] sm:$0xf]
  %v2861 = vld [vmem:[%s3 + $0x24] sm:$0xf]
  %v2862 = vld [vmem:[%s3 + $0x28] sm:$0xf]
  %v2863 = vld [vmem:[%s3 + $0x2c] sm:$0xf]
  %v2864 = vld [vmem:[%s3 + $0x30] sm:$0xf]
  %v2865 = vld [vmem:[%s3 + $0x34] sm:$0xf]
  %v2866 = vld [vmem:[%s3 + $0x38] sm:$0xf]
  %v2867 = vld [vmem:[%s3 + $0x3c] sm:$0xf]
  %v2868 = vld [vmem:[%s4] sm:$0x1]
  %v2870 = vlaneseq
  %v2871 = vshrl.u32 %v2870, 7
  %v2872 = vsub.s32 0, %v2871
  %v2873 = vrot.slane %v2868, %v2872
  %v2891 = vunpack.c.l.b16 %v2852
  %v2892 = vunpack.c.l.b16 %v2853
  %v2893 = vunpack.c.l.b16 %v2854
  %v2894 = vunpack.c.l.b16 %v2855
  %v2895 = vunpack.c.l.b16 %v2856
  %v2896 = vunpack.c.l.b16 %v2857
  %v2897 = vunpack.c.l.b16 %v2858
  %v2898 = vunpack.c.l.b16 %v2859
  %v2899 = vunpack.c.l.b16 %v2860
  %v2900 = vunpack.c.l.b16 %v2861
  %v2901 = vunpack.c.l.b16 %v2862
  %v2902 = vunpack.c.l.b16 %v2863
  %v2903 = vunpack.c.l.b16 %v2864
  %v2904 = vunpack.c.l.b16 %v2865
  %v2905 = vunpack.c.l.b16 %v2866
  %v2906 = vunpack.c.l.b16 %v2867
  %v2907 = vpack.c.b16 %v2892, %v2891
  %v2908 = vpack.c.b16 %v2894, %v2893
  %v2909 = vpack.c.b16 %v2896, %v2895
  %v2910 = vpack.c.b16 %v2898, %v2897
  %v2911 = vpack.c.b16 %v2900, %v2899
  %v2912 = vpack.c.b16 %v2902, %v2901
  %v2913 = vpack.c.b16 %v2904, %v2903
  %v2914 = vpack.c.b16 %v2906, %v2905
  %2923 = vmatprep.subr.bf16.mxu0 0
  %2924 = vmatpush1.bf16.msra.mxu0 %v2907
  %2925 = vmatprep.subr.bf16.mxu0 0
  %2926 = vmatpush1.bf16.msra.mxu0 %v2908
  %2927 = vmatprep.subr.bf16.mxu0 0
  %2928 = vmatpush1.bf16.msra.mxu0 %v2909
  %2929 = vmatprep.subr.bf16.mxu0 0
  %2930 = vmatpush1.bf16.msra.mxu0 %v2910
  %2931 = vmatprep.subr.bf16.mxu0 0
  %2932 = vmatpush1.bf16.msra.mxu0 %v2911
  %2933 = vmatprep.subr.bf16.mxu0 0
  %2934 = vmatpush1.bf16.msra.mxu0 %v2912
  %2935 = vmatprep.subr.bf16.mxu0 0
  %2936 = vmatpush1.bf16.msra.mxu0 %v2913
  %2937 = vmatprep.subr.bf16.mxu0 0
  %2938 = vmatpush1.bf16.msra.mxu0 %v2914
  %2939 = vmatprep.subr.bf16.mxu0 0
  %2940 = vmatpush1.bf16.msra.mxu0 0
  %2941 = vmatprep.subr.bf16.mxu0 0
  %2942 = vmatpush1.bf16.msra.mxu0 0
  %2943 = vmatprep.subr.bf16.mxu0 0
  %2944 = vmatpush1.bf16.msra.mxu0 0
  %2945 = vmatprep.subr.bf16.mxu0 0
  %2946 = vmatpush1.bf16.msra.mxu0 0
  %2947 = vmatprep.subr.bf16.mxu0 0
  %2948 = vmatpush1.bf16.msra.mxu0 0
  %2949 = vmatprep.subr.bf16.mxu0 0
  %2950 = vmatpush1.bf16.msra.mxu0 0
  %2951 = vmatprep.subr.bf16.mxu0 0
  %2952 = vmatpush1.bf16.msra.mxu0 0
  %2953 = vmatprep.subr.bf16.mxu0 0
  %2954 = vmatpush1.bf16.msra.mxu0 0
  %2955 = vmatprep.mubr.bf16.mxu0 0
  %2956 = vmatmul.mubr.bf16.gmra.mrb[0].mxu0 %v2851
  %v2957 = vpop.f32.mrb[0].mxu0
  %v2958 = vadd.f32 %v2873, %v2957
  %v2959 = vpop.f32.mrb[0].mxu0
  %v2960 = vpop.f32.mrb[0].mxu0
  %v2961 = vpop.f32.mrb[0].mxu0
  %2962 = vdwg.mxu0
  %v2963 = vmax.f32 %v2958, 0.0
  %v2964 = vpack.c.bf16 %v2963, %v2963
  %v2965 = vld [vmem:[%s5] sm:$0xf]
  %v2966 = vld [vmem:[%s5 + $0x4] sm:$0xf]
  %v2967 = vld [vmem:[%s5 + $0x8] sm:$0xf]
  %v2968 = vld [vmem:[%s5 + $0xc] sm:$0xf]
  %v2969 = vld [vmem:[%s5 + $0x10] sm:$0xf]
  %v2970 = vld [vmem:[%s5 + $0x14] sm:$0xf]
  %v2971 = vld [vmem:[%s5 + $0x18] sm:$0xf]
  %v2972 = vld [vmem:[%s5 + $0x1c] sm:$0xf]
  %v2973 = vld [vmem:[%s5 + $0x20] sm:$0xf]
  %v2974 = vld [vmem:[%s5 + $0x24] sm:$0xf]
  %v2975 = vld [vmem:[%s5 + $0x28] sm:$0xf]
  %v2976 = vld [vmem:[%s5 + $0x2c] sm:$0xf]
  %v2977 = vld [vmem:[%s5 + $0x30] sm:$0xf]
  %v2978 = vld [vmem:[%s5 + $0x34] sm:$0xf]
  %v2979 = vld [vmem:[%s5 + $0x38] sm:$0xf]
  %v2980 = vld [vmem:[%s5 + $0x3c] sm:$0xf]
  %v2981 = vld [vmem:[%s6] sm:$0x1]
  %v2983 = vlaneseq
  %v2984 = vshrl.u32 %v2983, 7
  %v2985 = vsub.s32 0, %v2984
  %v2986 = vrot.slane %v2981, %v2985
  %v3004 = vunpack.c.l.b16 %v2965
  %v3005 = vunpack.c.l.b16 %v2966
  %v3006 = vunpack.c.l.b16 %v2967
  %v3007 = vunpack.c.l.b16 %v2968
  %v3008 = vunpack.c.l.b16 %v2969
  %v3009 = vunpack.c.l.b16 %v2970
  %v3010 = vunpack.c.l.b16 %v2971
  %v3011 = vunpack.c.l.b16 %v2972
  %v3012 = vunpack.c.l.b16 %v2973
  %v3013 = vunpack.c.l.b16 %v2974
  %v3014 = vunpack.c.l.b16 %v2975
  %v3015 = vunpack.c.l.b16 %v2976
  %v3016 = vunpack.c.l.b16 %v2977
  %v3017 = vunpack.c.l.b16 %v2978
  %v3018 = vunpack.c.l.b16 %v2979
  %v3019 = vunpack.c.l.b16 %v2980
  %v3020 = vpack.c.b16 %v3005, %v3004
  %v3021 = vpack.c.b16 %v3007, %v3006
  %v3022 = vpack.c.b16 %v3009, %v3008
  %v3023 = vpack.c.b16 %v3011, %v3010
  %v3024 = vpack.c.b16 %v3013, %v3012
  %v3025 = vpack.c.b16 %v3015, %v3014
  %v3026 = vpack.c.b16 %v3017, %v3016
  %v3027 = vpack.c.b16 %v3019, %v3018
  %3036 = vmatprep.subr.bf16.mxu0 0
  %3037 = vmatpush1.bf16.msra.mxu0 %v3020
  %3038 = vmatprep.subr.bf16.mxu0 0
  %3039 = vmatpush1.bf16.msra.mxu0 %v3021
  %3040 = vmatprep.subr.bf16.mxu0 0
  %3041 = vmatpush1.bf16.msra.mxu0 %v3022
  %3042 = vmatprep.subr.bf16.mxu0 0
  %3043 = vmatpush1.bf16.msra.mxu0 %v3023
  %3044 = vmatprep.subr.bf16.mxu0 0
  %3045 = vmatpush1.bf16.msra.mxu0 %v3024
  %3046 = vmatprep.subr.bf16.mxu0 0
  %3047 = vmatpush1.bf16.msra.mxu0 %v3025
  %3048 = vmatprep.subr.bf16.mxu0 0
  %3049 = vmatpush1.bf16.msra.mxu0 %v3026
  %3050 = vmatprep.subr.bf16.mxu0 0
  %3051 = vmatpush1.bf16.msra.mxu0 %v3027
  %3052 = vmatprep.subr.bf16.mxu0 0
  %3053 = vmatpush1.bf16.msra.mxu0 0
  %3054 = vmatprep.subr.bf16.mxu0 0
  %3055 = vmatpush1.bf16.msra.mxu0 0
  %3056 = vmatprep.subr.bf16.mxu0 0
  %3057 = vmatpush1.bf16.msra.mxu0 0
  %3058 = vmatprep.subr.bf16.mxu0 0
  %3059 = vmatpush1.bf16.msra.mxu0 0
  %3060 = vmatprep.subr.bf16.mxu0 0
  %3061 = vmatpush1.bf16.msra.mxu0 0
  %3062 = vmatprep.subr.bf16.mxu0 0
  %3063 = vmatpush1.bf16.msra.mxu0 0
  %3064 = vmatprep.subr.bf16.mxu0 0
  %3065 = vmatpush1.bf16.msra.mxu0 0
  %3066 = vmatprep.subr.bf16.mxu0 0
  %3067 = vmatpush1.bf16.msra.mxu0 0
  %3068 = vmatprep.mubr.bf16.mxu0 0
  %3069 = vmatmul.mubr.bf16.gmra.mrb[0].mxu0 %v2964
  %v3070 = vpop.f32.mrb[0].mxu0
  %v3071 = vadd.f32 %v2986, %v3070
  %v3072 = vpop.f32.mrb[0].mxu0
  %v3073 = vpop.f32.mrb[0].mxu0
  %v3074 = vpop.f32.mrb[0].mxu0
  %3075 = vdwg.mxu0
  %3076 = vst [vmem:[%s7] sm:$0xff] %v3071
  // Predicated region
  $region30: #{net_forward.5} parent=0 // pred_check
    _
  $region31: #{net_forward.5} parent=0 // pred_check_branch
    %3078 = sbr.rel (0) target = $region33
  $region32: #{net_forward.5} parent=0 // pred_region
    _
  $region33: #{net_forward.5} parent=0 // pred_fallthru
    _
  // Predicated region
  $region34: #{net_forward.5} parent=0 // pred_check
    _
  $region35: #{net_forward.5} parent=0 // pred_check_branch
    %3080 = sbr.rel (0) target = $region37
  $region36: #{net_forward.5} parent=0 // pred_region
    _
  $region37: #{net_forward.5} parent=0 // pred_fallthru
    _

</llo_original>
